<compile_context>
chip_gen: v6e
topology: v6e:2x2x1
jax: 0.10.0
libtpu: 0.0.40
codegen_flags: <defaults>
</compile_context>

<pallas_src>
import functools

import jax
import jax.numpy as jnp
import numpy as np
from jax import lax
from jax.experimental import pallas as pl
from jax.experimental.pallas import tpu as pltpu

CP = 128  # lane-dense padded channel / K width (Cout 32 -> 128, K1 27 -> 128)


# ----------------------------------------------------------------------------
# Fused Pallas kernel: stem conv + residual block + global average pool
# ----------------------------------------------------------------------------
def encoder_kernel(xs1_ref, w1_ref, t1_ref, w2_ref, t2_ref, w3_ref, t3_ref,
                   o_ref, apad_ref, *, imgs, H, W):
    """`imgs` images per grid step; batch folded into the matmul M dimension.

    xs1_ref : (imgs, H*W, 128) bf16  layer-1 im2col LHS (K=9*Cin padded to 128),
                                     built lane-dense in the XLA wrapper
    w1_ref  : (128, 128)       bf16  stem weights, BN scale folded, K/Cout padded
    w2_ref  : (9, 128, 128)    bf16  conv2 per-tap weights (kh*3+kw, Cin_p, Cout_p)
    w3_ref  : (9, 128, 128)    bf16  conv3 per-tap weights
    tK_ref  : (1, 128)         f32   folded BN shifts (zero in padded channels)
    o_ref   : (1, imgs, 128)   f32   GAP features for this step's images
    apad_ref: (imgs, H+2, W+2, 128) f32  shared padded-activation scratch
                                     (written by layer 2, reused by layer 3)
    """
    HW = H * W
    M = imgs * HW

    # ---- halo-only zeroing ---------------------------------------------------
    # The interior [1:H+1, 1:W+1] is fully overwritten below, so only the 1-wide
    # border strips need zeroing.  Re-zeroed every step so correctness does not
    # depend on how the "parallel" grid axis is split across TensorCores.
    zrow = jnp.zeros((imgs, 1, W + 2, CP), jnp.float32)
    zcol = jnp.zeros((imgs, H, 1, CP), jnp.float32)
    apad_ref[:, 0:1, :, :] = zrow
    apad_ref[:, H + 1:H + 2, :, :] = zrow
    apad_ref[:, 1:H + 1, 0:1, :] = zcol
    apad_ref[:, 1:H + 1, W + 1:W + 2, :] = zcol

    # ---- layer 1: stem conv3x3 + folded BN + ReLU (one lane-dense matmul) ----
    xs1 = xs1_ref[...].reshape(M, CP)                         # bf16, lane-dense
    a1 = jnp.maximum(
        jnp.dot(xs1, w1_ref[...], preferred_element_type=jnp.float32)
        + t1_ref[...], 0.0)                                   # (M, CP) f32

    def conv3x3(w_ref):
        # Cast the padded activation to bf16 ONCE, then take the 9 shifted tap
        # slices and run 9 accumulating (M,128)@(128,128) MXU dots.  No (M,9*C)
        # im2col intermediate; K is lane-aligned for every dot.
        xpad = apad_ref[...].astype(jnp.bfloat16)
        acc = jnp.zeros((M, CP), jnp.float32)
        for kh in range(3):
            for kw in range(3):
                tap = xpad[:, kh:kh + H, kw:kw + W, :].reshape(M, CP)
                acc = acc + jnp.dot(tap, w_ref[kh * 3 + kw],
                                    preferred_element_type=jnp.float32)
        return acc

    # ---- layer 2: conv3x3 + folded BN + ReLU ---------------------------------
    apad_ref[:, 1:H + 1, 1:W + 1, :] = a1.reshape(imgs, H, W, CP)
    a2 = jnp.maximum(conv3x3(w2_ref) + t2_ref[...], 0.0)

    # ---- layer 3: conv3x3 + folded BN + residual(a1) + ReLU ------------------
    apad_ref[:, 1:H + 1, 1:W + 1, :] = a2.reshape(imgs, H, W, CP)
    y3 = jnp.maximum(conv3x3(w3_ref) + t3_ref[...] + a1, 0.0)

    # ---- GAP epilogue: AdaptiveAvgPool2d(1) + view(N, -1) --------------------
    inv_hw = 1.0 / HW
    feats = [jnp.sum(y3[i * HW:(i + 1) * HW, :], axis=0, keepdims=True) * inv_hw
             for i in range(imgs)]
    o_ref[...] = jnp.concatenate(feats, axis=0).reshape(1, imgs, CP)


# ----------------------------------------------------------------------------
# Parameter folding / packing helpers
# ----------------------------------------------------------------------------
def fold_conv_bn(w_hwio, bn, eps=1e-5):
    """Fold eval-mode BatchNorm into the conv (f32 weights, f32 shift)."""
    gamma, beta, mean, var = bn
    s = gamma / jnp.sqrt(var + eps)
    return w_hwio * s, (beta - mean * s).astype(jnp.float32)


def _pad_tap_weights(w_hwio_f32):
    """(3,3,Cin,Cout) -> (9, CP, CP) bf16 per-tap weights, zero-padded."""
    kh, kw, cin, cout = w_hwio_f32.shape
    w = w_hwio_f32.reshape(kh * kw, cin, cout)
    w = jnp.pad(w, ((0, 0), (0, CP - cin), (0, CP - cout)))
    return w.astype(jnp.bfloat16)


def _im2col_layer1(x_nhwc):
    """Lane-dense bf16 layer-1 LHS: (N, H*W, CP) with K = 9*Cin padded to CP."""
    N, H, W, cin = x_nhwc.shape
    xp = jnp.pad(x_nhwc, ((0, 0), (1, 1), (1, 1), (0, 0)))
    cols = [xp[:, kh:kh + H, kw:kw + W, :].reshape(N, H * W, cin)
            for kh in range(3) for kw in range(3)]
    xs = jnp.concatenate(cols, axis=-1)                       # (N, HW, 9*Cin)
    xs = jnp.pad(xs, ((0, 0), (0, 0), (0, CP - 9 * cin)))
    return xs.astype(jnp.bfloat16)


def init_params(key, cin=3, c=32):
    ks = jax.random.split(key, 16)

    def bn(k, ch):
        k1, k2, k3, k4 = jax.random.split(k, 4)
        gamma = 1.0 + 0.1 * jax.random.normal(k1, (ch,), jnp.float32)
        beta = 0.1 * jax.random.normal(k2, (ch,), jnp.float32)
        mean = 0.1 * jax.random.normal(k3, (ch,), jnp.float32)
        var = 1.0 + 0.5 * jax.random.uniform(k4, (ch,), jnp.float32)
        return (gamma, beta, mean, var)

    return {
        "conv1": 0.2 * jax.random.normal(ks[0], (3, 3, cin, c), jnp.float32),
        "bn1": bn(ks[1], c),
        "conv2": 0.1 * jax.random.normal(ks[2], (3, 3, c, c), jnp.float32),
        "bn2": bn(ks[3], c),
        "conv3": 0.1 * jax.random.normal(ks[4], (3, 3, c, c), jnp.float32),
        "bn3": bn(ks[5], c),
    }


# ----------------------------------------------------------------------------
# modelEncoder.forward equivalent (single fused pallas_call)
# ----------------------------------------------------------------------------
def model_encoder_forward(x_nchw, params):
    """x = self.features(x); x = x.view(x.size(0), -1); return ('not_used', x)"""
    # NCHW (PyTorch) -> NHWC (kernel layout)
    x = jnp.transpose(x_nchw, (0, 2, 3, 1)).astype(jnp.float32)
    N, H, W, Cin = x.shape
    C = params["conv1"].shape[-1]
    HW = H * W
    assert 9 * Cin <= CP and C <= CP

    # Fold BN into the convs; pad Cout (and layer-1 K) to 128 lanes.
    w1, t1 = fold_conv_bn(params["conv1"], params["bn1"])
    w2, t2 = fold_conv_bn(params["conv2"], params["bn2"])
    w3, t3 = fold_conv_bn(params["conv3"], params["bn3"])

    w1f = jnp.pad(w1.reshape(9 * Cin, C),
                  ((0, CP - 9 * Cin), (0, CP - C))).astype(jnp.bfloat16)
    w2f = _pad_tap_weights(w2)
    w3f = _pad_tap_weights(w3)
    t1r, t2r, t3r = [jnp.pad(t, (0, CP - C)).reshape(1, CP) for t in (t1, t2, t3)]

    # Lane-dense layer-1 LHS built once in XLA (fused with transpose/pad).
    xs1 = _im2col_layer1(x)                                   # (N, HW, CP) bf16

    # Fold the batch into the matmul M dimension.  Keep 2 grid steps when
    # possible so both v7x TensorCores get work on the "parallel" axis; the
    # extra step is only ~0.35us overhead on single-TC v5e/v6e.
    num_steps = 2 if N >= 2 else 1
    imgs = pl.cdiv(N, num_steps)
    n_pad = num_steps * imgs
    if n_pad != N:
        xs1 = jnp.pad(xs1, ((0, n_pad - N), (0, 0), (0, 0)))

    kernel = functools.partial(encoder_kernel, imgs=imgs, H=H, W=W)

    flops = 2 * n_pad * HW * CP * (CP + 2 * 9 * CP)
    bytes_accessed = (xs1.size * 2
                      + (w1f.size + w2f.size + w3f.size) * 2
                      + (t1r.size + t2r.size + t3r.size) * 4
                      + n_pad * CP * 4)

    out = pl.pallas_call(
        kernel,
        out_shape=jax.ShapeDtypeStruct((num_steps, imgs, CP), jnp.float32),
        grid=(num_steps,),
        in_specs=[
            pl.BlockSpec((imgs, HW, CP), lambda n: (n, 0, 0)),   # layer-1 LHS
            pl.BlockSpec((CP, CP), lambda n: (0, 0)),            # w1
            pl.BlockSpec((1, CP), lambda n: (0, 0)),             # t1
            pl.BlockSpec((9, CP, CP), lambda n: (0, 0, 0)),      # w2 (per tap)
            pl.BlockSpec((1, CP), lambda n: (0, 0)),             # t2
            pl.BlockSpec((9, CP, CP), lambda n: (0, 0, 0)),      # w3 (per tap)
            pl.BlockSpec((1, CP), lambda n: (0, 0)),             # t3
        ],
        out_specs=pl.BlockSpec((1, imgs, CP), lambda n: (n, 0, 0)),
        scratch_shapes=[
            pltpu.VMEM((imgs, H + 2, W + 2, CP), jnp.float32),   # shared padded act
        ],
        compiler_params=pltpu.CompilerParams(
            dimension_semantics=("parallel",),
            vmem_limit_bytes=32 * 1024 * 1024,
        ),
        cost_estimate=pl.CostEstimate(
            flops=flops, transcendentals=0, bytes_accessed=bytes_accessed),
    )(xs1, w1f, t1r, w2f, t2r, w3f, t3r)

    feat = out.reshape(n_pad, CP)[:N, :C]
    return ("not_used", feat)


# ----------------------------------------------------------------------------
# Pure-JAX reference (same bf16 matmul inputs, f32 accumulation/epilogue)
# ----------------------------------------------------------------------------
def _conv_bf16(x_f32, w_f32):
    return lax.conv_general_dilated(
        x_f32.astype(jnp.bfloat16), w_f32.astype(jnp.bfloat16),
        window_strides=(1, 1), padding="SAME",
        dimension_numbers=("NHWC", "HWIO", "NHWC"),
        preferred_element_type=jnp.float32)


def model_encoder_ref(x_nchw, params):
    x = jnp.transpose(x_nchw, (0, 2, 3, 1)).astype(jnp.float32)
    w1, t1 = fold_conv_bn(params["conv1"], params["bn1"])
    w2, t2 = fold_conv_bn(params["conv2"], params["bn2"])
    w3, t3 = fold_conv_bn(params["conv3"], params["bn3"])

    a1 = jnp.maximum(_conv_bf16(x, w1) + t1, 0.0)
    a2 = jnp.maximum(_conv_bf16(a1, w2) + t2, 0.0)
    y3 = jnp.maximum(_conv_bf16(a2, w3) + t3 + a1, 0.0)
    return jnp.mean(y3, axis=(1, 2))


# ----------------------------------------------------------------------------
if __name__ == "__main__":
    key = jax.random.PRNGKey(0)
    kx, kp = jax.random.split(key)

    N, C_IN, H, W = 4, 3, 16, 16          # PyTorch NCHW input
    C_FEAT = 32                            # encoder width

    x = jax.random.normal(kx, (N, C_IN, H, W), jnp.float32)
    params = init_params(kp, cin=C_IN, c=C_FEAT)

    tag, feat = model_encoder_forward(x, params)
    feat = jax.block_until_ready(feat)

    assert tag == "not_used"
    assert feat.shape == (N, C_FEAT), feat.shape

    ref = jax.block_until_ready(model_encoder_ref(x, params))
    np.testing.assert_allclose(np.asarray(feat), np.asarray(ref), atol=1e-2, rtol=1e-2)

    print("KERNEL_OK")
</pallas_src>

<mosaic_0001>
module attributes {stable_mosaic.version = 11 : i64} {
  func.func @encoder_kernel(%arg0: i32, %arg1: memref<2x256x128xbf16, #tpu.memory_space<vmem>>, %arg2: memref<128x128xbf16, #tpu.memory_space<vmem>>, %arg3: memref<1x128xf32, #tpu.memory_space<vmem>>, %arg4: memref<9x128x128xbf16, #tpu.memory_space<vmem>>, %arg5: memref<1x128xf32, #tpu.memory_space<vmem>>, %arg6: memref<9x128x128xbf16, #tpu.memory_space<vmem>>, %arg7: memref<1x128xf32, #tpu.memory_space<vmem>>, %arg8: memref<1x2x128xf32, #tpu.memory_space<vmem>>, %arg9: memref<2x18x18x128xf32, #tpu.memory_space<vmem>>) attributes {dimension_semantics = [#tpu.dimension_semantics<parallel>], iteration_bounds = array<i64: 2>, scalar_prefetch = 0 : i64, scratch_operands = 1 : i64, tpu.core_type = #tpu.core_type<tc>, window_params = [{transform_indices = @transform_0, window_bounds = array<i64: 2, 256, 128>}, {pipeline_mode = #tpu.pipeline_mode<synchronous>, transform_indices = @transform_1, window_bounds = array<i64: 128, 128>}, {pipeline_mode = #tpu.pipeline_mode<synchronous>, transform_indices = @transform_2, window_bounds = array<i64: 1, 128>}, {pipeline_mode = #tpu.pipeline_mode<synchronous>, transform_indices = @transform_3, window_bounds = array<i64: 9, 128, 128>}, {pipeline_mode = #tpu.pipeline_mode<synchronous>, transform_indices = @transform_4, window_bounds = array<i64: 1, 128>}, {pipeline_mode = #tpu.pipeline_mode<synchronous>, transform_indices = @transform_5, window_bounds = array<i64: 9, 128, 128>}, {pipeline_mode = #tpu.pipeline_mode<synchronous>, transform_indices = @transform_6, window_bounds = array<i64: 1, 128>}, {transform_indices = @transform_7, window_bounds = array<i64: 1, 2, 128>}]} {
    %cst = arith.constant 0.000000e+00 : f32
    %0 = vector.broadcast %cst : f32 to vector<2x1x18x128xf32>
    %cst_0 = arith.constant 0.000000e+00 : f32
    %1 = vector.broadcast %cst_0 : f32 to vector<2x16x1x128xf32>
    %c0 = arith.constant 0 : index
    %c0_1 = arith.constant 0 : index
    %c0_2 = arith.constant 0 : index
    %c0_3 = arith.constant 0 : index
    %2 = vector.load %arg9[%c0, %c0_1, %c0_2, %c0_3] : memref<2x18x18x128xf32, #tpu.memory_space<vmem>>, vector<2x1x18x128xf32>
    tpu.vector_store %arg9[%c0, %c0_1, %c0_2, %c0_3], %0 {strides = array<i32>} : memref<2x18x18x128xf32, #tpu.memory_space<vmem>>, vector<2x1x18x128xf32>,
    %c0_4 = arith.constant 0 : index
    %c17 = arith.constant 17 : index
    %c0_5 = arith.constant 0 : index
    %c0_6 = arith.constant 0 : index
    %3 = vector.load %arg9[%c0_4, %c17, %c0_5, %c0_6] : memref<2x18x18x128xf32, #tpu.memory_space<vmem>>, vector<2x1x18x128xf32>
    tpu.vector_store %arg9[%c0_4, %c17, %c0_5, %c0_6], %0 {strides = array<i32>} : memref<2x18x18x128xf32, #tpu.memory_space<vmem>>, vector<2x1x18x128xf32>,
    %c0_7 = arith.constant 0 : index
    %c1 = arith.constant 1 : index
    %c0_8 = arith.constant 0 : index
    %c0_9 = arith.constant 0 : index
    %4 = vector.load %arg9[%c0_7, %c1, %c0_8, %c0_9] : memref<2x18x18x128xf32, #tpu.memory_space<vmem>>, vector<2x16x1x128xf32>
    tpu.vector_store %arg9[%c0_7, %c1, %c0_8, %c0_9], %1 {strides = array<i32>} : memref<2x18x18x128xf32, #tpu.memory_space<vmem>>, vector<2x16x1x128xf32>,
    %c0_10 = arith.constant 0 : index
    %c1_11 = arith.constant 1 : index
    %c17_12 = arith.constant 17 : index
    %c0_13 = arith.constant 0 : index
    %5 = vector.load %arg9[%c0_10, %c1_11, %c17_12, %c0_13] : memref<2x18x18x128xf32, #tpu.memory_space<vmem>>, vector<2x16x1x128xf32>
    tpu.vector_store %arg9[%c0_10, %c1_11, %c17_12, %c0_13], %1 {strides = array<i32>} : memref<2x18x18x128xf32, #tpu.memory_space<vmem>>, vector<2x16x1x128xf32>,
    %c0_14 = arith.constant 0 : index
    %c0_15 = arith.constant 0 : index
    %c0_16 = arith.constant 0 : index
    %6 = vector.load %arg1[%c0_14, %c0_15, %c0_16] : memref<2x256x128xbf16, #tpu.memory_space<vmem>>, vector<2x256x128xbf16>
    %7 = vector.shape_cast %6 : vector<2x256x128xbf16> to vector<512x128xbf16>
    %c0_17 = arith.constant 0 : index
    %c0_18 = arith.constant 0 : index
    %8 = vector.load %arg2[%c0_17, %c0_18] : memref<128x128xbf16, #tpu.memory_space<vmem>>, vector<128x128xbf16>
    %cst_19 = arith.constant dense<0.000000e+00> : vector<512x128xf32>
    %9 = tpu.matmul %7, %8, %cst_19 {dimension_numbers = #tpu.dot_dimension_numbers<[1], [0], [0], [1], [0, 0, 1, 1], [], []>} : vector<512x128xbf16>, vector<128x128xbf16>, vector<512x128xf32> -> vector<512x128xf32>
    %c0_20 = arith.constant 0 : index
    %c0_21 = arith.constant 0 : index
    %10 = vector.load %arg3[%c0_20, %c0_21] : memref<1x128xf32, #tpu.memory_space<vmem>>, vector<1x128xf32>
    %11 = vector.broadcast %10 : vector<1x128xf32> to vector<512x128xf32>
    %12 = arith.addf %9, %11 : vector<512x128xf32>
    %cst_22 = arith.constant 0.000000e+00 : f32
    %13 = vector.broadcast %cst_22 : f32 to vector<512x128xf32>
    %14 = arith.maximumf %12, %13 : vector<512x128xf32>
    %15 = vector.shape_cast %14 : vector<512x128xf32> to vector<2x16x16x128xf32>
    %c0_23 = arith.constant 0 : index
    %c1_24 = arith.constant 1 : index
    %c1_25 = arith.constant 1 : index
    %c0_26 = arith.constant 0 : index
    %16 = vector.load %arg9[%c0_23, %c1_24, %c1_25, %c0_26] : memref<2x18x18x128xf32, #tpu.memory_space<vmem>>, vector<2x16x16x128xf32>
    tpu.vector_store %arg9[%c0_23, %c1_24, %c1_25, %c0_26], %15 {strides = array<i32>} : memref<2x18x18x128xf32, #tpu.memory_space<vmem>>, vector<2x16x16x128xf32>,
    %c0_27 = arith.constant 0 : index
    %c0_28 = arith.constant 0 : index
    %c0_29 = arith.constant 0 : index
    %c0_30 = arith.constant 0 : index
    %17 = vector.load %arg9[%c0_27, %c0_28, %c0_29, %c0_30] : memref<2x18x18x128xf32, #tpu.memory_space<vmem>>, vector<2x18x18x128xf32>
    %18 = arith.truncf %17 : vector<2x18x18x128xf32> to vector<2x18x18x128xbf16>
    %cst_31 = arith.constant 0.000000e+00 : f32
    %19 = vector.broadcast %cst_31 : f32 to vector<512x128xf32>
    %20 = vector.extract_strided_slice %18 {offsets = [0, 0, 0, 0], sizes = [2, 16, 16, 128], strides = [1, 1, 1, 1]} : vector<2x18x18x128xbf16> to vector<2x16x16x128xbf16>
    %21 = vector.shape_cast %20 : vector<2x16x16x128xbf16> to vector<512x128xbf16>
    %c0_32 = arith.constant 0 : index
    %c0_33 = arith.constant 0 : index
    %c0_34 = arith.constant 0 : index
    %22 = vector.load %arg4[%c0_32, %c0_33, %c0_34] : memref<9x128x128xbf16, #tpu.memory_space<vmem>>, vector<1x128x128xbf16>
    %23 = vector.shape_cast %22 : vector<1x128x128xbf16> to vector<128x128xbf16>
    %cst_35 = arith.constant dense<0.000000e+00> : vector<512x128xf32>
    %24 = tpu.matmul %21, %23, %cst_35 {dimension_numbers = #tpu.dot_dimension_numbers<[1], [0], [0], [1], [0, 0, 1, 1], [], []>} : vector<512x128xbf16>, vector<128x128xbf16>, vector<512x128xf32> -> vector<512x128xf32>
    %25 = arith.addf %19, %24 : vector<512x128xf32>
    %26 = vector.extract_strided_slice %18 {offsets = [0, 0, 1, 0], sizes = [2, 16, 16, 128], strides = [1, 1, 1, 1]} : vector<2x18x18x128xbf16> to vector<2x16x16x128xbf16>
    %27 = vector.shape_cast %26 : vector<2x16x16x128xbf16> to vector<512x128xbf16>
    %c1_36 = arith.constant 1 : index
    %c0_37 = arith.constant 0 : index
    %c0_38 = arith.constant 0 : index
    %28 = vector.load %arg4[%c1_36, %c0_37, %c0_38] : memref<9x128x128xbf16, #tpu.memory_space<vmem>>, vector<1x128x128xbf16>
    %29 = vector.shape_cast %28 : vector<1x128x128xbf16> to vector<128x128xbf16>
    %cst_39 = arith.constant dense<0.000000e+00> : vector<512x128xf32>
    %30 = tpu.matmul %27, %29, %cst_39 {dimension_numbers = #tpu.dot_dimension_numbers<[1], [0], [0], [1], [0, 0, 1, 1], [], []>} : vector<512x128xbf16>, vector<128x128xbf16>, vector<512x128xf32> -> vector<512x128xf32>
    %31 = arith.addf %25, %30 : vector<512x128xf32>
    %32 = vector.extract_strided_slice %18 {offsets = [0, 0, 2, 0], sizes = [2, 16, 16, 128], strides = [1, 1, 1, 1]} : vector<2x18x18x128xbf16> to vector<2x16x16x128xbf16>
    %33 = vector.shape_cast %32 : vector<2x16x16x128xbf16> to vector<512x128xbf16>
    %c2 = arith.constant 2 : index
    %c0_40 = arith.constant 0 : index
    %c0_41 = arith.constant 0 : index
    %34 = vector.load %arg4[%c2, %c0_40, %c0_41] : memref<9x128x128xbf16, #tpu.memory_space<vmem>>, vector<1x128x128xbf16>
    %35 = vector.shape_cast %34 : vector<1x128x128xbf16> to vector<128x128xbf16>
    %cst_42 = arith.constant dense<0.000000e+00> : vector<512x128xf32>
    %36 = tpu.matmul %33, %35, %cst_42 {dimension_numbers = #tpu.dot_dimension_numbers<[1], [0], [0], [1], [0, 0, 1, 1], [], []>} : vector<512x128xbf16>, vector<128x128xbf16>, vector<512x128xf32> -> vector<512x128xf32>
    %37 = arith.addf %31, %36 : vector<512x128xf32>
    %38 = vector.extract_strided_slice %18 {offsets = [0, 1, 0, 0], sizes = [2, 16, 16, 128], strides = [1, 1, 1, 1]} : vector<2x18x18x128xbf16> to vector<2x16x16x128xbf16>
    %39 = vector.shape_cast %38 : vector<2x16x16x128xbf16> to vector<512x128xbf16>
    %c3 = arith.constant 3 : index
    %c0_43 = arith.constant 0 : index
    %c0_44 = arith.constant 0 : index
    %40 = vector.load %arg4[%c3, %c0_43, %c0_44] : memref<9x128x128xbf16, #tpu.memory_space<vmem>>, vector<1x128x128xbf16>
    %41 = vector.shape_cast %40 : vector<1x128x128xbf16> to vector<128x128xbf16>
    %cst_45 = arith.constant dense<0.000000e+00> : vector<512x128xf32>
    %42 = tpu.matmul %39, %41, %cst_45 {dimension_numbers = #tpu.dot_dimension_numbers<[1], [0], [0], [1], [0, 0, 1, 1], [], []>} : vector<512x128xbf16>, vector<128x128xbf16>, vector<512x128xf32> -> vector<512x128xf32>
    %43 = arith.addf %37, %42 : vector<512x128xf32>
    %44 = vector.extract_strided_slice %18 {offsets = [0, 1, 1, 0], sizes = [2, 16, 16, 128], strides = [1, 1, 1, 1]} : vector<2x18x18x128xbf16> to vector<2x16x16x128xbf16>
    %45 = vector.shape_cast %44 : vector<2x16x16x128xbf16> to vector<512x128xbf16>
    %c4 = arith.constant 4 : index
    %c0_46 = arith.constant 0 : index
    %c0_47 = arith.constant 0 : index
    %46 = vector.load %arg4[%c4, %c0_46, %c0_47] : memref<9x128x128xbf16, #tpu.memory_space<vmem>>, vector<1x128x128xbf16>
    %47 = vector.shape_cast %46 : vector<1x128x128xbf16> to vector<128x128xbf16>
    %cst_48 = arith.constant dense<0.000000e+00> : vector<512x128xf32>
    %48 = tpu.matmul %45, %47, %cst_48 {dimension_numbers = #tpu.dot_dimension_numbers<[1], [0], [0], [1], [0, 0, 1, 1], [], []>} : vector<512x128xbf16>, vector<128x128xbf16>, vector<512x128xf32> -> vector<512x128xf32>
    %49 = arith.addf %43, %48 : vector<512x128xf32>
    %50 = vector.extract_strided_slice %18 {offsets = [0, 1, 2, 0], sizes = [2, 16, 16, 128], strides = [1, 1, 1, 1]} : vector<2x18x18x128xbf16> to vector<2x16x16x128xbf16>
    %51 = vector.shape_cast %50 : vector<2x16x16x128xbf16> to vector<512x128xbf16>
    %c5 = arith.constant 5 : index
    %c0_49 = arith.constant 0 : index
    %c0_50 = arith.constant 0 : index
    %52 = vector.load %arg4[%c5, %c0_49, %c0_50] : memref<9x128x128xbf16, #tpu.memory_space<vmem>>, vector<1x128x128xbf16>
    %53 = vector.shape_cast %52 : vector<1x128x128xbf16> to vector<128x128xbf16>
    %cst_51 = arith.constant dense<0.000000e+00> : vector<512x128xf32>
    %54 = tpu.matmul %51, %53, %cst_51 {dimension_numbers = #tpu.dot_dimension_numbers<[1], [0], [0], [1], [0, 0, 1, 1], [], []>} : vector<512x128xbf16>, vector<128x128xbf16>, vector<512x128xf32> -> vector<512x128xf32>
    %55 = arith.addf %49, %54 : vector<512x128xf32>
    %56 = vector.extract_strided_slice %18 {offsets = [0, 2, 0, 0], sizes = [2, 16, 16, 128], strides = [1, 1, 1, 1]} : vector<2x18x18x128xbf16> to vector<2x16x16x128xbf16>
    %57 = vector.shape_cast %56 : vector<2x16x16x128xbf16> to vector<512x128xbf16>
    %c6 = arith.constant 6 : index
    %c0_52 = arith.constant 0 : index
    %c0_53 = arith.constant 0 : index
    %58 = vector.load %arg4[%c6, %c0_52, %c0_53] : memref<9x128x128xbf16, #tpu.memory_space<vmem>>, vector<1x128x128xbf16>
    %59 = vector.shape_cast %58 : vector<1x128x128xbf16> to vector<128x128xbf16>
    %cst_54 = arith.constant dense<0.000000e+00> : vector<512x128xf32>
    %60 = tpu.matmul %57, %59, %cst_54 {dimension_numbers = #tpu.dot_dimension_numbers<[1], [0], [0], [1], [0, 0, 1, 1], [], []>} : vector<512x128xbf16>, vector<128x128xbf16>, vector<512x128xf32> -> vector<512x128xf32>
    %61 = arith.addf %55, %60 : vector<512x128xf32>
    %62 = vector.extract_strided_slice %18 {offsets = [0, 2, 1, 0], sizes = [2, 16, 16, 128], strides = [1, 1, 1, 1]} : vector<2x18x18x128xbf16> to vector<2x16x16x128xbf16>
    %63 = vector.shape_cast %62 : vector<2x16x16x128xbf16> to vector<512x128xbf16>
    %c7 = arith.constant 7 : index
    %c0_55 = arith.constant 0 : index
    %c0_56 = arith.constant 0 : index
    %64 = vector.load %arg4[%c7, %c0_55, %c0_56] : memref<9x128x128xbf16, #tpu.memory_space<vmem>>, vector<1x128x128xbf16>
    %65 = vector.shape_cast %64 : vector<1x128x128xbf16> to vector<128x128xbf16>
    %cst_57 = arith.constant dense<0.000000e+00> : vector<512x128xf32>
    %66 = tpu.matmul %63, %65, %cst_57 {dimension_numbers = #tpu.dot_dimension_numbers<[1], [0], [0], [1], [0, 0, 1, 1], [], []>} : vector<512x128xbf16>, vector<128x128xbf16>, vector<512x128xf32> -> vector<512x128xf32>
    %67 = arith.addf %61, %66 : vector<512x128xf32>
    %68 = vector.extract_strided_slice %18 {offsets = [0, 2, 2, 0], sizes = [2, 16, 16, 128], strides = [1, 1, 1, 1]} : vector<2x18x18x128xbf16> to vector<2x16x16x128xbf16>
    %69 = vector.shape_cast %68 : vector<2x16x16x128xbf16> to vector<512x128xbf16>
    %c8 = arith.constant 8 : index
    %c0_58 = arith.constant 0 : index
    %c0_59 = arith.constant 0 : index
    %70 = vector.load %arg4[%c8, %c0_58, %c0_59] : memref<9x128x128xbf16, #tpu.memory_space<vmem>>, vector<1x128x128xbf16>
    %71 = vector.shape_cast %70 : vector<1x128x128xbf16> to vector<128x128xbf16>
    %cst_60 = arith.constant dense<0.000000e+00> : vector<512x128xf32>
    %72 = tpu.matmul %69, %71, %cst_60 {dimension_numbers = #tpu.dot_dimension_numbers<[1], [0], [0], [1], [0, 0, 1, 1], [], []>} : vector<512x128xbf16>, vector<128x128xbf16>, vector<512x128xf32> -> vector<512x128xf32>
    %73 = arith.addf %67, %72 : vector<512x128xf32>
    %c0_61 = arith.constant 0 : index
    %c0_62 = arith.constant 0 : index
    %74 = vector.load %arg5[%c0_61, %c0_62] : memref<1x128xf32, #tpu.memory_space<vmem>>, vector<1x128xf32>
    %75 = vector.broadcast %74 : vector<1x128xf32> to vector<512x128xf32>
    %76 = arith.addf %73, %75 : vector<512x128xf32>
    %cst_63 = arith.constant 0.000000e+00 : f32
    %77 = vector.broadcast %cst_63 : f32 to vector<512x128xf32>
    %78 = arith.maximumf %76, %77 : vector<512x128xf32>
    %79 = vector.shape_cast %78 : vector<512x128xf32> to vector<2x16x16x128xf32>
    %c0_64 = arith.constant 0 : index
    %c1_65 = arith.constant 1 : index
    %c1_66 = arith.constant 1 : index
    %c0_67 = arith.constant 0 : index
    %80 = vector.load %arg9[%c0_64, %c1_65, %c1_66, %c0_67] : memref<2x18x18x128xf32, #tpu.memory_space<vmem>>, vector<2x16x16x128xf32>
    tpu.vector_store %arg9[%c0_64, %c1_65, %c1_66, %c0_67], %79 {strides = array<i32>} : memref<2x18x18x128xf32, #tpu.memory_space<vmem>>, vector<2x16x16x128xf32>,
    %c0_68 = arith.constant 0 : index
    %c0_69 = arith.constant 0 : index
    %c0_70 = arith.constant 0 : index
    %c0_71 = arith.constant 0 : index
    %81 = vector.load %arg9[%c0_68, %c0_69, %c0_70, %c0_71] : memref<2x18x18x128xf32, #tpu.memory_space<vmem>>, vector<2x18x18x128xf32>
    %82 = arith.truncf %81 : vector<2x18x18x128xf32> to vector<2x18x18x128xbf16>
    %cst_72 = arith.constant 0.000000e+00 : f32
    %83 = vector.broadcast %cst_72 : f32 to vector<512x128xf32>
    %84 = vector.extract_strided_slice %82 {offsets = [0, 0, 0, 0], sizes = [2, 16, 16, 128], strides = [1, 1, 1, 1]} : vector<2x18x18x128xbf16> to vector<2x16x16x128xbf16>
    %85 = vector.shape_cast %84 : vector<2x16x16x128xbf16> to vector<512x128xbf16>
    %c0_73 = arith.constant 0 : index
    %c0_74 = arith.constant 0 : index
    %c0_75 = arith.constant 0 : index
    %86 = vector.load %arg6[%c0_73, %c0_74, %c0_75] : memref<9x128x128xbf16, #tpu.memory_space<vmem>>, vector<1x128x128xbf16>
    %87 = vector.shape_cast %86 : vector<1x128x128xbf16> to vector<128x128xbf16>
    %cst_76 = arith.constant dense<0.000000e+00> : vector<512x128xf32>
    %88 = tpu.matmul %85, %87, %cst_76 {dimension_numbers = #tpu.dot_dimension_numbers<[1], [0], [0], [1], [0, 0, 1, 1], [], []>} : vector<512x128xbf16>, vector<128x128xbf16>, vector<512x128xf32> -> vector<512x128xf32>
    %89 = arith.addf %83, %88 : vector<512x128xf32>
    %90 = vector.extract_strided_slice %82 {offsets = [0, 0, 1, 0], sizes = [2, 16, 16, 128], strides = [1, 1, 1, 1]} : vector<2x18x18x128xbf16> to vector<2x16x16x128xbf16>
    %91 = vector.shape_cast %90 : vector<2x16x16x128xbf16> to vector<512x128xbf16>
    %c1_77 = arith.constant 1 : index
    %c0_78 = arith.constant 0 : index
    %c0_79 = arith.constant 0 : index
    %92 = vector.load %arg6[%c1_77, %c0_78, %c0_79] : memref<9x128x128xbf16, #tpu.memory_space<vmem>>, vector<1x128x128xbf16>
    %93 = vector.shape_cast %92 : vector<1x128x128xbf16> to vector<128x128xbf16>
    %cst_80 = arith.constant dense<0.000000e+00> : vector<512x128xf32>
    %94 = tpu.matmul %91, %93, %cst_80 {dimension_numbers = #tpu.dot_dimension_numbers<[1], [0], [0], [1], [0, 0, 1, 1], [], []>} : vector<512x128xbf16>, vector<128x128xbf16>, vector<512x128xf32> -> vector<512x128xf32>
    %95 = arith.addf %89, %94 : vector<512x128xf32>
    %96 = vector.extract_strided_slice %82 {offsets = [0, 0, 2, 0], sizes = [2, 16, 16, 128], strides = [1, 1, 1, 1]} : vector<2x18x18x128xbf16> to vector<2x16x16x128xbf16>
    %97 = vector.shape_cast %96 : vector<2x16x16x128xbf16> to vector<512x128xbf16>
    %c2_81 = arith.constant 2 : index
    %c0_82 = arith.constant 0 : index
    %c0_83 = arith.constant 0 : index
    %98 = vector.load %arg6[%c2_81, %c0_82, %c0_83] : memref<9x128x128xbf16, #tpu.memory_space<vmem>>, vector<1x128x128xbf16>
    %99 = vector.shape_cast %98 : vector<1x128x128xbf16> to vector<128x128xbf16>
    %cst_84 = arith.constant dense<0.000000e+00> : vector<512x128xf32>
    %100 = tpu.matmul %97, %99, %cst_84 {dimension_numbers = #tpu.dot_dimension_numbers<[1], [0], [0], [1], [0, 0, 1, 1], [], []>} : vector<512x128xbf16>, vector<128x128xbf16>, vector<512x128xf32> -> vector<512x128xf32>
    %101 = arith.addf %95, %100 : vector<512x128xf32>
    %102 = vector.extract_strided_slice %82 {offsets = [0, 1, 0, 0], sizes = [2, 16, 16, 128], strides = [1, 1, 1, 1]} : vector<2x18x18x128xbf16> to vector<2x16x16x128xbf16>
    %103 = vector.shape_cast %102 : vector<2x16x16x128xbf16> to vector<512x128xbf16>
    %c3_85 = arith.constant 3 : index
    %c0_86 = arith.constant 0 : index
    %c0_87 = arith.constant 0 : index
    %104 = vector.load %arg6[%c3_85, %c0_86, %c0_87] : memref<9x128x128xbf16, #tpu.memory_space<vmem>>, vector<1x128x128xbf16>
    %105 = vector.shape_cast %104 : vector<1x128x128xbf16> to vector<128x128xbf16>
    %cst_88 = arith.constant dense<0.000000e+00> : vector<512x128xf32>
    %106 = tpu.matmul %103, %105, %cst_88 {dimension_numbers = #tpu.dot_dimension_numbers<[1], [0], [0], [1], [0, 0, 1, 1], [], []>} : vector<512x128xbf16>, vector<128x128xbf16>, vector<512x128xf32> -> vector<512x128xf32>
    %107 = arith.addf %101, %106 : vector<512x128xf32>
    %108 = vector.extract_strided_slice %82 {offsets = [0, 1, 1, 0], sizes = [2, 16, 16, 128], strides = [1, 1, 1, 1]} : vector<2x18x18x128xbf16> to vector<2x16x16x128xbf16>
    %109 = vector.shape_cast %108 : vector<2x16x16x128xbf16> to vector<512x128xbf16>
    %c4_89 = arith.constant 4 : index
    %c0_90 = arith.constant 0 : index
    %c0_91 = arith.constant 0 : index
    %110 = vector.load %arg6[%c4_89, %c0_90, %c0_91] : memref<9x128x128xbf16, #tpu.memory_space<vmem>>, vector<1x128x128xbf16>
    %111 = vector.shape_cast %110 : vector<1x128x128xbf16> to vector<128x128xbf16>
    %cst_92 = arith.constant dense<0.000000e+00> : vector<512x128xf32>
    %112 = tpu.matmul %109, %111, %cst_92 {dimension_numbers = #tpu.dot_dimension_numbers<[1], [0], [0], [1], [0, 0, 1, 1], [], []>} : vector<512x128xbf16>, vector<128x128xbf16>, vector<512x128xf32> -> vector<512x128xf32>
    %113 = arith.addf %107, %112 : vector<512x128xf32>
    %114 = vector.extract_strided_slice %82 {offsets = [0, 1, 2, 0], sizes = [2, 16, 16, 128], strides = [1, 1, 1, 1]} : vector<2x18x18x128xbf16> to vector<2x16x16x128xbf16>
    %115 = vector.shape_cast %114 : vector<2x16x16x128xbf16> to vector<512x128xbf16>
    %c5_93 = arith.constant 5 : index
    %c0_94 = arith.constant 0 : index
    %c0_95 = arith.constant 0 : index
    %116 = vector.load %arg6[%c5_93, %c0_94, %c0_95] : memref<9x128x128xbf16, #tpu.memory_space<vmem>>, vector<1x128x128xbf16>
    %117 = vector.shape_cast %116 : vector<1x128x128xbf16> to vector<128x128xbf16>
    %cst_96 = arith.constant dense<0.000000e+00> : vector<512x128xf32>
    %118 = tpu.matmul %115, %117, %cst_96 {dimension_numbers = #tpu.dot_dimension_numbers<[1], [0], [0], [1], [0, 0, 1, 1], [], []>} : vector<512x128xbf16>, vector<128x128xbf16>, vector<512x128xf32> -> vector<512x128xf32>
    %119 = arith.addf %113, %118 : vector<512x128xf32>
    %120 = vector.extract_strided_slice %82 {offsets = [0, 2, 0, 0], sizes = [2, 16, 16, 128], strides = [1, 1, 1, 1]} : vector<2x18x18x128xbf16> to vector<2x16x16x128xbf16>
    %121 = vector.shape_cast %120 : vector<2x16x16x128xbf16> to vector<512x128xbf16>
    %c6_97 = arith.constant 6 : index
    %c0_98 = arith.constant 0 : index
    %c0_99 = arith.constant 0 : index
    %122 = vector.load %arg6[%c6_97, %c0_98, %c0_99] : memref<9x128x128xbf16, #tpu.memory_space<vmem>>, vector<1x128x128xbf16>
    %123 = vector.shape_cast %122 : vector<1x128x128xbf16> to vector<128x128xbf16>
    %cst_100 = arith.constant dense<0.000000e+00> : vector<512x128xf32>
    %124 = tpu.matmul %121, %123, %cst_100 {dimension_numbers = #tpu.dot_dimension_numbers<[1], [0], [0], [1], [0, 0, 1, 1], [], []>} : vector<512x128xbf16>, vector<128x128xbf16>, vector<512x128xf32> -> vector<512x128xf32>
    %125 = arith.addf %119, %124 : vector<512x128xf32>
    %126 = vector.extract_strided_slice %82 {offsets = [0, 2, 1, 0], sizes = [2, 16, 16, 128], strides = [1, 1, 1, 1]} : vector<2x18x18x128xbf16> to vector<2x16x16x128xbf16>
    %127 = vector.shape_cast %126 : vector<2x16x16x128xbf16> to vector<512x128xbf16>
    %c7_101 = arith.constant 7 : index
    %c0_102 = arith.constant 0 : index
    %c0_103 = arith.constant 0 : index
    %128 = vector.load %arg6[%c7_101, %c0_102, %c0_103] : memref<9x128x128xbf16, #tpu.memory_space<vmem>>, vector<1x128x128xbf16>
    %129 = vector.shape_cast %128 : vector<1x128x128xbf16> to vector<128x128xbf16>
    %cst_104 = arith.constant dense<0.000000e+00> : vector<512x128xf32>
    %130 = tpu.matmul %127, %129, %cst_104 {dimension_numbers = #tpu.dot_dimension_numbers<[1], [0], [0], [1], [0, 0, 1, 1], [], []>} : vector<512x128xbf16>, vector<128x128xbf16>, vector<512x128xf32> -> vector<512x128xf32>
    %131 = arith.addf %125, %130 : vector<512x128xf32>
    %132 = vector.extract_strided_slice %82 {offsets = [0, 2, 2, 0], sizes = [2, 16, 16, 128], strides = [1, 1, 1, 1]} : vector<2x18x18x128xbf16> to vector<2x16x16x128xbf16>
    %133 = vector.shape_cast %132 : vector<2x16x16x128xbf16> to vector<512x128xbf16>
    %c8_105 = arith.constant 8 : index
    %c0_106 = arith.constant 0 : index
    %c0_107 = arith.constant 0 : index
    %134 = vector.load %arg6[%c8_105, %c0_106, %c0_107] : memref<9x128x128xbf16, #tpu.memory_space<vmem>>, vector<1x128x128xbf16>
    %135 = vector.shape_cast %134 : vector<1x128x128xbf16> to vector<128x128xbf16>
    %cst_108 = arith.constant dense<0.000000e+00> : vector<512x128xf32>
    %136 = tpu.matmul %133, %135, %cst_108 {dimension_numbers = #tpu.dot_dimension_numbers<[1], [0], [0], [1], [0, 0, 1, 1], [], []>} : vector<512x128xbf16>, vector<128x128xbf16>, vector<512x128xf32> -> vector<512x128xf32>
    %137 = arith.addf %131, %136 : vector<512x128xf32>
    %c0_109 = arith.constant 0 : index
    %c0_110 = arith.constant 0 : index
    %138 = vector.load %arg7[%c0_109, %c0_110] : memref<1x128xf32, #tpu.memory_space<vmem>>, vector<1x128xf32>
    %139 = vector.broadcast %138 : vector<1x128xf32> to vector<512x128xf32>
    %140 = arith.addf %137, %139 : vector<512x128xf32>
    %141 = arith.addf %140, %14 : vector<512x128xf32>
    %cst_111 = arith.constant 0.000000e+00 : f32
    %142 = vector.broadcast %cst_111 : f32 to vector<512x128xf32>
    %143 = arith.maximumf %141, %142 : vector<512x128xf32>
    %144 = vector.extract_strided_slice %143 {offsets = [0, 0], sizes = [256, 128], strides = [1, 1]} : vector<512x128xf32> to vector<256x128xf32>
    %cst_112 = arith.constant dense<0.000000e+00> : vector<128xf32>
    %145 = vector.multi_reduction <add>, %144, %cst_112 [0] : vector<256x128xf32> to vector<128xf32>
    %146 = vector.shape_cast %145 : vector<128xf32> to vector<1x128xf32>
    %cst_113 = arith.constant 3.906250e-03 : f32
    %147 = vector.broadcast %cst_113 : f32 to vector<1x128xf32>
    %148 = arith.mulf %146, %147 : vector<1x128xf32>
    %149 = vector.extract_strided_slice %143 {offsets = [256, 0], sizes = [256, 128], strides = [1, 1]} : vector<512x128xf32> to vector<256x128xf32>
    %cst_114 = arith.constant dense<0.000000e+00> : vector<128xf32>
    %150 = vector.multi_reduction <add>, %149, %cst_114 [0] : vector<256x128xf32> to vector<128xf32>
    %151 = vector.shape_cast %150 : vector<128xf32> to vector<1x128xf32>
    %cst_115 = arith.constant 3.906250e-03 : f32
    %152 = vector.broadcast %cst_115 : f32 to vector<1x128xf32>
    %153 = arith.mulf %151, %152 : vector<1x128xf32>
    %154 = tpu.concatenate %148, %153 in 0 : vector<1x128xf32>, vector<1x128xf32> -> vector<2x128xf32>
    %155 = vector.shape_cast %154 : vector<2x128xf32> to vector<1x2x128xf32>
    %c0_116 = arith.constant 0 : index
    %c0_117 = arith.constant 0 : index
    %c0_118 = arith.constant 0 : index
    %156 = vector.load %arg8[%c0_116, %c0_117, %c0_118] : memref<1x2x128xf32, #tpu.memory_space<vmem>>, vector<1x2x128xf32>
    tpu.vector_store %arg8[%c0_116, %c0_117, %c0_118], %155 {strides = array<i32>} : memref<1x2x128xf32, #tpu.memory_space<vmem>>, vector<1x2x128xf32>,
    return
  }
  func.func @transform_0(%arg0: i32) -> (i32, i32, i32) {
    %c0_i32 = arith.constant 0 : i32
    %c0_i32_0 = arith.constant 0 : i32
    %c0_i32_1 = arith.constant 0 : i32
    return %arg0, %c0_i32, %c0_i32_0 : i32, i32, i32
  }
  func.func @transform_1(%arg0: i32) -> (i32, i32) {
    %c0_i32 = arith.constant 0 : i32
    %c0_i32_0 = arith.constant 0 : i32
    %c0_i32_1 = arith.constant 0 : i32
    return %c0_i32, %c0_i32_0 : i32, i32
  }
  func.func @transform_2(%arg0: i32) -> (i32, i32) {
    %c0_i32 = arith.constant 0 : i32
    %c0_i32_0 = arith.constant 0 : i32
    %c0_i32_1 = arith.constant 0 : i32
    return %c0_i32, %c0_i32_0 : i32, i32
  }
  func.func @transform_3(%arg0: i32) -> (i32, i32, i32) {
    %c0_i32 = arith.constant 0 : i32
    %c0_i32_0 = arith.constant 0 : i32
    %c0_i32_1 = arith.constant 0 : i32
    %c0_i32_2 = arith.constant 0 : i32
    return %c0_i32, %c0_i32_0, %c0_i32_1 : i32, i32, i32
  }
  func.func @transform_4(%arg0: i32) -> (i32, i32) {
    %c0_i32 = arith.constant 0 : i32
    %c0_i32_0 = arith.constant 0 : i32
    %c0_i32_1 = arith.constant 0 : i32
    return %c0_i32, %c0_i32_0 : i32, i32
  }
  func.func @transform_5(%arg0: i32) -> (i32, i32, i32) {
    %c0_i32 = arith.constant 0 : i32
    %c0_i32_0 = arith.constant 0 : i32
    %c0_i32_1 = arith.constant 0 : i32
    %c0_i32_2 = arith.constant 0 : i32
    return %c0_i32, %c0_i32_0, %c0_i32_1 : i32, i32, i32
  }
  func.func @transform_6(%arg0: i32) -> (i32, i32) {
    %c0_i32 = arith.constant 0 : i32
    %c0_i32_0 = arith.constant 0 : i32
    %c0_i32_1 = arith.constant 0 : i32
    return %c0_i32, %c0_i32_0 : i32, i32
  }
  func.func @transform_7(%arg0: i32) -> (i32, i32, i32) {
    %c0_i32 = arith.constant 0 : i32
    %c0_i32_0 = arith.constant 0 : i32
    %c0_i32_1 = arith.constant 0 : i32
    return %arg0, %c0_i32, %c0_i32_0 : i32, i32, i32
  }
}

</mosaic_0001>

<llo_original>
// kernel: tpu_custom_call.1
$region0: #{tpu_custom_call.1}
  #allocation0 [shape = 'u32[]', space=smem, size = 0x4, offset = 0x4, fixed_abs, tag = 'smem constant byte address 0x4 - core index']
  #allocation1 [shape = 'u32[144,128]{1,0:T(1,128)}', space=vmem, size = 0x12000, scoped, tag = 'internal scratch']
  #allocation2 [shape = 'f32[2,18,18,128]{3,2,1,0:T(8,128)}', space=vmem, size = 0x6c000, scoped, tag = 'scratch operand']
  %s0 = inlined_call_operand.hbm [shape: bf16[4,256,128], index: 0, kind: input, shape index: {}]
  %s1 = inlined_call_operand.hbm [shape: bf16[128,128], index: 1, kind: input, shape index: {}]
  %s2 = inlined_call_operand.vmem [shape: f32[1,128], index: 2, kind: input, shape index: {}]
  %s3 = inlined_call_operand.hbm [shape: bf16[9,128,128], index: 3, kind: input, shape index: {}]
  %s4 = inlined_call_operand.vmem [shape: f32[1,128], index: 4, kind: input, shape index: {}]
  %s5 = inlined_call_operand.hbm [shape: bf16[9,128,128], index: 5, kind: input, shape index: {}]
  %s6 = inlined_call_operand.vmem [shape: f32[1,128], index: 6, kind: input, shape index: {}]
  %s7 = inlined_call_operand.hbm [shape: f32[2,2,128], index: 7, kind: output, shape index: {}]
  %s8 = sld [smem:[#allocation0]]
  $region77: #{tpu_custom_call.1} parent=0
    _
  %s10 = ssub.s32 1, %s8
  %s11 = scalar_select 0, %s10, %s8
  $region1: #{tpu_custom_call.1} parent=0
    #allocation3 [shape = 'u8[262144]{0}', space=vmem, size = 0x40000, scoped, tag = 'input window, operand 0']
    #allocation4 [shape = 's32[2]{0}', space=sflag, size = 0x8, scoped, tag = 'scoped memory for tpu_custom_call.1']
    #allocation5 [shape = 's32[2]{0}', space=sflag, size = 0x8, scoped, tag = 'scoped memory for tpu_custom_call.1']
    #allocation6 [shape = 'u8[32768]{0}', space=vmem, size = 0x8000, scoped, tag = 'input window, operand 1, single buffered']
    #allocation7 [shape = 's32[1]{0}', space=sflag, size = 0x4, scoped, tag = 'scoped memory for tpu_custom_call.1']
    #allocation8 [shape = 'u8[294912]{0}', space=vmem, size = 0x48000, scoped, tag = 'input window, operand 3, single buffered']
    #allocation9 [shape = 'u8[294912]{0}', space=vmem, size = 0x48000, scoped, tag = 'input window, operand 5, single buffered']
    #allocation10 [shape = 's32[1]{0}', space=sflag, size = 0x4, scoped, tag = 'scoped memory for tpu_custom_call.1']
    #allocation11 [shape = 'u8[2048]{0}', space=vmem, size = 0x800, scoped, tag = 'output window, operand 0']
    %12 = vsyncpa [#allocation4], 0
    %s13 = scalar_lea.sflag [#allocation4], 1
    %14 = vsyncpa %s13, 0
    %15 = vsyncpa [#allocation7], 0
    %16 = vsyncpa [#allocation10], 0
    %17 = vsyncpa [#allocation5], 0
    %s18 = scalar_lea.sflag [#allocation5], 1
    %19 = vsyncpa %s18, 0
    loop: start=0, step=1, limit=4
    $region2: #{tpu_custom_call.1} parent=1 // loop_pre_header
      _
    $region3: #{tpu_custom_call.1} parent=1 // loop_header
      %s21 = sphi 0, %s25
      %p22 = scmp.ge.s32.totalorder %s21, 4
      %s31 = sphi 0, %s33
      %s34 = sphi 0, %s31
      %s35 = sphi 0, %s34
      %s51 = sphi 0, %s35
      %s55 = sphi 0, %s55
      %s57 = sphi 0, %s55
      %s58 = sphi 0, %s57
      %s72 = sphi 0, %s58
      %s76 = sphi 0, %s76
      %s78 = sphi 0, %s76
      %s79 = sphi 0, %s78
      %s93 = sphi 0, %s79
      %s97 = sphi 0, %s97
      %s99 = sphi 0, %s97
      %s100 = sphi 0, %s99
      %s114 = sphi 0, %s100
      %s118 = sphi 0, %s118
      %s120 = sphi 0, %s118
      %s121 = sphi 0, %s120
      %s135 = sphi 0, %s121
      %s139 = sphi 0, %s139
      %s141 = sphi 0, %s139
      %s142 = sphi 0, %s141
      %s156 = sphi 0, %s142
      %s160 = sphi 0, %s160
      %s162 = sphi 0, %s160
      %s163 = sphi 0, %s162
      %s177 = sphi 0, %s163
      %s183 = sphi 0, %s185
      %s186 = sphi 0, %s183
      %s187 = sphi 0, %s186
      %s203 = sphi 0, %s187
    $region4: #{tpu_custom_call.1} parent=1 // loop_header_branch
      %24 = sbr.rel (%p22) target = $region8
    $region5: #{tpu_custom_call.1} parent=1 // loop_body
      %s26 = ssub.s32 %s21, 1
      %s27 = ssub.s32 %s21, 2
      %s28 = sadd.s32 %s21, 1
      %s29 = ssub.s32 %s21, %s28
      %p30 = scmp.eq.s32.totalorder %s29, 0
      %s32 = sadd.s32 %s31, 1
      %s33 = scalar_select %p30, %s31, %s32
      %p36 = pneg %p30
      %p37 = scmp.eq.s32.totalorder %s21, 1
      %p38 = por %p36, %p37
      %p39 = scmp.ne.s32.totalorder %s31, %s34
      %p40 = scmp.eq.s32.totalorder %s21, 0
      %p41 = por %p39, %p40
      %p42 = scmp.ne.s32.totalorder %s31, %s34
      %p43 = scmp.eq.s32.totalorder %s26, 1
      %p44 = por %p42, %p43
      %p45 = scmp.ne.s32.totalorder %s34, %s35
      %p46 = scmp.eq.s32.totalorder %s26, 0
      %p47 = por %p45, %p46
      %p48 = scmp.ne.s32.totalorder %s34, %s35
      %p49 = scmp.eq.s32.totalorder %s27, 1
      %p50 = por %p48, %p49
      %p52 = scmp.ne.s32.totalorder %s35, %s51
      %p53 = scmp.eq.s32.totalorder %s27, 0
      %p54 = por %p52, %p53
      %s56 = sadd.s32 %s55, 1
      %p59 = scmp.eq.s32.totalorder %s21, 1
      %p60 = scmp.ne.s32.totalorder %s55, %s57
      %p61 = scmp.eq.s32.totalorder %s21, 0
      %p62 = por %p60, %p61
      %p63 = scmp.ne.s32.totalorder %s55, %s57
      %p64 = scmp.eq.s32.totalorder %s26, 1
      %p65 = por %p63, %p64
      %p66 = scmp.ne.s32.totalorder %s57, %s58
      %p67 = scmp.eq.s32.totalorder %s26, 0
      %p68 = por %p66, %p67
      %p69 = scmp.ne.s32.totalorder %s57, %s58
      %p70 = scmp.eq.s32.totalorder %s27, 1
      %p71 = por %p69, %p70
      %p73 = scmp.ne.s32.totalorder %s58, %s72
      %p74 = scmp.eq.s32.totalorder %s27, 0
      %p75 = por %p73, %p74
      %s77 = sadd.s32 %s76, 1
      %p80 = scmp.eq.s32.totalorder %s21, 1
      %p81 = scmp.ne.s32.totalorder %s76, %s78
      %p82 = scmp.eq.s32.totalorder %s21, 0
      %p83 = por %p81, %p82
      %p84 = scmp.ne.s32.totalorder %s76, %s78
      %p85 = scmp.eq.s32.totalorder %s26, 1
      %p86 = por %p84, %p85
      %p87 = scmp.ne.s32.totalorder %s78, %s79
      %p88 = scmp.eq.s32.totalorder %s26, 0
      %p89 = por %p87, %p88
      %p90 = scmp.ne.s32.totalorder %s78, %s79
      %p91 = scmp.eq.s32.totalorder %s27, 1
      %p92 = por %p90, %p91
      %p94 = scmp.ne.s32.totalorder %s79, %s93
      %p95 = scmp.eq.s32.totalorder %s27, 0
      %p96 = por %p94, %p95
      %s98 = sadd.s32 %s97, 1
      %p101 = scmp.eq.s32.totalorder %s21, 1
      %p102 = scmp.ne.s32.totalorder %s97, %s99
      %p103 = scmp.eq.s32.totalorder %s21, 0
      %p104 = por %p102, %p103
      %p105 = scmp.ne.s32.totalorder %s97, %s99
      %p106 = scmp.eq.s32.totalorder %s26, 1
      %p107 = por %p105, %p106
      %p108 = scmp.ne.s32.totalorder %s99, %s100
      %p109 = scmp.eq.s32.totalorder %s26, 0
      %p110 = por %p108, %p109
      %p111 = scmp.ne.s32.totalorder %s99, %s100
      %p112 = scmp.eq.s32.totalorder %s27, 1
      %p113 = por %p111, %p112
      %p115 = scmp.ne.s32.totalorder %s100, %s114
      %p116 = scmp.eq.s32.totalorder %s27, 0
      %p117 = por %p115, %p116
      %s119 = sadd.s32 %s118, 1
      %p122 = scmp.eq.s32.totalorder %s21, 1
      %p123 = scmp.ne.s32.totalorder %s118, %s120
      %p124 = scmp.eq.s32.totalorder %s21, 0
      %p125 = por %p123, %p124
      %p126 = scmp.ne.s32.totalorder %s118, %s120
      %p127 = scmp.eq.s32.totalorder %s26, 1
      %p128 = por %p126, %p127
      %p129 = scmp.ne.s32.totalorder %s120, %s121
      %p130 = scmp.eq.s32.totalorder %s26, 0
      %p131 = por %p129, %p130
      %p132 = scmp.ne.s32.totalorder %s120, %s121
      %p133 = scmp.eq.s32.totalorder %s27, 1
      %p134 = por %p132, %p133
      %p136 = scmp.ne.s32.totalorder %s121, %s135
      %p137 = scmp.eq.s32.totalorder %s27, 0
      %p138 = por %p136, %p137
      %s140 = sadd.s32 %s139, 1
      %p143 = scmp.eq.s32.totalorder %s21, 1
      %p144 = scmp.ne.s32.totalorder %s139, %s141
      %p145 = scmp.eq.s32.totalorder %s21, 0
      %p146 = por %p144, %p145
      %p147 = scmp.ne.s32.totalorder %s139, %s141
      %p148 = scmp.eq.s32.totalorder %s26, 1
      %p149 = por %p147, %p148
      %p150 = scmp.ne.s32.totalorder %s141, %s142
      %p151 = scmp.eq.s32.totalorder %s26, 0
      %p152 = por %p150, %p151
      %p153 = scmp.ne.s32.totalorder %s141, %s142
      %p154 = scmp.eq.s32.totalorder %s27, 1
      %p155 = por %p153, %p154
      %p157 = scmp.ne.s32.totalorder %s142, %s156
      %p158 = scmp.eq.s32.totalorder %s27, 0
      %p159 = por %p157, %p158
      %s161 = sadd.s32 %s160, 1
      %p164 = scmp.eq.s32.totalorder %s21, 1
      %p165 = scmp.ne.s32.totalorder %s160, %s162
      %p166 = scmp.eq.s32.totalorder %s21, 0
      %p167 = por %p165, %p166
      %p168 = scmp.ne.s32.totalorder %s160, %s162
      %p169 = scmp.eq.s32.totalorder %s26, 1
      %p170 = por %p168, %p169
      %p171 = scmp.ne.s32.totalorder %s162, %s163
      %p172 = scmp.eq.s32.totalorder %s26, 0
      %p173 = por %p171, %p172
      %p174 = scmp.ne.s32.totalorder %s162, %s163
      %p175 = scmp.eq.s32.totalorder %s27, 1
      %p176 = por %p174, %p175
      %p178 = scmp.ne.s32.totalorder %s163, %s177
      %p179 = scmp.eq.s32.totalorder %s27, 0
      %p180 = por %p178, %p179
      %s181 = ssub.s32 %s21, %s28
      %p182 = scmp.eq.s32.totalorder %s181, 0
      %s184 = sadd.s32 %s183, 1
      %s185 = scalar_select %p182, %s183, %s184
      %p188 = pneg %p182
      %p189 = scmp.eq.s32.totalorder %s21, 1
      %p190 = por %p188, %p189
      %p191 = scmp.ne.s32.totalorder %s183, %s186
      %p192 = scmp.eq.s32.totalorder %s21, 0
      %p193 = por %p191, %p192
      %p194 = scmp.ne.s32.totalorder %s183, %s186
      %p195 = scmp.eq.s32.totalorder %s26, 1
      %p196 = por %p194, %p195
      %p197 = scmp.ne.s32.totalorder %s186, %s187
      %p198 = scmp.eq.s32.totalorder %s26, 0
      %p199 = por %p197, %p198
      %p200 = scmp.ne.s32.totalorder %s186, %s187
      %p201 = scmp.eq.s32.totalorder %s27, 1
      %p202 = por %p200, %p201
      %p204 = scmp.ne.s32.totalorder %s187, %s203
      %p205 = scmp.eq.s32.totalorder %s27, 0
      %p206 = por %p204, %p205
      %p207 = scmp.le.s32.totalorder 1, %s21
      %p208 = scmp.lt.s32.totalorder %s21, 3
      %p209 = pnand %p207, %p208
      %p210 = pneg %p209
      // Predicated region
      $region9: #{tpu_custom_call.1} parent=5 // pred_check
        _
      $region10: #{tpu_custom_call.1} parent=5 // pred_check_branch
        %212 = sbr.rel (%p209) target = $region12
      $region11: #{tpu_custom_call.1} parent=5 // pred_region
        %s213 = ssub.s32 %s21, 1
        // Predicated region
        $region13: #{tpu_custom_call.1} parent=11 // pred_check
          %p214 = pneg %p68
        $region14: #{tpu_custom_call.1} parent=11 // pred_check_branch
          %216 = sbr.rel (%p214) target = $region16
        $region15: #{tpu_custom_call.1} parent=11 // pred_region
          %s218 = ssub.s32 1024, 1024
          %219 = vsyncadd [#allocation7], %s218
          %s220 = sshll.u32 [#allocation6], 4
          %s221 = int_to_ptr.vmem [resolvable:$true] %s220
          %226 = dma.hbm_to_vmem [thread:$0]  %s1, 1024, %s221, [#allocation7], 64, 64, 4
        $region16: #{tpu_custom_call.1} parent=11 // pred_fallthru
          _
        // Predicated region
        $region17: #{tpu_custom_call.1} parent=11 // pred_check
          %p227 = pneg %p89
        $region18: #{tpu_custom_call.1} parent=11 // pred_check_branch
          %229 = sbr.rel (%p227) target = $region20
        $region19: #{tpu_custom_call.1} parent=11 // pred_region
          _
        $region20: #{tpu_custom_call.1} parent=11 // pred_fallthru
          _
        // Predicated region
        $region21: #{tpu_custom_call.1} parent=11 // pred_check
          %p230 = pneg %p110
        $region22: #{tpu_custom_call.1} parent=11 // pred_check_branch
          %232 = sbr.rel (%p230) target = $region24
        $region23: #{tpu_custom_call.1} parent=11 // pred_region
          %s234 = ssub.s32 9216, 9216
          %235 = vsyncadd [#allocation7], %s234
          %s236 = sshll.u32 [#allocation8], 4
          %s237 = int_to_ptr.vmem [resolvable:$true] %s236
          %242 = dma.hbm_to_vmem [thread:$0]  %s3, 9216, %s237, [#allocation7], 64, 64, 4
        $region24: #{tpu_custom_call.1} parent=11 // pred_fallthru
          _
        // Predicated region
        $region25: #{tpu_custom_call.1} parent=11 // pred_check
          %p243 = pneg %p131
        $region26: #{tpu_custom_call.1} parent=11 // pred_check_branch
          %245 = sbr.rel (%p243) target = $region28
        $region27: #{tpu_custom_call.1} parent=11 // pred_region
          _
        $region28: #{tpu_custom_call.1} parent=11 // pred_fallthru
          _
        // Predicated region
        $region29: #{tpu_custom_call.1} parent=11 // pred_check
          %p246 = pneg %p152
        $region30: #{tpu_custom_call.1} parent=11 // pred_check_branch
          %248 = sbr.rel (%p246) target = $region32
        $region31: #{tpu_custom_call.1} parent=11 // pred_region
          %s250 = ssub.s32 9216, 9216
          %251 = vsyncadd [#allocation10], %s250
          %s252 = sshll.u32 [#allocation9], 4
          %s253 = int_to_ptr.vmem [resolvable:$true] %s252
          %258 = dma.hbm_to_vmem [thread:$0]  %s5, 9216, %s253, [#allocation10], 64, 64, 4
        $region32: #{tpu_custom_call.1} parent=11 // pred_fallthru
          _
        // Predicated region
        $region33: #{tpu_custom_call.1} parent=11 // pred_check
          %p259 = pneg %p173
        $region34: #{tpu_custom_call.1} parent=11 // pred_check_branch
          %261 = sbr.rel (%p259) target = $region36
        $region35: #{tpu_custom_call.1} parent=11 // pred_region
          _
        $region36: #{tpu_custom_call.1} parent=11 // pred_fallthru
          _
      $region12: #{tpu_custom_call.1} parent=5 // pred_fallthru
        _
      %p262 = scmp.lt.s32.totalorder %s21, 2
      // Predicated region
      $region37: #{tpu_custom_call.1} parent=5 // pred_check
        %p263 = pneg %p262
      $region38: #{tpu_custom_call.1} parent=5 // pred_check_branch
        %265 = sbr.rel (%p263) target = $region40
      $region39: #{tpu_custom_call.1} parent=5 // pred_region
        // Predicated region
        $region41: #{tpu_custom_call.1} parent=39 // pred_check
          %p266 = pneg %p41
        $region42: #{tpu_custom_call.1} parent=39 // pred_check_branch
          %268 = sbr.rel (%p266) target = $region44
        $region43: #{tpu_custom_call.1} parent=39 // pred_region
          %s269 = sand.u32 %s31, 1
          %s270 = scalar_lea.sflag [#allocation4], %s269
          %s271 = sand.u32 %s31, 1
          %s272 = smul.addr %s271, 256
          %s273 = scalar_lea.vmem [#allocation3], %s272
          %s274 = smul.u32 2, %s21
          %s276 = ssub.s32 4096, 4096
          %277 = vsyncadd %s270, %s276
          %s278 = smul.addr %s274, 32
          %s279 = smul.addr %s278, 64
          %s280 = scalar_lea.hbm %s0, %s279
          %s281 = sshll.u32 %s273, 4
          %s282 = int_to_ptr.vmem [resolvable:$true] %s281
          %287 = dma.hbm_to_vmem [thread:$0]  %s280, 4096, %s282, %s270, 64, 64, 4
        $region44: #{tpu_custom_call.1} parent=39 // pred_fallthru
          _
      $region40: #{tpu_custom_call.1} parent=5 // pred_fallthru
        _
      %p288 = scmp.le.s32.totalorder 1, %s21
      %p289 = scmp.lt.s32.totalorder %s21, 3
      %p290 = pnand %p288, %p289
      %p291 = pneg %p290
      // Predicated region
      $region45: #{tpu_custom_call.1} parent=5 // pred_check
        _
      $region46: #{tpu_custom_call.1} parent=5 // pred_check_branch
        %293 = sbr.rel (%p290) target = $region48
      $region47: #{tpu_custom_call.1} parent=5 // pred_region
        %s294 = ssub.s32 %s21, 1
        %s295 = sand.u32 %s34, 1
        %s296 = scalar_lea.sflag [#allocation4], %s295
        %s297 = sand.u32 %s34, 1
        %s298 = smul.addr %s297, 256
        %s299 = scalar_lea.vmem [#allocation3], %s298
        // Predicated region
        $region49: #{tpu_custom_call.1} parent=47 // pred_check
          %p300 = pneg %p47
        $region50: #{tpu_custom_call.1} parent=47 // pred_check_branch
          %302 = sbr.rel (%p300) target = $region52
        $region51: #{tpu_custom_call.1} parent=47 // pred_region
          %303 = dma.done %s296, 4096
        $region52: #{tpu_custom_call.1} parent=47 // pred_fallthru
          _
        // Predicated region
        $region53: #{tpu_custom_call.1} parent=47 // pred_check
          %p304 = pneg %p68
        $region54: #{tpu_custom_call.1} parent=47 // pred_check_branch
          %306 = sbr.rel (%p304) target = $region56
        $region55: #{tpu_custom_call.1} parent=47 // pred_region
          %307 = dma.done [#allocation7], 1024
        $region56: #{tpu_custom_call.1} parent=47 // pred_fallthru
          _
        // Predicated region
        $region57: #{tpu_custom_call.1} parent=47 // pred_check
          %p308 = pneg %p110
        $region58: #{tpu_custom_call.1} parent=47 // pred_check_branch
          %310 = sbr.rel (%p308) target = $region60
        $region59: #{tpu_custom_call.1} parent=47 // pred_region
          %311 = dma.done [#allocation7], 9216
        $region60: #{tpu_custom_call.1} parent=47 // pred_fallthru
          _
        // Predicated region
        $region61: #{tpu_custom_call.1} parent=47 // pred_check
          %p312 = pneg %p152
        $region62: #{tpu_custom_call.1} parent=47 // pred_check_branch
          %314 = sbr.rel (%p312) target = $region64
        $region63: #{tpu_custom_call.1} parent=47 // pred_region
          %315 = dma.done [#allocation10], 9216
        $region64: #{tpu_custom_call.1} parent=47 // pred_fallthru
          _
        %s316 = sand.u32 %s34, 1
        %s317 = scalar_lea.sflag [#allocation4], %s316
        %s318 = sand.u32 %s34, 1
        %s319 = smul.addr %s318, 256
        %s320 = scalar_lea.vmem [#allocation3], %s319
        %p321 = pneg %p47
        %p322 = pneg %p44
        %p323 = pneg %p68
        %p324 = pneg %p65
        %p325 = pneg %p89
        %p326 = pneg %p86
        %p327 = pneg %p110
        %p328 = pneg %p107
        %p329 = pneg %p131
        %p330 = pneg %p128
        %p331 = pneg %p152
        %p332 = pneg %p149
        %p333 = pneg %p173
        %p334 = pneg %p170
        %p335 = pneg %p199
        %p336 = pneg %p196
        %s337 = sand.u32 %s186, 1
        %s338 = scalar_lea.sflag [#allocation5], %s337
        %s339 = sand.u32 %s186, 1
        %s340 = smul.addr %s339, 2
        %s341 = scalar_lea.vmem [#allocation11], %s340
        %s342 = smul.u32 2, %s26
        %344 = vst [vmem:[#allocation2] sm:$0xff] 0.0
        %345 = vst [vmem:[#allocation2 + $0x8] sm:$0xff] 0.0
        %346 = vst [vmem:[#allocation2 + $0x10] sm:$0x3] 0.0
        %347 = vst [vmem:[#allocation2 + $0x1b0] sm:$0xff] 0.0
        %348 = vst [vmem:[#allocation2 + $0x1b8] sm:$0xff] 0.0
        %349 = vst [vmem:[#allocation2 + $0x1c0] sm:$0x3] 0.0
        %s350 = scalar_lea.vmem [#allocation2], 408
        %351 = vst [vmem:[%s350] sm:$0xff] 0.0
        %352 = vst [vmem:[%s350 + $0x8] sm:$0xff] 0.0
        %353 = vst [vmem:[%s350 + $0x10] sm:$0x3] 0.0
        %354 = vst [vmem:[%s350 + $0x1b0] sm:$0xff] 0.0
        %355 = vst [vmem:[%s350 + $0x1b8] sm:$0xff] 0.0
        %356 = vst [vmem:[%s350 + $0x1c0] sm:$0x3] 0.0
        %s357 = scalar_lea.vmem [#allocation2], 24
        %358 = vst [vmem:[%s357] sm:$0x1] 0.0
        %359 = vst [vmem:[%s357 + $0x18] sm:$0x1] 0.0
        %360 = vst [vmem:[%s357 + $0x30] sm:$0x1] 0.0
        %361 = vst [vmem:[%s357 + $0x48] sm:$0x1] 0.0
        %362 = vst [vmem:[%s357 + $0x60] sm:$0x1] 0.0
        %363 = vst [vmem:[%s357 + $0x78] sm:$0x1] 0.0
        %364 = vst [vmem:[%s357 + $0x90] sm:$0x1] 0.0
        %365 = vst [vmem:[%s357 + $0xa8] sm:$0x1] 0.0
        %366 = vst [vmem:[%s357 + $0xc0] sm:$0x1] 0.0
        %367 = vst [vmem:[%s357 + $0xd8] sm:$0x1] 0.0
        %368 = vst [vmem:[%s357 + $0xf0] sm:$0x1] 0.0
        %369 = vst [vmem:[%s357 + $0x108] sm:$0x1] 0.0
        %370 = vst [vmem:[%s357 + $0x120] sm:$0x1] 0.0
        %371 = vst [vmem:[%s357 + $0x138] sm:$0x1] 0.0
        %372 = vst [vmem:[%s357 + $0x150] sm:$0x1] 0.0
        %373 = vst [vmem:[%s357 + $0x168] sm:$0x1] 0.0
        %374 = vst [vmem:[%s357 + $0x1b0] sm:$0x1] 0.0
        %375 = vst [vmem:[%s357 + $0x1c8] sm:$0x1] 0.0
        %376 = vst [vmem:[%s357 + $0x1e0] sm:$0x1] 0.0
        %377 = vst [vmem:[%s357 + $0x1f8] sm:$0x1] 0.0
        %378 = vst [vmem:[%s357 + $0x210] sm:$0x1] 0.0
        %379 = vst [vmem:[%s357 + $0x228] sm:$0x1] 0.0
        %380 = vst [vmem:[%s357 + $0x240] sm:$0x1] 0.0
        %381 = vst [vmem:[%s357 + $0x258] sm:$0x1] 0.0
        %382 = vst [vmem:[%s357 + $0x270] sm:$0x1] 0.0
        %383 = vst [vmem:[%s357 + $0x288] sm:$0x1] 0.0
        %384 = vst [vmem:[%s357 + $0x2a0] sm:$0x1] 0.0
        %385 = vst [vmem:[%s357 + $0x2b8] sm:$0x1] 0.0
        %386 = vst [vmem:[%s357 + $0x2d0] sm:$0x1] 0.0
        %387 = vst [vmem:[%s357 + $0x2e8] sm:$0x1] 0.0
        %388 = vst [vmem:[%s357 + $0x300] sm:$0x1] 0.0
        %389 = vst [vmem:[%s357 + $0x318] sm:$0x1] 0.0
        %390 = vst [vmem:[%s357 + $0x11] sm:$0x1] 0.0
        %391 = vst [vmem:[%s357 + $0x29] sm:$0x1] 0.0
        %392 = vst [vmem:[%s357 + $0x41] sm:$0x1] 0.0
        %393 = vst [vmem:[%s357 + $0x59] sm:$0x1] 0.0
        %394 = vst [vmem:[%s357 + $0x71] sm:$0x1] 0.0
        %395 = vst [vmem:[%s357 + $0x89] sm:$0x1] 0.0
        %396 = vst [vmem:[%s357 + $0xa1] sm:$0x1] 0.0
        %397 = vst [vmem:[%s357 + $0xb9] sm:$0x1] 0.0
        %398 = vst [vmem:[%s357 + $0xd1] sm:$0x1] 0.0
        %399 = vst [vmem:[%s357 + $0xe9] sm:$0x1] 0.0
        %400 = vst [vmem:[%s357 + $0x101] sm:$0x1] 0.0
        %401 = vst [vmem:[%s357 + $0x119] sm:$0x1] 0.0
        %402 = vst [vmem:[%s357 + $0x131] sm:$0x1] 0.0
        %403 = vst [vmem:[%s357 + $0x149] sm:$0x1] 0.0
        %404 = vst [vmem:[%s357 + $0x161] sm:$0x1] 0.0
        %405 = vst [vmem:[%s357 + $0x179] sm:$0x1] 0.0
        %406 = vst [vmem:[%s357 + $0x1c1] sm:$0x1] 0.0
        %407 = vst [vmem:[%s357 + $0x1d9] sm:$0x1] 0.0
        %408 = vst [vmem:[%s357 + $0x1f1] sm:$0x1] 0.0
        %409 = vst [vmem:[%s357 + $0x209] sm:$0x1] 0.0
        %410 = vst [vmem:[%s357 + $0x221] sm:$0x1] 0.0
        %411 = vst [vmem:[%s357 + $0x239] sm:$0x1] 0.0
        %412 = vst [vmem:[%s357 + $0x251] sm:$0x1] 0.0
        %413 = vst [vmem:[%s357 + $0x269] sm:$0x1] 0.0
        %414 = vst [vmem:[%s357 + $0x281] sm:$0x1] 0.0
        %415 = vst [vmem:[%s357 + $0x299] sm:$0x1] 0.0
        %416 = vst [vmem:[%s357 + $0x2b1] sm:$0x1] 0.0
        %417 = vst [vmem:[%s357 + $0x2c9] sm:$0x1] 0.0
        %418 = vst [vmem:[%s357 + $0x2e1] sm:$0x1] 0.0
        %419 = vst [vmem:[%s357 + $0x2f9] sm:$0x1] 0.0
        %420 = vst [vmem:[%s357 + $0x311] sm:$0x1] 0.0
        %421 = vst [vmem:[%s357 + $0x329] sm:$0x1] 0.0
        %v422 = vld [vmem:[%s299] sm:$0xf]
        %v423 = vld [vmem:[%s299 + $0x4] sm:$0xf]
        %v424 = vld [vmem:[%s299 + $0x8] sm:$0xf]
        %v425 = vld [vmem:[%s299 + $0xc] sm:$0xf]
        %v426 = vld [vmem:[%s299 + $0x10] sm:$0xf]
        %v427 = vld [vmem:[%s299 + $0x14] sm:$0xf]
        %v428 = vld [vmem:[%s299 + $0x18] sm:$0xf]
        %v429 = vld [vmem:[%s299 + $0x1c] sm:$0xf]
        %v430 = vld [vmem:[%s299 + $0x20] sm:$0xf]
        %v431 = vld [vmem:[%s299 + $0x24] sm:$0xf]
        %v432 = vld [vmem:[%s299 + $0x28] sm:$0xf]
        %v433 = vld [vmem:[%s299 + $0x2c] sm:$0xf]
        %v434 = vld [vmem:[%s299 + $0x30] sm:$0xf]
        %v435 = vld [vmem:[%s299 + $0x34] sm:$0xf]
        %v436 = vld [vmem:[%s299 + $0x38] sm:$0xf]
        %v437 = vld [vmem:[%s299 + $0x3c] sm:$0xf]
        %v438 = vld [vmem:[%s299 + $0x40] sm:$0xf]
        %v439 = vld [vmem:[%s299 + $0x44] sm:$0xf]
        %v440 = vld [vmem:[%s299 + $0x48] sm:$0xf]
        %v441 = vld [vmem:[%s299 + $0x4c] sm:$0xf]
        %v442 = vld [vmem:[%s299 + $0x50] sm:$0xf]
        %v443 = vld [vmem:[%s299 + $0x54] sm:$0xf]
        %v444 = vld [vmem:[%s299 + $0x58] sm:$0xf]
        %v445 = vld [vmem:[%s299 + $0x5c] sm:$0xf]
        %v446 = vld [vmem:[%s299 + $0x60] sm:$0xf]
        %v447 = vld [vmem:[%s299 + $0x64] sm:$0xf]
        %v448 = vld [vmem:[%s299 + $0x68] sm:$0xf]
        %v449 = vld [vmem:[%s299 + $0x6c] sm:$0xf]
        %v450 = vld [vmem:[%s299 + $0x70] sm:$0xf]
        %v451 = vld [vmem:[%s299 + $0x74] sm:$0xf]
        %v452 = vld [vmem:[%s299 + $0x78] sm:$0xf]
        %v453 = vld [vmem:[%s299 + $0x7c] sm:$0xf]
        %v454 = vld [vmem:[%s299 + $0x80] sm:$0xf]
        %v455 = vld [vmem:[%s299 + $0x84] sm:$0xf]
        %v456 = vld [vmem:[%s299 + $0x88] sm:$0xf]
        %v457 = vld [vmem:[%s299 + $0x8c] sm:$0xf]
        %v458 = vld [vmem:[%s299 + $0x90] sm:$0xf]
        %v459 = vld [vmem:[%s299 + $0x94] sm:$0xf]
        %v460 = vld [vmem:[%s299 + $0x98] sm:$0xf]
        %v461 = vld [vmem:[%s299 + $0x9c] sm:$0xf]
        %v462 = vld [vmem:[%s299 + $0xa0] sm:$0xf]
        %v463 = vld [vmem:[%s299 + $0xa4] sm:$0xf]
        %v464 = vld [vmem:[%s299 + $0xa8] sm:$0xf]
        %v465 = vld [vmem:[%s299 + $0xac] sm:$0xf]
        %v466 = vld [vmem:[%s299 + $0xb0] sm:$0xf]
        %v467 = vld [vmem:[%s299 + $0xb4] sm:$0xf]
        %v468 = vld [vmem:[%s299 + $0xb8] sm:$0xf]
        %v469 = vld [vmem:[%s299 + $0xbc] sm:$0xf]
        %v470 = vld [vmem:[%s299 + $0xc0] sm:$0xf]
        %v471 = vld [vmem:[%s299 + $0xc4] sm:$0xf]
        %v472 = vld [vmem:[%s299 + $0xc8] sm:$0xf]
        %v473 = vld [vmem:[%s299 + $0xcc] sm:$0xf]
        %v474 = vld [vmem:[%s299 + $0xd0] sm:$0xf]
        %v475 = vld [vmem:[%s299 + $0xd4] sm:$0xf]
        %v476 = vld [vmem:[%s299 + $0xd8] sm:$0xf]
        %v477 = vld [vmem:[%s299 + $0xdc] sm:$0xf]
        %v478 = vld [vmem:[%s299 + $0xe0] sm:$0xf]
        %v479 = vld [vmem:[%s299 + $0xe4] sm:$0xf]
        %v480 = vld [vmem:[%s299 + $0xe8] sm:$0xf]
        %v481 = vld [vmem:[%s299 + $0xec] sm:$0xf]
        %v482 = vld [vmem:[%s299 + $0xf0] sm:$0xf]
        %v483 = vld [vmem:[%s299 + $0xf4] sm:$0xf]
        %v484 = vld [vmem:[%s299 + $0xf8] sm:$0xf]
        %v485 = vld [vmem:[%s299 + $0xfc] sm:$0xf]
        %v486 = vld [vmem:[#allocation6] sm:$0xf]
        %v487 = vld [vmem:[#allocation6 + $0x4] sm:$0xf]
        %v488 = vld [vmem:[#allocation6 + $0x8] sm:$0xf]
        %v489 = vld [vmem:[#allocation6 + $0xc] sm:$0xf]
        %v490 = vld [vmem:[#allocation6 + $0x10] sm:$0xf]
        %v491 = vld [vmem:[#allocation6 + $0x14] sm:$0xf]
        %v492 = vld [vmem:[#allocation6 + $0x18] sm:$0xf]
        %v493 = vld [vmem:[#allocation6 + $0x1c] sm:$0xf]
        %v494 = vld [vmem:[#allocation6 + $0x20] sm:$0xf]
        %v495 = vld [vmem:[#allocation6 + $0x24] sm:$0xf]
        %v496 = vld [vmem:[#allocation6 + $0x28] sm:$0xf]
        %v497 = vld [vmem:[#allocation6 + $0x2c] sm:$0xf]
        %v498 = vld [vmem:[#allocation6 + $0x30] sm:$0xf]
        %v499 = vld [vmem:[#allocation6 + $0x34] sm:$0xf]
        %v500 = vld [vmem:[#allocation6 + $0x38] sm:$0xf]
        %v501 = vld [vmem:[#allocation6 + $0x3c] sm:$0xf]
        %v502 = vld [vmem:[%s2] sm:$0x1]
        %v504 = vlaneseq
        %v505 = vshrl.u32 %v504, 7
        %v506 = vsub.s32 0, %v505
        %v507 = vrot.slane %v502, %v506
        %v573 = vunpack.c.l.b16 %v422
        %v574 = vunpack.c.l.b16 %v423
        %v575 = vunpack.c.l.b16 %v424
        %v576 = vunpack.c.l.b16 %v425
        %v577 = vunpack.c.l.b16 %v426
        %v578 = vunpack.c.l.b16 %v427
        %v579 = vunpack.c.l.b16 %v428
        %v580 = vunpack.c.l.b16 %v429
        %v581 = vunpack.c.l.b16 %v430
        %v582 = vunpack.c.l.b16 %v431
        %v583 = vunpack.c.l.b16 %v432
        %v584 = vunpack.c.l.b16 %v433
        %v585 = vunpack.c.l.b16 %v434
        %v586 = vunpack.c.l.b16 %v435
        %v587 = vunpack.c.l.b16 %v436
        %v588 = vunpack.c.l.b16 %v437
        %v589 = vunpack.c.l.b16 %v438
        %v590 = vunpack.c.l.b16 %v439
        %v591 = vunpack.c.l.b16 %v440
        %v592 = vunpack.c.l.b16 %v441
        %v593 = vunpack.c.l.b16 %v442
        %v594 = vunpack.c.l.b16 %v443
        %v595 = vunpack.c.l.b16 %v444
        %v596 = vunpack.c.l.b16 %v445
        %v597 = vunpack.c.l.b16 %v446
        %v598 = vunpack.c.l.b16 %v447
        %v599 = vunpack.c.l.b16 %v448
        %v600 = vunpack.c.l.b16 %v449
        %v601 = vunpack.c.l.b16 %v450
        %v602 = vunpack.c.l.b16 %v451
        %v603 = vunpack.c.l.b16 %v452
        %v604 = vunpack.c.l.b16 %v453
        %v605 = vunpack.c.l.b16 %v454
        %v606 = vunpack.c.l.b16 %v455
        %v607 = vunpack.c.l.b16 %v456
        %v608 = vunpack.c.l.b16 %v457
        %v609 = vunpack.c.l.b16 %v458
        %v610 = vunpack.c.l.b16 %v459
        %v611 = vunpack.c.l.b16 %v460
        %v612 = vunpack.c.l.b16 %v461
        %v613 = vunpack.c.l.b16 %v462
        %v614 = vunpack.c.l.b16 %v463
        %v615 = vunpack.c.l.b16 %v464
        %v616 = vunpack.c.l.b16 %v465
        %v617 = vunpack.c.l.b16 %v466
        %v618 = vunpack.c.l.b16 %v467
        %v619 = vunpack.c.l.b16 %v468
        %v620 = vunpack.c.l.b16 %v469
        %v621 = vunpack.c.l.b16 %v470
        %v622 = vunpack.c.l.b16 %v471
        %v623 = vunpack.c.l.b16 %v472
        %v624 = vunpack.c.l.b16 %v473
        %v625 = vunpack.c.l.b16 %v474
        %v626 = vunpack.c.l.b16 %v475
        %v627 = vunpack.c.l.b16 %v476
        %v628 = vunpack.c.l.b16 %v477
        %v629 = vunpack.c.l.b16 %v478
        %v630 = vunpack.c.l.b16 %v479
        %v631 = vunpack.c.l.b16 %v480
        %v632 = vunpack.c.l.b16 %v481
        %v633 = vunpack.c.l.b16 %v482
        %v634 = vunpack.c.l.b16 %v483
        %v635 = vunpack.c.l.b16 %v484
        %v636 = vunpack.c.l.b16 %v485
        %v637 = vpack.c.b16 %v574, %v573
        %v638 = vpack.c.b16 %v576, %v575
        %v639 = vpack.c.b16 %v578, %v577
        %v640 = vpack.c.b16 %v580, %v579
        %v641 = vpack.c.b16 %v582, %v581
        %v642 = vpack.c.b16 %v584, %v583
        %v643 = vpack.c.b16 %v586, %v585
        %v644 = vpack.c.b16 %v588, %v587
        %v645 = vpack.c.b16 %v590, %v589
        %v646 = vpack.c.b16 %v592, %v591
        %v647 = vpack.c.b16 %v594, %v593
        %v648 = vpack.c.b16 %v596, %v595
        %v649 = vpack.c.b16 %v598, %v597
        %v650 = vpack.c.b16 %v600, %v599
        %v651 = vpack.c.b16 %v602, %v601
        %v652 = vpack.c.b16 %v604, %v603
        %v653 = vpack.c.b16 %v606, %v605
        %v654 = vpack.c.b16 %v608, %v607
        %v655 = vpack.c.b16 %v610, %v609
        %v656 = vpack.c.b16 %v612, %v611
        %v657 = vpack.c.b16 %v614, %v613
        %v658 = vpack.c.b16 %v616, %v615
        %v659 = vpack.c.b16 %v618, %v617
        %v660 = vpack.c.b16 %v620, %v619
        %v661 = vpack.c.b16 %v622, %v621
        %v662 = vpack.c.b16 %v624, %v623
        %v663 = vpack.c.b16 %v626, %v625
        %v664 = vpack.c.b16 %v628, %v627
        %v665 = vpack.c.b16 %v630, %v629
        %v666 = vpack.c.b16 %v632, %v631
        %v667 = vpack.c.b16 %v634, %v633
        %v668 = vpack.c.b16 %v636, %v635
        %v717 = vunpack.c.l.b16 %v486
        %v718 = vunpack.c.l.b16 %v487
        %v719 = vunpack.c.l.b16 %v488
        %v720 = vunpack.c.l.b16 %v489
        %v721 = vunpack.c.l.b16 %v490
        %v722 = vunpack.c.l.b16 %v491
        %v723 = vunpack.c.l.b16 %v492
        %v724 = vunpack.c.l.b16 %v493
        %v725 = vunpack.c.l.b16 %v494
        %v726 = vunpack.c.l.b16 %v495
        %v727 = vunpack.c.l.b16 %v496
        %v728 = vunpack.c.l.b16 %v497
        %v729 = vunpack.c.l.b16 %v498
        %v730 = vunpack.c.l.b16 %v499
        %v731 = vunpack.c.l.b16 %v500
        %v732 = vunpack.c.l.b16 %v501
        %v733 = vpack.c.b16 %v718, %v717
        %v734 = vpack.c.b16 %v720, %v719
        %v735 = vpack.c.b16 %v722, %v721
        %v736 = vpack.c.b16 %v724, %v723
        %v737 = vpack.c.b16 %v726, %v725
        %v738 = vpack.c.b16 %v728, %v727
        %v739 = vpack.c.b16 %v730, %v729
        %v740 = vpack.c.b16 %v732, %v731
        %749 = vmatprep.subr.bf16.mxu0 0
        %750 = vmatpush1.bf16.msra.mxu0 %v740
        %751 = vmatprep.subr.bf16.mxu0 0
        %752 = vmatpush1.bf16.msra.mxu0 %v739
        %753 = vmatprep.subr.bf16.mxu0 0
        %754 = vmatpush1.bf16.msra.mxu0 %v738
        %755 = vmatprep.subr.bf16.mxu0 0
        %756 = vmatpush1.bf16.msra.mxu0 %v737
        %757 = vmatprep.subr.bf16.mxu0 0
        %758 = vmatpush1.bf16.msra.mxu0 %v736
        %759 = vmatprep.subr.bf16.mxu0 0
        %760 = vmatpush1.bf16.msra.mxu0 %v735
        %761 = vmatprep.subr.bf16.mxu0 0
        %762 = vmatpush1.bf16.msra.mxu0 %v734
        %763 = vmatprep.subr.bf16.mxu0 0
        %764 = vmatpush1.bf16.msra.mxu0 %v733
        %765 = vmatprep.subr.bf16.mxu0 0
        %766 = vmatpush2.bf16.msra.mxu0 0
        %767 = vmatprep.subr.bf16.mxu0 0
        %768 = vmatpush2.bf16.msra.mxu0 0
        %769 = vmatprep.subr.bf16.mxu0 0
        %770 = vmatpush2.bf16.msra.mxu0 0
        %771 = vmatprep.subr.bf16.mxu0 0
        %772 = vmatpush2.bf16.msra.mxu0 0
        %773 = vmatprep.subr.bf16.mxu0 0
        %774 = vmatpush2.bf16.msra.mxu0 0
        %775 = vmatprep.subr.bf16.mxu0 0
        %776 = vmatpush2.bf16.msra.mxu0 0
        %777 = vmatprep.subr.bf16.mxu0 0
        %778 = vmatpush2.bf16.msra.mxu0 0
        %779 = vmatprep.subr.bf16.mxu0 0
        %780 = vmatpush2.bf16.msra.mxu0 0
        %781 = vmatprep.mubr.bf16.mxu0 0
        %782 = vmatmul.mubr.bf16.gmra.mxu0 %v637
        %v783 = vpop.f32.mrf.mxu0
        %v784 = vadd.f32 %v507, %v783
        %v785 = vpop.f32.mrf.mxu0
        %v786 = vpop.f32.mrf.mxu0
        %v787 = vadd.f32 %v507, %v786
        %v788 = vpop.f32.mrf.mxu0
        %789 = vmatprep.mubr.bf16.mxu0 0
        %790 = vmatmul.mubr.bf16.gmra.mxu0 %v638
        %v791 = vpop.f32.mrf.mxu0
        %v792 = vadd.f32 %v507, %v791
        %v793 = vpop.f32.mrf.mxu0
        %v794 = vpop.f32.mrf.mxu0
        %v795 = vadd.f32 %v507, %v794
        %v796 = vpop.f32.mrf.mxu0
        %797 = vmatprep.mubr.bf16.mxu0 0
        %798 = vmatmul.mubr.bf16.gmra.mxu0 %v639
        %v799 = vpop.f32.mrf.mxu0
        %v800 = vadd.f32 %v507, %v799
        %v801 = vpop.f32.mrf.mxu0
        %v802 = vpop.f32.mrf.mxu0
        %v803 = vadd.f32 %v507, %v802
        %v804 = vpop.f32.mrf.mxu0
        %805 = vmatprep.mubr.bf16.mxu0 0
        %806 = vmatmul.mubr.bf16.gmra.mxu0 %v640
        %v807 = vpop.f32.mrf.mxu0
        %v808 = vadd.f32 %v507, %v807
        %v809 = vpop.f32.mrf.mxu0
        %v810 = vpop.f32.mrf.mxu0
        %v811 = vadd.f32 %v507, %v810
        %v812 = vpop.f32.mrf.mxu0
        %813 = vmatprep.mubr.bf16.mxu0 0
        %814 = vmatmul.mubr.bf16.gmra.mxu0 %v641
        %v815 = vpop.f32.mrf.mxu0
        %v816 = vadd.f32 %v507, %v815
        %v817 = vpop.f32.mrf.mxu0
        %v818 = vpop.f32.mrf.mxu0
        %v819 = vadd.f32 %v507, %v818
        %v820 = vpop.f32.mrf.mxu0
        %821 = vmatprep.mubr.bf16.mxu0 0
        %822 = vmatmul.mubr.bf16.gmra.mxu0 %v642
        %v823 = vpop.f32.mrf.mxu0
        %v824 = vadd.f32 %v507, %v823
        %v825 = vpop.f32.mrf.mxu0
        %v826 = vpop.f32.mrf.mxu0
        %v827 = vadd.f32 %v507, %v826
        %v828 = vpop.f32.mrf.mxu0
        %829 = vmatprep.mubr.bf16.mxu0 0
        %830 = vmatmul.mubr.bf16.gmra.mxu0 %v643
        %v831 = vpop.f32.mrf.mxu0
        %v832 = vadd.f32 %v507, %v831
        %v833 = vpop.f32.mrf.mxu0
        %v834 = vpop.f32.mrf.mxu0
        %v835 = vadd.f32 %v507, %v834
        %v836 = vpop.f32.mrf.mxu0
        %837 = vmatprep.mubr.bf16.mxu0 0
        %838 = vmatmul.mubr.bf16.gmra.mxu0 %v644
        %v839 = vpop.f32.mrf.mxu0
        %v840 = vadd.f32 %v507, %v839
        %v841 = vpop.f32.mrf.mxu0
        %v842 = vpop.f32.mrf.mxu0
        %v843 = vadd.f32 %v507, %v842
        %v844 = vpop.f32.mrf.mxu0
        %845 = vmatprep.mubr.bf16.mxu0 0
        %846 = vmatmul.mubr.bf16.gmra.mxu0 %v645
        %v847 = vpop.f32.mrf.mxu0
        %v848 = vadd.f32 %v507, %v847
        %v849 = vpop.f32.mrf.mxu0
        %v850 = vpop.f32.mrf.mxu0
        %v851 = vadd.f32 %v507, %v850
        %v852 = vpop.f32.mrf.mxu0
        %853 = vmatprep.mubr.bf16.mxu0 0
        %854 = vmatmul.mubr.bf16.gmra.mxu0 %v646
        %v855 = vpop.f32.mrf.mxu0
        %v856 = vadd.f32 %v507, %v855
        %v857 = vpop.f32.mrf.mxu0
        %v858 = vpop.f32.mrf.mxu0
        %v859 = vadd.f32 %v507, %v858
        %v860 = vpop.f32.mrf.mxu0
        %861 = vmatprep.mubr.bf16.mxu0 0
        %862 = vmatmul.mubr.bf16.gmra.mxu0 %v647
        %v863 = vpop.f32.mrf.mxu0
        %v864 = vadd.f32 %v507, %v863
        %v865 = vpop.f32.mrf.mxu0
        %v866 = vpop.f32.mrf.mxu0
        %v867 = vadd.f32 %v507, %v866
        %v868 = vpop.f32.mrf.mxu0
        %869 = vmatprep.mubr.bf16.mxu0 0
        %870 = vmatmul.mubr.bf16.gmra.mxu0 %v648
        %v871 = vpop.f32.mrf.mxu0
        %v872 = vadd.f32 %v507, %v871
        %v873 = vpop.f32.mrf.mxu0
        %v874 = vpop.f32.mrf.mxu0
        %v875 = vadd.f32 %v507, %v874
        %v876 = vpop.f32.mrf.mxu0
        %877 = vmatprep.mubr.bf16.mxu0 0
        %878 = vmatmul.mubr.bf16.gmra.mxu0 %v649
        %v879 = vpop.f32.mrf.mxu0
        %v880 = vadd.f32 %v507, %v879
        %v881 = vpop.f32.mrf.mxu0
        %v882 = vpop.f32.mrf.mxu0
        %v883 = vadd.f32 %v507, %v882
        %v884 = vpop.f32.mrf.mxu0
        %885 = vmatprep.mubr.bf16.mxu0 0
        %886 = vmatmul.mubr.bf16.gmra.mxu0 %v650
        %v887 = vpop.f32.mrf.mxu0
        %v888 = vadd.f32 %v507, %v887
        %v889 = vpop.f32.mrf.mxu0
        %v890 = vpop.f32.mrf.mxu0
        %v891 = vadd.f32 %v507, %v890
        %v892 = vpop.f32.mrf.mxu0
        %893 = vmatprep.mubr.bf16.mxu0 0
        %894 = vmatmul.mubr.bf16.gmra.mxu0 %v651
        %v895 = vpop.f32.mrf.mxu0
        %v896 = vadd.f32 %v507, %v895
        %v897 = vpop.f32.mrf.mxu0
        %v898 = vpop.f32.mrf.mxu0
        %v899 = vadd.f32 %v507, %v898
        %v900 = vpop.f32.mrf.mxu0
        %901 = vmatprep.mubr.bf16.mxu0 0
        %902 = vmatmul.mubr.bf16.gmra.mxu0 %v652
        %v903 = vpop.f32.mrf.mxu0
        %v904 = vadd.f32 %v507, %v903
        %v905 = vpop.f32.mrf.mxu0
        %v906 = vpop.f32.mrf.mxu0
        %v907 = vadd.f32 %v507, %v906
        %v908 = vpop.f32.mrf.mxu0
        %909 = vmatprep.mubr.bf16.mxu0 0
        %910 = vmatmul.mubr.bf16.gmra.mxu0 %v653
        %v911 = vpop.f32.mrf.mxu0
        %v912 = vadd.f32 %v507, %v911
        %v913 = vpop.f32.mrf.mxu0
        %v914 = vpop.f32.mrf.mxu0
        %v915 = vadd.f32 %v507, %v914
        %v916 = vpop.f32.mrf.mxu0
        %917 = vmatprep.mubr.bf16.mxu0 0
        %918 = vmatmul.mubr.bf16.gmra.mxu0 %v654
        %v919 = vpop.f32.mrf.mxu0
        %v920 = vadd.f32 %v507, %v919
        %v921 = vpop.f32.mrf.mxu0
        %v922 = vpop.f32.mrf.mxu0
        %v923 = vadd.f32 %v507, %v922
        %v924 = vpop.f32.mrf.mxu0
        %925 = vmatprep.mubr.bf16.mxu0 0
        %926 = vmatmul.mubr.bf16.gmra.mxu0 %v655
        %v927 = vpop.f32.mrf.mxu0
        %v928 = vadd.f32 %v507, %v927
        %v929 = vpop.f32.mrf.mxu0
        %v930 = vpop.f32.mrf.mxu0
        %v931 = vadd.f32 %v507, %v930
        %v932 = vpop.f32.mrf.mxu0
        %933 = vmatprep.mubr.bf16.mxu0 0
        %934 = vmatmul.mubr.bf16.gmra.mxu0 %v656
        %v935 = vpop.f32.mrf.mxu0
        %v936 = vadd.f32 %v507, %v935
        %v937 = vpop.f32.mrf.mxu0
        %v938 = vpop.f32.mrf.mxu0
        %v939 = vadd.f32 %v507, %v938
        %v940 = vpop.f32.mrf.mxu0
        %941 = vmatprep.mubr.bf16.mxu0 0
        %942 = vmatmul.mubr.bf16.gmra.mxu0 %v657
        %v943 = vpop.f32.mrf.mxu0
        %v944 = vadd.f32 %v507, %v943
        %v945 = vpop.f32.mrf.mxu0
        %v946 = vpop.f32.mrf.mxu0
        %v947 = vadd.f32 %v507, %v946
        %v948 = vpop.f32.mrf.mxu0
        %949 = vmatprep.mubr.bf16.mxu0 0
        %950 = vmatmul.mubr.bf16.gmra.mxu0 %v658
        %v951 = vpop.f32.mrf.mxu0
        %v952 = vadd.f32 %v507, %v951
        %v953 = vpop.f32.mrf.mxu0
        %v954 = vpop.f32.mrf.mxu0
        %v955 = vadd.f32 %v507, %v954
        %v956 = vpop.f32.mrf.mxu0
        %957 = vmatprep.mubr.bf16.mxu0 0
        %958 = vmatmul.mubr.bf16.gmra.mxu0 %v659
        %v959 = vpop.f32.mrf.mxu0
        %v960 = vadd.f32 %v507, %v959
        %v961 = vpop.f32.mrf.mxu0
        %v962 = vpop.f32.mrf.mxu0
        %v963 = vadd.f32 %v507, %v962
        %v964 = vpop.f32.mrf.mxu0
        %965 = vmatprep.mubr.bf16.mxu0 0
        %966 = vmatmul.mubr.bf16.gmra.mxu0 %v660
        %v967 = vpop.f32.mrf.mxu0
        %v968 = vadd.f32 %v507, %v967
        %v969 = vpop.f32.mrf.mxu0
        %v970 = vpop.f32.mrf.mxu0
        %v971 = vadd.f32 %v507, %v970
        %v972 = vpop.f32.mrf.mxu0
        %973 = vmatprep.mubr.bf16.mxu0 0
        %974 = vmatmul.mubr.bf16.gmra.mxu0 %v661
        %v975 = vpop.f32.mrf.mxu0
        %v976 = vadd.f32 %v507, %v975
        %v977 = vpop.f32.mrf.mxu0
        %v978 = vpop.f32.mrf.mxu0
        %v979 = vadd.f32 %v507, %v978
        %v980 = vpop.f32.mrf.mxu0
        %981 = vmatprep.mubr.bf16.mxu0 0
        %982 = vmatmul.mubr.bf16.gmra.mxu0 %v662
        %v983 = vpop.f32.mrf.mxu0
        %v984 = vadd.f32 %v507, %v983
        %v985 = vpop.f32.mrf.mxu0
        %v986 = vpop.f32.mrf.mxu0
        %v987 = vadd.f32 %v507, %v986
        %v988 = vpop.f32.mrf.mxu0
        %989 = vmatprep.mubr.bf16.mxu0 0
        %990 = vmatmul.mubr.bf16.gmra.mxu0 %v663
        %v991 = vpop.f32.mrf.mxu0
        %v992 = vadd.f32 %v507, %v991
        %v993 = vpop.f32.mrf.mxu0
        %v994 = vpop.f32.mrf.mxu0
        %v995 = vadd.f32 %v507, %v994
        %v996 = vpop.f32.mrf.mxu0
        %997 = vmatprep.mubr.bf16.mxu0 0
        %998 = vmatmul.mubr.bf16.gmra.mxu0 %v664
        %v999 = vpop.f32.mrf.mxu0
        %v1000 = vadd.f32 %v507, %v999
        %v1001 = vpop.f32.mrf.mxu0
        %v1002 = vpop.f32.mrf.mxu0
        %v1003 = vadd.f32 %v507, %v1002
        %v1004 = vpop.f32.mrf.mxu0
        %1005 = vmatprep.mubr.bf16.mxu0 0
        %1006 = vmatmul.mubr.bf16.gmra.mxu0 %v665
        %v1007 = vpop.f32.mrf.mxu0
        %v1008 = vadd.f32 %v507, %v1007
        %v1009 = vpop.f32.mrf.mxu0
        %v1010 = vpop.f32.mrf.mxu0
        %v1011 = vadd.f32 %v507, %v1010
        %v1012 = vpop.f32.mrf.mxu0
        %1013 = vmatprep.mubr.bf16.mxu0 0
        %1014 = vmatmul.mubr.bf16.gmra.mxu0 %v666
        %v1015 = vpop.f32.mrf.mxu0
        %v1016 = vadd.f32 %v507, %v1015
        %v1017 = vpop.f32.mrf.mxu0
        %v1018 = vpop.f32.mrf.mxu0
        %v1019 = vadd.f32 %v507, %v1018
        %v1020 = vpop.f32.mrf.mxu0
        %1021 = vmatprep.mubr.bf16.mxu0 0
        %1022 = vmatmul.mubr.bf16.gmra.mxu0 %v667
        %v1023 = vpop.f32.mrf.mxu0
        %v1024 = vadd.f32 %v507, %v1023
        %v1025 = vpop.f32.mrf.mxu0
        %v1026 = vpop.f32.mrf.mxu0
        %v1027 = vadd.f32 %v507, %v1026
        %v1028 = vpop.f32.mrf.mxu0
        %1029 = vmatprep.mubr.bf16.mxu0 0
        %1030 = vmatmul.mubr.bf16.gmra.mxu0 %v668
        %v1031 = vpop.f32.mrf.mxu0
        %v1032 = vadd.f32 %v507, %v1031
        %v1033 = vpop.f32.mrf.mxu0
        %v1034 = vpop.f32.mrf.mxu0
        %v1035 = vadd.f32 %v507, %v1034
        %v1036 = vpop.f32.mrf.mxu0
        %1037 = vdwg.mxu0
        %v1038 = vmax.f32 %v784, 0.0
        %v1039 = vmax.f32 %v787, 0.0
        %v1040 = vmax.f32 %v792, 0.0
        %v1041 = vmax.f32 %v795, 0.0
        %v1042 = vmax.f32 %v800, 0.0
        %v1043 = vmax.f32 %v803, 0.0
        %v1044 = vmax.f32 %v808, 0.0
        %v1045 = vmax.f32 %v811, 0.0
        %v1046 = vmax.f32 %v816, 0.0
        %v1047 = vmax.f32 %v819, 0.0
        %v1048 = vmax.f32 %v824, 0.0
        %v1049 = vmax.f32 %v827, 0.0
        %v1050 = vmax.f32 %v832, 0.0
        %v1051 = vmax.f32 %v835, 0.0
        %v1052 = vmax.f32 %v840, 0.0
        %v1053 = vmax.f32 %v843, 0.0
        %v1054 = vmax.f32 %v848, 0.0
        %v1055 = vmax.f32 %v851, 0.0
        %v1056 = vmax.f32 %v856, 0.0
        %v1057 = vmax.f32 %v859, 0.0
        %v1058 = vmax.f32 %v864, 0.0
        %v1059 = vmax.f32 %v867, 0.0
        %v1060 = vmax.f32 %v872, 0.0
        %v1061 = vmax.f32 %v875, 0.0
        %v1062 = vmax.f32 %v880, 0.0
        %v1063 = vmax.f32 %v883, 0.0
        %v1064 = vmax.f32 %v888, 0.0
        %v1065 = vmax.f32 %v891, 0.0
        %v1066 = vmax.f32 %v896, 0.0
        %v1067 = vmax.f32 %v899, 0.0
        %v1068 = vmax.f32 %v904, 0.0
        %v1069 = vmax.f32 %v907, 0.0
        %v1070 = vmax.f32 %v912, 0.0
        %v1071 = vmax.f32 %v915, 0.0
        %v1072 = vmax.f32 %v920, 0.0
        %v1073 = vmax.f32 %v923, 0.0
        %v1074 = vmax.f32 %v928, 0.0
        %v1075 = vmax.f32 %v931, 0.0
        %v1076 = vmax.f32 %v936, 0.0
        %v1077 = vmax.f32 %v939, 0.0
        %v1078 = vmax.f32 %v944, 0.0
        %v1079 = vmax.f32 %v947, 0.0
        %v1080 = vmax.f32 %v952, 0.0
        %v1081 = vmax.f32 %v955, 0.0
        %v1082 = vmax.f32 %v960, 0.0
        %v1083 = vmax.f32 %v963, 0.0
        %v1084 = vmax.f32 %v968, 0.0
        %v1085 = vmax.f32 %v971, 0.0
        %v1086 = vmax.f32 %v976, 0.0
        %v1087 = vmax.f32 %v979, 0.0
        %v1088 = vmax.f32 %v984, 0.0
        %v1089 = vmax.f32 %v987, 0.0
        %v1090 = vmax.f32 %v992, 0.0
        %v1091 = vmax.f32 %v995, 0.0
        %v1092 = vmax.f32 %v1000, 0.0
        %v1093 = vmax.f32 %v1003, 0.0
        %v1094 = vmax.f32 %v1008, 0.0
        %v1095 = vmax.f32 %v1011, 0.0
        %v1096 = vmax.f32 %v1016, 0.0
        %v1097 = vmax.f32 %v1019, 0.0
        %v1098 = vmax.f32 %v1024, 0.0
        %v1099 = vmax.f32 %v1027, 0.0
        %v1100 = vmax.f32 %v1032, 0.0
        %v1101 = vmax.f32 %v1035, 0.0
        %1102 = vst [vmem:[%s357 + $0x1] sm:$0xff] %v1038
        %1103 = vst [vmem:[%s357 + $0x9] sm:$0xff] %v1039
        %1104 = vst [vmem:[%s357 + $0x19] sm:$0xff] %v1040
        %1105 = vst [vmem:[%s357 + $0x21] sm:$0xff] %v1041
        %1106 = vst [vmem:[%s357 + $0x31] sm:$0xff] %v1042
        %1107 = vst [vmem:[%s357 + $0x39] sm:$0xff] %v1043
        %1108 = vst [vmem:[%s357 + $0x49] sm:$0xff] %v1044
        %1109 = vst [vmem:[%s357 + $0x51] sm:$0xff] %v1045
        %1110 = vst [vmem:[%s357 + $0x61] sm:$0xff] %v1046
        %1111 = vst [vmem:[%s357 + $0x69] sm:$0xff] %v1047
        %1112 = vst [vmem:[%s357 + $0x79] sm:$0xff] %v1048
        %1113 = vst [vmem:[%s357 + $0x81] sm:$0xff] %v1049
        %1114 = vst [vmem:[%s357 + $0x91] sm:$0xff] %v1050
        %1115 = vst [vmem:[%s357 + $0x99] sm:$0xff] %v1051
        %1116 = vst [vmem:[%s357 + $0xa9] sm:$0xff] %v1052
        %1117 = vst [vmem:[%s357 + $0xb1] sm:$0xff] %v1053
        %1118 = vst [vmem:[%s357 + $0xc1] sm:$0xff] %v1054
        %1119 = vst [vmem:[%s357 + $0xc9] sm:$0xff] %v1055
        %1120 = vst [vmem:[%s357 + $0xd9] sm:$0xff] %v1056
        %1121 = vst [vmem:[%s357 + $0xe1] sm:$0xff] %v1057
        %1122 = vst [vmem:[%s357 + $0xf1] sm:$0xff] %v1058
        %1123 = vst [vmem:[%s357 + $0xf9] sm:$0xff] %v1059
        %1124 = vst [vmem:[%s357 + $0x109] sm:$0xff] %v1060
        %1125 = vst [vmem:[%s357 + $0x111] sm:$0xff] %v1061
        %1126 = vst [vmem:[%s357 + $0x121] sm:$0xff] %v1062
        %1127 = vst [vmem:[%s357 + $0x129] sm:$0xff] %v1063
        %1128 = vst [vmem:[%s357 + $0x139] sm:$0xff] %v1064
        %1129 = vst [vmem:[%s357 + $0x141] sm:$0xff] %v1065
        %1130 = vst [vmem:[%s357 + $0x151] sm:$0xff] %v1066
        %1131 = vst [vmem:[%s357 + $0x159] sm:$0xff] %v1067
        %1132 = vst [vmem:[%s357 + $0x169] sm:$0xff] %v1068
        %1133 = vst [vmem:[%s357 + $0x171] sm:$0xff] %v1069
        %1134 = vst [vmem:[%s357 + $0x1b1] sm:$0xff] %v1070
        %1135 = vst [vmem:[%s357 + $0x1b9] sm:$0xff] %v1071
        %1136 = vst [vmem:[%s357 + $0x1c9] sm:$0xff] %v1072
        %1137 = vst [vmem:[%s357 + $0x1d1] sm:$0xff] %v1073
        %1138 = vst [vmem:[%s357 + $0x1e1] sm:$0xff] %v1074
        %1139 = vst [vmem:[%s357 + $0x1e9] sm:$0xff] %v1075
        %1140 = vst [vmem:[%s357 + $0x1f9] sm:$0xff] %v1076
        %1141 = vst [vmem:[%s357 + $0x201] sm:$0xff] %v1077
        %1142 = vst [vmem:[%s357 + $0x211] sm:$0xff] %v1078
        %1143 = vst [vmem:[%s357 + $0x219] sm:$0xff] %v1079
        %1144 = vst [vmem:[%s357 + $0x229] sm:$0xff] %v1080
        %1145 = vst [vmem:[%s357 + $0x231] sm:$0xff] %v1081
        %1146 = vst [vmem:[%s357 + $0x241] sm:$0xff] %v1082
        %1147 = vst [vmem:[%s357 + $0x249] sm:$0xff] %v1083
        %1148 = vst [vmem:[%s357 + $0x259] sm:$0xff] %v1084
        %1149 = vst [vmem:[%s357 + $0x261] sm:$0xff] %v1085
        %1150 = vst [vmem:[%s357 + $0x271] sm:$0xff] %v1086
        %1151 = vst [vmem:[%s357 + $0x279] sm:$0xff] %v1087
        %1152 = vst [vmem:[%s357 + $0x289] sm:$0xff] %v1088
        %1153 = vst [vmem:[%s357 + $0x291] sm:$0xff] %v1089
        %1154 = vst [vmem:[%s357 + $0x2a1] sm:$0xff] %v1090
        %1155 = vst [vmem:[%s357 + $0x2a9] sm:$0xff] %v1091
        %1156 = vst [vmem:[%s357 + $0x2b9] sm:$0xff] %v1092
        %1157 = vst [vmem:[%s357 + $0x2c1] sm:$0xff] %v1093
        %1158 = vst [vmem:[%s357 + $0x2d1] sm:$0xff] %v1094
        %1159 = vst [vmem:[%s357 + $0x2d9] sm:$0xff] %v1095
        %1160 = vst [vmem:[%s357 + $0x2e9] sm:$0xff] %v1096
        %1161 = vst [vmem:[%s357 + $0x2f1] sm:$0xff] %v1097
        %1162 = vst [vmem:[%s357 + $0x301] sm:$0xff] %v1098
        %1163 = vst [vmem:[%s357 + $0x309] sm:$0xff] %v1099
        %1164 = vst [vmem:[%s357 + $0x319] sm:$0xff] %v1100
        %1165 = vst [vmem:[%s357 + $0x321] sm:$0xff] %v1101
        %v1166 = vld [vmem:[#allocation2] sm:$0xff]
        %v1167 = vld [vmem:[#allocation2 + $0x8] sm:$0xff]
        %v1168 = vld [vmem:[#allocation2 + $0x10] sm:$0x3]
        %v1169 = vld [vmem:[#allocation2 + $0x18] sm:$0xff]
        %v1170 = vld [vmem:[#allocation2 + $0x20] sm:$0xff]
        %v1171 = vld [vmem:[#allocation2 + $0x28] sm:$0x3]
        %v1172 = vld [vmem:[#allocation2 + $0x30] sm:$0xff]
        %v1173 = vld [vmem:[#allocation2 + $0x38] sm:$0xff]
        %v1174 = vld [vmem:[#allocation2 + $0x40] sm:$0x3]
        %v1175 = vld [vmem:[#allocation2 + $0x48] sm:$0xff]
        %v1176 = vld [vmem:[#allocation2 + $0x50] sm:$0xff]
        %v1177 = vld [vmem:[#allocation2 + $0x58] sm:$0x3]
        %v1178 = vld [vmem:[#allocation2 + $0x60] sm:$0xff]
        %v1179 = vld [vmem:[#allocation2 + $0x68] sm:$0xff]
        %v1180 = vld [vmem:[#allocation2 + $0x70] sm:$0x3]
        %v1181 = vld [vmem:[#allocation2 + $0x78] sm:$0xff]
        %v1182 = vld [vmem:[#allocation2 + $0x80] sm:$0xff]
        %v1183 = vld [vmem:[#allocation2 + $0x88] sm:$0x3]
        %v1184 = vld [vmem:[#allocation2 + $0x90] sm:$0xff]
        %v1185 = vld [vmem:[#allocation2 + $0x98] sm:$0xff]
        %v1186 = vld [vmem:[#allocation2 + $0xa0] sm:$0x3]
        %v1187 = vld [vmem:[#allocation2 + $0xa8] sm:$0xff]
        %v1188 = vld [vmem:[#allocation2 + $0xb0] sm:$0xff]
        %v1189 = vld [vmem:[#allocation2 + $0xb8] sm:$0x3]
        %v1190 = vld [vmem:[#allocation2 + $0xc0] sm:$0xff]
        %v1191 = vld [vmem:[#allocation2 + $0xc8] sm:$0xff]
        %v1192 = vld [vmem:[#allocation2 + $0xd0] sm:$0x3]
        %v1193 = vld [vmem:[#allocation2 + $0xd8] sm:$0xff]
        %v1194 = vld [vmem:[#allocation2 + $0xe0] sm:$0xff]
        %v1195 = vld [vmem:[#allocation2 + $0xe8] sm:$0x3]
        %v1196 = vld [vmem:[#allocation2 + $0xf0] sm:$0xff]
        %v1197 = vld [vmem:[#allocation2 + $0xf8] sm:$0xff]
        %v1198 = vld [vmem:[#allocation2 + $0x100] sm:$0x3]
        %v1199 = vld [vmem:[#allocation2 + $0x108] sm:$0xff]
        %v1200 = vld [vmem:[#allocation2 + $0x110] sm:$0xff]
        %v1201 = vld [vmem:[#allocation2 + $0x118] sm:$0x3]
        %v1202 = vld [vmem:[#allocation2 + $0x120] sm:$0xff]
        %v1203 = vld [vmem:[#allocation2 + $0x128] sm:$0xff]
        %v1204 = vld [vmem:[#allocation2 + $0x130] sm:$0x3]
        %v1205 = vld [vmem:[#allocation2 + $0x138] sm:$0xff]
        %v1206 = vld [vmem:[#allocation2 + $0x140] sm:$0xff]
        %v1207 = vld [vmem:[#allocation2 + $0x148] sm:$0x3]
        %v1208 = vld [vmem:[#allocation2 + $0x150] sm:$0xff]
        %v1209 = vld [vmem:[#allocation2 + $0x158] sm:$0xff]
        %v1210 = vld [vmem:[#allocation2 + $0x160] sm:$0x3]
        %v1211 = vld [vmem:[#allocation2 + $0x168] sm:$0xff]
        %v1212 = vld [vmem:[#allocation2 + $0x170] sm:$0xff]
        %v1213 = vld [vmem:[#allocation2 + $0x178] sm:$0x3]
        %v1214 = vld [vmem:[#allocation2 + $0x180] sm:$0xff]
        %v1215 = vld [vmem:[#allocation2 + $0x188] sm:$0xff]
        %v1216 = vld [vmem:[#allocation2 + $0x190] sm:$0x3]
        %v1217 = vld [vmem:[#allocation2 + $0x198] sm:$0xff]
        %v1218 = vld [vmem:[#allocation2 + $0x1a0] sm:$0xff]
        %v1219 = vld [vmem:[#allocation2 + $0x1a8] sm:$0x3]
        %v1220 = vld [vmem:[#allocation2 + $0x1b0] sm:$0xff]
        %v1221 = vld [vmem:[#allocation2 + $0x1b8] sm:$0xff]
        %v1222 = vld [vmem:[#allocation2 + $0x1c0] sm:$0x3]
        %v1223 = vld [vmem:[#allocation2 + $0x1c8] sm:$0xff]
        %v1224 = vld [vmem:[#allocation2 + $0x1d0] sm:$0xff]
        %v1225 = vld [vmem:[#allocation2 + $0x1d8] sm:$0x3]
        %v1226 = vld [vmem:[#allocation2 + $0x1e0] sm:$0xff]
        %v1227 = vld [vmem:[#allocation2 + $0x1e8] sm:$0xff]
        %v1228 = vld [vmem:[#allocation2 + $0x1f0] sm:$0x3]
        %v1229 = vld [vmem:[#allocation2 + $0x1f8] sm:$0xff]
        %v1230 = vld [vmem:[#allocation2 + $0x200] sm:$0xff]
        %v1231 = vld [vmem:[#allocation2 + $0x208] sm:$0x3]
        %v1232 = vld [vmem:[#allocation2 + $0x210] sm:$0xff]
        %v1233 = vld [vmem:[#allocation2 + $0x218] sm:$0xff]
        %v1234 = vld [vmem:[#allocation2 + $0x220] sm:$0x3]
        %v1235 = vld [vmem:[#allocation2 + $0x228] sm:$0xff]
        %v1236 = vld [vmem:[#allocation2 + $0x230] sm:$0xff]
        %v1237 = vld [vmem:[#allocation2 + $0x238] sm:$0x3]
        %v1238 = vld [vmem:[#allocation2 + $0x240] sm:$0xff]
        %v1239 = vld [vmem:[#allocation2 + $0x248] sm:$0xff]
        %v1240 = vld [vmem:[#allocation2 + $0x250] sm:$0x3]
        %v1241 = vld [vmem:[#allocation2 + $0x258] sm:$0xff]
        %v1242 = vld [vmem:[#allocation2 + $0x260] sm:$0xff]
        %v1243 = vld [vmem:[#allocation2 + $0x268] sm:$0x3]
        %v1244 = vld [vmem:[#allocation2 + $0x270] sm:$0xff]
        %v1245 = vld [vmem:[#allocation2 + $0x278] sm:$0xff]
        %v1246 = vld [vmem:[#allocation2 + $0x280] sm:$0x3]
        %v1247 = vld [vmem:[#allocation2 + $0x288] sm:$0xff]
        %v1248 = vld [vmem:[#allocation2 + $0x290] sm:$0xff]
        %v1249 = vld [vmem:[#allocation2 + $0x298] sm:$0x3]
        %v1250 = vld [vmem:[#allocation2 + $0x2a0] sm:$0xff]
        %v1251 = vld [vmem:[#allocation2 + $0x2a8] sm:$0xff]
        %v1252 = vld [vmem:[#allocation2 + $0x2b0] sm:$0x3]
        %v1253 = vld [vmem:[#allocation2 + $0x2b8] sm:$0xff]
        %v1254 = vld [vmem:[#allocation2 + $0x2c0] sm:$0xff]
        %v1255 = vld [vmem:[#allocation2 + $0x2c8] sm:$0x3]
        %v1256 = vld [vmem:[#allocation2 + $0x2d0] sm:$0xff]
        %v1257 = vld [vmem:[#allocation2 + $0x2d8] sm:$0xff]
        %v1258 = vld [vmem:[#allocation2 + $0x2e0] sm:$0x3]
        %v1259 = vld [vmem:[#allocation2 + $0x2e8] sm:$0xff]
        %v1260 = vld [vmem:[#allocation2 + $0x2f0] sm:$0xff]
        %v1261 = vld [vmem:[#allocation2 + $0x2f8] sm:$0x3]
        %v1262 = vld [vmem:[#allocation2 + $0x300] sm:$0xff]
        %v1263 = vld [vmem:[#allocation2 + $0x308] sm:$0xff]
        %v1264 = vld [vmem:[#allocation2 + $0x310] sm:$0x3]
        %v1265 = vld [vmem:[#allocation2 + $0x318] sm:$0xff]
        %v1266 = vld [vmem:[#allocation2 + $0x320] sm:$0xff]
        %v1267 = vld [vmem:[#allocation2 + $0x328] sm:$0x3]
        %v1268 = vld [vmem:[#allocation2 + $0x330] sm:$0xff]
        %v1269 = vld [vmem:[#allocation2 + $0x338] sm:$0xff]
        %v1270 = vld [vmem:[#allocation2 + $0x340] sm:$0x3]
        %v1271 = vld [vmem:[#allocation2 + $0x348] sm:$0xff]
        %v1272 = vld [vmem:[#allocation2 + $0x350] sm:$0xff]
        %v1273 = vld [vmem:[#allocation2 + $0x358] sm:$0x3]
        %v1274 = vpack.c.bf16 %v1167, %v1166
        %v1275 = vpack.c.bf16 %v1168, %v1168
        %v1276 = vpack.c.bf16 %v1170, %v1169
        %v1277 = vpack.c.bf16 %v1171, %v1171
        %v1278 = vpack.c.bf16 %v1173, %v1172
        %v1279 = vpack.c.bf16 %v1174, %v1174
        %v1280 = vpack.c.bf16 %v1176, %v1175
        %v1281 = vpack.c.bf16 %v1177, %v1177
        %v1282 = vpack.c.bf16 %v1179, %v1178
        %v1283 = vpack.c.bf16 %v1180, %v1180
        %v1284 = vpack.c.bf16 %v1182, %v1181
        %v1285 = vpack.c.bf16 %v1183, %v1183
        %v1286 = vpack.c.bf16 %v1185, %v1184
        %v1287 = vpack.c.bf16 %v1186, %v1186
        %v1288 = vpack.c.bf16 %v1188, %v1187
        %v1289 = vpack.c.bf16 %v1189, %v1189
        %v1290 = vpack.c.bf16 %v1191, %v1190
        %v1291 = vpack.c.bf16 %v1192, %v1192
        %v1292 = vpack.c.bf16 %v1194, %v1193
        %v1293 = vpack.c.bf16 %v1195, %v1195
        %v1294 = vpack.c.bf16 %v1197, %v1196
        %v1295 = vpack.c.bf16 %v1198, %v1198
        %v1296 = vpack.c.bf16 %v1200, %v1199
        %v1297 = vpack.c.bf16 %v1201, %v1201
        %v1298 = vpack.c.bf16 %v1203, %v1202
        %v1299 = vpack.c.bf16 %v1204, %v1204
        %v1300 = vpack.c.bf16 %v1206, %v1205
        %v1301 = vpack.c.bf16 %v1207, %v1207
        %v1302 = vpack.c.bf16 %v1209, %v1208
        %v1303 = vpack.c.bf16 %v1210, %v1210
        %v1304 = vpack.c.bf16 %v1212, %v1211
        %v1305 = vpack.c.bf16 %v1213, %v1213
        %v1306 = vpack.c.bf16 %v1215, %v1214
        %v1307 = vpack.c.bf16 %v1216, %v1216
        %v1308 = vpack.c.bf16 %v1218, %v1217
        %v1309 = vpack.c.bf16 %v1219, %v1219
        %v1310 = vpack.c.bf16 %v1221, %v1220
        %v1311 = vpack.c.bf16 %v1222, %v1222
        %v1312 = vpack.c.bf16 %v1224, %v1223
        %v1313 = vpack.c.bf16 %v1225, %v1225
        %v1314 = vpack.c.bf16 %v1227, %v1226
        %v1315 = vpack.c.bf16 %v1228, %v1228
        %v1316 = vpack.c.bf16 %v1230, %v1229
        %v1317 = vpack.c.bf16 %v1231, %v1231
        %v1318 = vpack.c.bf16 %v1233, %v1232
        %v1319 = vpack.c.bf16 %v1234, %v1234
        %v1320 = vpack.c.bf16 %v1236, %v1235
        %v1321 = vpack.c.bf16 %v1237, %v1237
        %v1322 = vpack.c.bf16 %v1239, %v1238
        %v1323 = vpack.c.bf16 %v1240, %v1240
        %v1324 = vpack.c.bf16 %v1242, %v1241
        %v1325 = vpack.c.bf16 %v1243, %v1243
        %v1326 = vpack.c.bf16 %v1245, %v1244
        %v1327 = vpack.c.bf16 %v1246, %v1246
        %v1328 = vpack.c.bf16 %v1248, %v1247
        %v1329 = vpack.c.bf16 %v1249, %v1249
        %v1330 = vpack.c.bf16 %v1251, %v1250
        %v1331 = vpack.c.bf16 %v1252, %v1252
        %v1332 = vpack.c.bf16 %v1254, %v1253
        %v1333 = vpack.c.bf16 %v1255, %v1255
        %v1334 = vpack.c.bf16 %v1257, %v1256
        %v1335 = vpack.c.bf16 %v1258, %v1258
        %v1336 = vpack.c.bf16 %v1260, %v1259
        %v1337 = vpack.c.bf16 %v1261, %v1261
        %v1338 = vpack.c.bf16 %v1263, %v1262
        %v1339 = vpack.c.bf16 %v1264, %v1264
        %v1340 = vpack.c.bf16 %v1266, %v1265
        %v1341 = vpack.c.bf16 %v1267, %v1267
        %v1342 = vpack.c.bf16 %v1269, %v1268
        %v1343 = vpack.c.bf16 %v1270, %v1270
        %v1344 = vpack.c.bf16 %v1272, %v1271
        %v1345 = vpack.c.bf16 %v1273, %v1273
        %v1346 = vld [vmem:[#allocation8] sm:$0xf]
        %v1347 = vld [vmem:[#allocation8 + $0x4] sm:$0xf]
        %v1348 = vld [vmem:[#allocation8 + $0x8] sm:$0xf]
        %v1349 = vld [vmem:[#allocation8 + $0xc] sm:$0xf]
        %v1350 = vld [vmem:[#allocation8 + $0x10] sm:$0xf]
        %v1351 = vld [vmem:[#allocation8 + $0x14] sm:$0xf]
        %v1352 = vld [vmem:[#allocation8 + $0x18] sm:$0xf]
        %v1353 = vld [vmem:[#allocation8 + $0x1c] sm:$0xf]
        %v1354 = vld [vmem:[#allocation8 + $0x20] sm:$0xf]
        %v1355 = vld [vmem:[#allocation8 + $0x24] sm:$0xf]
        %v1356 = vld [vmem:[#allocation8 + $0x28] sm:$0xf]
        %v1357 = vld [vmem:[#allocation8 + $0x2c] sm:$0xf]
        %v1358 = vld [vmem:[#allocation8 + $0x30] sm:$0xf]
        %v1359 = vld [vmem:[#allocation8 + $0x34] sm:$0xf]
        %v1360 = vld [vmem:[#allocation8 + $0x38] sm:$0xf]
        %v1361 = vld [vmem:[#allocation8 + $0x3c] sm:$0xf]
        %vm1362 = vsmask.f32 7424
        %v1364 = vshrl.u32 %v1274, 16
        %v1366 = vshll.u32 %v1274, 16
        %v1368 = vrot.slane %v1366, 1
        %v1369 = vor.u32 %v1364, %v1368
        %v1371 = vshll.u32 %v1275, 16
        %v1373 = vrot.slane %v1371, 1
        %v1374 = vsel %vm1362, %v1369, %v1373
        %v1376 = vshrl.u32 %v1276, 16
        %v1378 = vshll.u32 %v1276, 16
        %v1380 = vrot.slane %v1378, 1
        %v1381 = vor.u32 %v1376, %v1380
        %v1383 = vshll.u32 %v1277, 16
        %v1385 = vrot.slane %v1383, 1
        %v1386 = vsel %vm1362, %v1381, %v1385
        %v1388 = vshrl.u32 %v1278, 16
        %v1390 = vshll.u32 %v1278, 16
        %v1392 = vrot.slane %v1390, 1
        %v1393 = vor.u32 %v1388, %v1392
        %v1395 = vshll.u32 %v1279, 16
        %v1397 = vrot.slane %v1395, 1
        %v1398 = vsel %vm1362, %v1393, %v1397
        %v1400 = vshrl.u32 %v1280, 16
        %v1402 = vshll.u32 %v1280, 16
        %v1404 = vrot.slane %v1402, 1
        %v1405 = vor.u32 %v1400, %v1404
        %v1407 = vshll.u32 %v1281, 16
        %v1409 = vrot.slane %v1407, 1
        %v1410 = vsel %vm1362, %v1405, %v1409
        %v1412 = vshrl.u32 %v1282, 16
        %v1414 = vshll.u32 %v1282, 16
        %v1416 = vrot.slane %v1414, 1
        %v1417 = vor.u32 %v1412, %v1416
        %v1419 = vshll.u32 %v1283, 16
        %v1421 = vrot.slane %v1419, 1
        %v1422 = vsel %vm1362, %v1417, %v1421
        %v1424 = vshrl.u32 %v1284, 16
        %v1426 = vshll.u32 %v1284, 16
        %v1428 = vrot.slane %v1426, 1
        %v1429 = vor.u32 %v1424, %v1428
        %v1431 = vshll.u32 %v1285, 16
        %v1433 = vrot.slane %v1431, 1
        %v1434 = vsel %vm1362, %v1429, %v1433
        %v1436 = vshrl.u32 %v1286, 16
        %v1438 = vshll.u32 %v1286, 16
        %v1440 = vrot.slane %v1438, 1
        %v1441 = vor.u32 %v1436, %v1440
        %v1443 = vshll.u32 %v1287, 16
        %v1445 = vrot.slane %v1443, 1
        %v1446 = vsel %vm1362, %v1441, %v1445
        %v1448 = vshrl.u32 %v1288, 16
        %v1450 = vshll.u32 %v1288, 16
        %v1452 = vrot.slane %v1450, 1
        %v1453 = vor.u32 %v1448, %v1452
        %v1455 = vshll.u32 %v1289, 16
        %v1457 = vrot.slane %v1455, 1
        %v1458 = vsel %vm1362, %v1453, %v1457
        %v1460 = vshrl.u32 %v1290, 16
        %v1462 = vshll.u32 %v1290, 16
        %v1464 = vrot.slane %v1462, 1
        %v1465 = vor.u32 %v1460, %v1464
        %v1467 = vshll.u32 %v1291, 16
        %v1469 = vrot.slane %v1467, 1
        %v1470 = vsel %vm1362, %v1465, %v1469
        %v1472 = vshrl.u32 %v1292, 16
        %v1474 = vshll.u32 %v1292, 16
        %v1476 = vrot.slane %v1474, 1
        %v1477 = vor.u32 %v1472, %v1476
        %v1479 = vshll.u32 %v1293, 16
        %v1481 = vrot.slane %v1479, 1
        %v1482 = vsel %vm1362, %v1477, %v1481
        %v1484 = vshrl.u32 %v1294, 16
        %v1486 = vshll.u32 %v1294, 16
        %v1488 = vrot.slane %v1486, 1
        %v1489 = vor.u32 %v1484, %v1488
        %v1491 = vshll.u32 %v1295, 16
        %v1493 = vrot.slane %v1491, 1
        %v1494 = vsel %vm1362, %v1489, %v1493
        %v1496 = vshrl.u32 %v1296, 16
        %v1498 = vshll.u32 %v1296, 16
        %v1500 = vrot.slane %v1498, 1
        %v1501 = vor.u32 %v1496, %v1500
        %v1503 = vshll.u32 %v1297, 16
        %v1505 = vrot.slane %v1503, 1
        %v1506 = vsel %vm1362, %v1501, %v1505
        %v1508 = vshrl.u32 %v1298, 16
        %v1510 = vshll.u32 %v1298, 16
        %v1512 = vrot.slane %v1510, 1
        %v1513 = vor.u32 %v1508, %v1512
        %v1515 = vshll.u32 %v1299, 16
        %v1517 = vrot.slane %v1515, 1
        %v1518 = vsel %vm1362, %v1513, %v1517
        %v1520 = vshrl.u32 %v1300, 16
        %v1522 = vshll.u32 %v1300, 16
        %v1524 = vrot.slane %v1522, 1
        %v1525 = vor.u32 %v1520, %v1524
        %v1527 = vshll.u32 %v1301, 16
        %v1529 = vrot.slane %v1527, 1
        %v1530 = vsel %vm1362, %v1525, %v1529
        %v1532 = vshrl.u32 %v1302, 16
        %v1534 = vshll.u32 %v1302, 16
        %v1536 = vrot.slane %v1534, 1
        %v1537 = vor.u32 %v1532, %v1536
        %v1539 = vshll.u32 %v1303, 16
        %v1541 = vrot.slane %v1539, 1
        %v1542 = vsel %vm1362, %v1537, %v1541
        %v1544 = vshrl.u32 %v1304, 16
        %v1546 = vshll.u32 %v1304, 16
        %v1548 = vrot.slane %v1546, 1
        %v1549 = vor.u32 %v1544, %v1548
        %v1551 = vshll.u32 %v1305, 16
        %v1553 = vrot.slane %v1551, 1
        %v1554 = vsel %vm1362, %v1549, %v1553
        %v1556 = vshrl.u32 %v1310, 16
        %v1558 = vshll.u32 %v1310, 16
        %v1560 = vrot.slane %v1558, 1
        %v1561 = vor.u32 %v1556, %v1560
        %v1563 = vshll.u32 %v1311, 16
        %v1565 = vrot.slane %v1563, 1
        %v1566 = vsel %vm1362, %v1561, %v1565
        %v1568 = vshrl.u32 %v1312, 16
        %v1570 = vshll.u32 %v1312, 16
        %v1572 = vrot.slane %v1570, 1
        %v1573 = vor.u32 %v1568, %v1572
        %v1575 = vshll.u32 %v1313, 16
        %v1577 = vrot.slane %v1575, 1
        %v1578 = vsel %vm1362, %v1573, %v1577
        %v1580 = vshrl.u32 %v1314, 16
        %v1582 = vshll.u32 %v1314, 16
        %v1584 = vrot.slane %v1582, 1
        %v1585 = vor.u32 %v1580, %v1584
        %v1587 = vshll.u32 %v1315, 16
        %v1589 = vrot.slane %v1587, 1
        %v1590 = vsel %vm1362, %v1585, %v1589
        %v1592 = vshrl.u32 %v1316, 16
        %v1594 = vshll.u32 %v1316, 16
        %v1596 = vrot.slane %v1594, 1
        %v1597 = vor.u32 %v1592, %v1596
        %v1599 = vshll.u32 %v1317, 16
        %v1601 = vrot.slane %v1599, 1
        %v1602 = vsel %vm1362, %v1597, %v1601
        %v1604 = vshrl.u32 %v1318, 16
        %v1606 = vshll.u32 %v1318, 16
        %v1608 = vrot.slane %v1606, 1
        %v1609 = vor.u32 %v1604, %v1608
        %v1611 = vshll.u32 %v1319, 16
        %v1613 = vrot.slane %v1611, 1
        %v1614 = vsel %vm1362, %v1609, %v1613
        %v1616 = vshrl.u32 %v1320, 16
        %v1618 = vshll.u32 %v1320, 16
        %v1620 = vrot.slane %v1618, 1
        %v1621 = vor.u32 %v1616, %v1620
        %v1623 = vshll.u32 %v1321, 16
        %v1625 = vrot.slane %v1623, 1
        %v1626 = vsel %vm1362, %v1621, %v1625
        %v1628 = vshrl.u32 %v1322, 16
        %v1630 = vshll.u32 %v1322, 16
        %v1632 = vrot.slane %v1630, 1
        %v1633 = vor.u32 %v1628, %v1632
        %v1635 = vshll.u32 %v1323, 16
        %v1637 = vrot.slane %v1635, 1
        %v1638 = vsel %vm1362, %v1633, %v1637
        %v1640 = vshrl.u32 %v1324, 16
        %v1642 = vshll.u32 %v1324, 16
        %v1644 = vrot.slane %v1642, 1
        %v1645 = vor.u32 %v1640, %v1644
        %v1647 = vshll.u32 %v1325, 16
        %v1649 = vrot.slane %v1647, 1
        %v1650 = vsel %vm1362, %v1645, %v1649
        %v1652 = vshrl.u32 %v1326, 16
        %v1654 = vshll.u32 %v1326, 16
        %v1656 = vrot.slane %v1654, 1
        %v1657 = vor.u32 %v1652, %v1656
        %v1659 = vshll.u32 %v1327, 16
        %v1661 = vrot.slane %v1659, 1
        %v1662 = vsel %vm1362, %v1657, %v1661
        %v1664 = vshrl.u32 %v1328, 16
        %v1666 = vshll.u32 %v1328, 16
        %v1668 = vrot.slane %v1666, 1
        %v1669 = vor.u32 %v1664, %v1668
        %v1671 = vshll.u32 %v1329, 16
        %v1673 = vrot.slane %v1671, 1
        %v1674 = vsel %vm1362, %v1669, %v1673
        %v1676 = vshrl.u32 %v1330, 16
        %v1678 = vshll.u32 %v1330, 16
        %v1680 = vrot.slane %v1678, 1
        %v1681 = vor.u32 %v1676, %v1680
        %v1683 = vshll.u32 %v1331, 16
        %v1685 = vrot.slane %v1683, 1
        %v1686 = vsel %vm1362, %v1681, %v1685
        %v1688 = vshrl.u32 %v1332, 16
        %v1690 = vshll.u32 %v1332, 16
        %v1692 = vrot.slane %v1690, 1
        %v1693 = vor.u32 %v1688, %v1692
        %v1695 = vshll.u32 %v1333, 16
        %v1697 = vrot.slane %v1695, 1
        %v1698 = vsel %vm1362, %v1693, %v1697
        %v1700 = vshrl.u32 %v1334, 16
        %v1702 = vshll.u32 %v1334, 16
        %v1704 = vrot.slane %v1702, 1
        %v1705 = vor.u32 %v1700, %v1704
        %v1707 = vshll.u32 %v1335, 16
        %v1709 = vrot.slane %v1707, 1
        %v1710 = vsel %vm1362, %v1705, %v1709
        %v1712 = vshrl.u32 %v1336, 16
        %v1714 = vshll.u32 %v1336, 16
        %v1716 = vrot.slane %v1714, 1
        %v1717 = vor.u32 %v1712, %v1716
        %v1719 = vshll.u32 %v1337, 16
        %v1721 = vrot.slane %v1719, 1
        %v1722 = vsel %vm1362, %v1717, %v1721
        %v1724 = vshrl.u32 %v1338, 16
        %v1726 = vshll.u32 %v1338, 16
        %v1728 = vrot.slane %v1726, 1
        %v1729 = vor.u32 %v1724, %v1728
        %v1731 = vshll.u32 %v1339, 16
        %v1733 = vrot.slane %v1731, 1
        %v1734 = vsel %vm1362, %v1729, %v1733
        %v1736 = vshrl.u32 %v1340, 16
        %v1738 = vshll.u32 %v1340, 16
        %v1740 = vrot.slane %v1738, 1
        %v1741 = vor.u32 %v1736, %v1740
        %v1743 = vshll.u32 %v1341, 16
        %v1745 = vrot.slane %v1743, 1
        %v1746 = vsel %vm1362, %v1741, %v1745
        %s1779 = scalar_lea.vmem [#allocation8], 64
        %v1780 = vld [vmem:[%s1779] sm:$0xf]
        %v1781 = vld [vmem:[%s1779 + $0x4] sm:$0xf]
        %v1782 = vld [vmem:[%s1779 + $0x8] sm:$0xf]
        %v1783 = vld [vmem:[%s1779 + $0xc] sm:$0xf]
        %v1784 = vld [vmem:[%s1779 + $0x10] sm:$0xf]
        %v1785 = vld [vmem:[%s1779 + $0x14] sm:$0xf]
        %v1786 = vld [vmem:[%s1779 + $0x18] sm:$0xf]
        %v1787 = vld [vmem:[%s1779 + $0x1c] sm:$0xf]
        %v1788 = vld [vmem:[%s1779 + $0x20] sm:$0xf]
        %v1789 = vld [vmem:[%s1779 + $0x24] sm:$0xf]
        %v1790 = vld [vmem:[%s1779 + $0x28] sm:$0xf]
        %v1791 = vld [vmem:[%s1779 + $0x2c] sm:$0xf]
        %v1792 = vld [vmem:[%s1779 + $0x30] sm:$0xf]
        %v1793 = vld [vmem:[%s1779 + $0x34] sm:$0xf]
        %v1794 = vld [vmem:[%s1779 + $0x38] sm:$0xf]
        %v1795 = vld [vmem:[%s1779 + $0x3c] sm:$0xf]
        %v1812 = vunpack.c.l.b16 %v1780
        %v1813 = vunpack.c.l.b16 %v1781
        %v1814 = vunpack.c.l.b16 %v1782
        %v1815 = vunpack.c.l.b16 %v1783
        %v1816 = vunpack.c.l.b16 %v1784
        %v1817 = vunpack.c.l.b16 %v1785
        %v1818 = vunpack.c.l.b16 %v1786
        %v1819 = vunpack.c.l.b16 %v1787
        %v1820 = vunpack.c.l.b16 %v1788
        %v1821 = vunpack.c.l.b16 %v1789
        %v1822 = vunpack.c.l.b16 %v1790
        %v1823 = vunpack.c.l.b16 %v1791
        %v1824 = vunpack.c.l.b16 %v1792
        %v1825 = vunpack.c.l.b16 %v1793
        %v1826 = vunpack.c.l.b16 %v1794
        %v1827 = vunpack.c.l.b16 %v1795
        %v1828 = vpack.c.b16 %v1813, %v1812
        %v1829 = vpack.c.b16 %v1815, %v1814
        %v1830 = vpack.c.b16 %v1817, %v1816
        %v1831 = vpack.c.b16 %v1819, %v1818
        %v1832 = vpack.c.b16 %v1821, %v1820
        %v1833 = vpack.c.b16 %v1823, %v1822
        %v1834 = vpack.c.b16 %v1825, %v1824
        %v1835 = vpack.c.b16 %v1827, %v1826
        %1844 = vmatprep.subr.bf16.mxu0 0
        %1845 = vmatpush1.bf16.msra.mxu0 %v1835
        %1846 = vmatprep.subr.bf16.mxu0 0
        %1847 = vmatpush1.bf16.msra.mxu0 %v1834
        %1848 = vmatprep.subr.bf16.mxu0 0
        %1849 = vmatpush1.bf16.msra.mxu0 %v1833
        %1850 = vmatprep.subr.bf16.mxu0 0
        %1851 = vmatpush1.bf16.msra.mxu0 %v1832
        %1852 = vmatprep.subr.bf16.mxu0 0
        %1853 = vmatpush1.bf16.msra.mxu0 %v1831
        %1854 = vmatprep.subr.bf16.mxu0 0
        %1855 = vmatpush1.bf16.msra.mxu0 %v1830
        %1856 = vmatprep.subr.bf16.mxu0 0
        %1857 = vmatpush1.bf16.msra.mxu0 %v1829
        %1858 = vmatprep.subr.bf16.mxu0 0
        %1859 = vmatpush1.bf16.msra.mxu0 %v1828
        %1860 = vmatprep.subr.bf16.mxu0 0
        %1861 = vmatpush2.bf16.msra.mxu0 0
        %1862 = vmatprep.subr.bf16.mxu0 0
        %1863 = vmatpush2.bf16.msra.mxu0 0
        %1864 = vmatprep.subr.bf16.mxu0 0
        %1865 = vmatpush2.bf16.msra.mxu0 0
        %1866 = vmatprep.subr.bf16.mxu0 0
        %1867 = vmatpush2.bf16.msra.mxu0 0
        %1868 = vmatprep.subr.bf16.mxu0 0
        %1869 = vmatpush2.bf16.msra.mxu0 0
        %1870 = vmatprep.subr.bf16.mxu0 0
        %1871 = vmatpush2.bf16.msra.mxu0 0
        %1872 = vmatprep.subr.bf16.mxu0 0
        %1873 = vmatpush2.bf16.msra.mxu0 0
        %1874 = vmatprep.subr.bf16.mxu0 0
        %1875 = vmatpush2.bf16.msra.mxu0 0
        %1876 = vmatprep.mubr.bf16.mxu0 0
        %1877 = vmatmul.mubr.bf16.gmra.mxu0 %v1374
        %v1878 = vpop.f32.mrf.mxu0
        %v1879 = vadd.f32 0.0, %v1878
        %v1880 = vpop.f32.mrf.mxu0
        %v1881 = vpop.f32.mrf.mxu0
        %v1882 = vadd.f32 0.0, %v1881
        %v1883 = vpop.f32.mrf.mxu0
        %1884 = vmatprep.mubr.bf16.mxu0 0
        %1885 = vmatmul.mubr.bf16.gmra.mxu0 %v1386
        %v1886 = vpop.f32.mrf.mxu0
        %v1887 = vadd.f32 0.0, %v1886
        %v1888 = vpop.f32.mrf.mxu0
        %v1889 = vpop.f32.mrf.mxu0
        %v1890 = vadd.f32 0.0, %v1889
        %v1891 = vpop.f32.mrf.mxu0
        %1892 = vmatprep.mubr.bf16.mxu0 0
        %1893 = vmatmul.mubr.bf16.gmra.mxu0 %v1398
        %v1894 = vpop.f32.mrf.mxu0
        %v1895 = vadd.f32 0.0, %v1894
        %v1896 = vpop.f32.mrf.mxu0
        %v1897 = vpop.f32.mrf.mxu0
        %v1898 = vadd.f32 0.0, %v1897
        %v1899 = vpop.f32.mrf.mxu0
        %1900 = vmatprep.mubr.bf16.mxu0 0
        %1901 = vmatmul.mubr.bf16.gmra.mxu0 %v1410
        %v1902 = vpop.f32.mrf.mxu0
        %v1903 = vadd.f32 0.0, %v1902
        %v1904 = vpop.f32.mrf.mxu0
        %v1905 = vpop.f32.mrf.mxu0
        %v1906 = vadd.f32 0.0, %v1905
        %v1907 = vpop.f32.mrf.mxu0
        %1908 = vmatprep.mubr.bf16.mxu0 0
        %1909 = vmatmul.mubr.bf16.gmra.mxu0 %v1422
        %v1910 = vpop.f32.mrf.mxu0
        %v1911 = vadd.f32 0.0, %v1910
        %v1912 = vpop.f32.mrf.mxu0
        %v1913 = vpop.f32.mrf.mxu0
        %v1914 = vadd.f32 0.0, %v1913
        %v1915 = vpop.f32.mrf.mxu0
        %1916 = vmatprep.mubr.bf16.mxu0 0
        %1917 = vmatmul.mubr.bf16.gmra.mxu0 %v1434
        %v1918 = vpop.f32.mrf.mxu0
        %v1919 = vadd.f32 0.0, %v1918
        %v1920 = vpop.f32.mrf.mxu0
        %v1921 = vpop.f32.mrf.mxu0
        %v1922 = vadd.f32 0.0, %v1921
        %v1923 = vpop.f32.mrf.mxu0
        %1924 = vmatprep.mubr.bf16.mxu0 0
        %1925 = vmatmul.mubr.bf16.gmra.mxu0 %v1446
        %v1926 = vpop.f32.mrf.mxu0
        %v1927 = vadd.f32 0.0, %v1926
        %v1928 = vpop.f32.mrf.mxu0
        %v1929 = vpop.f32.mrf.mxu0
        %v1930 = vadd.f32 0.0, %v1929
        %v1931 = vpop.f32.mrf.mxu0
        %1932 = vmatprep.mubr.bf16.mxu0 0
        %1933 = vmatmul.mubr.bf16.gmra.mxu0 %v1458
        %v1934 = vpop.f32.mrf.mxu0
        %v1935 = vadd.f32 0.0, %v1934
        %v1936 = vpop.f32.mrf.mxu0
        %v1937 = vpop.f32.mrf.mxu0
        %v1938 = vadd.f32 0.0, %v1937
        %v1939 = vpop.f32.mrf.mxu0
        %1940 = vmatprep.mubr.bf16.mxu0 0
        %1941 = vmatmul.mubr.bf16.gmra.mxu0 %v1470
        %v1942 = vpop.f32.mrf.mxu0
        %v1943 = vadd.f32 0.0, %v1942
        %v1944 = vpop.f32.mrf.mxu0
        %v1945 = vpop.f32.mrf.mxu0
        %v1946 = vadd.f32 0.0, %v1945
        %v1947 = vpop.f32.mrf.mxu0
        %1948 = vmatprep.mubr.bf16.mxu0 0
        %1949 = vmatmul.mubr.bf16.gmra.mxu0 %v1482
        %v1950 = vpop.f32.mrf.mxu0
        %v1951 = vadd.f32 0.0, %v1950
        %v1952 = vpop.f32.mrf.mxu0
        %v1953 = vpop.f32.mrf.mxu0
        %v1954 = vadd.f32 0.0, %v1953
        %v1955 = vpop.f32.mrf.mxu0
        %1956 = vmatprep.mubr.bf16.mxu0 0
        %1957 = vmatmul.mubr.bf16.gmra.mxu0 %v1494
        %v1958 = vpop.f32.mrf.mxu0
        %v1959 = vadd.f32 0.0, %v1958
        %v1960 = vpop.f32.mrf.mxu0
        %v1961 = vpop.f32.mrf.mxu0
        %v1962 = vadd.f32 0.0, %v1961
        %v1963 = vpop.f32.mrf.mxu0
        %1964 = vmatprep.mubr.bf16.mxu0 0
        %1965 = vmatmul.mubr.bf16.gmra.mxu0 %v1506
        %v1966 = vpop.f32.mrf.mxu0
        %v1967 = vadd.f32 0.0, %v1966
        %v1968 = vpop.f32.mrf.mxu0
        %v1969 = vpop.f32.mrf.mxu0
        %v1970 = vadd.f32 0.0, %v1969
        %v1971 = vpop.f32.mrf.mxu0
        %1972 = vmatprep.mubr.bf16.mxu0 0
        %1973 = vmatmul.mubr.bf16.gmra.mxu0 %v1518
        %v1974 = vpop.f32.mrf.mxu0
        %v1975 = vadd.f32 0.0, %v1974
        %v1976 = vpop.f32.mrf.mxu0
        %v1977 = vpop.f32.mrf.mxu0
        %v1978 = vadd.f32 0.0, %v1977
        %v1979 = vpop.f32.mrf.mxu0
        %1980 = vmatprep.mubr.bf16.mxu0 0
        %1981 = vmatmul.mubr.bf16.gmra.mxu0 %v1530
        %v1982 = vpop.f32.mrf.mxu0
        %v1983 = vadd.f32 0.0, %v1982
        %v1984 = vpop.f32.mrf.mxu0
        %v1985 = vpop.f32.mrf.mxu0
        %v1986 = vadd.f32 0.0, %v1985
        %v1987 = vpop.f32.mrf.mxu0
        %1988 = vmatprep.mubr.bf16.mxu0 0
        %1989 = vmatmul.mubr.bf16.gmra.mxu0 %v1542
        %v1990 = vpop.f32.mrf.mxu0
        %v1991 = vadd.f32 0.0, %v1990
        %v1992 = vpop.f32.mrf.mxu0
        %v1993 = vpop.f32.mrf.mxu0
        %v1994 = vadd.f32 0.0, %v1993
        %v1995 = vpop.f32.mrf.mxu0
        %1996 = vmatprep.mubr.bf16.mxu0 0
        %1997 = vmatmul.mubr.bf16.gmra.mxu0 %v1554
        %v1998 = vpop.f32.mrf.mxu0
        %v1999 = vadd.f32 0.0, %v1998
        %v2000 = vpop.f32.mrf.mxu0
        %v2001 = vpop.f32.mrf.mxu0
        %v2002 = vadd.f32 0.0, %v2001
        %v2003 = vpop.f32.mrf.mxu0
        %2004 = vmatprep.mubr.bf16.mxu0 0
        %2005 = vmatmul.mubr.bf16.gmra.mxu0 %v1566
        %v2006 = vpop.f32.mrf.mxu0
        %v2007 = vadd.f32 0.0, %v2006
        %v2008 = vpop.f32.mrf.mxu0
        %v2009 = vpop.f32.mrf.mxu0
        %v2010 = vadd.f32 0.0, %v2009
        %v2011 = vpop.f32.mrf.mxu0
        %2012 = vmatprep.mubr.bf16.mxu0 0
        %2013 = vmatmul.mubr.bf16.gmra.mxu0 %v1578
        %v2014 = vpop.f32.mrf.mxu0
        %v2015 = vadd.f32 0.0, %v2014
        %v2016 = vpop.f32.mrf.mxu0
        %v2017 = vpop.f32.mrf.mxu0
        %v2018 = vadd.f32 0.0, %v2017
        %v2019 = vpop.f32.mrf.mxu0
        %2020 = vmatprep.mubr.bf16.mxu0 0
        %2021 = vmatmul.mubr.bf16.gmra.mxu0 %v1590
        %v2022 = vpop.f32.mrf.mxu0
        %v2023 = vadd.f32 0.0, %v2022
        %v2024 = vpop.f32.mrf.mxu0
        %v2025 = vpop.f32.mrf.mxu0
        %v2026 = vadd.f32 0.0, %v2025
        %v2027 = vpop.f32.mrf.mxu0
        %2028 = vmatprep.mubr.bf16.mxu0 0
        %2029 = vmatmul.mubr.bf16.gmra.mxu0 %v1602
        %v2030 = vpop.f32.mrf.mxu0
        %v2031 = vadd.f32 0.0, %v2030
        %v2032 = vpop.f32.mrf.mxu0
        %v2033 = vpop.f32.mrf.mxu0
        %v2034 = vadd.f32 0.0, %v2033
        %v2035 = vpop.f32.mrf.mxu0
        %2036 = vmatprep.mubr.bf16.mxu0 0
        %2037 = vmatmul.mubr.bf16.gmra.mxu0 %v1614
        %v2038 = vpop.f32.mrf.mxu0
        %v2039 = vadd.f32 0.0, %v2038
        %v2040 = vpop.f32.mrf.mxu0
        %v2041 = vpop.f32.mrf.mxu0
        %v2042 = vadd.f32 0.0, %v2041
        %v2043 = vpop.f32.mrf.mxu0
        %2044 = vmatprep.mubr.bf16.mxu0 0
        %2045 = vmatmul.mubr.bf16.gmra.mxu0 %v1626
        %v2046 = vpop.f32.mrf.mxu0
        %v2047 = vadd.f32 0.0, %v2046
        %v2048 = vpop.f32.mrf.mxu0
        %v2049 = vpop.f32.mrf.mxu0
        %v2050 = vadd.f32 0.0, %v2049
        %v2051 = vpop.f32.mrf.mxu0
        %2052 = vmatprep.mubr.bf16.mxu0 0
        %2053 = vmatmul.mubr.bf16.gmra.mxu0 %v1638
        %v2054 = vpop.f32.mrf.mxu0
        %v2055 = vadd.f32 0.0, %v2054
        %v2056 = vpop.f32.mrf.mxu0
        %v2057 = vpop.f32.mrf.mxu0
        %v2058 = vadd.f32 0.0, %v2057
        %v2059 = vpop.f32.mrf.mxu0
        %2060 = vmatprep.mubr.bf16.mxu0 0
        %2061 = vmatmul.mubr.bf16.gmra.mxu0 %v1650
        %v2062 = vpop.f32.mrf.mxu0
        %v2063 = vadd.f32 0.0, %v2062
        %v2064 = vpop.f32.mrf.mxu0
        %v2065 = vpop.f32.mrf.mxu0
        %v2066 = vadd.f32 0.0, %v2065
        %v2067 = vpop.f32.mrf.mxu0
        %2068 = vmatprep.mubr.bf16.mxu0 0
        %2069 = vmatmul.mubr.bf16.gmra.mxu0 %v1662
        %v2070 = vpop.f32.mrf.mxu0
        %v2071 = vadd.f32 0.0, %v2070
        %v2072 = vpop.f32.mrf.mxu0
        %v2073 = vpop.f32.mrf.mxu0
        %v2074 = vadd.f32 0.0, %v2073
        %v2075 = vpop.f32.mrf.mxu0
        %2076 = vmatprep.mubr.bf16.mxu0 0
        %2077 = vmatmul.mubr.bf16.gmra.mxu0 %v1674
        %v2078 = vpop.f32.mrf.mxu0
        %v2079 = vadd.f32 0.0, %v2078
        %v2080 = vpop.f32.mrf.mxu0
        %v2081 = vpop.f32.mrf.mxu0
        %v2082 = vadd.f32 0.0, %v2081
        %v2083 = vpop.f32.mrf.mxu0
        %2084 = vmatprep.mubr.bf16.mxu0 0
        %2085 = vmatmul.mubr.bf16.gmra.mxu0 %v1686
        %v2086 = vpop.f32.mrf.mxu0
        %v2087 = vadd.f32 0.0, %v2086
        %v2088 = vpop.f32.mrf.mxu0
        %v2089 = vpop.f32.mrf.mxu0
        %v2090 = vadd.f32 0.0, %v2089
        %v2091 = vpop.f32.mrf.mxu0
        %2092 = vmatprep.mubr.bf16.mxu0 0
        %2093 = vmatmul.mubr.bf16.gmra.mxu0 %v1698
        %v2094 = vpop.f32.mrf.mxu0
        %v2095 = vadd.f32 0.0, %v2094
        %v2096 = vpop.f32.mrf.mxu0
        %v2097 = vpop.f32.mrf.mxu0
        %v2098 = vadd.f32 0.0, %v2097
        %v2099 = vpop.f32.mrf.mxu0
        %2100 = vmatprep.mubr.bf16.mxu0 0
        %2101 = vmatmul.mubr.bf16.gmra.mxu0 %v1710
        %v2102 = vpop.f32.mrf.mxu0
        %v2103 = vadd.f32 0.0, %v2102
        %v2104 = vpop.f32.mrf.mxu0
        %v2105 = vpop.f32.mrf.mxu0
        %v2106 = vadd.f32 0.0, %v2105
        %v2107 = vpop.f32.mrf.mxu0
        %2108 = vmatprep.mubr.bf16.mxu0 0
        %2109 = vmatmul.mubr.bf16.gmra.mxu0 %v1722
        %v2110 = vpop.f32.mrf.mxu0
        %v2111 = vadd.f32 0.0, %v2110
        %v2112 = vpop.f32.mrf.mxu0
        %v2113 = vpop.f32.mrf.mxu0
        %v2114 = vadd.f32 0.0, %v2113
        %v2115 = vpop.f32.mrf.mxu0
        %2116 = vmatprep.mubr.bf16.mxu0 0
        %2117 = vmatmul.mubr.bf16.gmra.mxu0 %v1734
        %v2118 = vpop.f32.mrf.mxu0
        %v2119 = vadd.f32 0.0, %v2118
        %v2120 = vpop.f32.mrf.mxu0
        %v2121 = vpop.f32.mrf.mxu0
        %v2122 = vadd.f32 0.0, %v2121
        %v2123 = vpop.f32.mrf.mxu0
        %2124 = vmatprep.mubr.bf16.mxu0 0
        %2125 = vmatmul.mubr.bf16.gmra.mxu0 %v1746
        %v2126 = vpop.f32.mrf.mxu0
        %v2127 = vadd.f32 0.0, %v2126
        %v2128 = vpop.f32.mrf.mxu0
        %v2129 = vpop.f32.mrf.mxu0
        %v2130 = vadd.f32 0.0, %v2129
        %v2131 = vpop.f32.mrf.mxu0
        %2132 = vdwg.mxu0
        %v2149 = vunpack.c.l.b16 %v1346
        %v2150 = vunpack.c.l.b16 %v1347
        %v2151 = vunpack.c.l.b16 %v1348
        %v2152 = vunpack.c.l.b16 %v1349
        %v2153 = vunpack.c.l.b16 %v1350
        %v2154 = vunpack.c.l.b16 %v1351
        %v2155 = vunpack.c.l.b16 %v1352
        %v2156 = vunpack.c.l.b16 %v1353
        %v2157 = vunpack.c.l.b16 %v1354
        %v2158 = vunpack.c.l.b16 %v1355
        %v2159 = vunpack.c.l.b16 %v1356
        %v2160 = vunpack.c.l.b16 %v1357
        %v2161 = vunpack.c.l.b16 %v1358
        %v2162 = vunpack.c.l.b16 %v1359
        %v2163 = vunpack.c.l.b16 %v1360
        %v2164 = vunpack.c.l.b16 %v1361
        %v2165 = vpack.c.b16 %v2150, %v2149
        %v2166 = vpack.c.b16 %v2152, %v2151
        %v2167 = vpack.c.b16 %v2154, %v2153
        %v2168 = vpack.c.b16 %v2156, %v2155
        %v2169 = vpack.c.b16 %v2158, %v2157
        %v2170 = vpack.c.b16 %v2160, %v2159
        %v2171 = vpack.c.b16 %v2162, %v2161
        %v2172 = vpack.c.b16 %v2164, %v2163
        %2181 = vmatprep.subr.bf16.mxu0 0
        %2182 = vmatpush1.bf16.msra.mxu0 %v2172
        %2183 = vmatprep.subr.bf16.mxu0 0
        %2184 = vmatpush1.bf16.msra.mxu0 %v2171
        %2185 = vmatprep.subr.bf16.mxu0 0
        %2186 = vmatpush1.bf16.msra.mxu0 %v2170
        %2187 = vmatprep.subr.bf16.mxu0 0
        %2188 = vmatpush1.bf16.msra.mxu0 %v2169
        %2189 = vmatprep.subr.bf16.mxu0 0
        %2190 = vmatpush1.bf16.msra.mxu0 %v2168
        %2191 = vmatprep.subr.bf16.mxu0 0
        %2192 = vmatpush1.bf16.msra.mxu0 %v2167
        %2193 = vmatprep.subr.bf16.mxu0 0
        %2194 = vmatpush1.bf16.msra.mxu0 %v2166
        %2195 = vmatprep.subr.bf16.mxu0 0
        %2196 = vmatpush1.bf16.msra.mxu0 %v2165
        %2197 = vmatprep.subr.bf16.mxu0 0
        %2198 = vmatpush2.bf16.msra.mxu0 0
        %2199 = vmatprep.subr.bf16.mxu0 0
        %2200 = vmatpush2.bf16.msra.mxu0 0
        %2201 = vmatprep.subr.bf16.mxu0 0
        %2202 = vmatpush2.bf16.msra.mxu0 0
        %2203 = vmatprep.subr.bf16.mxu0 0
        %2204 = vmatpush2.bf16.msra.mxu0 0
        %2205 = vmatprep.subr.bf16.mxu0 0
        %2206 = vmatpush2.bf16.msra.mxu0 0
        %2207 = vmatprep.subr.bf16.mxu0 0
        %2208 = vmatpush2.bf16.msra.mxu0 0
        %2209 = vmatprep.subr.bf16.mxu0 0
        %2210 = vmatpush2.bf16.msra.mxu0 0
        %2211 = vmatprep.subr.bf16.mxu0 0
        %2212 = vmatpush2.bf16.msra.mxu0 0
        %2213 = vmatprep.mubr.bf16.mxu0 0
        %2214 = vmatmul.mubr.bf16.gmra.mxu0 %v1274
        %v2215 = vpop.f32.mrf.mxu0
        %v2216 = vadd.f32 %v1879, %v2215
        %v2217 = vpop.f32.mrf.mxu0
        %v2218 = vpop.f32.mrf.mxu0
        %v2219 = vadd.f32 %v1882, %v2218
        %v2220 = vpop.f32.mrf.mxu0
        %2221 = vmatprep.mubr.bf16.mxu0 0
        %2222 = vmatmul.mubr.bf16.gmra.mxu0 %v1276
        %v2223 = vpop.f32.mrf.mxu0
        %v2224 = vadd.f32 %v1887, %v2223
        %v2225 = vpop.f32.mrf.mxu0
        %v2226 = vpop.f32.mrf.mxu0
        %v2227 = vadd.f32 %v1890, %v2226
        %v2228 = vpop.f32.mrf.mxu0
        %2229 = vmatprep.mubr.bf16.mxu0 0
        %2230 = vmatmul.mubr.bf16.gmra.mxu0 %v1278
        %v2231 = vpop.f32.mrf.mxu0
        %v2232 = vadd.f32 %v1895, %v2231
        %v2233 = vpop.f32.mrf.mxu0
        %v2234 = vpop.f32.mrf.mxu0
        %v2235 = vadd.f32 %v1898, %v2234
        %v2236 = vpop.f32.mrf.mxu0
        %2237 = vmatprep.mubr.bf16.mxu0 0
        %2238 = vmatmul.mubr.bf16.gmra.mxu0 %v1280
        %v2239 = vpop.f32.mrf.mxu0
        %v2240 = vadd.f32 %v1903, %v2239
        %v2241 = vpop.f32.mrf.mxu0
        %v2242 = vpop.f32.mrf.mxu0
        %v2243 = vadd.f32 %v1906, %v2242
        %v2244 = vpop.f32.mrf.mxu0
        %2245 = vmatprep.mubr.bf16.mxu0 0
        %2246 = vmatmul.mubr.bf16.gmra.mxu0 %v1282
        %v2247 = vpop.f32.mrf.mxu0
        %v2248 = vadd.f32 %v1911, %v2247
        %v2249 = vpop.f32.mrf.mxu0
        %v2250 = vpop.f32.mrf.mxu0
        %v2251 = vadd.f32 %v1914, %v2250
        %v2252 = vpop.f32.mrf.mxu0
        %2253 = vmatprep.mubr.bf16.mxu0 0
        %2254 = vmatmul.mubr.bf16.gmra.mxu0 %v1284
        %v2255 = vpop.f32.mrf.mxu0
        %v2256 = vadd.f32 %v1919, %v2255
        %v2257 = vpop.f32.mrf.mxu0
        %v2258 = vpop.f32.mrf.mxu0
        %v2259 = vadd.f32 %v1922, %v2258
        %v2260 = vpop.f32.mrf.mxu0
        %2261 = vmatprep.mubr.bf16.mxu0 0
        %2262 = vmatmul.mubr.bf16.gmra.mxu0 %v1286
        %v2263 = vpop.f32.mrf.mxu0
        %v2264 = vadd.f32 %v1927, %v2263
        %v2265 = vpop.f32.mrf.mxu0
        %v2266 = vpop.f32.mrf.mxu0
        %v2267 = vadd.f32 %v1930, %v2266
        %v2268 = vpop.f32.mrf.mxu0
        %2269 = vmatprep.mubr.bf16.mxu0 0
        %2270 = vmatmul.mubr.bf16.gmra.mxu0 %v1288
        %v2271 = vpop.f32.mrf.mxu0
        %v2272 = vadd.f32 %v1935, %v2271
        %v2273 = vpop.f32.mrf.mxu0
        %v2274 = vpop.f32.mrf.mxu0
        %v2275 = vadd.f32 %v1938, %v2274
        %v2276 = vpop.f32.mrf.mxu0
        %2277 = vmatprep.mubr.bf16.mxu0 0
        %2278 = vmatmul.mubr.bf16.gmra.mxu0 %v1290
        %v2279 = vpop.f32.mrf.mxu0
        %v2280 = vadd.f32 %v1943, %v2279
        %v2281 = vpop.f32.mrf.mxu0
        %v2282 = vpop.f32.mrf.mxu0
        %v2283 = vadd.f32 %v1946, %v2282
        %v2284 = vpop.f32.mrf.mxu0
        %2285 = vmatprep.mubr.bf16.mxu0 0
        %2286 = vmatmul.mubr.bf16.gmra.mxu0 %v1292
        %v2287 = vpop.f32.mrf.mxu0
        %v2288 = vadd.f32 %v1951, %v2287
        %v2289 = vpop.f32.mrf.mxu0
        %v2290 = vpop.f32.mrf.mxu0
        %v2291 = vadd.f32 %v1954, %v2290
        %v2292 = vpop.f32.mrf.mxu0
        %2293 = vmatprep.mubr.bf16.mxu0 0
        %2294 = vmatmul.mubr.bf16.gmra.mxu0 %v1294
        %v2295 = vpop.f32.mrf.mxu0
        %v2296 = vadd.f32 %v1959, %v2295
        %v2297 = vpop.f32.mrf.mxu0
        %v2298 = vpop.f32.mrf.mxu0
        %v2299 = vadd.f32 %v1962, %v2298
        %v2300 = vpop.f32.mrf.mxu0
        %2301 = vmatprep.mubr.bf16.mxu0 0
        %2302 = vmatmul.mubr.bf16.gmra.mxu0 %v1296
        %v2303 = vpop.f32.mrf.mxu0
        %v2304 = vadd.f32 %v1967, %v2303
        %v2305 = vpop.f32.mrf.mxu0
        %v2306 = vpop.f32.mrf.mxu0
        %v2307 = vadd.f32 %v1970, %v2306
        %v2308 = vpop.f32.mrf.mxu0
        %2309 = vmatprep.mubr.bf16.mxu0 0
        %2310 = vmatmul.mubr.bf16.gmra.mxu0 %v1298
        %v2311 = vpop.f32.mrf.mxu0
        %v2312 = vadd.f32 %v1975, %v2311
        %v2313 = vpop.f32.mrf.mxu0
        %v2314 = vpop.f32.mrf.mxu0
        %v2315 = vadd.f32 %v1978, %v2314
        %v2316 = vpop.f32.mrf.mxu0
        %2317 = vmatprep.mubr.bf16.mxu0 0
        %2318 = vmatmul.mubr.bf16.gmra.mxu0 %v1300
        %v2319 = vpop.f32.mrf.mxu0
        %v2320 = vadd.f32 %v1983, %v2319
        %v2321 = vpop.f32.mrf.mxu0
        %v2322 = vpop.f32.mrf.mxu0
        %v2323 = vadd.f32 %v1986, %v2322
        %v2324 = vpop.f32.mrf.mxu0
        %2325 = vmatprep.mubr.bf16.mxu0 0
        %2326 = vmatmul.mubr.bf16.gmra.mxu0 %v1302
        %v2327 = vpop.f32.mrf.mxu0
        %v2328 = vadd.f32 %v1991, %v2327
        %v2329 = vpop.f32.mrf.mxu0
        %v2330 = vpop.f32.mrf.mxu0
        %v2331 = vadd.f32 %v1994, %v2330
        %v2332 = vpop.f32.mrf.mxu0
        %2333 = vmatprep.mubr.bf16.mxu0 0
        %2334 = vmatmul.mubr.bf16.gmra.mxu0 %v1304
        %v2335 = vpop.f32.mrf.mxu0
        %v2336 = vadd.f32 %v1999, %v2335
        %v2337 = vpop.f32.mrf.mxu0
        %v2338 = vpop.f32.mrf.mxu0
        %v2339 = vadd.f32 %v2002, %v2338
        %v2340 = vpop.f32.mrf.mxu0
        %2341 = vmatprep.mubr.bf16.mxu0 0
        %2342 = vmatmul.mubr.bf16.gmra.mxu0 %v1310
        %v2343 = vpop.f32.mrf.mxu0
        %v2344 = vadd.f32 %v2007, %v2343
        %v2345 = vpop.f32.mrf.mxu0
        %v2346 = vpop.f32.mrf.mxu0
        %v2347 = vadd.f32 %v2010, %v2346
        %v2348 = vpop.f32.mrf.mxu0
        %2349 = vmatprep.mubr.bf16.mxu0 0
        %2350 = vmatmul.mubr.bf16.gmra.mxu0 %v1312
        %v2351 = vpop.f32.mrf.mxu0
        %v2352 = vadd.f32 %v2015, %v2351
        %v2353 = vpop.f32.mrf.mxu0
        %v2354 = vpop.f32.mrf.mxu0
        %v2355 = vadd.f32 %v2018, %v2354
        %v2356 = vpop.f32.mrf.mxu0
        %2357 = vmatprep.mubr.bf16.mxu0 0
        %2358 = vmatmul.mubr.bf16.gmra.mxu0 %v1314
        %v2359 = vpop.f32.mrf.mxu0
        %v2360 = vadd.f32 %v2023, %v2359
        %v2361 = vpop.f32.mrf.mxu0
        %v2362 = vpop.f32.mrf.mxu0
        %v2363 = vadd.f32 %v2026, %v2362
        %v2364 = vpop.f32.mrf.mxu0
        %2365 = vmatprep.mubr.bf16.mxu0 0
        %2366 = vmatmul.mubr.bf16.gmra.mxu0 %v1316
        %v2367 = vpop.f32.mrf.mxu0
        %v2368 = vadd.f32 %v2031, %v2367
        %v2369 = vpop.f32.mrf.mxu0
        %v2370 = vpop.f32.mrf.mxu0
        %v2371 = vadd.f32 %v2034, %v2370
        %v2372 = vpop.f32.mrf.mxu0
        %2373 = vmatprep.mubr.bf16.mxu0 0
        %2374 = vmatmul.mubr.bf16.gmra.mxu0 %v1318
        %v2375 = vpop.f32.mrf.mxu0
        %v2376 = vadd.f32 %v2039, %v2375
        %v2377 = vpop.f32.mrf.mxu0
        %v2378 = vpop.f32.mrf.mxu0
        %v2379 = vadd.f32 %v2042, %v2378
        %v2380 = vpop.f32.mrf.mxu0
        %2381 = vmatprep.mubr.bf16.mxu0 0
        %2382 = vmatmul.mubr.bf16.gmra.mxu0 %v1320
        %v2383 = vpop.f32.mrf.mxu0
        %v2384 = vadd.f32 %v2047, %v2383
        %v2385 = vpop.f32.mrf.mxu0
        %v2386 = vpop.f32.mrf.mxu0
        %v2387 = vadd.f32 %v2050, %v2386
        %v2388 = vpop.f32.mrf.mxu0
        %2389 = vmatprep.mubr.bf16.mxu0 0
        %2390 = vmatmul.mubr.bf16.gmra.mxu0 %v1322
        %v2391 = vpop.f32.mrf.mxu0
        %v2392 = vadd.f32 %v2055, %v2391
        %v2393 = vpop.f32.mrf.mxu0
        %v2394 = vpop.f32.mrf.mxu0
        %v2395 = vadd.f32 %v2058, %v2394
        %v2396 = vpop.f32.mrf.mxu0
        %2397 = vmatprep.mubr.bf16.mxu0 0
        %2398 = vmatmul.mubr.bf16.gmra.mxu0 %v1324
        %v2399 = vpop.f32.mrf.mxu0
        %v2400 = vadd.f32 %v2063, %v2399
        %v2401 = vpop.f32.mrf.mxu0
        %v2402 = vpop.f32.mrf.mxu0
        %v2403 = vadd.f32 %v2066, %v2402
        %v2404 = vpop.f32.mrf.mxu0
        %2405 = vmatprep.mubr.bf16.mxu0 0
        %2406 = vmatmul.mubr.bf16.gmra.mxu0 %v1326
        %v2407 = vpop.f32.mrf.mxu0
        %v2408 = vadd.f32 %v2071, %v2407
        %v2409 = vpop.f32.mrf.mxu0
        %v2410 = vpop.f32.mrf.mxu0
        %v2411 = vadd.f32 %v2074, %v2410
        %v2412 = vpop.f32.mrf.mxu0
        %2413 = vmatprep.mubr.bf16.mxu0 0
        %2414 = vmatmul.mubr.bf16.gmra.mxu0 %v1328
        %v2415 = vpop.f32.mrf.mxu0
        %v2416 = vadd.f32 %v2079, %v2415
        %v2417 = vpop.f32.mrf.mxu0
        %v2418 = vpop.f32.mrf.mxu0
        %v2419 = vadd.f32 %v2082, %v2418
        %v2420 = vpop.f32.mrf.mxu0
        %2421 = vmatprep.mubr.bf16.mxu0 0
        %2422 = vmatmul.mubr.bf16.gmra.mxu0 %v1330
        %v2423 = vpop.f32.mrf.mxu0
        %v2424 = vadd.f32 %v2087, %v2423
        %v2425 = vpop.f32.mrf.mxu0
        %v2426 = vpop.f32.mrf.mxu0
        %v2427 = vadd.f32 %v2090, %v2426
        %v2428 = vpop.f32.mrf.mxu0
        %2429 = vmatprep.mubr.bf16.mxu0 0
        %2430 = vmatmul.mubr.bf16.gmra.mxu0 %v1332
        %v2431 = vpop.f32.mrf.mxu0
        %v2432 = vadd.f32 %v2095, %v2431
        %v2433 = vpop.f32.mrf.mxu0
        %v2434 = vpop.f32.mrf.mxu0
        %v2435 = vadd.f32 %v2098, %v2434
        %v2436 = vpop.f32.mrf.mxu0
        %2437 = vmatprep.mubr.bf16.mxu0 0
        %2438 = vmatmul.mubr.bf16.gmra.mxu0 %v1334
        %v2439 = vpop.f32.mrf.mxu0
        %v2440 = vadd.f32 %v2103, %v2439
        %v2441 = vpop.f32.mrf.mxu0
        %v2442 = vpop.f32.mrf.mxu0
        %v2443 = vadd.f32 %v2106, %v2442
        %v2444 = vpop.f32.mrf.mxu0
        %2445 = vmatprep.mubr.bf16.mxu0 0
        %2446 = vmatmul.mubr.bf16.gmra.mxu0 %v1336
        %v2447 = vpop.f32.mrf.mxu0
        %v2448 = vadd.f32 %v2111, %v2447
        %v2449 = vpop.f32.mrf.mxu0
        %v2450 = vpop.f32.mrf.mxu0
        %v2451 = vadd.f32 %v2114, %v2450
        %v2452 = vpop.f32.mrf.mxu0
        %2453 = vmatprep.mubr.bf16.mxu0 0
        %2454 = vmatmul.mubr.bf16.gmra.mxu0 %v1338
        %v2455 = vpop.f32.mrf.mxu0
        %v2456 = vadd.f32 %v2119, %v2455
        %v2457 = vpop.f32.mrf.mxu0
        %v2458 = vpop.f32.mrf.mxu0
        %v2459 = vadd.f32 %v2122, %v2458
        %v2460 = vpop.f32.mrf.mxu0
        %2461 = vmatprep.mubr.bf16.mxu0 0
        %2462 = vmatmul.mubr.bf16.gmra.mxu0 %v1340
        %v2463 = vpop.f32.mrf.mxu0
        %v2464 = vadd.f32 %v2127, %v2463
        %v2465 = vpop.f32.mrf.mxu0
        %v2466 = vpop.f32.mrf.mxu0
        %v2467 = vadd.f32 %v2130, %v2466
        %v2468 = vpop.f32.mrf.mxu0
        %2469 = vdwg.mxu0
        %vm2534 = vcmask 1046528
        %v2535 = vrot.slane %v1274, 1
        %v2536 = vrot.slane %v1275, 1
        %v2537 = vsel %vm2534, %v2535, %v2536
        %v2538 = vrot.slane %v1276, 1
        %v2539 = vrot.slane %v1277, 1
        %v2540 = vsel %vm2534, %v2538, %v2539
        %v2541 = vrot.slane %v1278, 1
        %v2542 = vrot.slane %v1279, 1
        %v2543 = vsel %vm2534, %v2541, %v2542
        %v2544 = vrot.slane %v1280, 1
        %v2545 = vrot.slane %v1281, 1
        %v2546 = vsel %vm2534, %v2544, %v2545
        %v2547 = vrot.slane %v1282, 1
        %v2548 = vrot.slane %v1283, 1
        %v2549 = vsel %vm2534, %v2547, %v2548
        %v2550 = vrot.slane %v1284, 1
        %v2551 = vrot.slane %v1285, 1
        %v2552 = vsel %vm2534, %v2550, %v2551
        %v2553 = vrot.slane %v1286, 1
        %v2554 = vrot.slane %v1287, 1
        %v2555 = vsel %vm2534, %v2553, %v2554
        %v2556 = vrot.slane %v1288, 1
        %v2557 = vrot.slane %v1289, 1
        %v2558 = vsel %vm2534, %v2556, %v2557
        %v2559 = vrot.slane %v1290, 1
        %v2560 = vrot.slane %v1291, 1
        %v2561 = vsel %vm2534, %v2559, %v2560
        %v2562 = vrot.slane %v1292, 1
        %v2563 = vrot.slane %v1293, 1
        %v2564 = vsel %vm2534, %v2562, %v2563
        %v2565 = vrot.slane %v1294, 1
        %v2566 = vrot.slane %v1295, 1
        %v2567 = vsel %vm2534, %v2565, %v2566
        %v2568 = vrot.slane %v1296, 1
        %v2569 = vrot.slane %v1297, 1
        %v2570 = vsel %vm2534, %v2568, %v2569
        %v2571 = vrot.slane %v1298, 1
        %v2572 = vrot.slane %v1299, 1
        %v2573 = vsel %vm2534, %v2571, %v2572
        %v2574 = vrot.slane %v1300, 1
        %v2575 = vrot.slane %v1301, 1
        %v2576 = vsel %vm2534, %v2574, %v2575
        %v2577 = vrot.slane %v1302, 1
        %v2578 = vrot.slane %v1303, 1
        %v2579 = vsel %vm2534, %v2577, %v2578
        %v2580 = vrot.slane %v1304, 1
        %v2581 = vrot.slane %v1305, 1
        %v2582 = vsel %vm2534, %v2580, %v2581
        %v2583 = vrot.slane %v1310, 1
        %v2584 = vrot.slane %v1311, 1
        %v2585 = vsel %vm2534, %v2583, %v2584
        %v2586 = vrot.slane %v1312, 1
        %v2587 = vrot.slane %v1313, 1
        %v2588 = vsel %vm2534, %v2586, %v2587
        %v2589 = vrot.slane %v1314, 1
        %v2590 = vrot.slane %v1315, 1
        %v2591 = vsel %vm2534, %v2589, %v2590
        %v2592 = vrot.slane %v1316, 1
        %v2593 = vrot.slane %v1317, 1
        %v2594 = vsel %vm2534, %v2592, %v2593
        %v2595 = vrot.slane %v1318, 1
        %v2596 = vrot.slane %v1319, 1
        %v2597 = vsel %vm2534, %v2595, %v2596
        %v2598 = vrot.slane %v1320, 1
        %v2599 = vrot.slane %v1321, 1
        %v2600 = vsel %vm2534, %v2598, %v2599
        %v2601 = vrot.slane %v1322, 1
        %v2602 = vrot.slane %v1323, 1
        %v2603 = vsel %vm2534, %v2601, %v2602
        %v2604 = vrot.slane %v1324, 1
        %v2605 = vrot.slane %v1325, 1
        %v2606 = vsel %vm2534, %v2604, %v2605
        %v2607 = vrot.slane %v1326, 1
        %v2608 = vrot.slane %v1327, 1
        %v2609 = vsel %vm2534, %v2607, %v2608
        %v2610 = vrot.slane %v1328, 1
        %v2611 = vrot.slane %v1329, 1
        %v2612 = vsel %vm2534, %v2610, %v2611
        %v2613 = vrot.slane %v1330, 1
        %v2614 = vrot.slane %v1331, 1
        %v2615 = vsel %vm2534, %v2613, %v2614
        %v2616 = vrot.slane %v1332, 1
        %v2617 = vrot.slane %v1333, 1
        %v2618 = vsel %vm2534, %v2616, %v2617
        %v2619 = vrot.slane %v1334, 1
        %v2620 = vrot.slane %v1335, 1
        %v2621 = vsel %vm2534, %v2619, %v2620
        %v2622 = vrot.slane %v1336, 1
        %v2623 = vrot.slane %v1337, 1
        %v2624 = vsel %vm2534, %v2622, %v2623
        %v2625 = vrot.slane %v1338, 1
        %v2626 = vrot.slane %v1339, 1
        %v2627 = vsel %vm2534, %v2625, %v2626
        %v2628 = vrot.slane %v1340, 1
        %v2629 = vrot.slane %v1341, 1
        %v2630 = vsel %vm2534, %v2628, %v2629
        %s2663 = scalar_lea.vmem [#allocation8], 128
        %v2664 = vld [vmem:[%s2663] sm:$0xf]
        %v2665 = vld [vmem:[%s2663 + $0x4] sm:$0xf]
        %v2666 = vld [vmem:[%s2663 + $0x8] sm:$0xf]
        %v2667 = vld [vmem:[%s2663 + $0xc] sm:$0xf]
        %v2668 = vld [vmem:[%s2663 + $0x10] sm:$0xf]
        %v2669 = vld [vmem:[%s2663 + $0x14] sm:$0xf]
        %v2670 = vld [vmem:[%s2663 + $0x18] sm:$0xf]
        %v2671 = vld [vmem:[%s2663 + $0x1c] sm:$0xf]
        %v2672 = vld [vmem:[%s2663 + $0x20] sm:$0xf]
        %v2673 = vld [vmem:[%s2663 + $0x24] sm:$0xf]
        %v2674 = vld [vmem:[%s2663 + $0x28] sm:$0xf]
        %v2675 = vld [vmem:[%s2663 + $0x2c] sm:$0xf]
        %v2676 = vld [vmem:[%s2663 + $0x30] sm:$0xf]
        %v2677 = vld [vmem:[%s2663 + $0x34] sm:$0xf]
        %v2678 = vld [vmem:[%s2663 + $0x38] sm:$0xf]
        %v2679 = vld [vmem:[%s2663 + $0x3c] sm:$0xf]
        %v2696 = vunpack.c.l.b16 %v2664
        %v2697 = vunpack.c.l.b16 %v2665
        %v2698 = vunpack.c.l.b16 %v2666
        %v2699 = vunpack.c.l.b16 %v2667
        %v2700 = vunpack.c.l.b16 %v2668
        %v2701 = vunpack.c.l.b16 %v2669
        %v2702 = vunpack.c.l.b16 %v2670
        %v2703 = vunpack.c.l.b16 %v2671
        %v2704 = vunpack.c.l.b16 %v2672
        %v2705 = vunpack.c.l.b16 %v2673
        %v2706 = vunpack.c.l.b16 %v2674
        %v2707 = vunpack.c.l.b16 %v2675
        %v2708 = vunpack.c.l.b16 %v2676
        %v2709 = vunpack.c.l.b16 %v2677
        %v2710 = vunpack.c.l.b16 %v2678
        %v2711 = vunpack.c.l.b16 %v2679
        %v2712 = vpack.c.b16 %v2697, %v2696
        %v2713 = vpack.c.b16 %v2699, %v2698
        %v2714 = vpack.c.b16 %v2701, %v2700
        %v2715 = vpack.c.b16 %v2703, %v2702
        %v2716 = vpack.c.b16 %v2705, %v2704
        %v2717 = vpack.c.b16 %v2707, %v2706
        %v2718 = vpack.c.b16 %v2709, %v2708
        %v2719 = vpack.c.b16 %v2711, %v2710
        %2728 = vmatprep.subr.bf16.mxu0 0
        %2729 = vmatpush1.bf16.msra.mxu0 %v2719
        %2730 = vmatprep.subr.bf16.mxu0 0
        %2731 = vmatpush1.bf16.msra.mxu0 %v2718
        %2732 = vmatprep.subr.bf16.mxu0 0
        %2733 = vmatpush1.bf16.msra.mxu0 %v2717
        %2734 = vmatprep.subr.bf16.mxu0 0
        %2735 = vmatpush1.bf16.msra.mxu0 %v2716
        %2736 = vmatprep.subr.bf16.mxu0 0
        %2737 = vmatpush1.bf16.msra.mxu0 %v2715
        %2738 = vmatprep.subr.bf16.mxu0 0
        %2739 = vmatpush1.bf16.msra.mxu0 %v2714
        %2740 = vmatprep.subr.bf16.mxu0 0
        %2741 = vmatpush1.bf16.msra.mxu0 %v2713
        %2742 = vmatprep.subr.bf16.mxu0 0
        %2743 = vmatpush1.bf16.msra.mxu0 %v2712
        %2744 = vmatprep.subr.bf16.mxu0 0
        %2745 = vmatpush2.bf16.msra.mxu0 0
        %2746 = vmatprep.subr.bf16.mxu0 0
        %2747 = vmatpush2.bf16.msra.mxu0 0
        %2748 = vmatprep.subr.bf16.mxu0 0
        %2749 = vmatpush2.bf16.msra.mxu0 0
        %2750 = vmatprep.subr.bf16.mxu0 0
        %2751 = vmatpush2.bf16.msra.mxu0 0
        %2752 = vmatprep.subr.bf16.mxu0 0
        %2753 = vmatpush2.bf16.msra.mxu0 0
        %2754 = vmatprep.subr.bf16.mxu0 0
        %2755 = vmatpush2.bf16.msra.mxu0 0
        %2756 = vmatprep.subr.bf16.mxu0 0
        %2757 = vmatpush2.bf16.msra.mxu0 0
        %2758 = vmatprep.subr.bf16.mxu0 0
        %2759 = vmatpush2.bf16.msra.mxu0 0
        %2760 = vmatprep.mubr.bf16.mxu0 0
        %2761 = vmatmul.mubr.bf16.gmra.mxu0 %v2537
        %v2762 = vpop.f32.mrf.mxu0
        %v2763 = vadd.f32 0.0, %v2762
        %v2764 = vpop.f32.mrf.mxu0
        %v2765 = vpop.f32.mrf.mxu0
        %v2766 = vadd.f32 0.0, %v2765
        %v2767 = vpop.f32.mrf.mxu0
        %2768 = vmatprep.mubr.bf16.mxu0 0
        %2769 = vmatmul.mubr.bf16.gmra.mxu0 %v2540
        %v2770 = vpop.f32.mrf.mxu0
        %v2771 = vadd.f32 0.0, %v2770
        %v2772 = vpop.f32.mrf.mxu0
        %v2773 = vpop.f32.mrf.mxu0
        %v2774 = vadd.f32 0.0, %v2773
        %v2775 = vpop.f32.mrf.mxu0
        %2776 = vmatprep.mubr.bf16.mxu0 0
        %2777 = vmatmul.mubr.bf16.gmra.mxu0 %v2543
        %v2778 = vpop.f32.mrf.mxu0
        %v2779 = vadd.f32 0.0, %v2778
        %v2780 = vpop.f32.mrf.mxu0
        %v2781 = vpop.f32.mrf.mxu0
        %v2782 = vadd.f32 0.0, %v2781
        %v2783 = vpop.f32.mrf.mxu0
        %2784 = vmatprep.mubr.bf16.mxu0 0
        %2785 = vmatmul.mubr.bf16.gmra.mxu0 %v2546
        %v2786 = vpop.f32.mrf.mxu0
        %v2787 = vadd.f32 0.0, %v2786
        %v2788 = vpop.f32.mrf.mxu0
        %v2789 = vpop.f32.mrf.mxu0
        %v2790 = vadd.f32 0.0, %v2789
        %v2791 = vpop.f32.mrf.mxu0
        %2792 = vmatprep.mubr.bf16.mxu0 0
        %2793 = vmatmul.mubr.bf16.gmra.mxu0 %v2549
        %v2794 = vpop.f32.mrf.mxu0
        %v2795 = vadd.f32 0.0, %v2794
        %v2796 = vpop.f32.mrf.mxu0
        %v2797 = vpop.f32.mrf.mxu0
        %v2798 = vadd.f32 0.0, %v2797
        %v2799 = vpop.f32.mrf.mxu0
        %2800 = vmatprep.mubr.bf16.mxu0 0
        %2801 = vmatmul.mubr.bf16.gmra.mxu0 %v2552
        %v2802 = vpop.f32.mrf.mxu0
        %v2803 = vadd.f32 0.0, %v2802
        %v2804 = vpop.f32.mrf.mxu0
        %v2805 = vpop.f32.mrf.mxu0
        %v2806 = vadd.f32 0.0, %v2805
        %v2807 = vpop.f32.mrf.mxu0
        %2808 = vmatprep.mubr.bf16.mxu0 0
        %2809 = vmatmul.mubr.bf16.gmra.mxu0 %v2555
        %v2810 = vpop.f32.mrf.mxu0
        %v2811 = vadd.f32 0.0, %v2810
        %v2812 = vpop.f32.mrf.mxu0
        %v2813 = vpop.f32.mrf.mxu0
        %v2814 = vadd.f32 0.0, %v2813
        %v2815 = vpop.f32.mrf.mxu0
        %2816 = vmatprep.mubr.bf16.mxu0 0
        %2817 = vmatmul.mubr.bf16.gmra.mxu0 %v2558
        %v2818 = vpop.f32.mrf.mxu0
        %v2819 = vadd.f32 0.0, %v2818
        %v2820 = vpop.f32.mrf.mxu0
        %v2821 = vpop.f32.mrf.mxu0
        %v2822 = vadd.f32 0.0, %v2821
        %v2823 = vpop.f32.mrf.mxu0
        %2824 = vmatprep.mubr.bf16.mxu0 0
        %2825 = vmatmul.mubr.bf16.gmra.mxu0 %v2561
        %v2826 = vpop.f32.mrf.mxu0
        %v2827 = vadd.f32 0.0, %v2826
        %v2828 = vpop.f32.mrf.mxu0
        %v2829 = vpop.f32.mrf.mxu0
        %v2830 = vadd.f32 0.0, %v2829
        %v2831 = vpop.f32.mrf.mxu0
        %2832 = vmatprep.mubr.bf16.mxu0 0
        %2833 = vmatmul.mubr.bf16.gmra.mxu0 %v2564
        %v2834 = vpop.f32.mrf.mxu0
        %v2835 = vadd.f32 0.0, %v2834
        %v2836 = vpop.f32.mrf.mxu0
        %v2837 = vpop.f32.mrf.mxu0
        %v2838 = vadd.f32 0.0, %v2837
        %v2839 = vpop.f32.mrf.mxu0
        %2840 = vmatprep.mubr.bf16.mxu0 0
        %2841 = vmatmul.mubr.bf16.gmra.mxu0 %v2567
        %v2842 = vpop.f32.mrf.mxu0
        %v2843 = vadd.f32 0.0, %v2842
        %v2844 = vpop.f32.mrf.mxu0
        %v2845 = vpop.f32.mrf.mxu0
        %v2846 = vadd.f32 0.0, %v2845
        %v2847 = vpop.f32.mrf.mxu0
        %2848 = vmatprep.mubr.bf16.mxu0 0
        %2849 = vmatmul.mubr.bf16.gmra.mxu0 %v2570
        %v2850 = vpop.f32.mrf.mxu0
        %v2851 = vadd.f32 0.0, %v2850
        %v2852 = vpop.f32.mrf.mxu0
        %v2853 = vpop.f32.mrf.mxu0
        %v2854 = vadd.f32 0.0, %v2853
        %v2855 = vpop.f32.mrf.mxu0
        %2856 = vmatprep.mubr.bf16.mxu0 0
        %2857 = vmatmul.mubr.bf16.gmra.mxu0 %v2573
        %v2858 = vpop.f32.mrf.mxu0
        %v2859 = vadd.f32 0.0, %v2858
        %v2860 = vpop.f32.mrf.mxu0
        %v2861 = vpop.f32.mrf.mxu0
        %v2862 = vadd.f32 0.0, %v2861
        %v2863 = vpop.f32.mrf.mxu0
        %2864 = vmatprep.mubr.bf16.mxu0 0
        %2865 = vmatmul.mubr.bf16.gmra.mxu0 %v2576
        %v2866 = vpop.f32.mrf.mxu0
        %v2867 = vadd.f32 0.0, %v2866
        %v2868 = vpop.f32.mrf.mxu0
        %v2869 = vpop.f32.mrf.mxu0
        %v2870 = vadd.f32 0.0, %v2869
        %v2871 = vpop.f32.mrf.mxu0
        %2872 = vmatprep.mubr.bf16.mxu0 0
        %2873 = vmatmul.mubr.bf16.gmra.mxu0 %v2579
        %v2874 = vpop.f32.mrf.mxu0
        %v2875 = vadd.f32 0.0, %v2874
        %v2876 = vpop.f32.mrf.mxu0
        %v2877 = vpop.f32.mrf.mxu0
        %v2878 = vadd.f32 0.0, %v2877
        %v2879 = vpop.f32.mrf.mxu0
        %2880 = vmatprep.mubr.bf16.mxu0 0
        %2881 = vmatmul.mubr.bf16.gmra.mxu0 %v2582
        %v2882 = vpop.f32.mrf.mxu0
        %v2883 = vadd.f32 0.0, %v2882
        %v2884 = vpop.f32.mrf.mxu0
        %v2885 = vpop.f32.mrf.mxu0
        %v2886 = vadd.f32 0.0, %v2885
        %v2887 = vpop.f32.mrf.mxu0
        %2888 = vmatprep.mubr.bf16.mxu0 0
        %2889 = vmatmul.mubr.bf16.gmra.mxu0 %v2585
        %v2890 = vpop.f32.mrf.mxu0
        %v2891 = vadd.f32 0.0, %v2890
        %v2892 = vpop.f32.mrf.mxu0
        %v2893 = vpop.f32.mrf.mxu0
        %v2894 = vadd.f32 0.0, %v2893
        %v2895 = vpop.f32.mrf.mxu0
        %2896 = vmatprep.mubr.bf16.mxu0 0
        %2897 = vmatmul.mubr.bf16.gmra.mxu0 %v2588
        %v2898 = vpop.f32.mrf.mxu0
        %v2899 = vadd.f32 0.0, %v2898
        %v2900 = vpop.f32.mrf.mxu0
        %v2901 = vpop.f32.mrf.mxu0
        %v2902 = vadd.f32 0.0, %v2901
        %v2903 = vpop.f32.mrf.mxu0
        %2904 = vmatprep.mubr.bf16.mxu0 0
        %2905 = vmatmul.mubr.bf16.gmra.mxu0 %v2591
        %v2906 = vpop.f32.mrf.mxu0
        %v2907 = vadd.f32 0.0, %v2906
        %v2908 = vpop.f32.mrf.mxu0
        %v2909 = vpop.f32.mrf.mxu0
        %v2910 = vadd.f32 0.0, %v2909
        %v2911 = vpop.f32.mrf.mxu0
        %2912 = vmatprep.mubr.bf16.mxu0 0
        %2913 = vmatmul.mubr.bf16.gmra.mxu0 %v2594
        %v2914 = vpop.f32.mrf.mxu0
        %v2915 = vadd.f32 0.0, %v2914
        %v2916 = vpop.f32.mrf.mxu0
        %v2917 = vpop.f32.mrf.mxu0
        %v2918 = vadd.f32 0.0, %v2917
        %v2919 = vpop.f32.mrf.mxu0
        %2920 = vmatprep.mubr.bf16.mxu0 0
        %2921 = vmatmul.mubr.bf16.gmra.mxu0 %v2597
        %v2922 = vpop.f32.mrf.mxu0
        %v2923 = vadd.f32 0.0, %v2922
        %v2924 = vpop.f32.mrf.mxu0
        %v2925 = vpop.f32.mrf.mxu0
        %v2926 = vadd.f32 0.0, %v2925
        %v2927 = vpop.f32.mrf.mxu0
        %2928 = vmatprep.mubr.bf16.mxu0 0
        %2929 = vmatmul.mubr.bf16.gmra.mxu0 %v2600
        %v2930 = vpop.f32.mrf.mxu0
        %v2931 = vadd.f32 0.0, %v2930
        %v2932 = vpop.f32.mrf.mxu0
        %v2933 = vpop.f32.mrf.mxu0
        %v2934 = vadd.f32 0.0, %v2933
        %v2935 = vpop.f32.mrf.mxu0
        %2936 = vmatprep.mubr.bf16.mxu0 0
        %2937 = vmatmul.mubr.bf16.gmra.mxu0 %v2603
        %v2938 = vpop.f32.mrf.mxu0
        %v2939 = vadd.f32 0.0, %v2938
        %v2940 = vpop.f32.mrf.mxu0
        %v2941 = vpop.f32.mrf.mxu0
        %v2942 = vadd.f32 0.0, %v2941
        %v2943 = vpop.f32.mrf.mxu0
        %2944 = vmatprep.mubr.bf16.mxu0 0
        %2945 = vmatmul.mubr.bf16.gmra.mxu0 %v2606
        %v2946 = vpop.f32.mrf.mxu0
        %v2947 = vadd.f32 0.0, %v2946
        %v2948 = vpop.f32.mrf.mxu0
        %v2949 = vpop.f32.mrf.mxu0
        %v2950 = vadd.f32 0.0, %v2949
        %v2951 = vpop.f32.mrf.mxu0
        %2952 = vmatprep.mubr.bf16.mxu0 0
        %2953 = vmatmul.mubr.bf16.gmra.mxu0 %v2609
        %v2954 = vpop.f32.mrf.mxu0
        %v2955 = vadd.f32 0.0, %v2954
        %v2956 = vpop.f32.mrf.mxu0
        %v2957 = vpop.f32.mrf.mxu0
        %v2958 = vadd.f32 0.0, %v2957
        %v2959 = vpop.f32.mrf.mxu0
        %2960 = vmatprep.mubr.bf16.mxu0 0
        %2961 = vmatmul.mubr.bf16.gmra.mxu0 %v2612
        %v2962 = vpop.f32.mrf.mxu0
        %v2963 = vadd.f32 0.0, %v2962
        %v2964 = vpop.f32.mrf.mxu0
        %v2965 = vpop.f32.mrf.mxu0
        %v2966 = vadd.f32 0.0, %v2965
        %v2967 = vpop.f32.mrf.mxu0
        %2968 = vmatprep.mubr.bf16.mxu0 0
        %2969 = vmatmul.mubr.bf16.gmra.mxu0 %v2615
        %v2970 = vpop.f32.mrf.mxu0
        %v2971 = vadd.f32 0.0, %v2970
        %v2972 = vpop.f32.mrf.mxu0
        %v2973 = vpop.f32.mrf.mxu0
        %v2974 = vadd.f32 0.0, %v2973
        %v2975 = vpop.f32.mrf.mxu0
        %2976 = vmatprep.mubr.bf16.mxu0 0
        %2977 = vmatmul.mubr.bf16.gmra.mxu0 %v2618
        %v2978 = vpop.f32.mrf.mxu0
        %v2979 = vadd.f32 0.0, %v2978
        %v2980 = vpop.f32.mrf.mxu0
        %v2981 = vpop.f32.mrf.mxu0
        %v2982 = vadd.f32 0.0, %v2981
        %v2983 = vpop.f32.mrf.mxu0
        %2984 = vmatprep.mubr.bf16.mxu0 0
        %2985 = vmatmul.mubr.bf16.gmra.mxu0 %v2621
        %v2986 = vpop.f32.mrf.mxu0
        %v2987 = vadd.f32 0.0, %v2986
        %v2988 = vpop.f32.mrf.mxu0
        %v2989 = vpop.f32.mrf.mxu0
        %v2990 = vadd.f32 0.0, %v2989
        %v2991 = vpop.f32.mrf.mxu0
        %2992 = vmatprep.mubr.bf16.mxu0 0
        %2993 = vmatmul.mubr.bf16.gmra.mxu0 %v2624
        %v2994 = vpop.f32.mrf.mxu0
        %v2995 = vadd.f32 0.0, %v2994
        %v2996 = vpop.f32.mrf.mxu0
        %v2997 = vpop.f32.mrf.mxu0
        %v2998 = vadd.f32 0.0, %v2997
        %v2999 = vpop.f32.mrf.mxu0
        %3000 = vmatprep.mubr.bf16.mxu0 0
        %3001 = vmatmul.mubr.bf16.gmra.mxu0 %v2627
        %v3002 = vpop.f32.mrf.mxu0
        %v3003 = vadd.f32 0.0, %v3002
        %v3004 = vpop.f32.mrf.mxu0
        %v3005 = vpop.f32.mrf.mxu0
        %v3006 = vadd.f32 0.0, %v3005
        %v3007 = vpop.f32.mrf.mxu0
        %3008 = vmatprep.mubr.bf16.mxu0 0
        %3009 = vmatmul.mubr.bf16.gmra.mxu0 %v2630
        %v3010 = vpop.f32.mrf.mxu0
        %v3011 = vadd.f32 0.0, %v3010
        %v3012 = vpop.f32.mrf.mxu0
        %v3013 = vpop.f32.mrf.mxu0
        %v3014 = vadd.f32 0.0, %v3013
        %v3015 = vpop.f32.mrf.mxu0
        %3016 = vdwg.mxu0
        %v3017 = vadd.f32 %v2216, %v2763
        %v3018 = vadd.f32 %v2219, %v2766
        %v3019 = vadd.f32 %v2224, %v2771
        %v3020 = vadd.f32 %v2227, %v2774
        %v3021 = vadd.f32 %v2232, %v2779
        %v3022 = vadd.f32 %v2235, %v2782
        %v3023 = vadd.f32 %v2240, %v2787
        %v3024 = vadd.f32 %v2243, %v2790
        %v3025 = vadd.f32 %v2248, %v2795
        %v3026 = vadd.f32 %v2251, %v2798
        %v3027 = vadd.f32 %v2256, %v2803
        %v3028 = vadd.f32 %v2259, %v2806
        %v3029 = vadd.f32 %v2264, %v2811
        %v3030 = vadd.f32 %v2267, %v2814
        %v3031 = vadd.f32 %v2272, %v2819
        %v3032 = vadd.f32 %v2275, %v2822
        %v3033 = vadd.f32 %v2280, %v2827
        %v3034 = vadd.f32 %v2283, %v2830
        %v3035 = vadd.f32 %v2288, %v2835
        %v3036 = vadd.f32 %v2291, %v2838
        %v3037 = vadd.f32 %v2296, %v2843
        %v3038 = vadd.f32 %v2299, %v2846
        %v3039 = vadd.f32 %v2304, %v2851
        %v3040 = vadd.f32 %v2307, %v2854
        %v3041 = vadd.f32 %v2312, %v2859
        %v3042 = vadd.f32 %v2315, %v2862
        %v3043 = vadd.f32 %v2320, %v2867
        %v3044 = vadd.f32 %v2323, %v2870
        %v3045 = vadd.f32 %v2328, %v2875
        %v3046 = vadd.f32 %v2331, %v2878
        %v3047 = vadd.f32 %v2336, %v2883
        %v3048 = vadd.f32 %v2339, %v2886
        %v3049 = vadd.f32 %v2344, %v2891
        %v3050 = vadd.f32 %v2347, %v2894
        %v3051 = vadd.f32 %v2352, %v2899
        %v3052 = vadd.f32 %v2355, %v2902
        %v3053 = vadd.f32 %v2360, %v2907
        %v3054 = vadd.f32 %v2363, %v2910
        %v3055 = vadd.f32 %v2368, %v2915
        %v3056 = vadd.f32 %v2371, %v2918
        %v3057 = vadd.f32 %v2376, %v2923
        %v3058 = vadd.f32 %v2379, %v2926
        %v3059 = vadd.f32 %v2384, %v2931
        %v3060 = vadd.f32 %v2387, %v2934
        %v3061 = vadd.f32 %v2392, %v2939
        %v3062 = vadd.f32 %v2395, %v2942
        %v3063 = vadd.f32 %v2400, %v2947
        %v3064 = vadd.f32 %v2403, %v2950
        %v3065 = vadd.f32 %v2408, %v2955
        %v3066 = vadd.f32 %v2411, %v2958
        %v3067 = vadd.f32 %v2416, %v2963
        %v3068 = vadd.f32 %v2419, %v2966
        %v3069 = vadd.f32 %v2424, %v2971
        %v3070 = vadd.f32 %v2427, %v2974
        %v3071 = vadd.f32 %v2432, %v2979
        %v3072 = vadd.f32 %v2435, %v2982
        %v3073 = vadd.f32 %v2440, %v2987
        %v3074 = vadd.f32 %v2443, %v2990
        %v3075 = vadd.f32 %v2448, %v2995
        %v3076 = vadd.f32 %v2451, %v2998
        %v3077 = vadd.f32 %v2456, %v3003
        %v3078 = vadd.f32 %v2459, %v3006
        %v3079 = vadd.f32 %v2464, %v3011
        %v3080 = vadd.f32 %v2467, %v3014
        %s3081 = scalar_lea.vmem [#allocation8], 192
        %v3082 = vld [vmem:[%s3081] sm:$0xf]
        %v3083 = vld [vmem:[%s3081 + $0x4] sm:$0xf]
        %v3084 = vld [vmem:[%s3081 + $0x8] sm:$0xf]
        %v3085 = vld [vmem:[%s3081 + $0xc] sm:$0xf]
        %v3086 = vld [vmem:[%s3081 + $0x10] sm:$0xf]
        %v3087 = vld [vmem:[%s3081 + $0x14] sm:$0xf]
        %v3088 = vld [vmem:[%s3081 + $0x18] sm:$0xf]
        %v3089 = vld [vmem:[%s3081 + $0x1c] sm:$0xf]
        %v3090 = vld [vmem:[%s3081 + $0x20] sm:$0xf]
        %v3091 = vld [vmem:[%s3081 + $0x24] sm:$0xf]
        %v3092 = vld [vmem:[%s3081 + $0x28] sm:$0xf]
        %v3093 = vld [vmem:[%s3081 + $0x2c] sm:$0xf]
        %v3094 = vld [vmem:[%s3081 + $0x30] sm:$0xf]
        %v3095 = vld [vmem:[%s3081 + $0x34] sm:$0xf]
        %v3096 = vld [vmem:[%s3081 + $0x38] sm:$0xf]
        %v3097 = vld [vmem:[%s3081 + $0x3c] sm:$0xf]
        %v3114 = vunpack.c.l.b16 %v3082
        %v3115 = vunpack.c.l.b16 %v3083
        %v3116 = vunpack.c.l.b16 %v3084
        %v3117 = vunpack.c.l.b16 %v3085
        %v3118 = vunpack.c.l.b16 %v3086
        %v3119 = vunpack.c.l.b16 %v3087
        %v3120 = vunpack.c.l.b16 %v3088
        %v3121 = vunpack.c.l.b16 %v3089
        %v3122 = vunpack.c.l.b16 %v3090
        %v3123 = vunpack.c.l.b16 %v3091
        %v3124 = vunpack.c.l.b16 %v3092
        %v3125 = vunpack.c.l.b16 %v3093
        %v3126 = vunpack.c.l.b16 %v3094
        %v3127 = vunpack.c.l.b16 %v3095
        %v3128 = vunpack.c.l.b16 %v3096
        %v3129 = vunpack.c.l.b16 %v3097
        %v3130 = vpack.c.b16 %v3115, %v3114
        %v3131 = vpack.c.b16 %v3117, %v3116
        %v3132 = vpack.c.b16 %v3119, %v3118
        %v3133 = vpack.c.b16 %v3121, %v3120
        %v3134 = vpack.c.b16 %v3123, %v3122
        %v3135 = vpack.c.b16 %v3125, %v3124
        %v3136 = vpack.c.b16 %v3127, %v3126
        %v3137 = vpack.c.b16 %v3129, %v3128
        %3146 = vmatprep.subr.bf16.mxu0 0
        %3147 = vmatpush1.bf16.msra.mxu0 %v3137
        %3148 = vmatprep.subr.bf16.mxu0 0
        %3149 = vmatpush1.bf16.msra.mxu0 %v3136
        %3150 = vmatprep.subr.bf16.mxu0 0
        %3151 = vmatpush1.bf16.msra.mxu0 %v3135
        %3152 = vmatprep.subr.bf16.mxu0 0
        %3153 = vmatpush1.bf16.msra.mxu0 %v3134
        %3154 = vmatprep.subr.bf16.mxu0 0
        %3155 = vmatpush1.bf16.msra.mxu0 %v3133
        %3156 = vmatprep.subr.bf16.mxu0 0
        %3157 = vmatpush1.bf16.msra.mxu0 %v3132
        %3158 = vmatprep.subr.bf16.mxu0 0
        %3159 = vmatpush1.bf16.msra.mxu0 %v3131
        %3160 = vmatprep.subr.bf16.mxu0 0
        %3161 = vmatpush1.bf16.msra.mxu0 %v3130
        %3162 = vmatprep.subr.bf16.mxu0 0
        %3163 = vmatpush2.bf16.msra.mxu0 0
        %3164 = vmatprep.subr.bf16.mxu0 0
        %3165 = vmatpush2.bf16.msra.mxu0 0
        %3166 = vmatprep.subr.bf16.mxu0 0
        %3167 = vmatpush2.bf16.msra.mxu0 0
        %3168 = vmatprep.subr.bf16.mxu0 0
        %3169 = vmatpush2.bf16.msra.mxu0 0
        %3170 = vmatprep.subr.bf16.mxu0 0
        %3171 = vmatpush2.bf16.msra.mxu0 0
        %3172 = vmatprep.subr.bf16.mxu0 0
        %3173 = vmatpush2.bf16.msra.mxu0 0
        %3174 = vmatprep.subr.bf16.mxu0 0
        %3175 = vmatpush2.bf16.msra.mxu0 0
        %3176 = vmatprep.subr.bf16.mxu0 0
        %3177 = vmatpush2.bf16.msra.mxu0 0
        %3178 = vmatprep.mubr.bf16.mxu0 0
        %3179 = vmatmul.mubr.bf16.gmra.mxu0 %v1276
        %v3180 = vpop.f32.mrf.mxu0
        %v3181 = vadd.f32 0.0, %v3180
        %v3182 = vpop.f32.mrf.mxu0
        %v3183 = vpop.f32.mrf.mxu0
        %v3184 = vadd.f32 0.0, %v3183
        %v3185 = vpop.f32.mrf.mxu0
        %3186 = vmatprep.mubr.bf16.mxu0 0
        %3187 = vmatmul.mubr.bf16.gmra.mxu0 %v1278
        %v3188 = vpop.f32.mrf.mxu0
        %v3189 = vadd.f32 0.0, %v3188
        %v3190 = vpop.f32.mrf.mxu0
        %v3191 = vpop.f32.mrf.mxu0
        %v3192 = vadd.f32 0.0, %v3191
        %v3193 = vpop.f32.mrf.mxu0
        %3194 = vmatprep.mubr.bf16.mxu0 0
        %3195 = vmatmul.mubr.bf16.gmra.mxu0 %v1280
        %v3196 = vpop.f32.mrf.mxu0
        %v3197 = vadd.f32 0.0, %v3196
        %v3198 = vpop.f32.mrf.mxu0
        %v3199 = vpop.f32.mrf.mxu0
        %v3200 = vadd.f32 0.0, %v3199
        %v3201 = vpop.f32.mrf.mxu0
        %3202 = vmatprep.mubr.bf16.mxu0 0
        %3203 = vmatmul.mubr.bf16.gmra.mxu0 %v1282
        %v3204 = vpop.f32.mrf.mxu0
        %v3205 = vadd.f32 0.0, %v3204
        %v3206 = vpop.f32.mrf.mxu0
        %v3207 = vpop.f32.mrf.mxu0
        %v3208 = vadd.f32 0.0, %v3207
        %v3209 = vpop.f32.mrf.mxu0
        %3210 = vmatprep.mubr.bf16.mxu0 0
        %3211 = vmatmul.mubr.bf16.gmra.mxu0 %v1284
        %v3212 = vpop.f32.mrf.mxu0
        %v3213 = vadd.f32 0.0, %v3212
        %v3214 = vpop.f32.mrf.mxu0
        %v3215 = vpop.f32.mrf.mxu0
        %v3216 = vadd.f32 0.0, %v3215
        %v3217 = vpop.f32.mrf.mxu0
        %3218 = vmatprep.mubr.bf16.mxu0 0
        %3219 = vmatmul.mubr.bf16.gmra.mxu0 %v1286
        %v3220 = vpop.f32.mrf.mxu0
        %v3221 = vadd.f32 0.0, %v3220
        %v3222 = vpop.f32.mrf.mxu0
        %v3223 = vpop.f32.mrf.mxu0
        %v3224 = vadd.f32 0.0, %v3223
        %v3225 = vpop.f32.mrf.mxu0
        %3226 = vmatprep.mubr.bf16.mxu0 0
        %3227 = vmatmul.mubr.bf16.gmra.mxu0 %v1288
        %v3228 = vpop.f32.mrf.mxu0
        %v3229 = vadd.f32 0.0, %v3228
        %v3230 = vpop.f32.mrf.mxu0
        %v3231 = vpop.f32.mrf.mxu0
        %v3232 = vadd.f32 0.0, %v3231
        %v3233 = vpop.f32.mrf.mxu0
        %3234 = vmatprep.mubr.bf16.mxu0 0
        %3235 = vmatmul.mubr.bf16.gmra.mxu0 %v1290
        %v3236 = vpop.f32.mrf.mxu0
        %v3237 = vadd.f32 0.0, %v3236
        %v3238 = vpop.f32.mrf.mxu0
        %v3239 = vpop.f32.mrf.mxu0
        %v3240 = vadd.f32 0.0, %v3239
        %v3241 = vpop.f32.mrf.mxu0
        %3242 = vmatprep.mubr.bf16.mxu0 0
        %3243 = vmatmul.mubr.bf16.gmra.mxu0 %v1292
        %v3244 = vpop.f32.mrf.mxu0
        %v3245 = vadd.f32 0.0, %v3244
        %v3246 = vpop.f32.mrf.mxu0
        %v3247 = vpop.f32.mrf.mxu0
        %v3248 = vadd.f32 0.0, %v3247
        %v3249 = vpop.f32.mrf.mxu0
        %3250 = vmatprep.mubr.bf16.mxu0 0
        %3251 = vmatmul.mubr.bf16.gmra.mxu0 %v1294
        %v3252 = vpop.f32.mrf.mxu0
        %v3253 = vadd.f32 0.0, %v3252
        %v3254 = vpop.f32.mrf.mxu0
        %v3255 = vpop.f32.mrf.mxu0
        %v3256 = vadd.f32 0.0, %v3255
        %v3257 = vpop.f32.mrf.mxu0
        %3258 = vmatprep.mubr.bf16.mxu0 0
        %3259 = vmatmul.mubr.bf16.gmra.mxu0 %v1296
        %v3260 = vpop.f32.mrf.mxu0
        %v3261 = vadd.f32 0.0, %v3260
        %v3262 = vpop.f32.mrf.mxu0
        %v3263 = vpop.f32.mrf.mxu0
        %v3264 = vadd.f32 0.0, %v3263
        %v3265 = vpop.f32.mrf.mxu0
        %3266 = vmatprep.mubr.bf16.mxu0 0
        %3267 = vmatmul.mubr.bf16.gmra.mxu0 %v1298
        %v3268 = vpop.f32.mrf.mxu0
        %v3269 = vadd.f32 0.0, %v3268
        %v3270 = vpop.f32.mrf.mxu0
        %v3271 = vpop.f32.mrf.mxu0
        %v3272 = vadd.f32 0.0, %v3271
        %v3273 = vpop.f32.mrf.mxu0
        %3274 = vmatprep.mubr.bf16.mxu0 0
        %3275 = vmatmul.mubr.bf16.gmra.mxu0 %v1300
        %v3276 = vpop.f32.mrf.mxu0
        %v3277 = vadd.f32 0.0, %v3276
        %v3278 = vpop.f32.mrf.mxu0
        %v3279 = vpop.f32.mrf.mxu0
        %v3280 = vadd.f32 0.0, %v3279
        %v3281 = vpop.f32.mrf.mxu0
        %3282 = vmatprep.mubr.bf16.mxu0 0
        %3283 = vmatmul.mubr.bf16.gmra.mxu0 %v1302
        %v3284 = vpop.f32.mrf.mxu0
        %v3285 = vadd.f32 0.0, %v3284
        %v3286 = vpop.f32.mrf.mxu0
        %v3287 = vpop.f32.mrf.mxu0
        %v3288 = vadd.f32 0.0, %v3287
        %v3289 = vpop.f32.mrf.mxu0
        %3290 = vmatprep.mubr.bf16.mxu0 0
        %3291 = vmatmul.mubr.bf16.gmra.mxu0 %v1304
        %v3292 = vpop.f32.mrf.mxu0
        %v3293 = vadd.f32 0.0, %v3292
        %v3294 = vpop.f32.mrf.mxu0
        %v3295 = vpop.f32.mrf.mxu0
        %v3296 = vadd.f32 0.0, %v3295
        %v3297 = vpop.f32.mrf.mxu0
        %3298 = vmatprep.mubr.bf16.mxu0 0
        %3299 = vmatmul.mubr.bf16.gmra.mxu0 %v1306
        %v3300 = vpop.f32.mrf.mxu0
        %v3301 = vadd.f32 0.0, %v3300
        %v3302 = vpop.f32.mrf.mxu0
        %v3303 = vpop.f32.mrf.mxu0
        %v3304 = vadd.f32 0.0, %v3303
        %v3305 = vpop.f32.mrf.mxu0
        %3306 = vmatprep.mubr.bf16.mxu0 0
        %3307 = vmatmul.mubr.bf16.gmra.mxu0 %v1312
        %v3308 = vpop.f32.mrf.mxu0
        %v3309 = vadd.f32 0.0, %v3308
        %v3310 = vpop.f32.mrf.mxu0
        %v3311 = vpop.f32.mrf.mxu0
        %v3312 = vadd.f32 0.0, %v3311
        %v3313 = vpop.f32.mrf.mxu0
        %3314 = vmatprep.mubr.bf16.mxu0 0
        %3315 = vmatmul.mubr.bf16.gmra.mxu0 %v1314
        %v3316 = vpop.f32.mrf.mxu0
        %v3317 = vadd.f32 0.0, %v3316
        %v3318 = vpop.f32.mrf.mxu0
        %v3319 = vpop.f32.mrf.mxu0
        %v3320 = vadd.f32 0.0, %v3319
        %v3321 = vpop.f32.mrf.mxu0
        %3322 = vmatprep.mubr.bf16.mxu0 0
        %3323 = vmatmul.mubr.bf16.gmra.mxu0 %v1316
        %v3324 = vpop.f32.mrf.mxu0
        %v3325 = vadd.f32 0.0, %v3324
        %v3326 = vpop.f32.mrf.mxu0
        %v3327 = vpop.f32.mrf.mxu0
        %v3328 = vadd.f32 0.0, %v3327
        %v3329 = vpop.f32.mrf.mxu0
        %3330 = vmatprep.mubr.bf16.mxu0 0
        %3331 = vmatmul.mubr.bf16.gmra.mxu0 %v1318
        %v3332 = vpop.f32.mrf.mxu0
        %v3333 = vadd.f32 0.0, %v3332
        %v3334 = vpop.f32.mrf.mxu0
        %v3335 = vpop.f32.mrf.mxu0
        %v3336 = vadd.f32 0.0, %v3335
        %v3337 = vpop.f32.mrf.mxu0
        %3338 = vmatprep.mubr.bf16.mxu0 0
        %3339 = vmatmul.mubr.bf16.gmra.mxu0 %v1320
        %v3340 = vpop.f32.mrf.mxu0
        %v3341 = vadd.f32 0.0, %v3340
        %v3342 = vpop.f32.mrf.mxu0
        %v3343 = vpop.f32.mrf.mxu0
        %v3344 = vadd.f32 0.0, %v3343
        %v3345 = vpop.f32.mrf.mxu0
        %3346 = vmatprep.mubr.bf16.mxu0 0
        %3347 = vmatmul.mubr.bf16.gmra.mxu0 %v1322
        %v3348 = vpop.f32.mrf.mxu0
        %v3349 = vadd.f32 0.0, %v3348
        %v3350 = vpop.f32.mrf.mxu0
        %v3351 = vpop.f32.mrf.mxu0
        %v3352 = vadd.f32 0.0, %v3351
        %v3353 = vpop.f32.mrf.mxu0
        %3354 = vmatprep.mubr.bf16.mxu0 0
        %3355 = vmatmul.mubr.bf16.gmra.mxu0 %v1324
        %v3356 = vpop.f32.mrf.mxu0
        %v3357 = vadd.f32 0.0, %v3356
        %v3358 = vpop.f32.mrf.mxu0
        %v3359 = vpop.f32.mrf.mxu0
        %v3360 = vadd.f32 0.0, %v3359
        %v3361 = vpop.f32.mrf.mxu0
        %3362 = vmatprep.mubr.bf16.mxu0 0
        %3363 = vmatmul.mubr.bf16.gmra.mxu0 %v1326
        %v3364 = vpop.f32.mrf.mxu0
        %v3365 = vadd.f32 0.0, %v3364
        %v3366 = vpop.f32.mrf.mxu0
        %v3367 = vpop.f32.mrf.mxu0
        %v3368 = vadd.f32 0.0, %v3367
        %v3369 = vpop.f32.mrf.mxu0
        %3370 = vmatprep.mubr.bf16.mxu0 0
        %3371 = vmatmul.mubr.bf16.gmra.mxu0 %v1328
        %v3372 = vpop.f32.mrf.mxu0
        %v3373 = vadd.f32 0.0, %v3372
        %v3374 = vpop.f32.mrf.mxu0
        %v3375 = vpop.f32.mrf.mxu0
        %v3376 = vadd.f32 0.0, %v3375
        %v3377 = vpop.f32.mrf.mxu0
        %3378 = vmatprep.mubr.bf16.mxu0 0
        %3379 = vmatmul.mubr.bf16.gmra.mxu0 %v1330
        %v3380 = vpop.f32.mrf.mxu0
        %v3381 = vadd.f32 0.0, %v3380
        %v3382 = vpop.f32.mrf.mxu0
        %v3383 = vpop.f32.mrf.mxu0
        %v3384 = vadd.f32 0.0, %v3383
        %v3385 = vpop.f32.mrf.mxu0
        %3386 = vmatprep.mubr.bf16.mxu0 0
        %3387 = vmatmul.mubr.bf16.gmra.mxu0 %v1332
        %v3388 = vpop.f32.mrf.mxu0
        %v3389 = vadd.f32 0.0, %v3388
        %v3390 = vpop.f32.mrf.mxu0
        %v3391 = vpop.f32.mrf.mxu0
        %v3392 = vadd.f32 0.0, %v3391
        %v3393 = vpop.f32.mrf.mxu0
        %3394 = vmatprep.mubr.bf16.mxu0 0
        %3395 = vmatmul.mubr.bf16.gmra.mxu0 %v1334
        %v3396 = vpop.f32.mrf.mxu0
        %v3397 = vadd.f32 0.0, %v3396
        %v3398 = vpop.f32.mrf.mxu0
        %v3399 = vpop.f32.mrf.mxu0
        %v3400 = vadd.f32 0.0, %v3399
        %v3401 = vpop.f32.mrf.mxu0
        %3402 = vmatprep.mubr.bf16.mxu0 0
        %3403 = vmatmul.mubr.bf16.gmra.mxu0 %v1336
        %v3404 = vpop.f32.mrf.mxu0
        %v3405 = vadd.f32 0.0, %v3404
        %v3406 = vpop.f32.mrf.mxu0
        %v3407 = vpop.f32.mrf.mxu0
        %v3408 = vadd.f32 0.0, %v3407
        %v3409 = vpop.f32.mrf.mxu0
        %3410 = vmatprep.mubr.bf16.mxu0 0
        %3411 = vmatmul.mubr.bf16.gmra.mxu0 %v1338
        %v3412 = vpop.f32.mrf.mxu0
        %v3413 = vadd.f32 0.0, %v3412
        %v3414 = vpop.f32.mrf.mxu0
        %v3415 = vpop.f32.mrf.mxu0
        %v3416 = vadd.f32 0.0, %v3415
        %v3417 = vpop.f32.mrf.mxu0
        %3418 = vmatprep.mubr.bf16.mxu0 0
        %3419 = vmatmul.mubr.bf16.gmra.mxu0 %v1340
        %v3420 = vpop.f32.mrf.mxu0
        %v3421 = vadd.f32 0.0, %v3420
        %v3422 = vpop.f32.mrf.mxu0
        %v3423 = vpop.f32.mrf.mxu0
        %v3424 = vadd.f32 0.0, %v3423
        %v3425 = vpop.f32.mrf.mxu0
        %3426 = vmatprep.mubr.bf16.mxu0 0
        %3427 = vmatmul.mubr.bf16.gmra.mxu0 %v1342
        %v3428 = vpop.f32.mrf.mxu0
        %v3429 = vadd.f32 0.0, %v3428
        %v3430 = vpop.f32.mrf.mxu0
        %v3431 = vpop.f32.mrf.mxu0
        %v3432 = vadd.f32 0.0, %v3431
        %v3433 = vpop.f32.mrf.mxu0
        %3434 = vdwg.mxu0
        %v3435 = vadd.f32 %v3017, %v3181
        %v3436 = vadd.f32 %v3018, %v3184
        %v3437 = vadd.f32 %v3019, %v3189
        %v3438 = vadd.f32 %v3020, %v3192
        %v3439 = vadd.f32 %v3021, %v3197
        %v3440 = vadd.f32 %v3022, %v3200
        %v3441 = vadd.f32 %v3023, %v3205
        %v3442 = vadd.f32 %v3024, %v3208
        %v3443 = vadd.f32 %v3025, %v3213
        %v3444 = vadd.f32 %v3026, %v3216
        %v3445 = vadd.f32 %v3027, %v3221
        %v3446 = vadd.f32 %v3028, %v3224
        %v3447 = vadd.f32 %v3029, %v3229
        %v3448 = vadd.f32 %v3030, %v3232
        %v3449 = vadd.f32 %v3031, %v3237
        %v3450 = vadd.f32 %v3032, %v3240
        %v3451 = vadd.f32 %v3033, %v3245
        %v3452 = vadd.f32 %v3034, %v3248
        %v3453 = vadd.f32 %v3035, %v3253
        %v3454 = vadd.f32 %v3036, %v3256
        %v3455 = vadd.f32 %v3037, %v3261
        %v3456 = vadd.f32 %v3038, %v3264
        %v3457 = vadd.f32 %v3039, %v3269
        %v3458 = vadd.f32 %v3040, %v3272
        %v3459 = vadd.f32 %v3041, %v3277
        %v3460 = vadd.f32 %v3042, %v3280
        %v3461 = vadd.f32 %v3043, %v3285
        %v3462 = vadd.f32 %v3044, %v3288
        %v3463 = vadd.f32 %v3045, %v3293
        %v3464 = vadd.f32 %v3046, %v3296
        %v3465 = vadd.f32 %v3047, %v3301
        %v3466 = vadd.f32 %v3048, %v3304
        %v3467 = vadd.f32 %v3049, %v3309
        %v3468 = vadd.f32 %v3050, %v3312
        %v3469 = vadd.f32 %v3051, %v3317
        %v3470 = vadd.f32 %v3052, %v3320
        %v3471 = vadd.f32 %v3053, %v3325
        %v3472 = vadd.f32 %v3054, %v3328
        %v3473 = vadd.f32 %v3055, %v3333
        %v3474 = vadd.f32 %v3056, %v3336
        %v3475 = vadd.f32 %v3057, %v3341
        %v3476 = vadd.f32 %v3058, %v3344
        %v3477 = vadd.f32 %v3059, %v3349
        %v3478 = vadd.f32 %v3060, %v3352
        %v3479 = vadd.f32 %v3061, %v3357
        %v3480 = vadd.f32 %v3062, %v3360
        %v3481 = vadd.f32 %v3063, %v3365
        %v3482 = vadd.f32 %v3064, %v3368
        %v3483 = vadd.f32 %v3065, %v3373
        %v3484 = vadd.f32 %v3066, %v3376
        %v3485 = vadd.f32 %v3067, %v3381
        %v3486 = vadd.f32 %v3068, %v3384
        %v3487 = vadd.f32 %v3069, %v3389
        %v3488 = vadd.f32 %v3070, %v3392
        %v3489 = vadd.f32 %v3071, %v3397
        %v3490 = vadd.f32 %v3072, %v3400
        %v3491 = vadd.f32 %v3073, %v3405
        %v3492 = vadd.f32 %v3074, %v3408
        %v3493 = vadd.f32 %v3075, %v3413
        %v3494 = vadd.f32 %v3076, %v3416
        %v3495 = vadd.f32 %v3077, %v3421
        %v3496 = vadd.f32 %v3078, %v3424
        %v3497 = vadd.f32 %v3079, %v3429
        %v3498 = vadd.f32 %v3080, %v3432
        %v3500 = vshrl.u32 %v1306, 16
        %v3502 = vshll.u32 %v1306, 16
        %v3504 = vrot.slane %v3502, 1
        %v3505 = vor.u32 %v3500, %v3504
        %v3507 = vshll.u32 %v1307, 16
        %v3509 = vrot.slane %v3507, 1
        %v3510 = vsel %vm1362, %v3505, %v3509
        %v3512 = vshrl.u32 %v1342, 16
        %v3514 = vshll.u32 %v1342, 16
        %v3516 = vrot.slane %v3514, 1
        %v3517 = vor.u32 %v3512, %v3516
        %v3519 = vshll.u32 %v1343, 16
        %v3521 = vrot.slane %v3519, 1
        %v3522 = vsel %vm1362, %v3517, %v3521
        %s3525 = scalar_lea.vmem [#allocation8], 256
        %v3526 = vld [vmem:[%s3525] sm:$0xf]
        %v3527 = vld [vmem:[%s3525 + $0x4] sm:$0xf]
        %v3528 = vld [vmem:[%s3525 + $0x8] sm:$0xf]
        %v3529 = vld [vmem:[%s3525 + $0xc] sm:$0xf]
        %v3530 = vld [vmem:[%s3525 + $0x10] sm:$0xf]
        %v3531 = vld [vmem:[%s3525 + $0x14] sm:$0xf]
        %v3532 = vld [vmem:[%s3525 + $0x18] sm:$0xf]
        %v3533 = vld [vmem:[%s3525 + $0x1c] sm:$0xf]
        %v3534 = vld [vmem:[%s3525 + $0x20] sm:$0xf]
        %v3535 = vld [vmem:[%s3525 + $0x24] sm:$0xf]
        %v3536 = vld [vmem:[%s3525 + $0x28] sm:$0xf]
        %v3537 = vld [vmem:[%s3525 + $0x2c] sm:$0xf]
        %v3538 = vld [vmem:[%s3525 + $0x30] sm:$0xf]
        %v3539 = vld [vmem:[%s3525 + $0x34] sm:$0xf]
        %v3540 = vld [vmem:[%s3525 + $0x38] sm:$0xf]
        %v3541 = vld [vmem:[%s3525 + $0x3c] sm:$0xf]
        %v3558 = vunpack.c.l.b16 %v3526
        %v3559 = vunpack.c.l.b16 %v3527
        %v3560 = vunpack.c.l.b16 %v3528
        %v3561 = vunpack.c.l.b16 %v3529
        %v3562 = vunpack.c.l.b16 %v3530
        %v3563 = vunpack.c.l.b16 %v3531
        %v3564 = vunpack.c.l.b16 %v3532
        %v3565 = vunpack.c.l.b16 %v3533
        %v3566 = vunpack.c.l.b16 %v3534
        %v3567 = vunpack.c.l.b16 %v3535
        %v3568 = vunpack.c.l.b16 %v3536
        %v3569 = vunpack.c.l.b16 %v3537
        %v3570 = vunpack.c.l.b16 %v3538
        %v3571 = vunpack.c.l.b16 %v3539
        %v3572 = vunpack.c.l.b16 %v3540
        %v3573 = vunpack.c.l.b16 %v3541
        %v3574 = vpack.c.b16 %v3559, %v3558
        %v3575 = vpack.c.b16 %v3561, %v3560
        %v3576 = vpack.c.b16 %v3563, %v3562
        %v3577 = vpack.c.b16 %v3565, %v3564
        %v3578 = vpack.c.b16 %v3567, %v3566
        %v3579 = vpack.c.b16 %v3569, %v3568
        %v3580 = vpack.c.b16 %v3571, %v3570
        %v3581 = vpack.c.b16 %v3573, %v3572
        %3590 = vmatprep.subr.bf16.mxu0 0
        %3591 = vmatpush1.bf16.msra.mxu0 %v3581
        %3592 = vmatprep.subr.bf16.mxu0 0
        %3593 = vmatpush1.bf16.msra.mxu0 %v3580
        %3594 = vmatprep.subr.bf16.mxu0 0
        %3595 = vmatpush1.bf16.msra.mxu0 %v3579
        %3596 = vmatprep.subr.bf16.mxu0 0
        %3597 = vmatpush1.bf16.msra.mxu0 %v3578
        %3598 = vmatprep.subr.bf16.mxu0 0
        %3599 = vmatpush1.bf16.msra.mxu0 %v3577
        %3600 = vmatprep.subr.bf16.mxu0 0
        %3601 = vmatpush1.bf16.msra.mxu0 %v3576
        %3602 = vmatprep.subr.bf16.mxu0 0
        %3603 = vmatpush1.bf16.msra.mxu0 %v3575
        %3604 = vmatprep.subr.bf16.mxu0 0
        %3605 = vmatpush1.bf16.msra.mxu0 %v3574
        %3606 = vmatprep.subr.bf16.mxu0 0
        %3607 = vmatpush2.bf16.msra.mxu0 0
        %3608 = vmatprep.subr.bf16.mxu0 0
        %3609 = vmatpush2.bf16.msra.mxu0 0
        %3610 = vmatprep.subr.bf16.mxu0 0
        %3611 = vmatpush2.bf16.msra.mxu0 0
        %3612 = vmatprep.subr.bf16.mxu0 0
        %3613 = vmatpush2.bf16.msra.mxu0 0
        %3614 = vmatprep.subr.bf16.mxu0 0
        %3615 = vmatpush2.bf16.msra.mxu0 0
        %3616 = vmatprep.subr.bf16.mxu0 0
        %3617 = vmatpush2.bf16.msra.mxu0 0
        %3618 = vmatprep.subr.bf16.mxu0 0
        %3619 = vmatpush2.bf16.msra.mxu0 0
        %3620 = vmatprep.subr.bf16.mxu0 0
        %3621 = vmatpush2.bf16.msra.mxu0 0
        %3622 = vmatprep.mubr.bf16.mxu0 0
        %3623 = vmatmul.mubr.bf16.gmra.mxu0 %v1386
        %v3624 = vpop.f32.mrf.mxu0
        %v3625 = vadd.f32 0.0, %v3624
        %v3626 = vpop.f32.mrf.mxu0
        %v3627 = vpop.f32.mrf.mxu0
        %v3628 = vadd.f32 0.0, %v3627
        %v3629 = vpop.f32.mrf.mxu0
        %3630 = vmatprep.mubr.bf16.mxu0 0
        %3631 = vmatmul.mubr.bf16.gmra.mxu0 %v1398
        %v3632 = vpop.f32.mrf.mxu0
        %v3633 = vadd.f32 0.0, %v3632
        %v3634 = vpop.f32.mrf.mxu0
        %v3635 = vpop.f32.mrf.mxu0
        %v3636 = vadd.f32 0.0, %v3635
        %v3637 = vpop.f32.mrf.mxu0
        %3638 = vmatprep.mubr.bf16.mxu0 0
        %3639 = vmatmul.mubr.bf16.gmra.mxu0 %v1410
        %v3640 = vpop.f32.mrf.mxu0
        %v3641 = vadd.f32 0.0, %v3640
        %v3642 = vpop.f32.mrf.mxu0
        %v3643 = vpop.f32.mrf.mxu0
        %v3644 = vadd.f32 0.0, %v3643
        %v3645 = vpop.f32.mrf.mxu0
        %3646 = vmatprep.mubr.bf16.mxu0 0
        %3647 = vmatmul.mubr.bf16.gmra.mxu0 %v1422
        %v3648 = vpop.f32.mrf.mxu0
        %v3649 = vadd.f32 0.0, %v3648
        %v3650 = vpop.f32.mrf.mxu0
        %v3651 = vpop.f32.mrf.mxu0
        %v3652 = vadd.f32 0.0, %v3651
        %v3653 = vpop.f32.mrf.mxu0
        %3654 = vmatprep.mubr.bf16.mxu0 0
        %3655 = vmatmul.mubr.bf16.gmra.mxu0 %v1434
        %v3656 = vpop.f32.mrf.mxu0
        %v3657 = vadd.f32 0.0, %v3656
        %v3658 = vpop.f32.mrf.mxu0
        %v3659 = vpop.f32.mrf.mxu0
        %v3660 = vadd.f32 0.0, %v3659
        %v3661 = vpop.f32.mrf.mxu0
        %3662 = vmatprep.mubr.bf16.mxu0 0
        %3663 = vmatmul.mubr.bf16.gmra.mxu0 %v1446
        %v3664 = vpop.f32.mrf.mxu0
        %v3665 = vadd.f32 0.0, %v3664
        %v3666 = vpop.f32.mrf.mxu0
        %v3667 = vpop.f32.mrf.mxu0
        %v3668 = vadd.f32 0.0, %v3667
        %v3669 = vpop.f32.mrf.mxu0
        %3670 = vmatprep.mubr.bf16.mxu0 0
        %3671 = vmatmul.mubr.bf16.gmra.mxu0 %v1458
        %v3672 = vpop.f32.mrf.mxu0
        %v3673 = vadd.f32 0.0, %v3672
        %v3674 = vpop.f32.mrf.mxu0
        %v3675 = vpop.f32.mrf.mxu0
        %v3676 = vadd.f32 0.0, %v3675
        %v3677 = vpop.f32.mrf.mxu0
        %3678 = vmatprep.mubr.bf16.mxu0 0
        %3679 = vmatmul.mubr.bf16.gmra.mxu0 %v1470
        %v3680 = vpop.f32.mrf.mxu0
        %v3681 = vadd.f32 0.0, %v3680
        %v3682 = vpop.f32.mrf.mxu0
        %v3683 = vpop.f32.mrf.mxu0
        %v3684 = vadd.f32 0.0, %v3683
        %v3685 = vpop.f32.mrf.mxu0
        %3686 = vmatprep.mubr.bf16.mxu0 0
        %3687 = vmatmul.mubr.bf16.gmra.mxu0 %v1482
        %v3688 = vpop.f32.mrf.mxu0
        %v3689 = vadd.f32 0.0, %v3688
        %v3690 = vpop.f32.mrf.mxu0
        %v3691 = vpop.f32.mrf.mxu0
        %v3692 = vadd.f32 0.0, %v3691
        %v3693 = vpop.f32.mrf.mxu0
        %3694 = vmatprep.mubr.bf16.mxu0 0
        %3695 = vmatmul.mubr.bf16.gmra.mxu0 %v1494
        %v3696 = vpop.f32.mrf.mxu0
        %v3697 = vadd.f32 0.0, %v3696
        %v3698 = vpop.f32.mrf.mxu0
        %v3699 = vpop.f32.mrf.mxu0
        %v3700 = vadd.f32 0.0, %v3699
        %v3701 = vpop.f32.mrf.mxu0
        %3702 = vmatprep.mubr.bf16.mxu0 0
        %3703 = vmatmul.mubr.bf16.gmra.mxu0 %v1506
        %v3704 = vpop.f32.mrf.mxu0
        %v3705 = vadd.f32 0.0, %v3704
        %v3706 = vpop.f32.mrf.mxu0
        %v3707 = vpop.f32.mrf.mxu0
        %v3708 = vadd.f32 0.0, %v3707
        %v3709 = vpop.f32.mrf.mxu0
        %3710 = vmatprep.mubr.bf16.mxu0 0
        %3711 = vmatmul.mubr.bf16.gmra.mxu0 %v1518
        %v3712 = vpop.f32.mrf.mxu0
        %v3713 = vadd.f32 0.0, %v3712
        %v3714 = vpop.f32.mrf.mxu0
        %v3715 = vpop.f32.mrf.mxu0
        %v3716 = vadd.f32 0.0, %v3715
        %v3717 = vpop.f32.mrf.mxu0
        %3718 = vmatprep.mubr.bf16.mxu0 0
        %3719 = vmatmul.mubr.bf16.gmra.mxu0 %v1530
        %v3720 = vpop.f32.mrf.mxu0
        %v3721 = vadd.f32 0.0, %v3720
        %v3722 = vpop.f32.mrf.mxu0
        %v3723 = vpop.f32.mrf.mxu0
        %v3724 = vadd.f32 0.0, %v3723
        %v3725 = vpop.f32.mrf.mxu0
        %3726 = vmatprep.mubr.bf16.mxu0 0
        %3727 = vmatmul.mubr.bf16.gmra.mxu0 %v1542
        %v3728 = vpop.f32.mrf.mxu0
        %v3729 = vadd.f32 0.0, %v3728
        %v3730 = vpop.f32.mrf.mxu0
        %v3731 = vpop.f32.mrf.mxu0
        %v3732 = vadd.f32 0.0, %v3731
        %v3733 = vpop.f32.mrf.mxu0
        %3734 = vmatprep.mubr.bf16.mxu0 0
        %3735 = vmatmul.mubr.bf16.gmra.mxu0 %v1554
        %v3736 = vpop.f32.mrf.mxu0
        %v3737 = vadd.f32 0.0, %v3736
        %v3738 = vpop.f32.mrf.mxu0
        %v3739 = vpop.f32.mrf.mxu0
        %v3740 = vadd.f32 0.0, %v3739
        %v3741 = vpop.f32.mrf.mxu0
        %3742 = vmatprep.mubr.bf16.mxu0 0
        %3743 = vmatmul.mubr.bf16.gmra.mxu0 %v3510
        %v3744 = vpop.f32.mrf.mxu0
        %v3745 = vadd.f32 0.0, %v3744
        %v3746 = vpop.f32.mrf.mxu0
        %v3747 = vpop.f32.mrf.mxu0
        %v3748 = vadd.f32 0.0, %v3747
        %v3749 = vpop.f32.mrf.mxu0
        %3750 = vmatprep.mubr.bf16.mxu0 0
        %3751 = vmatmul.mubr.bf16.gmra.mxu0 %v1578
        %v3752 = vpop.f32.mrf.mxu0
        %v3753 = vadd.f32 0.0, %v3752
        %v3754 = vpop.f32.mrf.mxu0
        %v3755 = vpop.f32.mrf.mxu0
        %v3756 = vadd.f32 0.0, %v3755
        %v3757 = vpop.f32.mrf.mxu0
        %3758 = vmatprep.mubr.bf16.mxu0 0
        %3759 = vmatmul.mubr.bf16.gmra.mxu0 %v1590
        %v3760 = vpop.f32.mrf.mxu0
        %v3761 = vadd.f32 0.0, %v3760
        %v3762 = vpop.f32.mrf.mxu0
        %v3763 = vpop.f32.mrf.mxu0
        %v3764 = vadd.f32 0.0, %v3763
        %v3765 = vpop.f32.mrf.mxu0
        %3766 = vmatprep.mubr.bf16.mxu0 0
        %3767 = vmatmul.mubr.bf16.gmra.mxu0 %v1602
        %v3768 = vpop.f32.mrf.mxu0
        %v3769 = vadd.f32 0.0, %v3768
        %v3770 = vpop.f32.mrf.mxu0
        %v3771 = vpop.f32.mrf.mxu0
        %v3772 = vadd.f32 0.0, %v3771
        %v3773 = vpop.f32.mrf.mxu0
        %3774 = vmatprep.mubr.bf16.mxu0 0
        %3775 = vmatmul.mubr.bf16.gmra.mxu0 %v1614
        %v3776 = vpop.f32.mrf.mxu0
        %v3777 = vadd.f32 0.0, %v3776
        %v3778 = vpop.f32.mrf.mxu0
        %v3779 = vpop.f32.mrf.mxu0
        %v3780 = vadd.f32 0.0, %v3779
        %v3781 = vpop.f32.mrf.mxu0
        %3782 = vmatprep.mubr.bf16.mxu0 0
        %3783 = vmatmul.mubr.bf16.gmra.mxu0 %v1626
        %v3784 = vpop.f32.mrf.mxu0
        %v3785 = vadd.f32 0.0, %v3784
        %v3786 = vpop.f32.mrf.mxu0
        %v3787 = vpop.f32.mrf.mxu0
        %v3788 = vadd.f32 0.0, %v3787
        %v3789 = vpop.f32.mrf.mxu0
        %3790 = vmatprep.mubr.bf16.mxu0 0
        %3791 = vmatmul.mubr.bf16.gmra.mxu0 %v1638
        %v3792 = vpop.f32.mrf.mxu0
        %v3793 = vadd.f32 0.0, %v3792
        %v3794 = vpop.f32.mrf.mxu0
        %v3795 = vpop.f32.mrf.mxu0
        %v3796 = vadd.f32 0.0, %v3795
        %v3797 = vpop.f32.mrf.mxu0
        %3798 = vmatprep.mubr.bf16.mxu0 0
        %3799 = vmatmul.mubr.bf16.gmra.mxu0 %v1650
        %v3800 = vpop.f32.mrf.mxu0
        %v3801 = vadd.f32 0.0, %v3800
        %v3802 = vpop.f32.mrf.mxu0
        %v3803 = vpop.f32.mrf.mxu0
        %v3804 = vadd.f32 0.0, %v3803
        %v3805 = vpop.f32.mrf.mxu0
        %3806 = vmatprep.mubr.bf16.mxu0 0
        %3807 = vmatmul.mubr.bf16.gmra.mxu0 %v1662
        %v3808 = vpop.f32.mrf.mxu0
        %v3809 = vadd.f32 0.0, %v3808
        %v3810 = vpop.f32.mrf.mxu0
        %v3811 = vpop.f32.mrf.mxu0
        %v3812 = vadd.f32 0.0, %v3811
        %v3813 = vpop.f32.mrf.mxu0
        %3814 = vmatprep.mubr.bf16.mxu0 0
        %3815 = vmatmul.mubr.bf16.gmra.mxu0 %v1674
        %v3816 = vpop.f32.mrf.mxu0
        %v3817 = vadd.f32 0.0, %v3816
        %v3818 = vpop.f32.mrf.mxu0
        %v3819 = vpop.f32.mrf.mxu0
        %v3820 = vadd.f32 0.0, %v3819
        %v3821 = vpop.f32.mrf.mxu0
        %3822 = vmatprep.mubr.bf16.mxu0 0
        %3823 = vmatmul.mubr.bf16.gmra.mxu0 %v1686
        %v3824 = vpop.f32.mrf.mxu0
        %v3825 = vadd.f32 0.0, %v3824
        %v3826 = vpop.f32.mrf.mxu0
        %v3827 = vpop.f32.mrf.mxu0
        %v3828 = vadd.f32 0.0, %v3827
        %v3829 = vpop.f32.mrf.mxu0
        %3830 = vmatprep.mubr.bf16.mxu0 0
        %3831 = vmatmul.mubr.bf16.gmra.mxu0 %v1698
        %v3832 = vpop.f32.mrf.mxu0
        %v3833 = vadd.f32 0.0, %v3832
        %v3834 = vpop.f32.mrf.mxu0
        %v3835 = vpop.f32.mrf.mxu0
        %v3836 = vadd.f32 0.0, %v3835
        %v3837 = vpop.f32.mrf.mxu0
        %3838 = vmatprep.mubr.bf16.mxu0 0
        %3839 = vmatmul.mubr.bf16.gmra.mxu0 %v1710
        %v3840 = vpop.f32.mrf.mxu0
        %v3841 = vadd.f32 0.0, %v3840
        %v3842 = vpop.f32.mrf.mxu0
        %v3843 = vpop.f32.mrf.mxu0
        %v3844 = vadd.f32 0.0, %v3843
        %v3845 = vpop.f32.mrf.mxu0
        %3846 = vmatprep.mubr.bf16.mxu0 0
        %3847 = vmatmul.mubr.bf16.gmra.mxu0 %v1722
        %v3848 = vpop.f32.mrf.mxu0
        %v3849 = vadd.f32 0.0, %v3848
        %v3850 = vpop.f32.mrf.mxu0
        %v3851 = vpop.f32.mrf.mxu0
        %v3852 = vadd.f32 0.0, %v3851
        %v3853 = vpop.f32.mrf.mxu0
        %3854 = vmatprep.mubr.bf16.mxu0 0
        %3855 = vmatmul.mubr.bf16.gmra.mxu0 %v1734
        %v3856 = vpop.f32.mrf.mxu0
        %v3857 = vadd.f32 0.0, %v3856
        %v3858 = vpop.f32.mrf.mxu0
        %v3859 = vpop.f32.mrf.mxu0
        %v3860 = vadd.f32 0.0, %v3859
        %v3861 = vpop.f32.mrf.mxu0
        %3862 = vmatprep.mubr.bf16.mxu0 0
        %3863 = vmatmul.mubr.bf16.gmra.mxu0 %v1746
        %v3864 = vpop.f32.mrf.mxu0
        %v3865 = vadd.f32 0.0, %v3864
        %v3866 = vpop.f32.mrf.mxu0
        %v3867 = vpop.f32.mrf.mxu0
        %v3868 = vadd.f32 0.0, %v3867
        %v3869 = vpop.f32.mrf.mxu0
        %3870 = vmatprep.mubr.bf16.mxu0 0
        %3871 = vmatmul.mubr.bf16.gmra.mxu0 %v3522
        %v3872 = vpop.f32.mrf.mxu0
        %v3873 = vadd.f32 0.0, %v3872
        %v3874 = vpop.f32.mrf.mxu0
        %v3875 = vpop.f32.mrf.mxu0
        %v3876 = vadd.f32 0.0, %v3875
        %v3877 = vpop.f32.mrf.mxu0
        %3878 = vdwg.mxu0
        %v3879 = vadd.f32 %v3435, %v3625
        %v3880 = vadd.f32 %v3436, %v3628
        %v3881 = vadd.f32 %v3437, %v3633
        %v3882 = vadd.f32 %v3438, %v3636
        %v3883 = vadd.f32 %v3439, %v3641
        %v3884 = vadd.f32 %v3440, %v3644
        %v3885 = vadd.f32 %v3441, %v3649
        %v3886 = vadd.f32 %v3442, %v3652
        %v3887 = vadd.f32 %v3443, %v3657
        %v3888 = vadd.f32 %v3444, %v3660
        %v3889 = vadd.f32 %v3445, %v3665
        %v3890 = vadd.f32 %v3446, %v3668
        %v3891 = vadd.f32 %v3447, %v3673
        %v3892 = vadd.f32 %v3448, %v3676
        %v3893 = vadd.f32 %v3449, %v3681
        %v3894 = vadd.f32 %v3450, %v3684
        %v3895 = vadd.f32 %v3451, %v3689
        %v3896 = vadd.f32 %v3452, %v3692
        %v3897 = vadd.f32 %v3453, %v3697
        %v3898 = vadd.f32 %v3454, %v3700
        %v3899 = vadd.f32 %v3455, %v3705
        %v3900 = vadd.f32 %v3456, %v3708
        %v3901 = vadd.f32 %v3457, %v3713
        %v3902 = vadd.f32 %v3458, %v3716
        %v3903 = vadd.f32 %v3459, %v3721
        %v3904 = vadd.f32 %v3460, %v3724
        %v3905 = vadd.f32 %v3461, %v3729
        %v3906 = vadd.f32 %v3462, %v3732
        %v3907 = vadd.f32 %v3463, %v3737
        %v3908 = vadd.f32 %v3464, %v3740
        %v3909 = vadd.f32 %v3465, %v3745
        %v3910 = vadd.f32 %v3466, %v3748
        %v3911 = vadd.f32 %v3467, %v3753
        %v3912 = vadd.f32 %v3468, %v3756
        %v3913 = vadd.f32 %v3469, %v3761
        %v3914 = vadd.f32 %v3470, %v3764
        %v3915 = vadd.f32 %v3471, %v3769
        %v3916 = vadd.f32 %v3472, %v3772
        %v3917 = vadd.f32 %v3473, %v3777
        %v3918 = vadd.f32 %v3474, %v3780
        %v3919 = vadd.f32 %v3475, %v3785
        %v3920 = vadd.f32 %v3476, %v3788
        %v3921 = vadd.f32 %v3477, %v3793
        %v3922 = vadd.f32 %v3478, %v3796
        %v3923 = vadd.f32 %v3479, %v3801
        %v3924 = vadd.f32 %v3480, %v3804
        %v3925 = vadd.f32 %v3481, %v3809
        %v3926 = vadd.f32 %v3482, %v3812
        %v3927 = vadd.f32 %v3483, %v3817
        %v3928 = vadd.f32 %v3484, %v3820
        %v3929 = vadd.f32 %v3485, %v3825
        %v3930 = vadd.f32 %v3486, %v3828
        %v3931 = vadd.f32 %v3487, %v3833
        %v3932 = vadd.f32 %v3488, %v3836
        %v3933 = vadd.f32 %v3489, %v3841
        %v3934 = vadd.f32 %v3490, %v3844
        %v3935 = vadd.f32 %v3491, %v3849
        %v3936 = vadd.f32 %v3492, %v3852
        %v3937 = vadd.f32 %v3493, %v3857
        %v3938 = vadd.f32 %v3494, %v3860
        %v3939 = vadd.f32 %v3495, %v3865
        %v3940 = vadd.f32 %v3496, %v3868
        %v3941 = vadd.f32 %v3497, %v3873
        %v3942 = vadd.f32 %v3498, %v3876
        %v3947 = vrot.slane %v1306, 1
        %v3948 = vrot.slane %v1307, 1
        %v3949 = vsel %vm2534, %v3947, %v3948
        %v3950 = vrot.slane %v1342, 1
        %v3951 = vrot.slane %v1343, 1
        %v3952 = vsel %vm2534, %v3950, %v3951
        %s3955 = scalar_lea.vmem [#allocation8], 320
        %v3956 = vld [vmem:[%s3955] sm:$0xf]
        %v3957 = vld [vmem:[%s3955 + $0x4] sm:$0xf]
        %v3958 = vld [vmem:[%s3955 + $0x8] sm:$0xf]
        %v3959 = vld [vmem:[%s3955 + $0xc] sm:$0xf]
        %v3960 = vld [vmem:[%s3955 + $0x10] sm:$0xf]
        %v3961 = vld [vmem:[%s3955 + $0x14] sm:$0xf]
        %v3962 = vld [vmem:[%s3955 + $0x18] sm:$0xf]
        %v3963 = vld [vmem:[%s3955 + $0x1c] sm:$0xf]
        %v3964 = vld [vmem:[%s3955 + $0x20] sm:$0xf]
        %v3965 = vld [vmem:[%s3955 + $0x24] sm:$0xf]
        %v3966 = vld [vmem:[%s3955 + $0x28] sm:$0xf]
        %v3967 = vld [vmem:[%s3955 + $0x2c] sm:$0xf]
        %v3968 = vld [vmem:[%s3955 + $0x30] sm:$0xf]
        %v3969 = vld [vmem:[%s3955 + $0x34] sm:$0xf]
        %v3970 = vld [vmem:[%s3955 + $0x38] sm:$0xf]
        %v3971 = vld [vmem:[%s3955 + $0x3c] sm:$0xf]
        %v3988 = vunpack.c.l.b16 %v3956
        %v3989 = vunpack.c.l.b16 %v3957
        %v3990 = vunpack.c.l.b16 %v3958
        %v3991 = vunpack.c.l.b16 %v3959
        %v3992 = vunpack.c.l.b16 %v3960
        %v3993 = vunpack.c.l.b16 %v3961
        %v3994 = vunpack.c.l.b16 %v3962
        %v3995 = vunpack.c.l.b16 %v3963
        %v3996 = vunpack.c.l.b16 %v3964
        %v3997 = vunpack.c.l.b16 %v3965
        %v3998 = vunpack.c.l.b16 %v3966
        %v3999 = vunpack.c.l.b16 %v3967
        %v4000 = vunpack.c.l.b16 %v3968
        %v4001 = vunpack.c.l.b16 %v3969
        %v4002 = vunpack.c.l.b16 %v3970
        %v4003 = vunpack.c.l.b16 %v3971
        %v4004 = vpack.c.b16 %v3989, %v3988
        %v4005 = vpack.c.b16 %v3991, %v3990
        %v4006 = vpack.c.b16 %v3993, %v3992
        %v4007 = vpack.c.b16 %v3995, %v3994
        %v4008 = vpack.c.b16 %v3997, %v3996
        %v4009 = vpack.c.b16 %v3999, %v3998
        %v4010 = vpack.c.b16 %v4001, %v4000
        %v4011 = vpack.c.b16 %v4003, %v4002
        %4020 = vmatprep.subr.bf16.mxu0 0
        %4021 = vmatpush1.bf16.msra.mxu0 %v4011
        %4022 = vmatprep.subr.bf16.mxu0 0
        %4023 = vmatpush1.bf16.msra.mxu0 %v4010
        %4024 = vmatprep.subr.bf16.mxu0 0
        %4025 = vmatpush1.bf16.msra.mxu0 %v4009
        %4026 = vmatprep.subr.bf16.mxu0 0
        %4027 = vmatpush1.bf16.msra.mxu0 %v4008
        %4028 = vmatprep.subr.bf16.mxu0 0
        %4029 = vmatpush1.bf16.msra.mxu0 %v4007
        %4030 = vmatprep.subr.bf16.mxu0 0
        %4031 = vmatpush1.bf16.msra.mxu0 %v4006
        %4032 = vmatprep.subr.bf16.mxu0 0
        %4033 = vmatpush1.bf16.msra.mxu0 %v4005
        %4034 = vmatprep.subr.bf16.mxu0 0
        %4035 = vmatpush1.bf16.msra.mxu0 %v4004
        %4036 = vmatprep.subr.bf16.mxu0 0
        %4037 = vmatpush2.bf16.msra.mxu0 0
        %4038 = vmatprep.subr.bf16.mxu0 0
        %4039 = vmatpush2.bf16.msra.mxu0 0
        %4040 = vmatprep.subr.bf16.mxu0 0
        %4041 = vmatpush2.bf16.msra.mxu0 0
        %4042 = vmatprep.subr.bf16.mxu0 0
        %4043 = vmatpush2.bf16.msra.mxu0 0
        %4044 = vmatprep.subr.bf16.mxu0 0
        %4045 = vmatpush2.bf16.msra.mxu0 0
        %4046 = vmatprep.subr.bf16.mxu0 0
        %4047 = vmatpush2.bf16.msra.mxu0 0
        %4048 = vmatprep.subr.bf16.mxu0 0
        %4049 = vmatpush2.bf16.msra.mxu0 0
        %4050 = vmatprep.subr.bf16.mxu0 0
        %4051 = vmatpush2.bf16.msra.mxu0 0
        %4052 = vmatprep.mubr.bf16.mxu0 0
        %4053 = vmatmul.mubr.bf16.gmra.mxu0 %v2540
        %v4054 = vpop.f32.mrf.mxu0
        %v4055 = vadd.f32 0.0, %v4054
        %v4056 = vpop.f32.mrf.mxu0
        %v4057 = vpop.f32.mrf.mxu0
        %v4058 = vadd.f32 0.0, %v4057
        %v4059 = vpop.f32.mrf.mxu0
        %4060 = vmatprep.mubr.bf16.mxu0 0
        %4061 = vmatmul.mubr.bf16.gmra.mxu0 %v2543
        %v4062 = vpop.f32.mrf.mxu0
        %v4063 = vadd.f32 0.0, %v4062
        %v4064 = vpop.f32.mrf.mxu0
        %v4065 = vpop.f32.mrf.mxu0
        %v4066 = vadd.f32 0.0, %v4065
        %v4067 = vpop.f32.mrf.mxu0
        %4068 = vmatprep.mubr.bf16.mxu0 0
        %4069 = vmatmul.mubr.bf16.gmra.mxu0 %v2546
        %v4070 = vpop.f32.mrf.mxu0
        %v4071 = vadd.f32 0.0, %v4070
        %v4072 = vpop.f32.mrf.mxu0
        %v4073 = vpop.f32.mrf.mxu0
        %v4074 = vadd.f32 0.0, %v4073
        %v4075 = vpop.f32.mrf.mxu0
        %4076 = vmatprep.mubr.bf16.mxu0 0
        %4077 = vmatmul.mubr.bf16.gmra.mxu0 %v2549
        %v4078 = vpop.f32.mrf.mxu0
        %v4079 = vadd.f32 0.0, %v4078
        %v4080 = vpop.f32.mrf.mxu0
        %v4081 = vpop.f32.mrf.mxu0
        %v4082 = vadd.f32 0.0, %v4081
        %v4083 = vpop.f32.mrf.mxu0
        %4084 = vmatprep.mubr.bf16.mxu0 0
        %4085 = vmatmul.mubr.bf16.gmra.mxu0 %v2552
        %v4086 = vpop.f32.mrf.mxu0
        %v4087 = vadd.f32 0.0, %v4086
        %v4088 = vpop.f32.mrf.mxu0
        %v4089 = vpop.f32.mrf.mxu0
        %v4090 = vadd.f32 0.0, %v4089
        %v4091 = vpop.f32.mrf.mxu0
        %4092 = vmatprep.mubr.bf16.mxu0 0
        %4093 = vmatmul.mubr.bf16.gmra.mxu0 %v2555
        %v4094 = vpop.f32.mrf.mxu0
        %v4095 = vadd.f32 0.0, %v4094
        %v4096 = vpop.f32.mrf.mxu0
        %v4097 = vpop.f32.mrf.mxu0
        %v4098 = vadd.f32 0.0, %v4097
        %v4099 = vpop.f32.mrf.mxu0
        %4100 = vmatprep.mubr.bf16.mxu0 0
        %4101 = vmatmul.mubr.bf16.gmra.mxu0 %v2558
        %v4102 = vpop.f32.mrf.mxu0
        %v4103 = vadd.f32 0.0, %v4102
        %v4104 = vpop.f32.mrf.mxu0
        %v4105 = vpop.f32.mrf.mxu0
        %v4106 = vadd.f32 0.0, %v4105
        %v4107 = vpop.f32.mrf.mxu0
        %4108 = vmatprep.mubr.bf16.mxu0 0
        %4109 = vmatmul.mubr.bf16.gmra.mxu0 %v2561
        %v4110 = vpop.f32.mrf.mxu0
        %v4111 = vadd.f32 0.0, %v4110
        %v4112 = vpop.f32.mrf.mxu0
        %v4113 = vpop.f32.mrf.mxu0
        %v4114 = vadd.f32 0.0, %v4113
        %v4115 = vpop.f32.mrf.mxu0
        %4116 = vmatprep.mubr.bf16.mxu0 0
        %4117 = vmatmul.mubr.bf16.gmra.mxu0 %v2564
        %v4118 = vpop.f32.mrf.mxu0
        %v4119 = vadd.f32 0.0, %v4118
        %v4120 = vpop.f32.mrf.mxu0
        %v4121 = vpop.f32.mrf.mxu0
        %v4122 = vadd.f32 0.0, %v4121
        %v4123 = vpop.f32.mrf.mxu0
        %4124 = vmatprep.mubr.bf16.mxu0 0
        %4125 = vmatmul.mubr.bf16.gmra.mxu0 %v2567
        %v4126 = vpop.f32.mrf.mxu0
        %v4127 = vadd.f32 0.0, %v4126
        %v4128 = vpop.f32.mrf.mxu0
        %v4129 = vpop.f32.mrf.mxu0
        %v4130 = vadd.f32 0.0, %v4129
        %v4131 = vpop.f32.mrf.mxu0
        %4132 = vmatprep.mubr.bf16.mxu0 0
        %4133 = vmatmul.mubr.bf16.gmra.mxu0 %v2570
        %v4134 = vpop.f32.mrf.mxu0
        %v4135 = vadd.f32 0.0, %v4134
        %v4136 = vpop.f32.mrf.mxu0
        %v4137 = vpop.f32.mrf.mxu0
        %v4138 = vadd.f32 0.0, %v4137
        %v4139 = vpop.f32.mrf.mxu0
        %4140 = vmatprep.mubr.bf16.mxu0 0
        %4141 = vmatmul.mubr.bf16.gmra.mxu0 %v2573
        %v4142 = vpop.f32.mrf.mxu0
        %v4143 = vadd.f32 0.0, %v4142
        %v4144 = vpop.f32.mrf.mxu0
        %v4145 = vpop.f32.mrf.mxu0
        %v4146 = vadd.f32 0.0, %v4145
        %v4147 = vpop.f32.mrf.mxu0
        %4148 = vmatprep.mubr.bf16.mxu0 0
        %4149 = vmatmul.mubr.bf16.gmra.mxu0 %v2576
        %v4150 = vpop.f32.mrf.mxu0
        %v4151 = vadd.f32 0.0, %v4150
        %v4152 = vpop.f32.mrf.mxu0
        %v4153 = vpop.f32.mrf.mxu0
        %v4154 = vadd.f32 0.0, %v4153
        %v4155 = vpop.f32.mrf.mxu0
        %4156 = vmatprep.mubr.bf16.mxu0 0
        %4157 = vmatmul.mubr.bf16.gmra.mxu0 %v2579
        %v4158 = vpop.f32.mrf.mxu0
        %v4159 = vadd.f32 0.0, %v4158
        %v4160 = vpop.f32.mrf.mxu0
        %v4161 = vpop.f32.mrf.mxu0
        %v4162 = vadd.f32 0.0, %v4161
        %v4163 = vpop.f32.mrf.mxu0
        %4164 = vmatprep.mubr.bf16.mxu0 0
        %4165 = vmatmul.mubr.bf16.gmra.mxu0 %v2582
        %v4166 = vpop.f32.mrf.mxu0
        %v4167 = vadd.f32 0.0, %v4166
        %v4168 = vpop.f32.mrf.mxu0
        %v4169 = vpop.f32.mrf.mxu0
        %v4170 = vadd.f32 0.0, %v4169
        %v4171 = vpop.f32.mrf.mxu0
        %4172 = vmatprep.mubr.bf16.mxu0 0
        %4173 = vmatmul.mubr.bf16.gmra.mxu0 %v3949
        %v4174 = vpop.f32.mrf.mxu0
        %v4175 = vadd.f32 0.0, %v4174
        %v4176 = vpop.f32.mrf.mxu0
        %v4177 = vpop.f32.mrf.mxu0
        %v4178 = vadd.f32 0.0, %v4177
        %v4179 = vpop.f32.mrf.mxu0
        %4180 = vmatprep.mubr.bf16.mxu0 0
        %4181 = vmatmul.mubr.bf16.gmra.mxu0 %v2588
        %v4182 = vpop.f32.mrf.mxu0
        %v4183 = vadd.f32 0.0, %v4182
        %v4184 = vpop.f32.mrf.mxu0
        %v4185 = vpop.f32.mrf.mxu0
        %v4186 = vadd.f32 0.0, %v4185
        %v4187 = vpop.f32.mrf.mxu0
        %4188 = vmatprep.mubr.bf16.mxu0 0
        %4189 = vmatmul.mubr.bf16.gmra.mxu0 %v2591
        %v4190 = vpop.f32.mrf.mxu0
        %v4191 = vadd.f32 0.0, %v4190
        %v4192 = vpop.f32.mrf.mxu0
        %v4193 = vpop.f32.mrf.mxu0
        %v4194 = vadd.f32 0.0, %v4193
        %v4195 = vpop.f32.mrf.mxu0
        %4196 = vmatprep.mubr.bf16.mxu0 0
        %4197 = vmatmul.mubr.bf16.gmra.mxu0 %v2594
        %v4198 = vpop.f32.mrf.mxu0
        %v4199 = vadd.f32 0.0, %v4198
        %v4200 = vpop.f32.mrf.mxu0
        %v4201 = vpop.f32.mrf.mxu0
        %v4202 = vadd.f32 0.0, %v4201
        %v4203 = vpop.f32.mrf.mxu0
        %4204 = vmatprep.mubr.bf16.mxu0 0
        %4205 = vmatmul.mubr.bf16.gmra.mxu0 %v2597
        %v4206 = vpop.f32.mrf.mxu0
        %v4207 = vadd.f32 0.0, %v4206
        %v4208 = vpop.f32.mrf.mxu0
        %v4209 = vpop.f32.mrf.mxu0
        %v4210 = vadd.f32 0.0, %v4209
        %v4211 = vpop.f32.mrf.mxu0
        %4212 = vmatprep.mubr.bf16.mxu0 0
        %4213 = vmatmul.mubr.bf16.gmra.mxu0 %v2600
        %v4214 = vpop.f32.mrf.mxu0
        %v4215 = vadd.f32 0.0, %v4214
        %v4216 = vpop.f32.mrf.mxu0
        %v4217 = vpop.f32.mrf.mxu0
        %v4218 = vadd.f32 0.0, %v4217
        %v4219 = vpop.f32.mrf.mxu0
        %4220 = vmatprep.mubr.bf16.mxu0 0
        %4221 = vmatmul.mubr.bf16.gmra.mxu0 %v2603
        %v4222 = vpop.f32.mrf.mxu0
        %v4223 = vadd.f32 0.0, %v4222
        %v4224 = vpop.f32.mrf.mxu0
        %v4225 = vpop.f32.mrf.mxu0
        %v4226 = vadd.f32 0.0, %v4225
        %v4227 = vpop.f32.mrf.mxu0
        %4228 = vmatprep.mubr.bf16.mxu0 0
        %4229 = vmatmul.mubr.bf16.gmra.mxu0 %v2606
        %v4230 = vpop.f32.mrf.mxu0
        %v4231 = vadd.f32 0.0, %v4230
        %v4232 = vpop.f32.mrf.mxu0
        %v4233 = vpop.f32.mrf.mxu0
        %v4234 = vadd.f32 0.0, %v4233
        %v4235 = vpop.f32.mrf.mxu0
        %4236 = vmatprep.mubr.bf16.mxu0 0
        %4237 = vmatmul.mubr.bf16.gmra.mxu0 %v2609
        %v4238 = vpop.f32.mrf.mxu0
        %v4239 = vadd.f32 0.0, %v4238
        %v4240 = vpop.f32.mrf.mxu0
        %v4241 = vpop.f32.mrf.mxu0
        %v4242 = vadd.f32 0.0, %v4241
        %v4243 = vpop.f32.mrf.mxu0
        %4244 = vmatprep.mubr.bf16.mxu0 0
        %4245 = vmatmul.mubr.bf16.gmra.mxu0 %v2612
        %v4246 = vpop.f32.mrf.mxu0
        %v4247 = vadd.f32 0.0, %v4246
        %v4248 = vpop.f32.mrf.mxu0
        %v4249 = vpop.f32.mrf.mxu0
        %v4250 = vadd.f32 0.0, %v4249
        %v4251 = vpop.f32.mrf.mxu0
        %4252 = vmatprep.mubr.bf16.mxu0 0
        %4253 = vmatmul.mubr.bf16.gmra.mxu0 %v2615
        %v4254 = vpop.f32.mrf.mxu0
        %v4255 = vadd.f32 0.0, %v4254
        %v4256 = vpop.f32.mrf.mxu0
        %v4257 = vpop.f32.mrf.mxu0
        %v4258 = vadd.f32 0.0, %v4257
        %v4259 = vpop.f32.mrf.mxu0
        %4260 = vmatprep.mubr.bf16.mxu0 0
        %4261 = vmatmul.mubr.bf16.gmra.mxu0 %v2618
        %v4262 = vpop.f32.mrf.mxu0
        %v4263 = vadd.f32 0.0, %v4262
        %v4264 = vpop.f32.mrf.mxu0
        %v4265 = vpop.f32.mrf.mxu0
        %v4266 = vadd.f32 0.0, %v4265
        %v4267 = vpop.f32.mrf.mxu0
        %4268 = vmatprep.mubr.bf16.mxu0 0
        %4269 = vmatmul.mubr.bf16.gmra.mxu0 %v2621
        %v4270 = vpop.f32.mrf.mxu0
        %v4271 = vadd.f32 0.0, %v4270
        %v4272 = vpop.f32.mrf.mxu0
        %v4273 = vpop.f32.mrf.mxu0
        %v4274 = vadd.f32 0.0, %v4273
        %v4275 = vpop.f32.mrf.mxu0
        %4276 = vmatprep.mubr.bf16.mxu0 0
        %4277 = vmatmul.mubr.bf16.gmra.mxu0 %v2624
        %v4278 = vpop.f32.mrf.mxu0
        %v4279 = vadd.f32 0.0, %v4278
        %v4280 = vpop.f32.mrf.mxu0
        %v4281 = vpop.f32.mrf.mxu0
        %v4282 = vadd.f32 0.0, %v4281
        %v4283 = vpop.f32.mrf.mxu0
        %4284 = vmatprep.mubr.bf16.mxu0 0
        %4285 = vmatmul.mubr.bf16.gmra.mxu0 %v2627
        %v4286 = vpop.f32.mrf.mxu0
        %v4287 = vadd.f32 0.0, %v4286
        %v4288 = vpop.f32.mrf.mxu0
        %v4289 = vpop.f32.mrf.mxu0
        %v4290 = vadd.f32 0.0, %v4289
        %v4291 = vpop.f32.mrf.mxu0
        %4292 = vmatprep.mubr.bf16.mxu0 0
        %4293 = vmatmul.mubr.bf16.gmra.mxu0 %v2630
        %v4294 = vpop.f32.mrf.mxu0
        %v4295 = vadd.f32 0.0, %v4294
        %v4296 = vpop.f32.mrf.mxu0
        %v4297 = vpop.f32.mrf.mxu0
        %v4298 = vadd.f32 0.0, %v4297
        %v4299 = vpop.f32.mrf.mxu0
        %4300 = vmatprep.mubr.bf16.mxu0 0
        %4301 = vmatmul.mubr.bf16.gmra.mxu0 %v3952
        %v4302 = vpop.f32.mrf.mxu0
        %v4303 = vadd.f32 0.0, %v4302
        %v4304 = vpop.f32.mrf.mxu0
        %v4305 = vpop.f32.mrf.mxu0
        %v4306 = vadd.f32 0.0, %v4305
        %v4307 = vpop.f32.mrf.mxu0
        %4308 = vdwg.mxu0
        %v4309 = vadd.f32 %v3879, %v4055
        %v4310 = vadd.f32 %v3880, %v4058
        %v4311 = vadd.f32 %v3881, %v4063
        %v4312 = vadd.f32 %v3882, %v4066
        %v4313 = vadd.f32 %v3883, %v4071
        %v4314 = vadd.f32 %v3884, %v4074
        %v4315 = vadd.f32 %v3885, %v4079
        %v4316 = vadd.f32 %v3886, %v4082
        %v4317 = vadd.f32 %v3887, %v4087
        %v4318 = vadd.f32 %v3888, %v4090
        %v4319 = vadd.f32 %v3889, %v4095
        %v4320 = vadd.f32 %v3890, %v4098
        %v4321 = vadd.f32 %v3891, %v4103
        %v4322 = vadd.f32 %v3892, %v4106
        %v4323 = vadd.f32 %v3893, %v4111
        %v4324 = vadd.f32 %v3894, %v4114
        %v4325 = vadd.f32 %v3895, %v4119
        %v4326 = vadd.f32 %v3896, %v4122
        %v4327 = vadd.f32 %v3897, %v4127
        %v4328 = vadd.f32 %v3898, %v4130
        %v4329 = vadd.f32 %v3899, %v4135
        %v4330 = vadd.f32 %v3900, %v4138
        %v4331 = vadd.f32 %v3901, %v4143
        %v4332 = vadd.f32 %v3902, %v4146
        %v4333 = vadd.f32 %v3903, %v4151
        %v4334 = vadd.f32 %v3904, %v4154
        %v4335 = vadd.f32 %v3905, %v4159
        %v4336 = vadd.f32 %v3906, %v4162
        %v4337 = vadd.f32 %v3907, %v4167
        %v4338 = vadd.f32 %v3908, %v4170
        %v4339 = vadd.f32 %v3909, %v4175
        %v4340 = vadd.f32 %v3910, %v4178
        %v4341 = vadd.f32 %v3911, %v4183
        %v4342 = vadd.f32 %v3912, %v4186
        %v4343 = vadd.f32 %v3913, %v4191
        %v4344 = vadd.f32 %v3914, %v4194
        %v4345 = vadd.f32 %v3915, %v4199
        %v4346 = vadd.f32 %v3916, %v4202
        %v4347 = vadd.f32 %v3917, %v4207
        %v4348 = vadd.f32 %v3918, %v4210
        %v4349 = vadd.f32 %v3919, %v4215
        %v4350 = vadd.f32 %v3920, %v4218
        %v4351 = vadd.f32 %v3921, %v4223
        %v4352 = vadd.f32 %v3922, %v4226
        %v4353 = vadd.f32 %v3923, %v4231
        %v4354 = vadd.f32 %v3924, %v4234
        %v4355 = vadd.f32 %v3925, %v4239
        %v4356 = vadd.f32 %v3926, %v4242
        %v4357 = vadd.f32 %v3927, %v4247
        %v4358 = vadd.f32 %v3928, %v4250
        %v4359 = vadd.f32 %v3929, %v4255
        %v4360 = vadd.f32 %v3930, %v4258
        %v4361 = vadd.f32 %v3931, %v4263
        %v4362 = vadd.f32 %v3932, %v4266
        %v4363 = vadd.f32 %v3933, %v4271
        %v4364 = vadd.f32 %v3934, %v4274
        %v4365 = vadd.f32 %v3935, %v4279
        %v4366 = vadd.f32 %v3936, %v4282
        %v4367 = vadd.f32 %v3937, %v4287
        %v4368 = vadd.f32 %v3938, %v4290
        %v4369 = vadd.f32 %v3939, %v4295
        %v4370 = vadd.f32 %v3940, %v4298
        %v4371 = vadd.f32 %v3941, %v4303
        %v4372 = vadd.f32 %v3942, %v4306
        %s4373 = scalar_lea.vmem [#allocation8], 384
        %v4374 = vld [vmem:[%s4373] sm:$0xf]
        %v4375 = vld [vmem:[%s4373 + $0x4] sm:$0xf]
        %v4376 = vld [vmem:[%s4373 + $0x8] sm:$0xf]
        %v4377 = vld [vmem:[%s4373 + $0xc] sm:$0xf]
        %v4378 = vld [vmem:[%s4373 + $0x10] sm:$0xf]
        %v4379 = vld [vmem:[%s4373 + $0x14] sm:$0xf]
        %v4380 = vld [vmem:[%s4373 + $0x18] sm:$0xf]
        %v4381 = vld [vmem:[%s4373 + $0x1c] sm:$0xf]
        %v4382 = vld [vmem:[%s4373 + $0x20] sm:$0xf]
        %v4383 = vld [vmem:[%s4373 + $0x24] sm:$0xf]
        %v4384 = vld [vmem:[%s4373 + $0x28] sm:$0xf]
        %v4385 = vld [vmem:[%s4373 + $0x2c] sm:$0xf]
        %v4386 = vld [vmem:[%s4373 + $0x30] sm:$0xf]
        %v4387 = vld [vmem:[%s4373 + $0x34] sm:$0xf]
        %v4388 = vld [vmem:[%s4373 + $0x38] sm:$0xf]
        %v4389 = vld [vmem:[%s4373 + $0x3c] sm:$0xf]
        %v4406 = vunpack.c.l.b16 %v4374
        %v4407 = vunpack.c.l.b16 %v4375
        %v4408 = vunpack.c.l.b16 %v4376
        %v4409 = vunpack.c.l.b16 %v4377
        %v4410 = vunpack.c.l.b16 %v4378
        %v4411 = vunpack.c.l.b16 %v4379
        %v4412 = vunpack.c.l.b16 %v4380
        %v4413 = vunpack.c.l.b16 %v4381
        %v4414 = vunpack.c.l.b16 %v4382
        %v4415 = vunpack.c.l.b16 %v4383
        %v4416 = vunpack.c.l.b16 %v4384
        %v4417 = vunpack.c.l.b16 %v4385
        %v4418 = vunpack.c.l.b16 %v4386
        %v4419 = vunpack.c.l.b16 %v4387
        %v4420 = vunpack.c.l.b16 %v4388
        %v4421 = vunpack.c.l.b16 %v4389
        %v4422 = vpack.c.b16 %v4407, %v4406
        %v4423 = vpack.c.b16 %v4409, %v4408
        %v4424 = vpack.c.b16 %v4411, %v4410
        %v4425 = vpack.c.b16 %v4413, %v4412
        %v4426 = vpack.c.b16 %v4415, %v4414
        %v4427 = vpack.c.b16 %v4417, %v4416
        %v4428 = vpack.c.b16 %v4419, %v4418
        %v4429 = vpack.c.b16 %v4421, %v4420
        %4438 = vmatprep.subr.bf16.mxu0 0
        %4439 = vmatpush1.bf16.msra.mxu0 %v4429
        %4440 = vmatprep.subr.bf16.mxu0 0
        %4441 = vmatpush1.bf16.msra.mxu0 %v4428
        %4442 = vmatprep.subr.bf16.mxu0 0
        %4443 = vmatpush1.bf16.msra.mxu0 %v4427
        %4444 = vmatprep.subr.bf16.mxu0 0
        %4445 = vmatpush1.bf16.msra.mxu0 %v4426
        %4446 = vmatprep.subr.bf16.mxu0 0
        %4447 = vmatpush1.bf16.msra.mxu0 %v4425
        %4448 = vmatprep.subr.bf16.mxu0 0
        %4449 = vmatpush1.bf16.msra.mxu0 %v4424
        %4450 = vmatprep.subr.bf16.mxu0 0
        %4451 = vmatpush1.bf16.msra.mxu0 %v4423
        %4452 = vmatprep.subr.bf16.mxu0 0
        %4453 = vmatpush1.bf16.msra.mxu0 %v4422
        %4454 = vmatprep.subr.bf16.mxu0 0
        %4455 = vmatpush2.bf16.msra.mxu0 0
        %4456 = vmatprep.subr.bf16.mxu0 0
        %4457 = vmatpush2.bf16.msra.mxu0 0
        %4458 = vmatprep.subr.bf16.mxu0 0
        %4459 = vmatpush2.bf16.msra.mxu0 0
        %4460 = vmatprep.subr.bf16.mxu0 0
        %4461 = vmatpush2.bf16.msra.mxu0 0
        %4462 = vmatprep.subr.bf16.mxu0 0
        %4463 = vmatpush2.bf16.msra.mxu0 0
        %4464 = vmatprep.subr.bf16.mxu0 0
        %4465 = vmatpush2.bf16.msra.mxu0 0
        %4466 = vmatprep.subr.bf16.mxu0 0
        %4467 = vmatpush2.bf16.msra.mxu0 0
        %4468 = vmatprep.subr.bf16.mxu0 0
        %4469 = vmatpush2.bf16.msra.mxu0 0
        %4470 = vmatprep.mubr.bf16.mxu0 0
        %4471 = vmatmul.mubr.bf16.gmra.mxu0 %v1278
        %v4472 = vpop.f32.mrf.mxu0
        %v4473 = vadd.f32 0.0, %v4472
        %v4474 = vpop.f32.mrf.mxu0
        %v4475 = vpop.f32.mrf.mxu0
        %v4476 = vadd.f32 0.0, %v4475
        %v4477 = vpop.f32.mrf.mxu0
        %4478 = vmatprep.mubr.bf16.mxu0 0
        %4479 = vmatmul.mubr.bf16.gmra.mxu0 %v1280
        %v4480 = vpop.f32.mrf.mxu0
        %v4481 = vadd.f32 0.0, %v4480
        %v4482 = vpop.f32.mrf.mxu0
        %v4483 = vpop.f32.mrf.mxu0
        %v4484 = vadd.f32 0.0, %v4483
        %v4485 = vpop.f32.mrf.mxu0
        %4486 = vmatprep.mubr.bf16.mxu0 0
        %4487 = vmatmul.mubr.bf16.gmra.mxu0 %v1282
        %v4488 = vpop.f32.mrf.mxu0
        %v4489 = vadd.f32 0.0, %v4488
        %v4490 = vpop.f32.mrf.mxu0
        %v4491 = vpop.f32.mrf.mxu0
        %v4492 = vadd.f32 0.0, %v4491
        %v4493 = vpop.f32.mrf.mxu0
        %4494 = vmatprep.mubr.bf16.mxu0 0
        %4495 = vmatmul.mubr.bf16.gmra.mxu0 %v1284
        %v4496 = vpop.f32.mrf.mxu0
        %v4497 = vadd.f32 0.0, %v4496
        %v4498 = vpop.f32.mrf.mxu0
        %v4499 = vpop.f32.mrf.mxu0
        %v4500 = vadd.f32 0.0, %v4499
        %v4501 = vpop.f32.mrf.mxu0
        %4502 = vmatprep.mubr.bf16.mxu0 0
        %4503 = vmatmul.mubr.bf16.gmra.mxu0 %v1286
        %v4504 = vpop.f32.mrf.mxu0
        %v4505 = vadd.f32 0.0, %v4504
        %v4506 = vpop.f32.mrf.mxu0
        %v4507 = vpop.f32.mrf.mxu0
        %v4508 = vadd.f32 0.0, %v4507
        %v4509 = vpop.f32.mrf.mxu0
        %4510 = vmatprep.mubr.bf16.mxu0 0
        %4511 = vmatmul.mubr.bf16.gmra.mxu0 %v1288
        %v4512 = vpop.f32.mrf.mxu0
        %v4513 = vadd.f32 0.0, %v4512
        %v4514 = vpop.f32.mrf.mxu0
        %v4515 = vpop.f32.mrf.mxu0
        %v4516 = vadd.f32 0.0, %v4515
        %v4517 = vpop.f32.mrf.mxu0
        %4518 = vmatprep.mubr.bf16.mxu0 0
        %4519 = vmatmul.mubr.bf16.gmra.mxu0 %v1290
        %v4520 = vpop.f32.mrf.mxu0
        %v4521 = vadd.f32 0.0, %v4520
        %v4522 = vpop.f32.mrf.mxu0
        %v4523 = vpop.f32.mrf.mxu0
        %v4524 = vadd.f32 0.0, %v4523
        %v4525 = vpop.f32.mrf.mxu0
        %4526 = vmatprep.mubr.bf16.mxu0 0
        %4527 = vmatmul.mubr.bf16.gmra.mxu0 %v1292
        %v4528 = vpop.f32.mrf.mxu0
        %v4529 = vadd.f32 0.0, %v4528
        %v4530 = vpop.f32.mrf.mxu0
        %v4531 = vpop.f32.mrf.mxu0
        %v4532 = vadd.f32 0.0, %v4531
        %v4533 = vpop.f32.mrf.mxu0
        %4534 = vmatprep.mubr.bf16.mxu0 0
        %4535 = vmatmul.mubr.bf16.gmra.mxu0 %v1294
        %v4536 = vpop.f32.mrf.mxu0
        %v4537 = vadd.f32 0.0, %v4536
        %v4538 = vpop.f32.mrf.mxu0
        %v4539 = vpop.f32.mrf.mxu0
        %v4540 = vadd.f32 0.0, %v4539
        %v4541 = vpop.f32.mrf.mxu0
        %4542 = vmatprep.mubr.bf16.mxu0 0
        %4543 = vmatmul.mubr.bf16.gmra.mxu0 %v1296
        %v4544 = vpop.f32.mrf.mxu0
        %v4545 = vadd.f32 0.0, %v4544
        %v4546 = vpop.f32.mrf.mxu0
        %v4547 = vpop.f32.mrf.mxu0
        %v4548 = vadd.f32 0.0, %v4547
        %v4549 = vpop.f32.mrf.mxu0
        %4550 = vmatprep.mubr.bf16.mxu0 0
        %4551 = vmatmul.mubr.bf16.gmra.mxu0 %v1298
        %v4552 = vpop.f32.mrf.mxu0
        %v4553 = vadd.f32 0.0, %v4552
        %v4554 = vpop.f32.mrf.mxu0
        %v4555 = vpop.f32.mrf.mxu0
        %v4556 = vadd.f32 0.0, %v4555
        %v4557 = vpop.f32.mrf.mxu0
        %4558 = vmatprep.mubr.bf16.mxu0 0
        %4559 = vmatmul.mubr.bf16.gmra.mxu0 %v1300
        %v4560 = vpop.f32.mrf.mxu0
        %v4561 = vadd.f32 0.0, %v4560
        %v4562 = vpop.f32.mrf.mxu0
        %v4563 = vpop.f32.mrf.mxu0
        %v4564 = vadd.f32 0.0, %v4563
        %v4565 = vpop.f32.mrf.mxu0
        %4566 = vmatprep.mubr.bf16.mxu0 0
        %4567 = vmatmul.mubr.bf16.gmra.mxu0 %v1302
        %v4568 = vpop.f32.mrf.mxu0
        %v4569 = vadd.f32 0.0, %v4568
        %v4570 = vpop.f32.mrf.mxu0
        %v4571 = vpop.f32.mrf.mxu0
        %v4572 = vadd.f32 0.0, %v4571
        %v4573 = vpop.f32.mrf.mxu0
        %4574 = vmatprep.mubr.bf16.mxu0 0
        %4575 = vmatmul.mubr.bf16.gmra.mxu0 %v1304
        %v4576 = vpop.f32.mrf.mxu0
        %v4577 = vadd.f32 0.0, %v4576
        %v4578 = vpop.f32.mrf.mxu0
        %v4579 = vpop.f32.mrf.mxu0
        %v4580 = vadd.f32 0.0, %v4579
        %v4581 = vpop.f32.mrf.mxu0
        %4582 = vmatprep.mubr.bf16.mxu0 0
        %4583 = vmatmul.mubr.bf16.gmra.mxu0 %v1306
        %v4584 = vpop.f32.mrf.mxu0
        %v4585 = vadd.f32 0.0, %v4584
        %v4586 = vpop.f32.mrf.mxu0
        %v4587 = vpop.f32.mrf.mxu0
        %v4588 = vadd.f32 0.0, %v4587
        %v4589 = vpop.f32.mrf.mxu0
        %4590 = vmatprep.mubr.bf16.mxu0 0
        %4591 = vmatmul.mubr.bf16.gmra.mxu0 %v1308
        %v4592 = vpop.f32.mrf.mxu0
        %v4593 = vadd.f32 0.0, %v4592
        %v4594 = vpop.f32.mrf.mxu0
        %v4595 = vpop.f32.mrf.mxu0
        %v4596 = vadd.f32 0.0, %v4595
        %v4597 = vpop.f32.mrf.mxu0
        %4598 = vmatprep.mubr.bf16.mxu0 0
        %4599 = vmatmul.mubr.bf16.gmra.mxu0 %v1314
        %v4600 = vpop.f32.mrf.mxu0
        %v4601 = vadd.f32 0.0, %v4600
        %v4602 = vpop.f32.mrf.mxu0
        %v4603 = vpop.f32.mrf.mxu0
        %v4604 = vadd.f32 0.0, %v4603
        %v4605 = vpop.f32.mrf.mxu0
        %4606 = vmatprep.mubr.bf16.mxu0 0
        %4607 = vmatmul.mubr.bf16.gmra.mxu0 %v1316
        %v4608 = vpop.f32.mrf.mxu0
        %v4609 = vadd.f32 0.0, %v4608
        %v4610 = vpop.f32.mrf.mxu0
        %v4611 = vpop.f32.mrf.mxu0
        %v4612 = vadd.f32 0.0, %v4611
        %v4613 = vpop.f32.mrf.mxu0
        %4614 = vmatprep.mubr.bf16.mxu0 0
        %4615 = vmatmul.mubr.bf16.gmra.mxu0 %v1318
        %v4616 = vpop.f32.mrf.mxu0
        %v4617 = vadd.f32 0.0, %v4616
        %v4618 = vpop.f32.mrf.mxu0
        %v4619 = vpop.f32.mrf.mxu0
        %v4620 = vadd.f32 0.0, %v4619
        %v4621 = vpop.f32.mrf.mxu0
        %4622 = vmatprep.mubr.bf16.mxu0 0
        %4623 = vmatmul.mubr.bf16.gmra.mxu0 %v1320
        %v4624 = vpop.f32.mrf.mxu0
        %v4625 = vadd.f32 0.0, %v4624
        %v4626 = vpop.f32.mrf.mxu0
        %v4627 = vpop.f32.mrf.mxu0
        %v4628 = vadd.f32 0.0, %v4627
        %v4629 = vpop.f32.mrf.mxu0
        %4630 = vmatprep.mubr.bf16.mxu0 0
        %4631 = vmatmul.mubr.bf16.gmra.mxu0 %v1322
        %v4632 = vpop.f32.mrf.mxu0
        %v4633 = vadd.f32 0.0, %v4632
        %v4634 = vpop.f32.mrf.mxu0
        %v4635 = vpop.f32.mrf.mxu0
        %v4636 = vadd.f32 0.0, %v4635
        %v4637 = vpop.f32.mrf.mxu0
        %4638 = vmatprep.mubr.bf16.mxu0 0
        %4639 = vmatmul.mubr.bf16.gmra.mxu0 %v1324
        %v4640 = vpop.f32.mrf.mxu0
        %v4641 = vadd.f32 0.0, %v4640
        %v4642 = vpop.f32.mrf.mxu0
        %v4643 = vpop.f32.mrf.mxu0
        %v4644 = vadd.f32 0.0, %v4643
        %v4645 = vpop.f32.mrf.mxu0
        %4646 = vmatprep.mubr.bf16.mxu0 0
        %4647 = vmatmul.mubr.bf16.gmra.mxu0 %v1326
        %v4648 = vpop.f32.mrf.mxu0
        %v4649 = vadd.f32 0.0, %v4648
        %v4650 = vpop.f32.mrf.mxu0
        %v4651 = vpop.f32.mrf.mxu0
        %v4652 = vadd.f32 0.0, %v4651
        %v4653 = vpop.f32.mrf.mxu0
        %4654 = vmatprep.mubr.bf16.mxu0 0
        %4655 = vmatmul.mubr.bf16.gmra.mxu0 %v1328
        %v4656 = vpop.f32.mrf.mxu0
        %v4657 = vadd.f32 0.0, %v4656
        %v4658 = vpop.f32.mrf.mxu0
        %v4659 = vpop.f32.mrf.mxu0
        %v4660 = vadd.f32 0.0, %v4659
        %v4661 = vpop.f32.mrf.mxu0
        %4662 = vmatprep.mubr.bf16.mxu0 0
        %4663 = vmatmul.mubr.bf16.gmra.mxu0 %v1330
        %v4664 = vpop.f32.mrf.mxu0
        %v4665 = vadd.f32 0.0, %v4664
        %v4666 = vpop.f32.mrf.mxu0
        %v4667 = vpop.f32.mrf.mxu0
        %v4668 = vadd.f32 0.0, %v4667
        %v4669 = vpop.f32.mrf.mxu0
        %4670 = vmatprep.mubr.bf16.mxu0 0
        %4671 = vmatmul.mubr.bf16.gmra.mxu0 %v1332
        %v4672 = vpop.f32.mrf.mxu0
        %v4673 = vadd.f32 0.0, %v4672
        %v4674 = vpop.f32.mrf.mxu0
        %v4675 = vpop.f32.mrf.mxu0
        %v4676 = vadd.f32 0.0, %v4675
        %v4677 = vpop.f32.mrf.mxu0
        %4678 = vmatprep.mubr.bf16.mxu0 0
        %4679 = vmatmul.mubr.bf16.gmra.mxu0 %v1334
        %v4680 = vpop.f32.mrf.mxu0
        %v4681 = vadd.f32 0.0, %v4680
        %v4682 = vpop.f32.mrf.mxu0
        %v4683 = vpop.f32.mrf.mxu0
        %v4684 = vadd.f32 0.0, %v4683
        %v4685 = vpop.f32.mrf.mxu0
        %4686 = vmatprep.mubr.bf16.mxu0 0
        %4687 = vmatmul.mubr.bf16.gmra.mxu0 %v1336
        %v4688 = vpop.f32.mrf.mxu0
        %v4689 = vadd.f32 0.0, %v4688
        %v4690 = vpop.f32.mrf.mxu0
        %v4691 = vpop.f32.mrf.mxu0
        %v4692 = vadd.f32 0.0, %v4691
        %v4693 = vpop.f32.mrf.mxu0
        %4694 = vmatprep.mubr.bf16.mxu0 0
        %4695 = vmatmul.mubr.bf16.gmra.mxu0 %v1338
        %v4696 = vpop.f32.mrf.mxu0
        %v4697 = vadd.f32 0.0, %v4696
        %v4698 = vpop.f32.mrf.mxu0
        %v4699 = vpop.f32.mrf.mxu0
        %v4700 = vadd.f32 0.0, %v4699
        %v4701 = vpop.f32.mrf.mxu0
        %4702 = vmatprep.mubr.bf16.mxu0 0
        %4703 = vmatmul.mubr.bf16.gmra.mxu0 %v1340
        %v4704 = vpop.f32.mrf.mxu0
        %v4705 = vadd.f32 0.0, %v4704
        %v4706 = vpop.f32.mrf.mxu0
        %v4707 = vpop.f32.mrf.mxu0
        %v4708 = vadd.f32 0.0, %v4707
        %v4709 = vpop.f32.mrf.mxu0
        %4710 = vmatprep.mubr.bf16.mxu0 0
        %4711 = vmatmul.mubr.bf16.gmra.mxu0 %v1342
        %v4712 = vpop.f32.mrf.mxu0
        %v4713 = vadd.f32 0.0, %v4712
        %v4714 = vpop.f32.mrf.mxu0
        %v4715 = vpop.f32.mrf.mxu0
        %v4716 = vadd.f32 0.0, %v4715
        %v4717 = vpop.f32.mrf.mxu0
        %4718 = vmatprep.mubr.bf16.mxu0 0
        %4719 = vmatmul.mubr.bf16.gmra.mxu0 %v1344
        %v4720 = vpop.f32.mrf.mxu0
        %v4721 = vadd.f32 0.0, %v4720
        %v4722 = vpop.f32.mrf.mxu0
        %v4723 = vpop.f32.mrf.mxu0
        %v4724 = vadd.f32 0.0, %v4723
        %v4725 = vpop.f32.mrf.mxu0
        %4726 = vdwg.mxu0
        %v4727 = vadd.f32 %v4309, %v4473
        %v4728 = vadd.f32 %v4310, %v4476
        %v4729 = vadd.f32 %v4311, %v4481
        %v4730 = vadd.f32 %v4312, %v4484
        %v4731 = vadd.f32 %v4313, %v4489
        %v4732 = vadd.f32 %v4314, %v4492
        %v4733 = vadd.f32 %v4315, %v4497
        %v4734 = vadd.f32 %v4316, %v4500
        %v4735 = vadd.f32 %v4317, %v4505
        %v4736 = vadd.f32 %v4318, %v4508
        %v4737 = vadd.f32 %v4319, %v4513
        %v4738 = vadd.f32 %v4320, %v4516
        %v4739 = vadd.f32 %v4321, %v4521
        %v4740 = vadd.f32 %v4322, %v4524
        %v4741 = vadd.f32 %v4323, %v4529
        %v4742 = vadd.f32 %v4324, %v4532
        %v4743 = vadd.f32 %v4325, %v4537
        %v4744 = vadd.f32 %v4326, %v4540
        %v4745 = vadd.f32 %v4327, %v4545
        %v4746 = vadd.f32 %v4328, %v4548
        %v4747 = vadd.f32 %v4329, %v4553
        %v4748 = vadd.f32 %v4330, %v4556
        %v4749 = vadd.f32 %v4331, %v4561
        %v4750 = vadd.f32 %v4332, %v4564
        %v4751 = vadd.f32 %v4333, %v4569
        %v4752 = vadd.f32 %v4334, %v4572
        %v4753 = vadd.f32 %v4335, %v4577
        %v4754 = vadd.f32 %v4336, %v4580
        %v4755 = vadd.f32 %v4337, %v4585
        %v4756 = vadd.f32 %v4338, %v4588
        %v4757 = vadd.f32 %v4339, %v4593
        %v4758 = vadd.f32 %v4340, %v4596
        %v4759 = vadd.f32 %v4341, %v4601
        %v4760 = vadd.f32 %v4342, %v4604
        %v4761 = vadd.f32 %v4343, %v4609
        %v4762 = vadd.f32 %v4344, %v4612
        %v4763 = vadd.f32 %v4345, %v4617
        %v4764 = vadd.f32 %v4346, %v4620
        %v4765 = vadd.f32 %v4347, %v4625
        %v4766 = vadd.f32 %v4348, %v4628
        %v4767 = vadd.f32 %v4349, %v4633
        %v4768 = vadd.f32 %v4350, %v4636
        %v4769 = vadd.f32 %v4351, %v4641
        %v4770 = vadd.f32 %v4352, %v4644
        %v4771 = vadd.f32 %v4353, %v4649
        %v4772 = vadd.f32 %v4354, %v4652
        %v4773 = vadd.f32 %v4355, %v4657
        %v4774 = vadd.f32 %v4356, %v4660
        %v4775 = vadd.f32 %v4357, %v4665
        %v4776 = vadd.f32 %v4358, %v4668
        %v4777 = vadd.f32 %v4359, %v4673
        %v4778 = vadd.f32 %v4360, %v4676
        %v4779 = vadd.f32 %v4361, %v4681
        %v4780 = vadd.f32 %v4362, %v4684
        %v4781 = vadd.f32 %v4363, %v4689
        %v4782 = vadd.f32 %v4364, %v4692
        %v4783 = vadd.f32 %v4365, %v4697
        %v4784 = vadd.f32 %v4366, %v4700
        %v4785 = vadd.f32 %v4367, %v4705
        %v4786 = vadd.f32 %v4368, %v4708
        %v4787 = vadd.f32 %v4369, %v4713
        %v4788 = vadd.f32 %v4370, %v4716
        %v4789 = vadd.f32 %v4371, %v4721
        %v4790 = vadd.f32 %v4372, %v4724
        %v4792 = vshrl.u32 %v1308, 16
        %v4794 = vshll.u32 %v1308, 16
        %v4796 = vrot.slane %v4794, 1
        %v4797 = vor.u32 %v4792, %v4796
        %v4799 = vshll.u32 %v1309, 16
        %v4801 = vrot.slane %v4799, 1
        %v4802 = vsel %vm1362, %v4797, %v4801
        %v4804 = vshrl.u32 %v1344, 16
        %v4806 = vshll.u32 %v1344, 16
        %v4808 = vrot.slane %v4806, 1
        %v4809 = vor.u32 %v4804, %v4808
        %v4811 = vshll.u32 %v1345, 16
        %v4813 = vrot.slane %v4811, 1
        %v4814 = vsel %vm1362, %v4809, %v4813
        %s4817 = scalar_lea.vmem [#allocation8], 448
        %v4818 = vld [vmem:[%s4817] sm:$0xf]
        %v4819 = vld [vmem:[%s4817 + $0x4] sm:$0xf]
        %v4820 = vld [vmem:[%s4817 + $0x8] sm:$0xf]
        %v4821 = vld [vmem:[%s4817 + $0xc] sm:$0xf]
        %v4822 = vld [vmem:[%s4817 + $0x10] sm:$0xf]
        %v4823 = vld [vmem:[%s4817 + $0x14] sm:$0xf]
        %v4824 = vld [vmem:[%s4817 + $0x18] sm:$0xf]
        %v4825 = vld [vmem:[%s4817 + $0x1c] sm:$0xf]
        %v4826 = vld [vmem:[%s4817 + $0x20] sm:$0xf]
        %v4827 = vld [vmem:[%s4817 + $0x24] sm:$0xf]
        %v4828 = vld [vmem:[%s4817 + $0x28] sm:$0xf]
        %v4829 = vld [vmem:[%s4817 + $0x2c] sm:$0xf]
        %v4830 = vld [vmem:[%s4817 + $0x30] sm:$0xf]
        %v4831 = vld [vmem:[%s4817 + $0x34] sm:$0xf]
        %v4832 = vld [vmem:[%s4817 + $0x38] sm:$0xf]
        %v4833 = vld [vmem:[%s4817 + $0x3c] sm:$0xf]
        %v4850 = vunpack.c.l.b16 %v4818
        %v4851 = vunpack.c.l.b16 %v4819
        %v4852 = vunpack.c.l.b16 %v4820
        %v4853 = vunpack.c.l.b16 %v4821
        %v4854 = vunpack.c.l.b16 %v4822
        %v4855 = vunpack.c.l.b16 %v4823
        %v4856 = vunpack.c.l.b16 %v4824
        %v4857 = vunpack.c.l.b16 %v4825
        %v4858 = vunpack.c.l.b16 %v4826
        %v4859 = vunpack.c.l.b16 %v4827
        %v4860 = vunpack.c.l.b16 %v4828
        %v4861 = vunpack.c.l.b16 %v4829
        %v4862 = vunpack.c.l.b16 %v4830
        %v4863 = vunpack.c.l.b16 %v4831
        %v4864 = vunpack.c.l.b16 %v4832
        %v4865 = vunpack.c.l.b16 %v4833
        %v4866 = vpack.c.b16 %v4851, %v4850
        %v4867 = vpack.c.b16 %v4853, %v4852
        %v4868 = vpack.c.b16 %v4855, %v4854
        %v4869 = vpack.c.b16 %v4857, %v4856
        %v4870 = vpack.c.b16 %v4859, %v4858
        %v4871 = vpack.c.b16 %v4861, %v4860
        %v4872 = vpack.c.b16 %v4863, %v4862
        %v4873 = vpack.c.b16 %v4865, %v4864
        %4882 = vmatprep.subr.bf16.mxu0 0
        %4883 = vmatpush1.bf16.msra.mxu0 %v4873
        %4884 = vmatprep.subr.bf16.mxu0 0
        %4885 = vmatpush1.bf16.msra.mxu0 %v4872
        %4886 = vmatprep.subr.bf16.mxu0 0
        %4887 = vmatpush1.bf16.msra.mxu0 %v4871
        %4888 = vmatprep.subr.bf16.mxu0 0
        %4889 = vmatpush1.bf16.msra.mxu0 %v4870
        %4890 = vmatprep.subr.bf16.mxu0 0
        %4891 = vmatpush1.bf16.msra.mxu0 %v4869
        %4892 = vmatprep.subr.bf16.mxu0 0
        %4893 = vmatpush1.bf16.msra.mxu0 %v4868
        %4894 = vmatprep.subr.bf16.mxu0 0
        %4895 = vmatpush1.bf16.msra.mxu0 %v4867
        %4896 = vmatprep.subr.bf16.mxu0 0
        %4897 = vmatpush1.bf16.msra.mxu0 %v4866
        %4898 = vmatprep.subr.bf16.mxu0 0
        %4899 = vmatpush2.bf16.msra.mxu0 0
        %4900 = vmatprep.subr.bf16.mxu0 0
        %4901 = vmatpush2.bf16.msra.mxu0 0
        %4902 = vmatprep.subr.bf16.mxu0 0
        %4903 = vmatpush2.bf16.msra.mxu0 0
        %4904 = vmatprep.subr.bf16.mxu0 0
        %4905 = vmatpush2.bf16.msra.mxu0 0
        %4906 = vmatprep.subr.bf16.mxu0 0
        %4907 = vmatpush2.bf16.msra.mxu0 0
        %4908 = vmatprep.subr.bf16.mxu0 0
        %4909 = vmatpush2.bf16.msra.mxu0 0
        %4910 = vmatprep.subr.bf16.mxu0 0
        %4911 = vmatpush2.bf16.msra.mxu0 0
        %4912 = vmatprep.subr.bf16.mxu0 0
        %4913 = vmatpush2.bf16.msra.mxu0 0
        %4914 = vmatprep.mubr.bf16.mxu0 0
        %4915 = vmatmul.mubr.bf16.gmra.mxu0 %v1398
        %v4916 = vpop.f32.mrf.mxu0
        %v4917 = vadd.f32 0.0, %v4916
        %v4918 = vpop.f32.mrf.mxu0
        %v4919 = vpop.f32.mrf.mxu0
        %v4920 = vadd.f32 0.0, %v4919
        %v4921 = vpop.f32.mrf.mxu0
        %4922 = vmatprep.mubr.bf16.mxu0 0
        %4923 = vmatmul.mubr.bf16.gmra.mxu0 %v1410
        %v4924 = vpop.f32.mrf.mxu0
        %v4925 = vadd.f32 0.0, %v4924
        %v4926 = vpop.f32.mrf.mxu0
        %v4927 = vpop.f32.mrf.mxu0
        %v4928 = vadd.f32 0.0, %v4927
        %v4929 = vpop.f32.mrf.mxu0
        %4930 = vmatprep.mubr.bf16.mxu0 0
        %4931 = vmatmul.mubr.bf16.gmra.mxu0 %v1422
        %v4932 = vpop.f32.mrf.mxu0
        %v4933 = vadd.f32 0.0, %v4932
        %v4934 = vpop.f32.mrf.mxu0
        %v4935 = vpop.f32.mrf.mxu0
        %v4936 = vadd.f32 0.0, %v4935
        %v4937 = vpop.f32.mrf.mxu0
        %4938 = vmatprep.mubr.bf16.mxu0 0
        %4939 = vmatmul.mubr.bf16.gmra.mxu0 %v1434
        %v4940 = vpop.f32.mrf.mxu0
        %v4941 = vadd.f32 0.0, %v4940
        %v4942 = vpop.f32.mrf.mxu0
        %v4943 = vpop.f32.mrf.mxu0
        %v4944 = vadd.f32 0.0, %v4943
        %v4945 = vpop.f32.mrf.mxu0
        %4946 = vmatprep.mubr.bf16.mxu0 0
        %4947 = vmatmul.mubr.bf16.gmra.mxu0 %v1446
        %v4948 = vpop.f32.mrf.mxu0
        %v4949 = vadd.f32 0.0, %v4948
        %v4950 = vpop.f32.mrf.mxu0
        %v4951 = vpop.f32.mrf.mxu0
        %v4952 = vadd.f32 0.0, %v4951
        %v4953 = vpop.f32.mrf.mxu0
        %4954 = vmatprep.mubr.bf16.mxu0 0
        %4955 = vmatmul.mubr.bf16.gmra.mxu0 %v1458
        %v4956 = vpop.f32.mrf.mxu0
        %v4957 = vadd.f32 0.0, %v4956
        %v4958 = vpop.f32.mrf.mxu0
        %v4959 = vpop.f32.mrf.mxu0
        %v4960 = vadd.f32 0.0, %v4959
        %v4961 = vpop.f32.mrf.mxu0
        %4962 = vmatprep.mubr.bf16.mxu0 0
        %4963 = vmatmul.mubr.bf16.gmra.mxu0 %v1470
        %v4964 = vpop.f32.mrf.mxu0
        %v4965 = vadd.f32 0.0, %v4964
        %v4966 = vpop.f32.mrf.mxu0
        %v4967 = vpop.f32.mrf.mxu0
        %v4968 = vadd.f32 0.0, %v4967
        %v4969 = vpop.f32.mrf.mxu0
        %4970 = vmatprep.mubr.bf16.mxu0 0
        %4971 = vmatmul.mubr.bf16.gmra.mxu0 %v1482
        %v4972 = vpop.f32.mrf.mxu0
        %v4973 = vadd.f32 0.0, %v4972
        %v4974 = vpop.f32.mrf.mxu0
        %v4975 = vpop.f32.mrf.mxu0
        %v4976 = vadd.f32 0.0, %v4975
        %v4977 = vpop.f32.mrf.mxu0
        %4978 = vmatprep.mubr.bf16.mxu0 0
        %4979 = vmatmul.mubr.bf16.gmra.mxu0 %v1494
        %v4980 = vpop.f32.mrf.mxu0
        %v4981 = vadd.f32 0.0, %v4980
        %v4982 = vpop.f32.mrf.mxu0
        %v4983 = vpop.f32.mrf.mxu0
        %v4984 = vadd.f32 0.0, %v4983
        %v4985 = vpop.f32.mrf.mxu0
        %4986 = vmatprep.mubr.bf16.mxu0 0
        %4987 = vmatmul.mubr.bf16.gmra.mxu0 %v1506
        %v4988 = vpop.f32.mrf.mxu0
        %v4989 = vadd.f32 0.0, %v4988
        %v4990 = vpop.f32.mrf.mxu0
        %v4991 = vpop.f32.mrf.mxu0
        %v4992 = vadd.f32 0.0, %v4991
        %v4993 = vpop.f32.mrf.mxu0
        %4994 = vmatprep.mubr.bf16.mxu0 0
        %4995 = vmatmul.mubr.bf16.gmra.mxu0 %v1518
        %v4996 = vpop.f32.mrf.mxu0
        %v4997 = vadd.f32 0.0, %v4996
        %v4998 = vpop.f32.mrf.mxu0
        %v4999 = vpop.f32.mrf.mxu0
        %v5000 = vadd.f32 0.0, %v4999
        %v5001 = vpop.f32.mrf.mxu0
        %5002 = vmatprep.mubr.bf16.mxu0 0
        %5003 = vmatmul.mubr.bf16.gmra.mxu0 %v1530
        %v5004 = vpop.f32.mrf.mxu0
        %v5005 = vadd.f32 0.0, %v5004
        %v5006 = vpop.f32.mrf.mxu0
        %v5007 = vpop.f32.mrf.mxu0
        %v5008 = vadd.f32 0.0, %v5007
        %v5009 = vpop.f32.mrf.mxu0
        %5010 = vmatprep.mubr.bf16.mxu0 0
        %5011 = vmatmul.mubr.bf16.gmra.mxu0 %v1542
        %v5012 = vpop.f32.mrf.mxu0
        %v5013 = vadd.f32 0.0, %v5012
        %v5014 = vpop.f32.mrf.mxu0
        %v5015 = vpop.f32.mrf.mxu0
        %v5016 = vadd.f32 0.0, %v5015
        %v5017 = vpop.f32.mrf.mxu0
        %5018 = vmatprep.mubr.bf16.mxu0 0
        %5019 = vmatmul.mubr.bf16.gmra.mxu0 %v1554
        %v5020 = vpop.f32.mrf.mxu0
        %v5021 = vadd.f32 0.0, %v5020
        %v5022 = vpop.f32.mrf.mxu0
        %v5023 = vpop.f32.mrf.mxu0
        %v5024 = vadd.f32 0.0, %v5023
        %v5025 = vpop.f32.mrf.mxu0
        %5026 = vmatprep.mubr.bf16.mxu0 0
        %5027 = vmatmul.mubr.bf16.gmra.mxu0 %v3510
        %v5028 = vpop.f32.mrf.mxu0
        %v5029 = vadd.f32 0.0, %v5028
        %v5030 = vpop.f32.mrf.mxu0
        %v5031 = vpop.f32.mrf.mxu0
        %v5032 = vadd.f32 0.0, %v5031
        %v5033 = vpop.f32.mrf.mxu0
        %5034 = vmatprep.mubr.bf16.mxu0 0
        %5035 = vmatmul.mubr.bf16.gmra.mxu0 %v4802
        %v5036 = vpop.f32.mrf.mxu0
        %v5037 = vadd.f32 0.0, %v5036
        %v5038 = vpop.f32.mrf.mxu0
        %v5039 = vpop.f32.mrf.mxu0
        %v5040 = vadd.f32 0.0, %v5039
        %v5041 = vpop.f32.mrf.mxu0
        %5042 = vmatprep.mubr.bf16.mxu0 0
        %5043 = vmatmul.mubr.bf16.gmra.mxu0 %v1590
        %v5044 = vpop.f32.mrf.mxu0
        %v5045 = vadd.f32 0.0, %v5044
        %v5046 = vpop.f32.mrf.mxu0
        %v5047 = vpop.f32.mrf.mxu0
        %v5048 = vadd.f32 0.0, %v5047
        %v5049 = vpop.f32.mrf.mxu0
        %5050 = vmatprep.mubr.bf16.mxu0 0
        %5051 = vmatmul.mubr.bf16.gmra.mxu0 %v1602
        %v5052 = vpop.f32.mrf.mxu0
        %v5053 = vadd.f32 0.0, %v5052
        %v5054 = vpop.f32.mrf.mxu0
        %v5055 = vpop.f32.mrf.mxu0
        %v5056 = vadd.f32 0.0, %v5055
        %v5057 = vpop.f32.mrf.mxu0
        %5058 = vmatprep.mubr.bf16.mxu0 0
        %5059 = vmatmul.mubr.bf16.gmra.mxu0 %v1614
        %v5060 = vpop.f32.mrf.mxu0
        %v5061 = vadd.f32 0.0, %v5060
        %v5062 = vpop.f32.mrf.mxu0
        %v5063 = vpop.f32.mrf.mxu0
        %v5064 = vadd.f32 0.0, %v5063
        %v5065 = vpop.f32.mrf.mxu0
        %5066 = vmatprep.mubr.bf16.mxu0 0
        %5067 = vmatmul.mubr.bf16.gmra.mxu0 %v1626
        %v5068 = vpop.f32.mrf.mxu0
        %v5069 = vadd.f32 0.0, %v5068
        %v5070 = vpop.f32.mrf.mxu0
        %v5071 = vpop.f32.mrf.mxu0
        %v5072 = vadd.f32 0.0, %v5071
        %v5073 = vpop.f32.mrf.mxu0
        %5074 = vmatprep.mubr.bf16.mxu0 0
        %5075 = vmatmul.mubr.bf16.gmra.mxu0 %v1638
        %v5076 = vpop.f32.mrf.mxu0
        %v5077 = vadd.f32 0.0, %v5076
        %v5078 = vpop.f32.mrf.mxu0
        %v5079 = vpop.f32.mrf.mxu0
        %v5080 = vadd.f32 0.0, %v5079
        %v5081 = vpop.f32.mrf.mxu0
        %5082 = vmatprep.mubr.bf16.mxu0 0
        %5083 = vmatmul.mubr.bf16.gmra.mxu0 %v1650
        %v5084 = vpop.f32.mrf.mxu0
        %v5085 = vadd.f32 0.0, %v5084
        %v5086 = vpop.f32.mrf.mxu0
        %v5087 = vpop.f32.mrf.mxu0
        %v5088 = vadd.f32 0.0, %v5087
        %v5089 = vpop.f32.mrf.mxu0
        %5090 = vmatprep.mubr.bf16.mxu0 0
        %5091 = vmatmul.mubr.bf16.gmra.mxu0 %v1662
        %v5092 = vpop.f32.mrf.mxu0
        %v5093 = vadd.f32 0.0, %v5092
        %v5094 = vpop.f32.mrf.mxu0
        %v5095 = vpop.f32.mrf.mxu0
        %v5096 = vadd.f32 0.0, %v5095
        %v5097 = vpop.f32.mrf.mxu0
        %5098 = vmatprep.mubr.bf16.mxu0 0
        %5099 = vmatmul.mubr.bf16.gmra.mxu0 %v1674
        %v5100 = vpop.f32.mrf.mxu0
        %v5101 = vadd.f32 0.0, %v5100
        %v5102 = vpop.f32.mrf.mxu0
        %v5103 = vpop.f32.mrf.mxu0
        %v5104 = vadd.f32 0.0, %v5103
        %v5105 = vpop.f32.mrf.mxu0
        %5106 = vmatprep.mubr.bf16.mxu0 0
        %5107 = vmatmul.mubr.bf16.gmra.mxu0 %v1686
        %v5108 = vpop.f32.mrf.mxu0
        %v5109 = vadd.f32 0.0, %v5108
        %v5110 = vpop.f32.mrf.mxu0
        %v5111 = vpop.f32.mrf.mxu0
        %v5112 = vadd.f32 0.0, %v5111
        %v5113 = vpop.f32.mrf.mxu0
        %5114 = vmatprep.mubr.bf16.mxu0 0
        %5115 = vmatmul.mubr.bf16.gmra.mxu0 %v1698
        %v5116 = vpop.f32.mrf.mxu0
        %v5117 = vadd.f32 0.0, %v5116
        %v5118 = vpop.f32.mrf.mxu0
        %v5119 = vpop.f32.mrf.mxu0
        %v5120 = vadd.f32 0.0, %v5119
        %v5121 = vpop.f32.mrf.mxu0
        %5122 = vmatprep.mubr.bf16.mxu0 0
        %5123 = vmatmul.mubr.bf16.gmra.mxu0 %v1710
        %v5124 = vpop.f32.mrf.mxu0
        %v5125 = vadd.f32 0.0, %v5124
        %v5126 = vpop.f32.mrf.mxu0
        %v5127 = vpop.f32.mrf.mxu0
        %v5128 = vadd.f32 0.0, %v5127
        %v5129 = vpop.f32.mrf.mxu0
        %5130 = vmatprep.mubr.bf16.mxu0 0
        %5131 = vmatmul.mubr.bf16.gmra.mxu0 %v1722
        %v5132 = vpop.f32.mrf.mxu0
        %v5133 = vadd.f32 0.0, %v5132
        %v5134 = vpop.f32.mrf.mxu0
        %v5135 = vpop.f32.mrf.mxu0
        %v5136 = vadd.f32 0.0, %v5135
        %v5137 = vpop.f32.mrf.mxu0
        %5138 = vmatprep.mubr.bf16.mxu0 0
        %5139 = vmatmul.mubr.bf16.gmra.mxu0 %v1734
        %v5140 = vpop.f32.mrf.mxu0
        %v5141 = vadd.f32 0.0, %v5140
        %v5142 = vpop.f32.mrf.mxu0
        %v5143 = vpop.f32.mrf.mxu0
        %v5144 = vadd.f32 0.0, %v5143
        %v5145 = vpop.f32.mrf.mxu0
        %5146 = vmatprep.mubr.bf16.mxu0 0
        %5147 = vmatmul.mubr.bf16.gmra.mxu0 %v1746
        %v5148 = vpop.f32.mrf.mxu0
        %v5149 = vadd.f32 0.0, %v5148
        %v5150 = vpop.f32.mrf.mxu0
        %v5151 = vpop.f32.mrf.mxu0
        %v5152 = vadd.f32 0.0, %v5151
        %v5153 = vpop.f32.mrf.mxu0
        %5154 = vmatprep.mubr.bf16.mxu0 0
        %5155 = vmatmul.mubr.bf16.gmra.mxu0 %v3522
        %v5156 = vpop.f32.mrf.mxu0
        %v5157 = vadd.f32 0.0, %v5156
        %v5158 = vpop.f32.mrf.mxu0
        %v5159 = vpop.f32.mrf.mxu0
        %v5160 = vadd.f32 0.0, %v5159
        %v5161 = vpop.f32.mrf.mxu0
        %5162 = vmatprep.mubr.bf16.mxu0 0
        %5163 = vmatmul.mubr.bf16.gmra.mxu0 %v4814
        %v5164 = vpop.f32.mrf.mxu0
        %v5165 = vadd.f32 0.0, %v5164
        %v5166 = vpop.f32.mrf.mxu0
        %v5167 = vpop.f32.mrf.mxu0
        %v5168 = vadd.f32 0.0, %v5167
        %v5169 = vpop.f32.mrf.mxu0
        %5170 = vdwg.mxu0
        %v5171 = vadd.f32 %v4727, %v4917
        %v5172 = vadd.f32 %v4728, %v4920
        %v5173 = vadd.f32 %v4729, %v4925
        %v5174 = vadd.f32 %v4730, %v4928
        %v5175 = vadd.f32 %v4731, %v4933
        %v5176 = vadd.f32 %v4732, %v4936
        %v5177 = vadd.f32 %v4733, %v4941
        %v5178 = vadd.f32 %v4734, %v4944
        %v5179 = vadd.f32 %v4735, %v4949
        %v5180 = vadd.f32 %v4736, %v4952
        %v5181 = vadd.f32 %v4737, %v4957
        %v5182 = vadd.f32 %v4738, %v4960
        %v5183 = vadd.f32 %v4739, %v4965
        %v5184 = vadd.f32 %v4740, %v4968
        %v5185 = vadd.f32 %v4741, %v4973
        %v5186 = vadd.f32 %v4742, %v4976
        %v5187 = vadd.f32 %v4743, %v4981
        %v5188 = vadd.f32 %v4744, %v4984
        %v5189 = vadd.f32 %v4745, %v4989
        %v5190 = vadd.f32 %v4746, %v4992
        %v5191 = vadd.f32 %v4747, %v4997
        %v5192 = vadd.f32 %v4748, %v5000
        %v5193 = vadd.f32 %v4749, %v5005
        %v5194 = vadd.f32 %v4750, %v5008
        %v5195 = vadd.f32 %v4751, %v5013
        %v5196 = vadd.f32 %v4752, %v5016
        %v5197 = vadd.f32 %v4753, %v5021
        %v5198 = vadd.f32 %v4754, %v5024
        %v5199 = vadd.f32 %v4755, %v5029
        %v5200 = vadd.f32 %v4756, %v5032
        %v5201 = vadd.f32 %v4757, %v5037
        %v5202 = vadd.f32 %v4758, %v5040
        %v5203 = vadd.f32 %v4759, %v5045
        %v5204 = vadd.f32 %v4760, %v5048
        %v5205 = vadd.f32 %v4761, %v5053
        %v5206 = vadd.f32 %v4762, %v5056
        %v5207 = vadd.f32 %v4763, %v5061
        %v5208 = vadd.f32 %v4764, %v5064
        %v5209 = vadd.f32 %v4765, %v5069
        %v5210 = vadd.f32 %v4766, %v5072
        %v5211 = vadd.f32 %v4767, %v5077
        %v5212 = vadd.f32 %v4768, %v5080
        %v5213 = vadd.f32 %v4769, %v5085
        %v5214 = vadd.f32 %v4770, %v5088
        %v5215 = vadd.f32 %v4771, %v5093
        %v5216 = vadd.f32 %v4772, %v5096
        %v5217 = vadd.f32 %v4773, %v5101
        %v5218 = vadd.f32 %v4774, %v5104
        %v5219 = vadd.f32 %v4775, %v5109
        %v5220 = vadd.f32 %v4776, %v5112
        %v5221 = vadd.f32 %v4777, %v5117
        %v5222 = vadd.f32 %v4778, %v5120
        %v5223 = vadd.f32 %v4779, %v5125
        %v5224 = vadd.f32 %v4780, %v5128
        %v5225 = vadd.f32 %v4781, %v5133
        %v5226 = vadd.f32 %v4782, %v5136
        %v5227 = vadd.f32 %v4783, %v5141
        %v5228 = vadd.f32 %v4784, %v5144
        %v5229 = vadd.f32 %v4785, %v5149
        %v5230 = vadd.f32 %v4786, %v5152
        %v5231 = vadd.f32 %v4787, %v5157
        %v5232 = vadd.f32 %v4788, %v5160
        %v5233 = vadd.f32 %v4789, %v5165
        %v5234 = vadd.f32 %v4790, %v5168
        %v5239 = vrot.slane %v1308, 1
        %v5240 = vrot.slane %v1309, 1
        %v5241 = vsel %vm2534, %v5239, %v5240
        %v5242 = vrot.slane %v1344, 1
        %v5243 = vrot.slane %v1345, 1
        %v5244 = vsel %vm2534, %v5242, %v5243
        %s5247 = scalar_lea.vmem [#allocation8], 512
        %v5248 = vld [vmem:[%s5247] sm:$0xf]
        %v5249 = vld [vmem:[%s5247 + $0x4] sm:$0xf]
        %v5250 = vld [vmem:[%s5247 + $0x8] sm:$0xf]
        %v5251 = vld [vmem:[%s5247 + $0xc] sm:$0xf]
        %v5252 = vld [vmem:[%s5247 + $0x10] sm:$0xf]
        %v5253 = vld [vmem:[%s5247 + $0x14] sm:$0xf]
        %v5254 = vld [vmem:[%s5247 + $0x18] sm:$0xf]
        %v5255 = vld [vmem:[%s5247 + $0x1c] sm:$0xf]
        %v5256 = vld [vmem:[%s5247 + $0x20] sm:$0xf]
        %v5257 = vld [vmem:[%s5247 + $0x24] sm:$0xf]
        %v5258 = vld [vmem:[%s5247 + $0x28] sm:$0xf]
        %v5259 = vld [vmem:[%s5247 + $0x2c] sm:$0xf]
        %v5260 = vld [vmem:[%s5247 + $0x30] sm:$0xf]
        %v5261 = vld [vmem:[%s5247 + $0x34] sm:$0xf]
        %v5262 = vld [vmem:[%s5247 + $0x38] sm:$0xf]
        %v5263 = vld [vmem:[%s5247 + $0x3c] sm:$0xf]
        %v5280 = vunpack.c.l.b16 %v5248
        %v5281 = vunpack.c.l.b16 %v5249
        %v5282 = vunpack.c.l.b16 %v5250
        %v5283 = vunpack.c.l.b16 %v5251
        %v5284 = vunpack.c.l.b16 %v5252
        %v5285 = vunpack.c.l.b16 %v5253
        %v5286 = vunpack.c.l.b16 %v5254
        %v5287 = vunpack.c.l.b16 %v5255
        %v5288 = vunpack.c.l.b16 %v5256
        %v5289 = vunpack.c.l.b16 %v5257
        %v5290 = vunpack.c.l.b16 %v5258
        %v5291 = vunpack.c.l.b16 %v5259
        %v5292 = vunpack.c.l.b16 %v5260
        %v5293 = vunpack.c.l.b16 %v5261
        %v5294 = vunpack.c.l.b16 %v5262
        %v5295 = vunpack.c.l.b16 %v5263
        %v5296 = vpack.c.b16 %v5281, %v5280
        %v5297 = vpack.c.b16 %v5283, %v5282
        %v5298 = vpack.c.b16 %v5285, %v5284
        %v5299 = vpack.c.b16 %v5287, %v5286
        %v5300 = vpack.c.b16 %v5289, %v5288
        %v5301 = vpack.c.b16 %v5291, %v5290
        %v5302 = vpack.c.b16 %v5293, %v5292
        %v5303 = vpack.c.b16 %v5295, %v5294
        %5312 = vmatprep.subr.bf16.mxu0 0
        %5313 = vmatpush1.bf16.msra.mxu0 %v5303
        %5314 = vmatprep.subr.bf16.mxu0 0
        %5315 = vmatpush1.bf16.msra.mxu0 %v5302
        %5316 = vmatprep.subr.bf16.mxu0 0
        %5317 = vmatpush1.bf16.msra.mxu0 %v5301
        %5318 = vmatprep.subr.bf16.mxu0 0
        %5319 = vmatpush1.bf16.msra.mxu0 %v5300
        %5320 = vmatprep.subr.bf16.mxu0 0
        %5321 = vmatpush1.bf16.msra.mxu0 %v5299
        %5322 = vmatprep.subr.bf16.mxu0 0
        %5323 = vmatpush1.bf16.msra.mxu0 %v5298
        %5324 = vmatprep.subr.bf16.mxu0 0
        %5325 = vmatpush1.bf16.msra.mxu0 %v5297
        %5326 = vmatprep.subr.bf16.mxu0 0
        %5327 = vmatpush1.bf16.msra.mxu0 %v5296
        %5328 = vmatprep.subr.bf16.mxu0 0
        %5329 = vmatpush2.bf16.msra.mxu0 0
        %5330 = vmatprep.subr.bf16.mxu0 0
        %5331 = vmatpush2.bf16.msra.mxu0 0
        %5332 = vmatprep.subr.bf16.mxu0 0
        %5333 = vmatpush2.bf16.msra.mxu0 0
        %5334 = vmatprep.subr.bf16.mxu0 0
        %5335 = vmatpush2.bf16.msra.mxu0 0
        %5336 = vmatprep.subr.bf16.mxu0 0
        %5337 = vmatpush2.bf16.msra.mxu0 0
        %5338 = vmatprep.subr.bf16.mxu0 0
        %5339 = vmatpush2.bf16.msra.mxu0 0
        %5340 = vmatprep.subr.bf16.mxu0 0
        %5341 = vmatpush2.bf16.msra.mxu0 0
        %5342 = vmatprep.subr.bf16.mxu0 0
        %5343 = vmatpush2.bf16.msra.mxu0 0
        %5344 = vmatprep.mubr.bf16.mxu0 0
        %5345 = vmatmul.mubr.bf16.gmra.mxu0 %v2543
        %v5346 = vpop.f32.mrf.mxu0
        %v5347 = vadd.f32 0.0, %v5346
        %v5348 = vpop.f32.mrf.mxu0
        %v5349 = vpop.f32.mrf.mxu0
        %v5350 = vadd.f32 0.0, %v5349
        %v5351 = vpop.f32.mrf.mxu0
        %5352 = vmatprep.mubr.bf16.mxu0 0
        %5353 = vmatmul.mubr.bf16.gmra.mxu0 %v2546
        %v5354 = vpop.f32.mrf.mxu0
        %v5355 = vadd.f32 0.0, %v5354
        %v5356 = vpop.f32.mrf.mxu0
        %v5357 = vpop.f32.mrf.mxu0
        %v5358 = vadd.f32 0.0, %v5357
        %v5359 = vpop.f32.mrf.mxu0
        %5360 = vmatprep.mubr.bf16.mxu0 0
        %5361 = vmatmul.mubr.bf16.gmra.mxu0 %v2549
        %v5362 = vpop.f32.mrf.mxu0
        %v5363 = vadd.f32 0.0, %v5362
        %v5364 = vpop.f32.mrf.mxu0
        %v5365 = vpop.f32.mrf.mxu0
        %v5366 = vadd.f32 0.0, %v5365
        %v5367 = vpop.f32.mrf.mxu0
        %5368 = vmatprep.mubr.bf16.mxu0 0
        %5369 = vmatmul.mubr.bf16.gmra.mxu0 %v2552
        %v5370 = vpop.f32.mrf.mxu0
        %v5371 = vadd.f32 0.0, %v5370
        %v5372 = vpop.f32.mrf.mxu0
        %v5373 = vpop.f32.mrf.mxu0
        %v5374 = vadd.f32 0.0, %v5373
        %v5375 = vpop.f32.mrf.mxu0
        %5376 = vmatprep.mubr.bf16.mxu0 0
        %5377 = vmatmul.mubr.bf16.gmra.mxu0 %v2555
        %v5378 = vpop.f32.mrf.mxu0
        %v5379 = vadd.f32 0.0, %v5378
        %v5380 = vpop.f32.mrf.mxu0
        %v5381 = vpop.f32.mrf.mxu0
        %v5382 = vadd.f32 0.0, %v5381
        %v5383 = vpop.f32.mrf.mxu0
        %5384 = vmatprep.mubr.bf16.mxu0 0
        %5385 = vmatmul.mubr.bf16.gmra.mxu0 %v2558
        %v5386 = vpop.f32.mrf.mxu0
        %v5387 = vadd.f32 0.0, %v5386
        %v5388 = vpop.f32.mrf.mxu0
        %v5389 = vpop.f32.mrf.mxu0
        %v5390 = vadd.f32 0.0, %v5389
        %v5391 = vpop.f32.mrf.mxu0
        %5392 = vmatprep.mubr.bf16.mxu0 0
        %5393 = vmatmul.mubr.bf16.gmra.mxu0 %v2561
        %v5394 = vpop.f32.mrf.mxu0
        %v5395 = vadd.f32 0.0, %v5394
        %v5396 = vpop.f32.mrf.mxu0
        %v5397 = vpop.f32.mrf.mxu0
        %v5398 = vadd.f32 0.0, %v5397
        %v5399 = vpop.f32.mrf.mxu0
        %5400 = vmatprep.mubr.bf16.mxu0 0
        %5401 = vmatmul.mubr.bf16.gmra.mxu0 %v2564
        %v5402 = vpop.f32.mrf.mxu0
        %v5403 = vadd.f32 0.0, %v5402
        %v5404 = vpop.f32.mrf.mxu0
        %v5405 = vpop.f32.mrf.mxu0
        %v5406 = vadd.f32 0.0, %v5405
        %v5407 = vpop.f32.mrf.mxu0
        %5408 = vmatprep.mubr.bf16.mxu0 0
        %5409 = vmatmul.mubr.bf16.gmra.mxu0 %v2567
        %v5410 = vpop.f32.mrf.mxu0
        %v5411 = vadd.f32 0.0, %v5410
        %v5412 = vpop.f32.mrf.mxu0
        %v5413 = vpop.f32.mrf.mxu0
        %v5414 = vadd.f32 0.0, %v5413
        %v5415 = vpop.f32.mrf.mxu0
        %5416 = vmatprep.mubr.bf16.mxu0 0
        %5417 = vmatmul.mubr.bf16.gmra.mxu0 %v2570
        %v5418 = vpop.f32.mrf.mxu0
        %v5419 = vadd.f32 0.0, %v5418
        %v5420 = vpop.f32.mrf.mxu0
        %v5421 = vpop.f32.mrf.mxu0
        %v5422 = vadd.f32 0.0, %v5421
        %v5423 = vpop.f32.mrf.mxu0
        %5424 = vmatprep.mubr.bf16.mxu0 0
        %5425 = vmatmul.mubr.bf16.gmra.mxu0 %v2573
        %v5426 = vpop.f32.mrf.mxu0
        %v5427 = vadd.f32 0.0, %v5426
        %v5428 = vpop.f32.mrf.mxu0
        %v5429 = vpop.f32.mrf.mxu0
        %v5430 = vadd.f32 0.0, %v5429
        %v5431 = vpop.f32.mrf.mxu0
        %5432 = vmatprep.mubr.bf16.mxu0 0
        %5433 = vmatmul.mubr.bf16.gmra.mxu0 %v2576
        %v5434 = vpop.f32.mrf.mxu0
        %v5435 = vadd.f32 0.0, %v5434
        %v5436 = vpop.f32.mrf.mxu0
        %v5437 = vpop.f32.mrf.mxu0
        %v5438 = vadd.f32 0.0, %v5437
        %v5439 = vpop.f32.mrf.mxu0
        %5440 = vmatprep.mubr.bf16.mxu0 0
        %5441 = vmatmul.mubr.bf16.gmra.mxu0 %v2579
        %v5442 = vpop.f32.mrf.mxu0
        %v5443 = vadd.f32 0.0, %v5442
        %v5444 = vpop.f32.mrf.mxu0
        %v5445 = vpop.f32.mrf.mxu0
        %v5446 = vadd.f32 0.0, %v5445
        %v5447 = vpop.f32.mrf.mxu0
        %5448 = vmatprep.mubr.bf16.mxu0 0
        %5449 = vmatmul.mubr.bf16.gmra.mxu0 %v2582
        %v5450 = vpop.f32.mrf.mxu0
        %v5451 = vadd.f32 0.0, %v5450
        %v5452 = vpop.f32.mrf.mxu0
        %v5453 = vpop.f32.mrf.mxu0
        %v5454 = vadd.f32 0.0, %v5453
        %v5455 = vpop.f32.mrf.mxu0
        %5456 = vmatprep.mubr.bf16.mxu0 0
        %5457 = vmatmul.mubr.bf16.gmra.mxu0 %v3949
        %v5458 = vpop.f32.mrf.mxu0
        %v5459 = vadd.f32 0.0, %v5458
        %v5460 = vpop.f32.mrf.mxu0
        %v5461 = vpop.f32.mrf.mxu0
        %v5462 = vadd.f32 0.0, %v5461
        %v5463 = vpop.f32.mrf.mxu0
        %5464 = vmatprep.mubr.bf16.mxu0 0
        %5465 = vmatmul.mubr.bf16.gmra.mxu0 %v5241
        %v5466 = vpop.f32.mrf.mxu0
        %v5467 = vadd.f32 0.0, %v5466
        %v5468 = vpop.f32.mrf.mxu0
        %v5469 = vpop.f32.mrf.mxu0
        %v5470 = vadd.f32 0.0, %v5469
        %v5471 = vpop.f32.mrf.mxu0
        %5472 = vmatprep.mubr.bf16.mxu0 0
        %5473 = vmatmul.mubr.bf16.gmra.mxu0 %v2591
        %v5474 = vpop.f32.mrf.mxu0
        %v5475 = vadd.f32 0.0, %v5474
        %v5476 = vpop.f32.mrf.mxu0
        %v5477 = vpop.f32.mrf.mxu0
        %v5478 = vadd.f32 0.0, %v5477
        %v5479 = vpop.f32.mrf.mxu0
        %5480 = vmatprep.mubr.bf16.mxu0 0
        %5481 = vmatmul.mubr.bf16.gmra.mxu0 %v2594
        %v5482 = vpop.f32.mrf.mxu0
        %v5483 = vadd.f32 0.0, %v5482
        %v5484 = vpop.f32.mrf.mxu0
        %v5485 = vpop.f32.mrf.mxu0
        %v5486 = vadd.f32 0.0, %v5485
        %v5487 = vpop.f32.mrf.mxu0
        %5488 = vmatprep.mubr.bf16.mxu0 0
        %5489 = vmatmul.mubr.bf16.gmra.mxu0 %v2597
        %v5490 = vpop.f32.mrf.mxu0
        %v5491 = vadd.f32 0.0, %v5490
        %v5492 = vpop.f32.mrf.mxu0
        %v5493 = vpop.f32.mrf.mxu0
        %v5494 = vadd.f32 0.0, %v5493
        %v5495 = vpop.f32.mrf.mxu0
        %5496 = vmatprep.mubr.bf16.mxu0 0
        %5497 = vmatmul.mubr.bf16.gmra.mxu0 %v2600
        %v5498 = vpop.f32.mrf.mxu0
        %v5499 = vadd.f32 0.0, %v5498
        %v5500 = vpop.f32.mrf.mxu0
        %v5501 = vpop.f32.mrf.mxu0
        %v5502 = vadd.f32 0.0, %v5501
        %v5503 = vpop.f32.mrf.mxu0
        %5504 = vmatprep.mubr.bf16.mxu0 0
        %5505 = vmatmul.mubr.bf16.gmra.mxu0 %v2603
        %v5506 = vpop.f32.mrf.mxu0
        %v5507 = vadd.f32 0.0, %v5506
        %v5508 = vpop.f32.mrf.mxu0
        %v5509 = vpop.f32.mrf.mxu0
        %v5510 = vadd.f32 0.0, %v5509
        %v5511 = vpop.f32.mrf.mxu0
        %5512 = vmatprep.mubr.bf16.mxu0 0
        %5513 = vmatmul.mubr.bf16.gmra.mxu0 %v2606
        %v5514 = vpop.f32.mrf.mxu0
        %v5515 = vadd.f32 0.0, %v5514
        %v5516 = vpop.f32.mrf.mxu0
        %v5517 = vpop.f32.mrf.mxu0
        %v5518 = vadd.f32 0.0, %v5517
        %v5519 = vpop.f32.mrf.mxu0
        %5520 = vmatprep.mubr.bf16.mxu0 0
        %5521 = vmatmul.mubr.bf16.gmra.mxu0 %v2609
        %v5522 = vpop.f32.mrf.mxu0
        %v5523 = vadd.f32 0.0, %v5522
        %v5524 = vpop.f32.mrf.mxu0
        %v5525 = vpop.f32.mrf.mxu0
        %v5526 = vadd.f32 0.0, %v5525
        %v5527 = vpop.f32.mrf.mxu0
        %5528 = vmatprep.mubr.bf16.mxu0 0
        %5529 = vmatmul.mubr.bf16.gmra.mxu0 %v2612
        %v5530 = vpop.f32.mrf.mxu0
        %v5531 = vadd.f32 0.0, %v5530
        %v5532 = vpop.f32.mrf.mxu0
        %v5533 = vpop.f32.mrf.mxu0
        %v5534 = vadd.f32 0.0, %v5533
        %v5535 = vpop.f32.mrf.mxu0
        %5536 = vmatprep.mubr.bf16.mxu0 0
        %5537 = vmatmul.mubr.bf16.gmra.mxu0 %v2615
        %v5538 = vpop.f32.mrf.mxu0
        %v5539 = vadd.f32 0.0, %v5538
        %v5540 = vpop.f32.mrf.mxu0
        %v5541 = vpop.f32.mrf.mxu0
        %v5542 = vadd.f32 0.0, %v5541
        %v5543 = vpop.f32.mrf.mxu0
        %5544 = vmatprep.mubr.bf16.mxu0 0
        %5545 = vmatmul.mubr.bf16.gmra.mxu0 %v2618
        %v5546 = vpop.f32.mrf.mxu0
        %v5547 = vadd.f32 0.0, %v5546
        %v5548 = vpop.f32.mrf.mxu0
        %v5549 = vpop.f32.mrf.mxu0
        %v5550 = vadd.f32 0.0, %v5549
        %v5551 = vpop.f32.mrf.mxu0
        %5552 = vmatprep.mubr.bf16.mxu0 0
        %5553 = vmatmul.mubr.bf16.gmra.mxu0 %v2621
        %v5554 = vpop.f32.mrf.mxu0
        %v5555 = vadd.f32 0.0, %v5554
        %v5556 = vpop.f32.mrf.mxu0
        %v5557 = vpop.f32.mrf.mxu0
        %v5558 = vadd.f32 0.0, %v5557
        %v5559 = vpop.f32.mrf.mxu0
        %5560 = vmatprep.mubr.bf16.mxu0 0
        %5561 = vmatmul.mubr.bf16.gmra.mxu0 %v2624
        %v5562 = vpop.f32.mrf.mxu0
        %v5563 = vadd.f32 0.0, %v5562
        %v5564 = vpop.f32.mrf.mxu0
        %v5565 = vpop.f32.mrf.mxu0
        %v5566 = vadd.f32 0.0, %v5565
        %v5567 = vpop.f32.mrf.mxu0
        %5568 = vmatprep.mubr.bf16.mxu0 0
        %5569 = vmatmul.mubr.bf16.gmra.mxu0 %v2627
        %v5570 = vpop.f32.mrf.mxu0
        %v5571 = vadd.f32 0.0, %v5570
        %v5572 = vpop.f32.mrf.mxu0
        %v5573 = vpop.f32.mrf.mxu0
        %v5574 = vadd.f32 0.0, %v5573
        %v5575 = vpop.f32.mrf.mxu0
        %5576 = vmatprep.mubr.bf16.mxu0 0
        %5577 = vmatmul.mubr.bf16.gmra.mxu0 %v2630
        %v5578 = vpop.f32.mrf.mxu0
        %v5579 = vadd.f32 0.0, %v5578
        %v5580 = vpop.f32.mrf.mxu0
        %v5581 = vpop.f32.mrf.mxu0
        %v5582 = vadd.f32 0.0, %v5581
        %v5583 = vpop.f32.mrf.mxu0
        %5584 = vmatprep.mubr.bf16.mxu0 0
        %5585 = vmatmul.mubr.bf16.gmra.mxu0 %v3952
        %v5586 = vpop.f32.mrf.mxu0
        %v5587 = vadd.f32 0.0, %v5586
        %v5588 = vpop.f32.mrf.mxu0
        %v5589 = vpop.f32.mrf.mxu0
        %v5590 = vadd.f32 0.0, %v5589
        %v5591 = vpop.f32.mrf.mxu0
        %5592 = vmatprep.mubr.bf16.mxu0 0
        %5593 = vmatmul.mubr.bf16.gmra.mxu0 %v5244
        %v5594 = vpop.f32.mrf.mxu0
        %v5595 = vadd.f32 0.0, %v5594
        %v5596 = vpop.f32.mrf.mxu0
        %v5597 = vpop.f32.mrf.mxu0
        %v5598 = vadd.f32 0.0, %v5597
        %v5599 = vpop.f32.mrf.mxu0
        %5600 = vdwg.mxu0
        %v5601 = vadd.f32 %v5171, %v5347
        %v5602 = vadd.f32 %v5172, %v5350
        %v5603 = vadd.f32 %v5173, %v5355
        %v5604 = vadd.f32 %v5174, %v5358
        %v5605 = vadd.f32 %v5175, %v5363
        %v5606 = vadd.f32 %v5176, %v5366
        %v5607 = vadd.f32 %v5177, %v5371
        %v5608 = vadd.f32 %v5178, %v5374
        %v5609 = vadd.f32 %v5179, %v5379
        %v5610 = vadd.f32 %v5180, %v5382
        %v5611 = vadd.f32 %v5181, %v5387
        %v5612 = vadd.f32 %v5182, %v5390
        %v5613 = vadd.f32 %v5183, %v5395
        %v5614 = vadd.f32 %v5184, %v5398
        %v5615 = vadd.f32 %v5185, %v5403
        %v5616 = vadd.f32 %v5186, %v5406
        %v5617 = vadd.f32 %v5187, %v5411
        %v5618 = vadd.f32 %v5188, %v5414
        %v5619 = vadd.f32 %v5189, %v5419
        %v5620 = vadd.f32 %v5190, %v5422
        %v5621 = vadd.f32 %v5191, %v5427
        %v5622 = vadd.f32 %v5192, %v5430
        %v5623 = vadd.f32 %v5193, %v5435
        %v5624 = vadd.f32 %v5194, %v5438
        %v5625 = vadd.f32 %v5195, %v5443
        %v5626 = vadd.f32 %v5196, %v5446
        %v5627 = vadd.f32 %v5197, %v5451
        %v5628 = vadd.f32 %v5198, %v5454
        %v5629 = vadd.f32 %v5199, %v5459
        %v5630 = vadd.f32 %v5200, %v5462
        %v5631 = vadd.f32 %v5201, %v5467
        %v5632 = vadd.f32 %v5202, %v5470
        %v5633 = vadd.f32 %v5203, %v5475
        %v5634 = vadd.f32 %v5204, %v5478
        %v5635 = vadd.f32 %v5205, %v5483
        %v5636 = vadd.f32 %v5206, %v5486
        %v5637 = vadd.f32 %v5207, %v5491
        %v5638 = vadd.f32 %v5208, %v5494
        %v5639 = vadd.f32 %v5209, %v5499
        %v5640 = vadd.f32 %v5210, %v5502
        %v5641 = vadd.f32 %v5211, %v5507
        %v5642 = vadd.f32 %v5212, %v5510
        %v5643 = vadd.f32 %v5213, %v5515
        %v5644 = vadd.f32 %v5214, %v5518
        %v5645 = vadd.f32 %v5215, %v5523
        %v5646 = vadd.f32 %v5216, %v5526
        %v5647 = vadd.f32 %v5217, %v5531
        %v5648 = vadd.f32 %v5218, %v5534
        %v5649 = vadd.f32 %v5219, %v5539
        %v5650 = vadd.f32 %v5220, %v5542
        %v5651 = vadd.f32 %v5221, %v5547
        %v5652 = vadd.f32 %v5222, %v5550
        %v5653 = vadd.f32 %v5223, %v5555
        %v5654 = vadd.f32 %v5224, %v5558
        %v5655 = vadd.f32 %v5225, %v5563
        %v5656 = vadd.f32 %v5226, %v5566
        %v5657 = vadd.f32 %v5227, %v5571
        %v5658 = vadd.f32 %v5228, %v5574
        %v5659 = vadd.f32 %v5229, %v5579
        %v5660 = vadd.f32 %v5230, %v5582
        %v5661 = vadd.f32 %v5231, %v5587
        %v5662 = vadd.f32 %v5232, %v5590
        %v5663 = vadd.f32 %v5233, %v5595
        %v5664 = vadd.f32 %v5234, %v5598
        %v5665 = vld [vmem:[%s4] sm:$0x1]
        %v5667 = vlaneseq
        %v5668 = vshrl.u32 %v5667, 7
        %v5669 = vsub.s32 0, %v5668
        %v5670 = vrot.slane %v5665, %v5669
        %v5672 = vadd.f32 %v5601, %v5670
        %v5673 = vadd.f32 %v5602, %v5670
        %v5674 = vadd.f32 %v5603, %v5670
        %v5675 = vadd.f32 %v5604, %v5670
        %v5676 = vadd.f32 %v5605, %v5670
        %v5677 = vadd.f32 %v5606, %v5670
        %v5678 = vadd.f32 %v5607, %v5670
        %v5679 = vadd.f32 %v5608, %v5670
        %v5680 = vadd.f32 %v5609, %v5670
        %v5681 = vadd.f32 %v5610, %v5670
        %v5682 = vadd.f32 %v5611, %v5670
        %v5683 = vadd.f32 %v5612, %v5670
        %v5684 = vadd.f32 %v5613, %v5670
        %v5685 = vadd.f32 %v5614, %v5670
        %v5686 = vadd.f32 %v5615, %v5670
        %v5687 = vadd.f32 %v5616, %v5670
        %v5688 = vadd.f32 %v5617, %v5670
        %v5689 = vadd.f32 %v5618, %v5670
        %v5690 = vadd.f32 %v5619, %v5670
        %v5691 = vadd.f32 %v5620, %v5670
        %v5692 = vadd.f32 %v5621, %v5670
        %v5693 = vadd.f32 %v5622, %v5670
        %v5694 = vadd.f32 %v5623, %v5670
        %v5695 = vadd.f32 %v5624, %v5670
        %v5696 = vadd.f32 %v5625, %v5670
        %v5697 = vadd.f32 %v5626, %v5670
        %v5698 = vadd.f32 %v5627, %v5670
        %v5699 = vadd.f32 %v5628, %v5670
        %v5700 = vadd.f32 %v5629, %v5670
        %v5701 = vadd.f32 %v5630, %v5670
        %v5702 = vadd.f32 %v5631, %v5670
        %v5703 = vadd.f32 %v5632, %v5670
        %v5704 = vadd.f32 %v5633, %v5670
        %v5705 = vadd.f32 %v5634, %v5670
        %v5706 = vadd.f32 %v5635, %v5670
        %v5707 = vadd.f32 %v5636, %v5670
        %v5708 = vadd.f32 %v5637, %v5670
        %v5709 = vadd.f32 %v5638, %v5670
        %v5710 = vadd.f32 %v5639, %v5670
        %v5711 = vadd.f32 %v5640, %v5670
        %v5712 = vadd.f32 %v5641, %v5670
        %v5713 = vadd.f32 %v5642, %v5670
        %v5714 = vadd.f32 %v5643, %v5670
        %v5715 = vadd.f32 %v5644, %v5670
        %v5716 = vadd.f32 %v5645, %v5670
        %v5717 = vadd.f32 %v5646, %v5670
        %v5718 = vadd.f32 %v5647, %v5670
        %v5719 = vadd.f32 %v5648, %v5670
        %v5720 = vadd.f32 %v5649, %v5670
        %v5721 = vadd.f32 %v5650, %v5670
        %v5722 = vadd.f32 %v5651, %v5670
        %v5723 = vadd.f32 %v5652, %v5670
        %v5724 = vadd.f32 %v5653, %v5670
        %v5725 = vadd.f32 %v5654, %v5670
        %v5726 = vadd.f32 %v5655, %v5670
        %v5727 = vadd.f32 %v5656, %v5670
        %v5728 = vadd.f32 %v5657, %v5670
        %v5729 = vadd.f32 %v5658, %v5670
        %v5730 = vadd.f32 %v5659, %v5670
        %v5731 = vadd.f32 %v5660, %v5670
        %v5732 = vadd.f32 %v5661, %v5670
        %v5733 = vadd.f32 %v5662, %v5670
        %v5734 = vadd.f32 %v5663, %v5670
        %v5735 = vadd.f32 %v5664, %v5670
        %v5736 = vmax.f32 %v5672, 0.0
        %v5737 = vmax.f32 %v5673, 0.0
        %v5738 = vmax.f32 %v5674, 0.0
        %v5739 = vmax.f32 %v5675, 0.0
        %v5740 = vmax.f32 %v5676, 0.0
        %v5741 = vmax.f32 %v5677, 0.0
        %v5742 = vmax.f32 %v5678, 0.0
        %v5743 = vmax.f32 %v5679, 0.0
        %v5744 = vmax.f32 %v5680, 0.0
        %v5745 = vmax.f32 %v5681, 0.0
        %v5746 = vmax.f32 %v5682, 0.0
        %v5747 = vmax.f32 %v5683, 0.0
        %v5748 = vmax.f32 %v5684, 0.0
        %v5749 = vmax.f32 %v5685, 0.0
        %v5750 = vmax.f32 %v5686, 0.0
        %v5751 = vmax.f32 %v5687, 0.0
        %v5752 = vmax.f32 %v5688, 0.0
        %v5753 = vmax.f32 %v5689, 0.0
        %v5754 = vmax.f32 %v5690, 0.0
        %v5755 = vmax.f32 %v5691, 0.0
        %v5756 = vmax.f32 %v5692, 0.0
        %v5757 = vmax.f32 %v5693, 0.0
        %v5758 = vmax.f32 %v5694, 0.0
        %v5759 = vmax.f32 %v5695, 0.0
        %v5760 = vmax.f32 %v5696, 0.0
        %v5761 = vmax.f32 %v5697, 0.0
        %v5762 = vmax.f32 %v5698, 0.0
        %v5763 = vmax.f32 %v5699, 0.0
        %v5764 = vmax.f32 %v5700, 0.0
        %v5765 = vmax.f32 %v5701, 0.0
        %v5766 = vmax.f32 %v5702, 0.0
        %v5767 = vmax.f32 %v5703, 0.0
        %v5768 = vmax.f32 %v5704, 0.0
        %v5769 = vmax.f32 %v5705, 0.0
        %v5770 = vmax.f32 %v5706, 0.0
        %v5771 = vmax.f32 %v5707, 0.0
        %v5772 = vmax.f32 %v5708, 0.0
        %v5773 = vmax.f32 %v5709, 0.0
        %v5774 = vmax.f32 %v5710, 0.0
        %v5775 = vmax.f32 %v5711, 0.0
        %v5776 = vmax.f32 %v5712, 0.0
        %v5777 = vmax.f32 %v5713, 0.0
        %v5778 = vmax.f32 %v5714, 0.0
        %v5779 = vmax.f32 %v5715, 0.0
        %v5780 = vmax.f32 %v5716, 0.0
        %v5781 = vmax.f32 %v5717, 0.0
        %v5782 = vmax.f32 %v5718, 0.0
        %v5783 = vmax.f32 %v5719, 0.0
        %v5784 = vmax.f32 %v5720, 0.0
        %v5785 = vmax.f32 %v5721, 0.0
        %v5786 = vmax.f32 %v5722, 0.0
        %v5787 = vmax.f32 %v5723, 0.0
        %v5788 = vmax.f32 %v5724, 0.0
        %v5789 = vmax.f32 %v5725, 0.0
        %v5790 = vmax.f32 %v5726, 0.0
        %v5791 = vmax.f32 %v5727, 0.0
        %v5792 = vmax.f32 %v5728, 0.0
        %v5793 = vmax.f32 %v5729, 0.0
        %v5794 = vmax.f32 %v5730, 0.0
        %v5795 = vmax.f32 %v5731, 0.0
        %v5796 = vmax.f32 %v5732, 0.0
        %v5797 = vmax.f32 %v5733, 0.0
        %v5798 = vmax.f32 %v5734, 0.0
        %v5799 = vmax.f32 %v5735, 0.0
        %5800 = vst [vmem:[%s357 + $0x1] sm:$0xff] %v5736
        %5801 = vst [vmem:[%s357 + $0x9] sm:$0xff] %v5737
        %5802 = vst [vmem:[%s357 + $0x19] sm:$0xff] %v5738
        %5803 = vst [vmem:[%s357 + $0x21] sm:$0xff] %v5739
        %5804 = vst [vmem:[%s357 + $0x31] sm:$0xff] %v5740
        %5805 = vst [vmem:[%s357 + $0x39] sm:$0xff] %v5741
        %5806 = vst [vmem:[%s357 + $0x49] sm:$0xff] %v5742
        %5807 = vst [vmem:[%s357 + $0x51] sm:$0xff] %v5743
        %5808 = vst [vmem:[%s357 + $0x61] sm:$0xff] %v5744
        %5809 = vst [vmem:[%s357 + $0x69] sm:$0xff] %v5745
        %5810 = vst [vmem:[%s357 + $0x79] sm:$0xff] %v5746
        %5811 = vst [vmem:[%s357 + $0x81] sm:$0xff] %v5747
        %5812 = vst [vmem:[%s357 + $0x91] sm:$0xff] %v5748
        %5813 = vst [vmem:[%s357 + $0x99] sm:$0xff] %v5749
        %5814 = vst [vmem:[%s357 + $0xa9] sm:$0xff] %v5750
        %5815 = vst [vmem:[%s357 + $0xb1] sm:$0xff] %v5751
        %5816 = vst [vmem:[%s357 + $0xc1] sm:$0xff] %v5752
        %5817 = vst [vmem:[%s357 + $0xc9] sm:$0xff] %v5753
        %5818 = vst [vmem:[%s357 + $0xd9] sm:$0xff] %v5754
        %5819 = vst [vmem:[%s357 + $0xe1] sm:$0xff] %v5755
        %5820 = vst [vmem:[%s357 + $0xf1] sm:$0xff] %v5756
        %5821 = vst [vmem:[%s357 + $0xf9] sm:$0xff] %v5757
        %5822 = vst [vmem:[%s357 + $0x109] sm:$0xff] %v5758
        %5823 = vst [vmem:[%s357 + $0x111] sm:$0xff] %v5759
        %5824 = vst [vmem:[%s357 + $0x121] sm:$0xff] %v5760
        %5825 = vst [vmem:[%s357 + $0x129] sm:$0xff] %v5761
        %5826 = vst [vmem:[%s357 + $0x139] sm:$0xff] %v5762
        %5827 = vst [vmem:[%s357 + $0x141] sm:$0xff] %v5763
        %5828 = vst [vmem:[%s357 + $0x151] sm:$0xff] %v5764
        %5829 = vst [vmem:[%s357 + $0x159] sm:$0xff] %v5765
        %5830 = vst [vmem:[%s357 + $0x169] sm:$0xff] %v5766
        %5831 = vst [vmem:[%s357 + $0x171] sm:$0xff] %v5767
        %5832 = vst [vmem:[%s357 + $0x1b1] sm:$0xff] %v5768
        %5833 = vst [vmem:[%s357 + $0x1b9] sm:$0xff] %v5769
        %5834 = vst [vmem:[%s357 + $0x1c9] sm:$0xff] %v5770
        %5835 = vst [vmem:[%s357 + $0x1d1] sm:$0xff] %v5771
        %5836 = vst [vmem:[%s357 + $0x1e1] sm:$0xff] %v5772
        %5837 = vst [vmem:[%s357 + $0x1e9] sm:$0xff] %v5773
        %5838 = vst [vmem:[%s357 + $0x1f9] sm:$0xff] %v5774
        %5839 = vst [vmem:[%s357 + $0x201] sm:$0xff] %v5775
        %5840 = vst [vmem:[%s357 + $0x211] sm:$0xff] %v5776
        %5841 = vst [vmem:[%s357 + $0x219] sm:$0xff] %v5777
        %5842 = vst [vmem:[%s357 + $0x229] sm:$0xff] %v5778
        %5843 = vst [vmem:[%s357 + $0x231] sm:$0xff] %v5779
        %5844 = vst [vmem:[%s357 + $0x241] sm:$0xff] %v5780
        %5845 = vst [vmem:[%s357 + $0x249] sm:$0xff] %v5781
        %5846 = vst [vmem:[%s357 + $0x259] sm:$0xff] %v5782
        %5847 = vst [vmem:[%s357 + $0x261] sm:$0xff] %v5783
        %5848 = vst [vmem:[%s357 + $0x271] sm:$0xff] %v5784
        %5849 = vst [vmem:[%s357 + $0x279] sm:$0xff] %v5785
        %5850 = vst [vmem:[%s357 + $0x289] sm:$0xff] %v5786
        %5851 = vst [vmem:[%s357 + $0x291] sm:$0xff] %v5787
        %5852 = vst [vmem:[%s357 + $0x2a1] sm:$0xff] %v5788
        %5853 = vst [vmem:[%s357 + $0x2a9] sm:$0xff] %v5789
        %5854 = vst [vmem:[%s357 + $0x2b9] sm:$0xff] %v5790
        %5855 = vst [vmem:[%s357 + $0x2c1] sm:$0xff] %v5791
        %5856 = vst [vmem:[%s357 + $0x2d1] sm:$0xff] %v5792
        %5857 = vst [vmem:[%s357 + $0x2d9] sm:$0xff] %v5793
        %5858 = vst [vmem:[%s357 + $0x2e9] sm:$0xff] %v5794
        %5859 = vst [vmem:[%s357 + $0x2f1] sm:$0xff] %v5795
        %5860 = vst [vmem:[%s357 + $0x301] sm:$0xff] %v5796
        %5861 = vst [vmem:[%s357 + $0x309] sm:$0xff] %v5797
        %5862 = vst [vmem:[%s357 + $0x319] sm:$0xff] %v5798
        %5863 = vst [vmem:[%s357 + $0x321] sm:$0xff] %v5799
        %v5864 = vld [vmem:[#allocation2] sm:$0xff]
        %v5865 = vld [vmem:[#allocation2 + $0x8] sm:$0xff]
        %v5866 = vld [vmem:[#allocation2 + $0x10] sm:$0x3]
        %v5867 = vld [vmem:[#allocation2 + $0x18] sm:$0xff]
        %v5868 = vld [vmem:[#allocation2 + $0x20] sm:$0xff]
        %v5869 = vld [vmem:[#allocation2 + $0x28] sm:$0x3]
        %v5870 = vld [vmem:[#allocation2 + $0x30] sm:$0xff]
        %v5871 = vld [vmem:[#allocation2 + $0x38] sm:$0xff]
        %v5872 = vld [vmem:[#allocation2 + $0x40] sm:$0x3]
        %v5873 = vld [vmem:[#allocation2 + $0x48] sm:$0xff]
        %v5874 = vld [vmem:[#allocation2 + $0x50] sm:$0xff]
        %v5875 = vld [vmem:[#allocation2 + $0x58] sm:$0x3]
        %v5876 = vld [vmem:[#allocation2 + $0x60] sm:$0xff]
        %v5877 = vld [vmem:[#allocation2 + $0x68] sm:$0xff]
        %v5878 = vld [vmem:[#allocation2 + $0x70] sm:$0x3]
        %v5879 = vld [vmem:[#allocation2 + $0x78] sm:$0xff]
        %v5880 = vld [vmem:[#allocation2 + $0x80] sm:$0xff]
        %v5881 = vld [vmem:[#allocation2 + $0x88] sm:$0x3]
        %v5882 = vld [vmem:[#allocation2 + $0x90] sm:$0xff]
        %v5883 = vld [vmem:[#allocation2 + $0x98] sm:$0xff]
        %v5884 = vld [vmem:[#allocation2 + $0xa0] sm:$0x3]
        %v5885 = vld [vmem:[#allocation2 + $0xa8] sm:$0xff]
        %v5886 = vld [vmem:[#allocation2 + $0xb0] sm:$0xff]
        %v5887 = vld [vmem:[#allocation2 + $0xb8] sm:$0x3]
        %v5888 = vld [vmem:[#allocation2 + $0xc0] sm:$0xff]
        %v5889 = vld [vmem:[#allocation2 + $0xc8] sm:$0xff]
        %v5890 = vld [vmem:[#allocation2 + $0xd0] sm:$0x3]
        %v5891 = vld [vmem:[#allocation2 + $0xd8] sm:$0xff]
        %v5892 = vld [vmem:[#allocation2 + $0xe0] sm:$0xff]
        %v5893 = vld [vmem:[#allocation2 + $0xe8] sm:$0x3]
        %v5894 = vld [vmem:[#allocation2 + $0xf0] sm:$0xff]
        %v5895 = vld [vmem:[#allocation2 + $0xf8] sm:$0xff]
        %v5896 = vld [vmem:[#allocation2 + $0x100] sm:$0x3]
        %v5897 = vld [vmem:[#allocation2 + $0x108] sm:$0xff]
        %v5898 = vld [vmem:[#allocation2 + $0x110] sm:$0xff]
        %v5899 = vld [vmem:[#allocation2 + $0x118] sm:$0x3]
        %v5900 = vld [vmem:[#allocation2 + $0x120] sm:$0xff]
        %v5901 = vld [vmem:[#allocation2 + $0x128] sm:$0xff]
        %v5902 = vld [vmem:[#allocation2 + $0x130] sm:$0x3]
        %v5903 = vld [vmem:[#allocation2 + $0x138] sm:$0xff]
        %v5904 = vld [vmem:[#allocation2 + $0x140] sm:$0xff]
        %v5905 = vld [vmem:[#allocation2 + $0x148] sm:$0x3]
        %v5906 = vld [vmem:[#allocation2 + $0x150] sm:$0xff]
        %v5907 = vld [vmem:[#allocation2 + $0x158] sm:$0xff]
        %v5908 = vld [vmem:[#allocation2 + $0x160] sm:$0x3]
        %v5909 = vld [vmem:[#allocation2 + $0x168] sm:$0xff]
        %v5910 = vld [vmem:[#allocation2 + $0x170] sm:$0xff]
        %v5911 = vld [vmem:[#allocation2 + $0x178] sm:$0x3]
        %v5912 = vld [vmem:[#allocation2 + $0x180] sm:$0xff]
        %v5913 = vld [vmem:[#allocation2 + $0x188] sm:$0xff]
        %v5914 = vld [vmem:[#allocation2 + $0x190] sm:$0x3]
        %v5915 = vld [vmem:[#allocation2 + $0x198] sm:$0xff]
        %v5916 = vld [vmem:[#allocation2 + $0x1a0] sm:$0xff]
        %v5917 = vld [vmem:[#allocation2 + $0x1a8] sm:$0x3]
        %v5918 = vld [vmem:[#allocation2 + $0x1b0] sm:$0xff]
        %v5919 = vld [vmem:[#allocation2 + $0x1b8] sm:$0xff]
        %v5920 = vld [vmem:[#allocation2 + $0x1c0] sm:$0x3]
        %v5921 = vld [vmem:[#allocation2 + $0x1c8] sm:$0xff]
        %v5922 = vld [vmem:[#allocation2 + $0x1d0] sm:$0xff]
        %v5923 = vld [vmem:[#allocation2 + $0x1d8] sm:$0x3]
        %v5924 = vld [vmem:[#allocation2 + $0x1e0] sm:$0xff]
        %v5925 = vld [vmem:[#allocation2 + $0x1e8] sm:$0xff]
        %v5926 = vld [vmem:[#allocation2 + $0x1f0] sm:$0x3]
        %v5927 = vld [vmem:[#allocation2 + $0x1f8] sm:$0xff]
        %v5928 = vld [vmem:[#allocation2 + $0x200] sm:$0xff]
        %v5929 = vld [vmem:[#allocation2 + $0x208] sm:$0x3]
        %v5930 = vld [vmem:[#allocation2 + $0x210] sm:$0xff]
        %v5931 = vld [vmem:[#allocation2 + $0x218] sm:$0xff]
        %v5932 = vld [vmem:[#allocation2 + $0x220] sm:$0x3]
        %v5933 = vld [vmem:[#allocation2 + $0x228] sm:$0xff]
        %v5934 = vld [vmem:[#allocation2 + $0x230] sm:$0xff]
        %v5935 = vld [vmem:[#allocation2 + $0x238] sm:$0x3]
        %v5936 = vld [vmem:[#allocation2 + $0x240] sm:$0xff]
        %v5937 = vld [vmem:[#allocation2 + $0x248] sm:$0xff]
        %v5938 = vld [vmem:[#allocation2 + $0x250] sm:$0x3]
        %v5939 = vld [vmem:[#allocation2 + $0x258] sm:$0xff]
        %v5940 = vld [vmem:[#allocation2 + $0x260] sm:$0xff]
        %v5941 = vld [vmem:[#allocation2 + $0x268] sm:$0x3]
        %v5942 = vld [vmem:[#allocation2 + $0x270] sm:$0xff]
        %v5943 = vld [vmem:[#allocation2 + $0x278] sm:$0xff]
        %v5944 = vld [vmem:[#allocation2 + $0x280] sm:$0x3]
        %v5945 = vld [vmem:[#allocation2 + $0x288] sm:$0xff]
        %v5946 = vld [vmem:[#allocation2 + $0x290] sm:$0xff]
        %v5947 = vld [vmem:[#allocation2 + $0x298] sm:$0x3]
        %v5948 = vld [vmem:[#allocation2 + $0x2a0] sm:$0xff]
        %v5949 = vld [vmem:[#allocation2 + $0x2a8] sm:$0xff]
        %v5950 = vld [vmem:[#allocation2 + $0x2b0] sm:$0x3]
        %v5951 = vld [vmem:[#allocation2 + $0x2b8] sm:$0xff]
        %v5952 = vld [vmem:[#allocation2 + $0x2c0] sm:$0xff]
        %v5953 = vld [vmem:[#allocation2 + $0x2c8] sm:$0x3]
        %v5954 = vld [vmem:[#allocation2 + $0x2d0] sm:$0xff]
        %v5955 = vld [vmem:[#allocation2 + $0x2d8] sm:$0xff]
        %v5956 = vld [vmem:[#allocation2 + $0x2e0] sm:$0x3]
        %v5957 = vld [vmem:[#allocation2 + $0x2e8] sm:$0xff]
        %v5958 = vld [vmem:[#allocation2 + $0x2f0] sm:$0xff]
        %v5959 = vld [vmem:[#allocation2 + $0x2f8] sm:$0x3]
        %v5960 = vld [vmem:[#allocation2 + $0x300] sm:$0xff]
        %v5961 = vld [vmem:[#allocation2 + $0x308] sm:$0xff]
        %v5962 = vld [vmem:[#allocation2 + $0x310] sm:$0x3]
        %v5963 = vld [vmem:[#allocation2 + $0x318] sm:$0xff]
        %v5964 = vld [vmem:[#allocation2 + $0x320] sm:$0xff]
        %v5965 = vld [vmem:[#allocation2 + $0x328] sm:$0x3]
        %v5966 = vld [vmem:[#allocation2 + $0x330] sm:$0xff]
        %v5967 = vld [vmem:[#allocation2 + $0x338] sm:$0xff]
        %v5968 = vld [vmem:[#allocation2 + $0x340] sm:$0x3]
        %v5969 = vld [vmem:[#allocation2 + $0x348] sm:$0xff]
        %v5970 = vld [vmem:[#allocation2 + $0x350] sm:$0xff]
        %v5971 = vld [vmem:[#allocation2 + $0x358] sm:$0x3]
        %v5972 = vpack.c.bf16 %v5865, %v5864
        %v5973 = vpack.c.bf16 %v5866, %v5866
        %v5974 = vpack.c.bf16 %v5868, %v5867
        %v5975 = vpack.c.bf16 %v5869, %v5869
        %v5976 = vpack.c.bf16 %v5871, %v5870
        %v5977 = vpack.c.bf16 %v5872, %v5872
        %v5978 = vpack.c.bf16 %v5874, %v5873
        %v5979 = vpack.c.bf16 %v5875, %v5875
        %v5980 = vpack.c.bf16 %v5877, %v5876
        %v5981 = vpack.c.bf16 %v5878, %v5878
        %v5982 = vpack.c.bf16 %v5880, %v5879
        %v5983 = vpack.c.bf16 %v5881, %v5881
        %v5984 = vpack.c.bf16 %v5883, %v5882
        %v5985 = vpack.c.bf16 %v5884, %v5884
        %v5986 = vpack.c.bf16 %v5886, %v5885
        %v5987 = vpack.c.bf16 %v5887, %v5887
        %v5988 = vpack.c.bf16 %v5889, %v5888
        %v5989 = vpack.c.bf16 %v5890, %v5890
        %v5990 = vpack.c.bf16 %v5892, %v5891
        %v5991 = vpack.c.bf16 %v5893, %v5893
        %v5992 = vpack.c.bf16 %v5895, %v5894
        %v5993 = vpack.c.bf16 %v5896, %v5896
        %v5994 = vpack.c.bf16 %v5898, %v5897
        %v5995 = vpack.c.bf16 %v5899, %v5899
        %v5996 = vpack.c.bf16 %v5901, %v5900
        %v5997 = vpack.c.bf16 %v5902, %v5902
        %v5998 = vpack.c.bf16 %v5904, %v5903
        %v5999 = vpack.c.bf16 %v5905, %v5905
        %v6000 = vpack.c.bf16 %v5907, %v5906
        %v6001 = vpack.c.bf16 %v5908, %v5908
        %v6002 = vpack.c.bf16 %v5910, %v5909
        %v6003 = vpack.c.bf16 %v5911, %v5911
        %v6004 = vpack.c.bf16 %v5913, %v5912
        %v6005 = vpack.c.bf16 %v5914, %v5914
        %v6006 = vpack.c.bf16 %v5916, %v5915
        %v6007 = vpack.c.bf16 %v5917, %v5917
        %v6008 = vpack.c.bf16 %v5919, %v5918
        %v6009 = vpack.c.bf16 %v5920, %v5920
        %v6010 = vpack.c.bf16 %v5922, %v5921
        %v6011 = vpack.c.bf16 %v5923, %v5923
        %v6012 = vpack.c.bf16 %v5925, %v5924
        %v6013 = vpack.c.bf16 %v5926, %v5926
        %v6014 = vpack.c.bf16 %v5928, %v5927
        %v6015 = vpack.c.bf16 %v5929, %v5929
        %v6016 = vpack.c.bf16 %v5931, %v5930
        %v6017 = vpack.c.bf16 %v5932, %v5932
        %v6018 = vpack.c.bf16 %v5934, %v5933
        %v6019 = vpack.c.bf16 %v5935, %v5935
        %v6020 = vpack.c.bf16 %v5937, %v5936
        %v6021 = vpack.c.bf16 %v5938, %v5938
        %v6022 = vpack.c.bf16 %v5940, %v5939
        %v6023 = vpack.c.bf16 %v5941, %v5941
        %v6024 = vpack.c.bf16 %v5943, %v5942
        %v6025 = vpack.c.bf16 %v5944, %v5944
        %v6026 = vpack.c.bf16 %v5946, %v5945
        %v6027 = vpack.c.bf16 %v5947, %v5947
        %v6028 = vpack.c.bf16 %v5949, %v5948
        %v6029 = vpack.c.bf16 %v5950, %v5950
        %v6030 = vpack.c.bf16 %v5952, %v5951
        %v6031 = vpack.c.bf16 %v5953, %v5953
        %v6032 = vpack.c.bf16 %v5955, %v5954
        %v6033 = vpack.c.bf16 %v5956, %v5956
        %v6034 = vpack.c.bf16 %v5958, %v5957
        %v6035 = vpack.c.bf16 %v5959, %v5959
        %v6036 = vpack.c.bf16 %v5961, %v5960
        %v6037 = vpack.c.bf16 %v5962, %v5962
        %v6038 = vpack.c.bf16 %v5964, %v5963
        %v6039 = vpack.c.bf16 %v5965, %v5965
        %v6040 = vpack.c.bf16 %v5967, %v5966
        %v6041 = vpack.c.bf16 %v5968, %v5968
        %v6042 = vpack.c.bf16 %v5970, %v5969
        %v6043 = vpack.c.bf16 %v5971, %v5971
        %v6044 = vld [vmem:[#allocation9] sm:$0xf]
        %v6045 = vld [vmem:[#allocation9 + $0x4] sm:$0xf]
        %v6046 = vld [vmem:[#allocation9 + $0x8] sm:$0xf]
        %v6047 = vld [vmem:[#allocation9 + $0xc] sm:$0xf]
        %v6048 = vld [vmem:[#allocation9 + $0x10] sm:$0xf]
        %v6049 = vld [vmem:[#allocation9 + $0x14] sm:$0xf]
        %v6050 = vld [vmem:[#allocation9 + $0x18] sm:$0xf]
        %v6051 = vld [vmem:[#allocation9 + $0x1c] sm:$0xf]
        %v6052 = vld [vmem:[#allocation9 + $0x20] sm:$0xf]
        %v6053 = vld [vmem:[#allocation9 + $0x24] sm:$0xf]
        %v6054 = vld [vmem:[#allocation9 + $0x28] sm:$0xf]
        %v6055 = vld [vmem:[#allocation9 + $0x2c] sm:$0xf]
        %v6056 = vld [vmem:[#allocation9 + $0x30] sm:$0xf]
        %v6057 = vld [vmem:[#allocation9 + $0x34] sm:$0xf]
        %v6058 = vld [vmem:[#allocation9 + $0x38] sm:$0xf]
        %v6059 = vld [vmem:[#allocation9 + $0x3c] sm:$0xf]
        %v6061 = vshrl.u32 %v5972, 16
        %v6063 = vshll.u32 %v5972, 16
        %v6065 = vrot.slane %v6063, 1
        %v6066 = vor.u32 %v6061, %v6065
        %v6068 = vshll.u32 %v5973, 16
        %v6070 = vrot.slane %v6068, 1
        %v6071 = vsel %vm1362, %v6066, %v6070
        %v6073 = vshrl.u32 %v5974, 16
        %v6075 = vshll.u32 %v5974, 16
        %v6077 = vrot.slane %v6075, 1
        %v6078 = vor.u32 %v6073, %v6077
        %v6080 = vshll.u32 %v5975, 16
        %v6082 = vrot.slane %v6080, 1
        %v6083 = vsel %vm1362, %v6078, %v6082
        %v6085 = vshrl.u32 %v5976, 16
        %v6087 = vshll.u32 %v5976, 16
        %v6089 = vrot.slane %v6087, 1
        %v6090 = vor.u32 %v6085, %v6089
        %v6092 = vshll.u32 %v5977, 16
        %v6094 = vrot.slane %v6092, 1
        %v6095 = vsel %vm1362, %v6090, %v6094
        %v6097 = vshrl.u32 %v5978, 16
        %v6099 = vshll.u32 %v5978, 16
        %v6101 = vrot.slane %v6099, 1
        %v6102 = vor.u32 %v6097, %v6101
        %v6104 = vshll.u32 %v5979, 16
        %v6106 = vrot.slane %v6104, 1
        %v6107 = vsel %vm1362, %v6102, %v6106
        %v6109 = vshrl.u32 %v5980, 16
        %v6111 = vshll.u32 %v5980, 16
        %v6113 = vrot.slane %v6111, 1
        %v6114 = vor.u32 %v6109, %v6113
        %v6116 = vshll.u32 %v5981, 16
        %v6118 = vrot.slane %v6116, 1
        %v6119 = vsel %vm1362, %v6114, %v6118
        %v6121 = vshrl.u32 %v5982, 16
        %v6123 = vshll.u32 %v5982, 16
        %v6125 = vrot.slane %v6123, 1
        %v6126 = vor.u32 %v6121, %v6125
        %v6128 = vshll.u32 %v5983, 16
        %v6130 = vrot.slane %v6128, 1
        %v6131 = vsel %vm1362, %v6126, %v6130
        %v6133 = vshrl.u32 %v5984, 16
        %v6135 = vshll.u32 %v5984, 16
        %v6137 = vrot.slane %v6135, 1
        %v6138 = vor.u32 %v6133, %v6137
        %v6140 = vshll.u32 %v5985, 16
        %v6142 = vrot.slane %v6140, 1
        %v6143 = vsel %vm1362, %v6138, %v6142
        %v6145 = vshrl.u32 %v5986, 16
        %v6147 = vshll.u32 %v5986, 16
        %v6149 = vrot.slane %v6147, 1
        %v6150 = vor.u32 %v6145, %v6149
        %v6152 = vshll.u32 %v5987, 16
        %v6154 = vrot.slane %v6152, 1
        %v6155 = vsel %vm1362, %v6150, %v6154
        %v6157 = vshrl.u32 %v5988, 16
        %v6159 = vshll.u32 %v5988, 16
        %v6161 = vrot.slane %v6159, 1
        %v6162 = vor.u32 %v6157, %v6161
        %v6164 = vshll.u32 %v5989, 16
        %v6166 = vrot.slane %v6164, 1
        %v6167 = vsel %vm1362, %v6162, %v6166
        %v6169 = vshrl.u32 %v5990, 16
        %v6171 = vshll.u32 %v5990, 16
        %v6173 = vrot.slane %v6171, 1
        %v6174 = vor.u32 %v6169, %v6173
        %v6176 = vshll.u32 %v5991, 16
        %v6178 = vrot.slane %v6176, 1
        %v6179 = vsel %vm1362, %v6174, %v6178
        %v6181 = vshrl.u32 %v5992, 16
        %v6183 = vshll.u32 %v5992, 16
        %v6185 = vrot.slane %v6183, 1
        %v6186 = vor.u32 %v6181, %v6185
        %v6188 = vshll.u32 %v5993, 16
        %v6190 = vrot.slane %v6188, 1
        %v6191 = vsel %vm1362, %v6186, %v6190
        %v6193 = vshrl.u32 %v5994, 16
        %v6195 = vshll.u32 %v5994, 16
        %v6197 = vrot.slane %v6195, 1
        %v6198 = vor.u32 %v6193, %v6197
        %v6200 = vshll.u32 %v5995, 16
        %v6202 = vrot.slane %v6200, 1
        %v6203 = vsel %vm1362, %v6198, %v6202
        %v6205 = vshrl.u32 %v5996, 16
        %v6207 = vshll.u32 %v5996, 16
        %v6209 = vrot.slane %v6207, 1
        %v6210 = vor.u32 %v6205, %v6209
        %v6212 = vshll.u32 %v5997, 16
        %v6214 = vrot.slane %v6212, 1
        %v6215 = vsel %vm1362, %v6210, %v6214
        %v6217 = vshrl.u32 %v5998, 16
        %v6219 = vshll.u32 %v5998, 16
        %v6221 = vrot.slane %v6219, 1
        %v6222 = vor.u32 %v6217, %v6221
        %v6224 = vshll.u32 %v5999, 16
        %v6226 = vrot.slane %v6224, 1
        %v6227 = vsel %vm1362, %v6222, %v6226
        %v6229 = vshrl.u32 %v6000, 16
        %v6231 = vshll.u32 %v6000, 16
        %v6233 = vrot.slane %v6231, 1
        %v6234 = vor.u32 %v6229, %v6233
        %v6236 = vshll.u32 %v6001, 16
        %v6238 = vrot.slane %v6236, 1
        %v6239 = vsel %vm1362, %v6234, %v6238
        %v6241 = vshrl.u32 %v6002, 16
        %v6243 = vshll.u32 %v6002, 16
        %v6245 = vrot.slane %v6243, 1
        %v6246 = vor.u32 %v6241, %v6245
        %v6248 = vshll.u32 %v6003, 16
        %v6250 = vrot.slane %v6248, 1
        %v6251 = vsel %vm1362, %v6246, %v6250
        %v6253 = vshrl.u32 %v6008, 16
        %v6255 = vshll.u32 %v6008, 16
        %v6257 = vrot.slane %v6255, 1
        %v6258 = vor.u32 %v6253, %v6257
        %v6260 = vshll.u32 %v6009, 16
        %v6262 = vrot.slane %v6260, 1
        %v6263 = vsel %vm1362, %v6258, %v6262
        %v6265 = vshrl.u32 %v6010, 16
        %v6267 = vshll.u32 %v6010, 16
        %v6269 = vrot.slane %v6267, 1
        %v6270 = vor.u32 %v6265, %v6269
        %v6272 = vshll.u32 %v6011, 16
        %v6274 = vrot.slane %v6272, 1
        %v6275 = vsel %vm1362, %v6270, %v6274
        %v6277 = vshrl.u32 %v6012, 16
        %v6279 = vshll.u32 %v6012, 16
        %v6281 = vrot.slane %v6279, 1
        %v6282 = vor.u32 %v6277, %v6281
        %v6284 = vshll.u32 %v6013, 16
        %v6286 = vrot.slane %v6284, 1
        %v6287 = vsel %vm1362, %v6282, %v6286
        %v6289 = vshrl.u32 %v6014, 16
        %v6291 = vshll.u32 %v6014, 16
        %v6293 = vrot.slane %v6291, 1
        %v6294 = vor.u32 %v6289, %v6293
        %v6296 = vshll.u32 %v6015, 16
        %v6298 = vrot.slane %v6296, 1
        %v6299 = vsel %vm1362, %v6294, %v6298
        %v6301 = vshrl.u32 %v6016, 16
        %v6303 = vshll.u32 %v6016, 16
        %v6305 = vrot.slane %v6303, 1
        %v6306 = vor.u32 %v6301, %v6305
        %v6308 = vshll.u32 %v6017, 16
        %v6310 = vrot.slane %v6308, 1
        %v6311 = vsel %vm1362, %v6306, %v6310
        %v6313 = vshrl.u32 %v6018, 16
        %v6315 = vshll.u32 %v6018, 16
        %v6317 = vrot.slane %v6315, 1
        %v6318 = vor.u32 %v6313, %v6317
        %v6320 = vshll.u32 %v6019, 16
        %v6322 = vrot.slane %v6320, 1
        %v6323 = vsel %vm1362, %v6318, %v6322
        %v6325 = vshrl.u32 %v6020, 16
        %v6327 = vshll.u32 %v6020, 16
        %v6329 = vrot.slane %v6327, 1
        %v6330 = vor.u32 %v6325, %v6329
        %v6332 = vshll.u32 %v6021, 16
        %v6334 = vrot.slane %v6332, 1
        %v6335 = vsel %vm1362, %v6330, %v6334
        %v6337 = vshrl.u32 %v6022, 16
        %v6339 = vshll.u32 %v6022, 16
        %v6341 = vrot.slane %v6339, 1
        %v6342 = vor.u32 %v6337, %v6341
        %v6344 = vshll.u32 %v6023, 16
        %v6346 = vrot.slane %v6344, 1
        %v6347 = vsel %vm1362, %v6342, %v6346
        %v6349 = vshrl.u32 %v6024, 16
        %v6351 = vshll.u32 %v6024, 16
        %v6353 = vrot.slane %v6351, 1
        %v6354 = vor.u32 %v6349, %v6353
        %v6356 = vshll.u32 %v6025, 16
        %v6358 = vrot.slane %v6356, 1
        %v6359 = vsel %vm1362, %v6354, %v6358
        %v6361 = vshrl.u32 %v6026, 16
        %v6363 = vshll.u32 %v6026, 16
        %v6365 = vrot.slane %v6363, 1
        %v6366 = vor.u32 %v6361, %v6365
        %v6368 = vshll.u32 %v6027, 16
        %v6370 = vrot.slane %v6368, 1
        %v6371 = vsel %vm1362, %v6366, %v6370
        %v6373 = vshrl.u32 %v6028, 16
        %v6375 = vshll.u32 %v6028, 16
        %v6377 = vrot.slane %v6375, 1
        %v6378 = vor.u32 %v6373, %v6377
        %v6380 = vshll.u32 %v6029, 16
        %v6382 = vrot.slane %v6380, 1
        %v6383 = vsel %vm1362, %v6378, %v6382
        %v6385 = vshrl.u32 %v6030, 16
        %v6387 = vshll.u32 %v6030, 16
        %v6389 = vrot.slane %v6387, 1
        %v6390 = vor.u32 %v6385, %v6389
        %v6392 = vshll.u32 %v6031, 16
        %v6394 = vrot.slane %v6392, 1
        %v6395 = vsel %vm1362, %v6390, %v6394
        %v6397 = vshrl.u32 %v6032, 16
        %v6399 = vshll.u32 %v6032, 16
        %v6401 = vrot.slane %v6399, 1
        %v6402 = vor.u32 %v6397, %v6401
        %v6404 = vshll.u32 %v6033, 16
        %v6406 = vrot.slane %v6404, 1
        %v6407 = vsel %vm1362, %v6402, %v6406
        %v6409 = vshrl.u32 %v6034, 16
        %v6411 = vshll.u32 %v6034, 16
        %v6413 = vrot.slane %v6411, 1
        %v6414 = vor.u32 %v6409, %v6413
        %v6416 = vshll.u32 %v6035, 16
        %v6418 = vrot.slane %v6416, 1
        %v6419 = vsel %vm1362, %v6414, %v6418
        %v6421 = vshrl.u32 %v6036, 16
        %v6423 = vshll.u32 %v6036, 16
        %v6425 = vrot.slane %v6423, 1
        %v6426 = vor.u32 %v6421, %v6425
        %v6428 = vshll.u32 %v6037, 16
        %v6430 = vrot.slane %v6428, 1
        %v6431 = vsel %vm1362, %v6426, %v6430
        %v6433 = vshrl.u32 %v6038, 16
        %v6435 = vshll.u32 %v6038, 16
        %v6437 = vrot.slane %v6435, 1
        %v6438 = vor.u32 %v6433, %v6437
        %v6440 = vshll.u32 %v6039, 16
        %v6442 = vrot.slane %v6440, 1
        %v6443 = vsel %vm1362, %v6438, %v6442
        %s6476 = scalar_lea.vmem [#allocation9], 64
        %v6477 = vld [vmem:[%s6476] sm:$0xf]
        %v6478 = vld [vmem:[%s6476 + $0x4] sm:$0xf]
        %v6479 = vld [vmem:[%s6476 + $0x8] sm:$0xf]
        %v6480 = vld [vmem:[%s6476 + $0xc] sm:$0xf]
        %v6481 = vld [vmem:[%s6476 + $0x10] sm:$0xf]
        %v6482 = vld [vmem:[%s6476 + $0x14] sm:$0xf]
        %v6483 = vld [vmem:[%s6476 + $0x18] sm:$0xf]
        %v6484 = vld [vmem:[%s6476 + $0x1c] sm:$0xf]
        %v6485 = vld [vmem:[%s6476 + $0x20] sm:$0xf]
        %v6486 = vld [vmem:[%s6476 + $0x24] sm:$0xf]
        %v6487 = vld [vmem:[%s6476 + $0x28] sm:$0xf]
        %v6488 = vld [vmem:[%s6476 + $0x2c] sm:$0xf]
        %v6489 = vld [vmem:[%s6476 + $0x30] sm:$0xf]
        %v6490 = vld [vmem:[%s6476 + $0x34] sm:$0xf]
        %v6491 = vld [vmem:[%s6476 + $0x38] sm:$0xf]
        %v6492 = vld [vmem:[%s6476 + $0x3c] sm:$0xf]
        %v6509 = vunpack.c.l.b16 %v6477
        %v6510 = vunpack.c.l.b16 %v6478
        %v6511 = vunpack.c.l.b16 %v6479
        %v6512 = vunpack.c.l.b16 %v6480
        %v6513 = vunpack.c.l.b16 %v6481
        %v6514 = vunpack.c.l.b16 %v6482
        %v6515 = vunpack.c.l.b16 %v6483
        %v6516 = vunpack.c.l.b16 %v6484
        %v6517 = vunpack.c.l.b16 %v6485
        %v6518 = vunpack.c.l.b16 %v6486
        %v6519 = vunpack.c.l.b16 %v6487
        %v6520 = vunpack.c.l.b16 %v6488
        %v6521 = vunpack.c.l.b16 %v6489
        %v6522 = vunpack.c.l.b16 %v6490
        %v6523 = vunpack.c.l.b16 %v6491
        %v6524 = vunpack.c.l.b16 %v6492
        %v6525 = vpack.c.b16 %v6510, %v6509
        %v6526 = vpack.c.b16 %v6512, %v6511
        %v6527 = vpack.c.b16 %v6514, %v6513
        %v6528 = vpack.c.b16 %v6516, %v6515
        %v6529 = vpack.c.b16 %v6518, %v6517
        %v6530 = vpack.c.b16 %v6520, %v6519
        %v6531 = vpack.c.b16 %v6522, %v6521
        %v6532 = vpack.c.b16 %v6524, %v6523
        %6541 = vmatprep.subr.bf16.mxu0 0
        %6542 = vmatpush1.bf16.msra.mxu0 %v6532
        %6543 = vmatprep.subr.bf16.mxu0 0
        %6544 = vmatpush1.bf16.msra.mxu0 %v6531
        %6545 = vmatprep.subr.bf16.mxu0 0
        %6546 = vmatpush1.bf16.msra.mxu0 %v6530
        %6547 = vmatprep.subr.bf16.mxu0 0
        %6548 = vmatpush1.bf16.msra.mxu0 %v6529
        %6549 = vmatprep.subr.bf16.mxu0 0
        %6550 = vmatpush1.bf16.msra.mxu0 %v6528
        %6551 = vmatprep.subr.bf16.mxu0 0
        %6552 = vmatpush1.bf16.msra.mxu0 %v6527
        %6553 = vmatprep.subr.bf16.mxu0 0
        %6554 = vmatpush1.bf16.msra.mxu0 %v6526
        %6555 = vmatprep.subr.bf16.mxu0 0
        %6556 = vmatpush1.bf16.msra.mxu0 %v6525
        %6557 = vmatprep.subr.bf16.mxu0 0
        %6558 = vmatpush2.bf16.msra.mxu0 0
        %6559 = vmatprep.subr.bf16.mxu0 0
        %6560 = vmatpush2.bf16.msra.mxu0 0
        %6561 = vmatprep.subr.bf16.mxu0 0
        %6562 = vmatpush2.bf16.msra.mxu0 0
        %6563 = vmatprep.subr.bf16.mxu0 0
        %6564 = vmatpush2.bf16.msra.mxu0 0
        %6565 = vmatprep.subr.bf16.mxu0 0
        %6566 = vmatpush2.bf16.msra.mxu0 0
        %6567 = vmatprep.subr.bf16.mxu0 0
        %6568 = vmatpush2.bf16.msra.mxu0 0
        %6569 = vmatprep.subr.bf16.mxu0 0
        %6570 = vmatpush2.bf16.msra.mxu0 0
        %6571 = vmatprep.subr.bf16.mxu0 0
        %6572 = vmatpush2.bf16.msra.mxu0 0
        %6573 = vmatprep.mubr.bf16.mxu0 0
        %6574 = vmatmul.mubr.bf16.gmra.mxu0 %v6071
        %v6575 = vpop.f32.mrf.mxu0
        %v6576 = vadd.f32 0.0, %v6575
        %v6577 = vpop.f32.mrf.mxu0
        %v6578 = vpop.f32.mrf.mxu0
        %v6579 = vadd.f32 0.0, %v6578
        %v6580 = vpop.f32.mrf.mxu0
        %6581 = vmatprep.mubr.bf16.mxu0 0
        %6582 = vmatmul.mubr.bf16.gmra.mxu0 %v6083
        %v6583 = vpop.f32.mrf.mxu0
        %v6584 = vadd.f32 0.0, %v6583
        %v6585 = vpop.f32.mrf.mxu0
        %v6586 = vpop.f32.mrf.mxu0
        %v6587 = vadd.f32 0.0, %v6586
        %v6588 = vpop.f32.mrf.mxu0
        %6589 = vmatprep.mubr.bf16.mxu0 0
        %6590 = vmatmul.mubr.bf16.gmra.mxu0 %v6095
        %v6591 = vpop.f32.mrf.mxu0
        %v6592 = vadd.f32 0.0, %v6591
        %v6593 = vpop.f32.mrf.mxu0
        %v6594 = vpop.f32.mrf.mxu0
        %v6595 = vadd.f32 0.0, %v6594
        %v6596 = vpop.f32.mrf.mxu0
        %6597 = vmatprep.mubr.bf16.mxu0 0
        %6598 = vmatmul.mubr.bf16.gmra.mxu0 %v6107
        %v6599 = vpop.f32.mrf.mxu0
        %v6600 = vadd.f32 0.0, %v6599
        %v6601 = vpop.f32.mrf.mxu0
        %v6602 = vpop.f32.mrf.mxu0
        %v6603 = vadd.f32 0.0, %v6602
        %v6604 = vpop.f32.mrf.mxu0
        %6605 = vmatprep.mubr.bf16.mxu0 0
        %6606 = vmatmul.mubr.bf16.gmra.mxu0 %v6119
        %v6607 = vpop.f32.mrf.mxu0
        %v6608 = vadd.f32 0.0, %v6607
        %v6609 = vpop.f32.mrf.mxu0
        %v6610 = vpop.f32.mrf.mxu0
        %v6611 = vadd.f32 0.0, %v6610
        %v6612 = vpop.f32.mrf.mxu0
        %6613 = vmatprep.mubr.bf16.mxu0 0
        %6614 = vmatmul.mubr.bf16.gmra.mxu0 %v6131
        %v6615 = vpop.f32.mrf.mxu0
        %v6616 = vadd.f32 0.0, %v6615
        %v6617 = vpop.f32.mrf.mxu0
        %v6618 = vpop.f32.mrf.mxu0
        %v6619 = vadd.f32 0.0, %v6618
        %v6620 = vpop.f32.mrf.mxu0
        %6621 = vmatprep.mubr.bf16.mxu0 0
        %6622 = vmatmul.mubr.bf16.gmra.mxu0 %v6143
        %v6623 = vpop.f32.mrf.mxu0
        %v6624 = vadd.f32 0.0, %v6623
        %v6625 = vpop.f32.mrf.mxu0
        %v6626 = vpop.f32.mrf.mxu0
        %v6627 = vadd.f32 0.0, %v6626
        %v6628 = vpop.f32.mrf.mxu0
        %6629 = vmatprep.mubr.bf16.mxu0 0
        %6630 = vmatmul.mubr.bf16.gmra.mxu0 %v6155
        %v6631 = vpop.f32.mrf.mxu0
        %v6632 = vadd.f32 0.0, %v6631
        %v6633 = vpop.f32.mrf.mxu0
        %v6634 = vpop.f32.mrf.mxu0
        %v6635 = vadd.f32 0.0, %v6634
        %v6636 = vpop.f32.mrf.mxu0
        %6637 = vmatprep.mubr.bf16.mxu0 0
        %6638 = vmatmul.mubr.bf16.gmra.mxu0 %v6167
        %v6639 = vpop.f32.mrf.mxu0
        %v6640 = vadd.f32 0.0, %v6639
        %v6641 = vpop.f32.mrf.mxu0
        %v6642 = vpop.f32.mrf.mxu0
        %v6643 = vadd.f32 0.0, %v6642
        %v6644 = vpop.f32.mrf.mxu0
        %6645 = vmatprep.mubr.bf16.mxu0 0
        %6646 = vmatmul.mubr.bf16.gmra.mxu0 %v6179
        %v6647 = vpop.f32.mrf.mxu0
        %v6648 = vadd.f32 0.0, %v6647
        %v6649 = vpop.f32.mrf.mxu0
        %v6650 = vpop.f32.mrf.mxu0
        %v6651 = vadd.f32 0.0, %v6650
        %v6652 = vpop.f32.mrf.mxu0
        %6653 = vmatprep.mubr.bf16.mxu0 0
        %6654 = vmatmul.mubr.bf16.gmra.mxu0 %v6191
        %v6655 = vpop.f32.mrf.mxu0
        %v6656 = vadd.f32 0.0, %v6655
        %v6657 = vpop.f32.mrf.mxu0
        %v6658 = vpop.f32.mrf.mxu0
        %v6659 = vadd.f32 0.0, %v6658
        %v6660 = vpop.f32.mrf.mxu0
        %6661 = vmatprep.mubr.bf16.mxu0 0
        %6662 = vmatmul.mubr.bf16.gmra.mxu0 %v6203
        %v6663 = vpop.f32.mrf.mxu0
        %v6664 = vadd.f32 0.0, %v6663
        %v6665 = vpop.f32.mrf.mxu0
        %v6666 = vpop.f32.mrf.mxu0
        %v6667 = vadd.f32 0.0, %v6666
        %v6668 = vpop.f32.mrf.mxu0
        %6669 = vmatprep.mubr.bf16.mxu0 0
        %6670 = vmatmul.mubr.bf16.gmra.mxu0 %v6215
        %v6671 = vpop.f32.mrf.mxu0
        %v6672 = vadd.f32 0.0, %v6671
        %v6673 = vpop.f32.mrf.mxu0
        %v6674 = vpop.f32.mrf.mxu0
        %v6675 = vadd.f32 0.0, %v6674
        %v6676 = vpop.f32.mrf.mxu0
        %6677 = vmatprep.mubr.bf16.mxu0 0
        %6678 = vmatmul.mubr.bf16.gmra.mxu0 %v6227
        %v6679 = vpop.f32.mrf.mxu0
        %v6680 = vadd.f32 0.0, %v6679
        %v6681 = vpop.f32.mrf.mxu0
        %v6682 = vpop.f32.mrf.mxu0
        %v6683 = vadd.f32 0.0, %v6682
        %v6684 = vpop.f32.mrf.mxu0
        %6685 = vmatprep.mubr.bf16.mxu0 0
        %6686 = vmatmul.mubr.bf16.gmra.mxu0 %v6239
        %v6687 = vpop.f32.mrf.mxu0
        %v6688 = vadd.f32 0.0, %v6687
        %v6689 = vpop.f32.mrf.mxu0
        %v6690 = vpop.f32.mrf.mxu0
        %v6691 = vadd.f32 0.0, %v6690
        %v6692 = vpop.f32.mrf.mxu0
        %6693 = vmatprep.mubr.bf16.mxu0 0
        %6694 = vmatmul.mubr.bf16.gmra.mxu0 %v6251
        %v6695 = vpop.f32.mrf.mxu0
        %v6696 = vadd.f32 0.0, %v6695
        %v6697 = vpop.f32.mrf.mxu0
        %v6698 = vpop.f32.mrf.mxu0
        %v6699 = vadd.f32 0.0, %v6698
        %v6700 = vpop.f32.mrf.mxu0
        %6701 = vmatprep.mubr.bf16.mxu0 0
        %6702 = vmatmul.mubr.bf16.gmra.mxu0 %v6263
        %v6703 = vpop.f32.mrf.mxu0
        %v6704 = vadd.f32 0.0, %v6703
        %v6705 = vpop.f32.mrf.mxu0
        %v6706 = vpop.f32.mrf.mxu0
        %v6707 = vadd.f32 0.0, %v6706
        %v6708 = vpop.f32.mrf.mxu0
        %6709 = vmatprep.mubr.bf16.mxu0 0
        %6710 = vmatmul.mubr.bf16.gmra.mxu0 %v6275
        %v6711 = vpop.f32.mrf.mxu0
        %v6712 = vadd.f32 0.0, %v6711
        %v6713 = vpop.f32.mrf.mxu0
        %v6714 = vpop.f32.mrf.mxu0
        %v6715 = vadd.f32 0.0, %v6714
        %v6716 = vpop.f32.mrf.mxu0
        %6717 = vmatprep.mubr.bf16.mxu0 0
        %6718 = vmatmul.mubr.bf16.gmra.mxu0 %v6287
        %v6719 = vpop.f32.mrf.mxu0
        %v6720 = vadd.f32 0.0, %v6719
        %v6721 = vpop.f32.mrf.mxu0
        %v6722 = vpop.f32.mrf.mxu0
        %v6723 = vadd.f32 0.0, %v6722
        %v6724 = vpop.f32.mrf.mxu0
        %6725 = vmatprep.mubr.bf16.mxu0 0
        %6726 = vmatmul.mubr.bf16.gmra.mxu0 %v6299
        %v6727 = vpop.f32.mrf.mxu0
        %v6728 = vadd.f32 0.0, %v6727
        %v6729 = vpop.f32.mrf.mxu0
        %v6730 = vpop.f32.mrf.mxu0
        %v6731 = vadd.f32 0.0, %v6730
        %v6732 = vpop.f32.mrf.mxu0
        %6733 = vmatprep.mubr.bf16.mxu0 0
        %6734 = vmatmul.mubr.bf16.gmra.mxu0 %v6311
        %v6735 = vpop.f32.mrf.mxu0
        %v6736 = vadd.f32 0.0, %v6735
        %v6737 = vpop.f32.mrf.mxu0
        %v6738 = vpop.f32.mrf.mxu0
        %v6739 = vadd.f32 0.0, %v6738
        %v6740 = vpop.f32.mrf.mxu0
        %6741 = vmatprep.mubr.bf16.mxu0 0
        %6742 = vmatmul.mubr.bf16.gmra.mxu0 %v6323
        %v6743 = vpop.f32.mrf.mxu0
        %v6744 = vadd.f32 0.0, %v6743
        %v6745 = vpop.f32.mrf.mxu0
        %v6746 = vpop.f32.mrf.mxu0
        %v6747 = vadd.f32 0.0, %v6746
        %v6748 = vpop.f32.mrf.mxu0
        %6749 = vmatprep.mubr.bf16.mxu0 0
        %6750 = vmatmul.mubr.bf16.gmra.mxu0 %v6335
        %v6751 = vpop.f32.mrf.mxu0
        %v6752 = vadd.f32 0.0, %v6751
        %v6753 = vpop.f32.mrf.mxu0
        %v6754 = vpop.f32.mrf.mxu0
        %v6755 = vadd.f32 0.0, %v6754
        %v6756 = vpop.f32.mrf.mxu0
        %6757 = vmatprep.mubr.bf16.mxu0 0
        %6758 = vmatmul.mubr.bf16.gmra.mxu0 %v6347
        %v6759 = vpop.f32.mrf.mxu0
        %v6760 = vadd.f32 0.0, %v6759
        %v6761 = vpop.f32.mrf.mxu0
        %v6762 = vpop.f32.mrf.mxu0
        %v6763 = vadd.f32 0.0, %v6762
        %v6764 = vpop.f32.mrf.mxu0
        %6765 = vmatprep.mubr.bf16.mxu0 0
        %6766 = vmatmul.mubr.bf16.gmra.mxu0 %v6359
        %v6767 = vpop.f32.mrf.mxu0
        %v6768 = vadd.f32 0.0, %v6767
        %v6769 = vpop.f32.mrf.mxu0
        %v6770 = vpop.f32.mrf.mxu0
        %v6771 = vadd.f32 0.0, %v6770
        %v6772 = vpop.f32.mrf.mxu0
        %6773 = vmatprep.mubr.bf16.mxu0 0
        %6774 = vmatmul.mubr.bf16.gmra.mxu0 %v6371
        %v6775 = vpop.f32.mrf.mxu0
        %v6776 = vadd.f32 0.0, %v6775
        %v6777 = vpop.f32.mrf.mxu0
        %v6778 = vpop.f32.mrf.mxu0
        %v6779 = vadd.f32 0.0, %v6778
        %v6780 = vpop.f32.mrf.mxu0
        %6781 = vmatprep.mubr.bf16.mxu0 0
        %6782 = vmatmul.mubr.bf16.gmra.mxu0 %v6383
        %v6783 = vpop.f32.mrf.mxu0
        %v6784 = vadd.f32 0.0, %v6783
        %v6785 = vpop.f32.mrf.mxu0
        %v6786 = vpop.f32.mrf.mxu0
        %v6787 = vadd.f32 0.0, %v6786
        %v6788 = vpop.f32.mrf.mxu0
        %6789 = vmatprep.mubr.bf16.mxu0 0
        %6790 = vmatmul.mubr.bf16.gmra.mxu0 %v6395
        %v6791 = vpop.f32.mrf.mxu0
        %v6792 = vadd.f32 0.0, %v6791
        %v6793 = vpop.f32.mrf.mxu0
        %v6794 = vpop.f32.mrf.mxu0
        %v6795 = vadd.f32 0.0, %v6794
        %v6796 = vpop.f32.mrf.mxu0
        %6797 = vmatprep.mubr.bf16.mxu0 0
        %6798 = vmatmul.mubr.bf16.gmra.mxu0 %v6407
        %v6799 = vpop.f32.mrf.mxu0
        %v6800 = vadd.f32 0.0, %v6799
        %v6801 = vpop.f32.mrf.mxu0
        %v6802 = vpop.f32.mrf.mxu0
        %v6803 = vadd.f32 0.0, %v6802
        %v6804 = vpop.f32.mrf.mxu0
        %6805 = vmatprep.mubr.bf16.mxu0 0
        %6806 = vmatmul.mubr.bf16.gmra.mxu0 %v6419
        %v6807 = vpop.f32.mrf.mxu0
        %v6808 = vadd.f32 0.0, %v6807
        %v6809 = vpop.f32.mrf.mxu0
        %v6810 = vpop.f32.mrf.mxu0
        %v6811 = vadd.f32 0.0, %v6810
        %v6812 = vpop.f32.mrf.mxu0
        %6813 = vmatprep.mubr.bf16.mxu0 0
        %6814 = vmatmul.mubr.bf16.gmra.mxu0 %v6431
        %v6815 = vpop.f32.mrf.mxu0
        %v6816 = vadd.f32 0.0, %v6815
        %v6817 = vpop.f32.mrf.mxu0
        %v6818 = vpop.f32.mrf.mxu0
        %v6819 = vadd.f32 0.0, %v6818
        %v6820 = vpop.f32.mrf.mxu0
        %6821 = vmatprep.mubr.bf16.mxu0 0
        %6822 = vmatmul.mubr.bf16.gmra.mxu0 %v6443
        %v6823 = vpop.f32.mrf.mxu0
        %v6824 = vadd.f32 0.0, %v6823
        %v6825 = vpop.f32.mrf.mxu0
        %v6826 = vpop.f32.mrf.mxu0
        %v6827 = vadd.f32 0.0, %v6826
        %v6828 = vpop.f32.mrf.mxu0
        %6829 = vdwg.mxu0
        %v6846 = vunpack.c.l.b16 %v6044
        %v6847 = vunpack.c.l.b16 %v6045
        %v6848 = vunpack.c.l.b16 %v6046
        %v6849 = vunpack.c.l.b16 %v6047
        %v6850 = vunpack.c.l.b16 %v6048
        %v6851 = vunpack.c.l.b16 %v6049
        %v6852 = vunpack.c.l.b16 %v6050
        %v6853 = vunpack.c.l.b16 %v6051
        %v6854 = vunpack.c.l.b16 %v6052
        %v6855 = vunpack.c.l.b16 %v6053
        %v6856 = vunpack.c.l.b16 %v6054
        %v6857 = vunpack.c.l.b16 %v6055
        %v6858 = vunpack.c.l.b16 %v6056
        %v6859 = vunpack.c.l.b16 %v6057
        %v6860 = vunpack.c.l.b16 %v6058
        %v6861 = vunpack.c.l.b16 %v6059
        %v6862 = vpack.c.b16 %v6847, %v6846
        %v6863 = vpack.c.b16 %v6849, %v6848
        %v6864 = vpack.c.b16 %v6851, %v6850
        %v6865 = vpack.c.b16 %v6853, %v6852
        %v6866 = vpack.c.b16 %v6855, %v6854
        %v6867 = vpack.c.b16 %v6857, %v6856
        %v6868 = vpack.c.b16 %v6859, %v6858
        %v6869 = vpack.c.b16 %v6861, %v6860
        %6878 = vmatprep.subr.bf16.mxu0 0
        %6879 = vmatpush1.bf16.msra.mxu0 %v6869
        %6880 = vmatprep.subr.bf16.mxu0 0
        %6881 = vmatpush1.bf16.msra.mxu0 %v6868
        %6882 = vmatprep.subr.bf16.mxu0 0
        %6883 = vmatpush1.bf16.msra.mxu0 %v6867
        %6884 = vmatprep.subr.bf16.mxu0 0
        %6885 = vmatpush1.bf16.msra.mxu0 %v6866
        %6886 = vmatprep.subr.bf16.mxu0 0
        %6887 = vmatpush1.bf16.msra.mxu0 %v6865
        %6888 = vmatprep.subr.bf16.mxu0 0
        %6889 = vmatpush1.bf16.msra.mxu0 %v6864
        %6890 = vmatprep.subr.bf16.mxu0 0
        %6891 = vmatpush1.bf16.msra.mxu0 %v6863
        %6892 = vmatprep.subr.bf16.mxu0 0
        %6893 = vmatpush1.bf16.msra.mxu0 %v6862
        %6894 = vmatprep.subr.bf16.mxu0 0
        %6895 = vmatpush2.bf16.msra.mxu0 0
        %6896 = vmatprep.subr.bf16.mxu0 0
        %6897 = vmatpush2.bf16.msra.mxu0 0
        %6898 = vmatprep.subr.bf16.mxu0 0
        %6899 = vmatpush2.bf16.msra.mxu0 0
        %6900 = vmatprep.subr.bf16.mxu0 0
        %6901 = vmatpush2.bf16.msra.mxu0 0
        %6902 = vmatprep.subr.bf16.mxu0 0
        %6903 = vmatpush2.bf16.msra.mxu0 0
        %6904 = vmatprep.subr.bf16.mxu0 0
        %6905 = vmatpush2.bf16.msra.mxu0 0
        %6906 = vmatprep.subr.bf16.mxu0 0
        %6907 = vmatpush2.bf16.msra.mxu0 0
        %6908 = vmatprep.subr.bf16.mxu0 0
        %6909 = vmatpush2.bf16.msra.mxu0 0
        %6910 = vmatprep.mubr.bf16.mxu0 0
        %6911 = vmatmul.mubr.bf16.gmra.mxu0 %v5972
        %v6912 = vpop.f32.mrf.mxu0
        %v6913 = vadd.f32 %v6576, %v6912
        %v6914 = vpop.f32.mrf.mxu0
        %v6915 = vpop.f32.mrf.mxu0
        %v6916 = vadd.f32 %v6579, %v6915
        %v6917 = vpop.f32.mrf.mxu0
        %6918 = vmatprep.mubr.bf16.mxu0 0
        %6919 = vmatmul.mubr.bf16.gmra.mxu0 %v5974
        %v6920 = vpop.f32.mrf.mxu0
        %v6921 = vadd.f32 %v6584, %v6920
        %v6922 = vpop.f32.mrf.mxu0
        %v6923 = vpop.f32.mrf.mxu0
        %v6924 = vadd.f32 %v6587, %v6923
        %v6925 = vpop.f32.mrf.mxu0
        %6926 = vmatprep.mubr.bf16.mxu0 0
        %6927 = vmatmul.mubr.bf16.gmra.mxu0 %v5976
        %v6928 = vpop.f32.mrf.mxu0
        %v6929 = vadd.f32 %v6592, %v6928
        %v6930 = vpop.f32.mrf.mxu0
        %v6931 = vpop.f32.mrf.mxu0
        %v6932 = vadd.f32 %v6595, %v6931
        %v6933 = vpop.f32.mrf.mxu0
        %6934 = vmatprep.mubr.bf16.mxu0 0
        %6935 = vmatmul.mubr.bf16.gmra.mxu0 %v5978
        %v6936 = vpop.f32.mrf.mxu0
        %v6937 = vadd.f32 %v6600, %v6936
        %v6938 = vpop.f32.mrf.mxu0
        %v6939 = vpop.f32.mrf.mxu0
        %v6940 = vadd.f32 %v6603, %v6939
        %v6941 = vpop.f32.mrf.mxu0
        %6942 = vmatprep.mubr.bf16.mxu0 0
        %6943 = vmatmul.mubr.bf16.gmra.mxu0 %v5980
        %v6944 = vpop.f32.mrf.mxu0
        %v6945 = vadd.f32 %v6608, %v6944
        %v6946 = vpop.f32.mrf.mxu0
        %v6947 = vpop.f32.mrf.mxu0
        %v6948 = vadd.f32 %v6611, %v6947
        %v6949 = vpop.f32.mrf.mxu0
        %6950 = vmatprep.mubr.bf16.mxu0 0
        %6951 = vmatmul.mubr.bf16.gmra.mxu0 %v5982
        %v6952 = vpop.f32.mrf.mxu0
        %v6953 = vadd.f32 %v6616, %v6952
        %v6954 = vpop.f32.mrf.mxu0
        %v6955 = vpop.f32.mrf.mxu0
        %v6956 = vadd.f32 %v6619, %v6955
        %v6957 = vpop.f32.mrf.mxu0
        %6958 = vmatprep.mubr.bf16.mxu0 0
        %6959 = vmatmul.mubr.bf16.gmra.mxu0 %v5984
        %v6960 = vpop.f32.mrf.mxu0
        %v6961 = vadd.f32 %v6624, %v6960
        %v6962 = vpop.f32.mrf.mxu0
        %v6963 = vpop.f32.mrf.mxu0
        %v6964 = vadd.f32 %v6627, %v6963
        %v6965 = vpop.f32.mrf.mxu0
        %6966 = vmatprep.mubr.bf16.mxu0 0
        %6967 = vmatmul.mubr.bf16.gmra.mxu0 %v5986
        %v6968 = vpop.f32.mrf.mxu0
        %v6969 = vadd.f32 %v6632, %v6968
        %v6970 = vpop.f32.mrf.mxu0
        %v6971 = vpop.f32.mrf.mxu0
        %v6972 = vadd.f32 %v6635, %v6971
        %v6973 = vpop.f32.mrf.mxu0
        %6974 = vmatprep.mubr.bf16.mxu0 0
        %6975 = vmatmul.mubr.bf16.gmra.mxu0 %v5988
        %v6976 = vpop.f32.mrf.mxu0
        %v6977 = vadd.f32 %v6640, %v6976
        %v6978 = vpop.f32.mrf.mxu0
        %v6979 = vpop.f32.mrf.mxu0
        %v6980 = vadd.f32 %v6643, %v6979
        %v6981 = vpop.f32.mrf.mxu0
        %6982 = vmatprep.mubr.bf16.mxu0 0
        %6983 = vmatmul.mubr.bf16.gmra.mxu0 %v5990
        %v6984 = vpop.f32.mrf.mxu0
        %v6985 = vadd.f32 %v6648, %v6984
        %v6986 = vpop.f32.mrf.mxu0
        %v6987 = vpop.f32.mrf.mxu0
        %v6988 = vadd.f32 %v6651, %v6987
        %v6989 = vpop.f32.mrf.mxu0
        %6990 = vmatprep.mubr.bf16.mxu0 0
        %6991 = vmatmul.mubr.bf16.gmra.mxu0 %v5992
        %v6992 = vpop.f32.mrf.mxu0
        %v6993 = vadd.f32 %v6656, %v6992
        %v6994 = vpop.f32.mrf.mxu0
        %v6995 = vpop.f32.mrf.mxu0
        %v6996 = vadd.f32 %v6659, %v6995
        %v6997 = vpop.f32.mrf.mxu0
        %6998 = vmatprep.mubr.bf16.mxu0 0
        %6999 = vmatmul.mubr.bf16.gmra.mxu0 %v5994
        %v7000 = vpop.f32.mrf.mxu0
        %v7001 = vadd.f32 %v6664, %v7000
        %v7002 = vpop.f32.mrf.mxu0
        %v7003 = vpop.f32.mrf.mxu0
        %v7004 = vadd.f32 %v6667, %v7003
        %v7005 = vpop.f32.mrf.mxu0
        %7006 = vmatprep.mubr.bf16.mxu0 0
        %7007 = vmatmul.mubr.bf16.gmra.mxu0 %v5996
        %v7008 = vpop.f32.mrf.mxu0
        %v7009 = vadd.f32 %v6672, %v7008
        %v7010 = vpop.f32.mrf.mxu0
        %v7011 = vpop.f32.mrf.mxu0
        %v7012 = vadd.f32 %v6675, %v7011
        %v7013 = vpop.f32.mrf.mxu0
        %7014 = vmatprep.mubr.bf16.mxu0 0
        %7015 = vmatmul.mubr.bf16.gmra.mxu0 %v5998
        %v7016 = vpop.f32.mrf.mxu0
        %v7017 = vadd.f32 %v6680, %v7016
        %v7018 = vpop.f32.mrf.mxu0
        %v7019 = vpop.f32.mrf.mxu0
        %v7020 = vadd.f32 %v6683, %v7019
        %v7021 = vpop.f32.mrf.mxu0
        %7022 = vmatprep.mubr.bf16.mxu0 0
        %7023 = vmatmul.mubr.bf16.gmra.mxu0 %v6000
        %v7024 = vpop.f32.mrf.mxu0
        %v7025 = vadd.f32 %v6688, %v7024
        %v7026 = vpop.f32.mrf.mxu0
        %v7027 = vpop.f32.mrf.mxu0
        %v7028 = vadd.f32 %v6691, %v7027
        %v7029 = vpop.f32.mrf.mxu0
        %7030 = vmatprep.mubr.bf16.mxu0 0
        %7031 = vmatmul.mubr.bf16.gmra.mxu0 %v6002
        %v7032 = vpop.f32.mrf.mxu0
        %v7033 = vadd.f32 %v6696, %v7032
        %v7034 = vpop.f32.mrf.mxu0
        %v7035 = vpop.f32.mrf.mxu0
        %v7036 = vadd.f32 %v6699, %v7035
        %v7037 = vpop.f32.mrf.mxu0
        %7038 = vmatprep.mubr.bf16.mxu0 0
        %7039 = vmatmul.mubr.bf16.gmra.mxu0 %v6008
        %v7040 = vpop.f32.mrf.mxu0
        %v7041 = vadd.f32 %v6704, %v7040
        %v7042 = vpop.f32.mrf.mxu0
        %v7043 = vpop.f32.mrf.mxu0
        %v7044 = vadd.f32 %v6707, %v7043
        %v7045 = vpop.f32.mrf.mxu0
        %7046 = vmatprep.mubr.bf16.mxu0 0
        %7047 = vmatmul.mubr.bf16.gmra.mxu0 %v6010
        %v7048 = vpop.f32.mrf.mxu0
        %v7049 = vadd.f32 %v6712, %v7048
        %v7050 = vpop.f32.mrf.mxu0
        %v7051 = vpop.f32.mrf.mxu0
        %v7052 = vadd.f32 %v6715, %v7051
        %v7053 = vpop.f32.mrf.mxu0
        %7054 = vmatprep.mubr.bf16.mxu0 0
        %7055 = vmatmul.mubr.bf16.gmra.mxu0 %v6012
        %v7056 = vpop.f32.mrf.mxu0
        %v7057 = vadd.f32 %v6720, %v7056
        %v7058 = vpop.f32.mrf.mxu0
        %v7059 = vpop.f32.mrf.mxu0
        %v7060 = vadd.f32 %v6723, %v7059
        %v7061 = vpop.f32.mrf.mxu0
        %7062 = vmatprep.mubr.bf16.mxu0 0
        %7063 = vmatmul.mubr.bf16.gmra.mxu0 %v6014
        %v7064 = vpop.f32.mrf.mxu0
        %v7065 = vadd.f32 %v6728, %v7064
        %v7066 = vpop.f32.mrf.mxu0
        %v7067 = vpop.f32.mrf.mxu0
        %v7068 = vadd.f32 %v6731, %v7067
        %v7069 = vpop.f32.mrf.mxu0
        %7070 = vmatprep.mubr.bf16.mxu0 0
        %7071 = vmatmul.mubr.bf16.gmra.mxu0 %v6016
        %v7072 = vpop.f32.mrf.mxu0
        %v7073 = vadd.f32 %v6736, %v7072
        %v7074 = vpop.f32.mrf.mxu0
        %v7075 = vpop.f32.mrf.mxu0
        %v7076 = vadd.f32 %v6739, %v7075
        %v7077 = vpop.f32.mrf.mxu0
        %7078 = vmatprep.mubr.bf16.mxu0 0
        %7079 = vmatmul.mubr.bf16.gmra.mxu0 %v6018
        %v7080 = vpop.f32.mrf.mxu0
        %v7081 = vadd.f32 %v6744, %v7080
        %v7082 = vpop.f32.mrf.mxu0
        %v7083 = vpop.f32.mrf.mxu0
        %v7084 = vadd.f32 %v6747, %v7083
        %v7085 = vpop.f32.mrf.mxu0
        %7086 = vmatprep.mubr.bf16.mxu0 0
        %7087 = vmatmul.mubr.bf16.gmra.mxu0 %v6020
        %v7088 = vpop.f32.mrf.mxu0
        %v7089 = vadd.f32 %v6752, %v7088
        %v7090 = vpop.f32.mrf.mxu0
        %v7091 = vpop.f32.mrf.mxu0
        %v7092 = vadd.f32 %v6755, %v7091
        %v7093 = vpop.f32.mrf.mxu0
        %7094 = vmatprep.mubr.bf16.mxu0 0
        %7095 = vmatmul.mubr.bf16.gmra.mxu0 %v6022
        %v7096 = vpop.f32.mrf.mxu0
        %v7097 = vadd.f32 %v6760, %v7096
        %v7098 = vpop.f32.mrf.mxu0
        %v7099 = vpop.f32.mrf.mxu0
        %v7100 = vadd.f32 %v6763, %v7099
        %v7101 = vpop.f32.mrf.mxu0
        %7102 = vmatprep.mubr.bf16.mxu0 0
        %7103 = vmatmul.mubr.bf16.gmra.mxu0 %v6024
        %v7104 = vpop.f32.mrf.mxu0
        %v7105 = vadd.f32 %v6768, %v7104
        %v7106 = vpop.f32.mrf.mxu0
        %v7107 = vpop.f32.mrf.mxu0
        %v7108 = vadd.f32 %v6771, %v7107
        %v7109 = vpop.f32.mrf.mxu0
        %7110 = vmatprep.mubr.bf16.mxu0 0
        %7111 = vmatmul.mubr.bf16.gmra.mxu0 %v6026
        %v7112 = vpop.f32.mrf.mxu0
        %v7113 = vadd.f32 %v6776, %v7112
        %v7114 = vpop.f32.mrf.mxu0
        %v7115 = vpop.f32.mrf.mxu0
        %v7116 = vadd.f32 %v6779, %v7115
        %v7117 = vpop.f32.mrf.mxu0
        %7118 = vmatprep.mubr.bf16.mxu0 0
        %7119 = vmatmul.mubr.bf16.gmra.mxu0 %v6028
        %v7120 = vpop.f32.mrf.mxu0
        %v7121 = vadd.f32 %v6784, %v7120
        %v7122 = vpop.f32.mrf.mxu0
        %v7123 = vpop.f32.mrf.mxu0
        %v7124 = vadd.f32 %v6787, %v7123
        %v7125 = vpop.f32.mrf.mxu0
        %7126 = vmatprep.mubr.bf16.mxu0 0
        %7127 = vmatmul.mubr.bf16.gmra.mxu0 %v6030
        %v7128 = vpop.f32.mrf.mxu0
        %v7129 = vadd.f32 %v6792, %v7128
        %v7130 = vpop.f32.mrf.mxu0
        %v7131 = vpop.f32.mrf.mxu0
        %v7132 = vadd.f32 %v6795, %v7131
        %v7133 = vpop.f32.mrf.mxu0
        %7134 = vmatprep.mubr.bf16.mxu0 0
        %7135 = vmatmul.mubr.bf16.gmra.mxu0 %v6032
        %v7136 = vpop.f32.mrf.mxu0
        %v7137 = vadd.f32 %v6800, %v7136
        %v7138 = vpop.f32.mrf.mxu0
        %v7139 = vpop.f32.mrf.mxu0
        %v7140 = vadd.f32 %v6803, %v7139
        %v7141 = vpop.f32.mrf.mxu0
        %7142 = vmatprep.mubr.bf16.mxu0 0
        %7143 = vmatmul.mubr.bf16.gmra.mxu0 %v6034
        %v7144 = vpop.f32.mrf.mxu0
        %v7145 = vadd.f32 %v6808, %v7144
        %v7146 = vpop.f32.mrf.mxu0
        %v7147 = vpop.f32.mrf.mxu0
        %v7148 = vadd.f32 %v6811, %v7147
        %v7149 = vpop.f32.mrf.mxu0
        %7150 = vmatprep.mubr.bf16.mxu0 0
        %7151 = vmatmul.mubr.bf16.gmra.mxu0 %v6036
        %v7152 = vpop.f32.mrf.mxu0
        %v7153 = vadd.f32 %v6816, %v7152
        %v7154 = vpop.f32.mrf.mxu0
        %v7155 = vpop.f32.mrf.mxu0
        %v7156 = vadd.f32 %v6819, %v7155
        %v7157 = vpop.f32.mrf.mxu0
        %7158 = vmatprep.mubr.bf16.mxu0 0
        %7159 = vmatmul.mubr.bf16.gmra.mxu0 %v6038
        %v7160 = vpop.f32.mrf.mxu0
        %v7161 = vadd.f32 %v6824, %v7160
        %v7162 = vpop.f32.mrf.mxu0
        %v7163 = vpop.f32.mrf.mxu0
        %v7164 = vadd.f32 %v6827, %v7163
        %v7165 = vpop.f32.mrf.mxu0
        %7166 = vdwg.mxu0
        %v7231 = vrot.slane %v5972, 1
        %v7232 = vrot.slane %v5973, 1
        %v7233 = vsel %vm2534, %v7231, %v7232
        %v7234 = vrot.slane %v5974, 1
        %v7235 = vrot.slane %v5975, 1
        %v7236 = vsel %vm2534, %v7234, %v7235
        %v7237 = vrot.slane %v5976, 1
        %v7238 = vrot.slane %v5977, 1
        %v7239 = vsel %vm2534, %v7237, %v7238
        %v7240 = vrot.slane %v5978, 1
        %v7241 = vrot.slane %v5979, 1
        %v7242 = vsel %vm2534, %v7240, %v7241
        %v7243 = vrot.slane %v5980, 1
        %v7244 = vrot.slane %v5981, 1
        %v7245 = vsel %vm2534, %v7243, %v7244
        %v7246 = vrot.slane %v5982, 1
        %v7247 = vrot.slane %v5983, 1
        %v7248 = vsel %vm2534, %v7246, %v7247
        %v7249 = vrot.slane %v5984, 1
        %v7250 = vrot.slane %v5985, 1
        %v7251 = vsel %vm2534, %v7249, %v7250
        %v7252 = vrot.slane %v5986, 1
        %v7253 = vrot.slane %v5987, 1
        %v7254 = vsel %vm2534, %v7252, %v7253
        %v7255 = vrot.slane %v5988, 1
        %v7256 = vrot.slane %v5989, 1
        %v7257 = vsel %vm2534, %v7255, %v7256
        %v7258 = vrot.slane %v5990, 1
        %v7259 = vrot.slane %v5991, 1
        %v7260 = vsel %vm2534, %v7258, %v7259
        %v7261 = vrot.slane %v5992, 1
        %v7262 = vrot.slane %v5993, 1
        %v7263 = vsel %vm2534, %v7261, %v7262
        %v7264 = vrot.slane %v5994, 1
        %v7265 = vrot.slane %v5995, 1
        %v7266 = vsel %vm2534, %v7264, %v7265
        %v7267 = vrot.slane %v5996, 1
        %v7268 = vrot.slane %v5997, 1
        %v7269 = vsel %vm2534, %v7267, %v7268
        %v7270 = vrot.slane %v5998, 1
        %v7271 = vrot.slane %v5999, 1
        %v7272 = vsel %vm2534, %v7270, %v7271
        %v7273 = vrot.slane %v6000, 1
        %v7274 = vrot.slane %v6001, 1
        %v7275 = vsel %vm2534, %v7273, %v7274
        %v7276 = vrot.slane %v6002, 1
        %v7277 = vrot.slane %v6003, 1
        %v7278 = vsel %vm2534, %v7276, %v7277
        %v7279 = vrot.slane %v6008, 1
        %v7280 = vrot.slane %v6009, 1
        %v7281 = vsel %vm2534, %v7279, %v7280
        %v7282 = vrot.slane %v6010, 1
        %v7283 = vrot.slane %v6011, 1
        %v7284 = vsel %vm2534, %v7282, %v7283
        %v7285 = vrot.slane %v6012, 1
        %v7286 = vrot.slane %v6013, 1
        %v7287 = vsel %vm2534, %v7285, %v7286
        %v7288 = vrot.slane %v6014, 1
        %v7289 = vrot.slane %v6015, 1
        %v7290 = vsel %vm2534, %v7288, %v7289
        %v7291 = vrot.slane %v6016, 1
        %v7292 = vrot.slane %v6017, 1
        %v7293 = vsel %vm2534, %v7291, %v7292
        %v7294 = vrot.slane %v6018, 1
        %v7295 = vrot.slane %v6019, 1
        %v7296 = vsel %vm2534, %v7294, %v7295
        %v7297 = vrot.slane %v6020, 1
        %v7298 = vrot.slane %v6021, 1
        %v7299 = vsel %vm2534, %v7297, %v7298
        %v7300 = vrot.slane %v6022, 1
        %v7301 = vrot.slane %v6023, 1
        %v7302 = vsel %vm2534, %v7300, %v7301
        %v7303 = vrot.slane %v6024, 1
        %v7304 = vrot.slane %v6025, 1
        %v7305 = vsel %vm2534, %v7303, %v7304
        %v7306 = vrot.slane %v6026, 1
        %v7307 = vrot.slane %v6027, 1
        %v7308 = vsel %vm2534, %v7306, %v7307
        %v7309 = vrot.slane %v6028, 1
        %v7310 = vrot.slane %v6029, 1
        %v7311 = vsel %vm2534, %v7309, %v7310
        %v7312 = vrot.slane %v6030, 1
        %v7313 = vrot.slane %v6031, 1
        %v7314 = vsel %vm2534, %v7312, %v7313
        %v7315 = vrot.slane %v6032, 1
        %v7316 = vrot.slane %v6033, 1
        %v7317 = vsel %vm2534, %v7315, %v7316
        %v7318 = vrot.slane %v6034, 1
        %v7319 = vrot.slane %v6035, 1
        %v7320 = vsel %vm2534, %v7318, %v7319
        %v7321 = vrot.slane %v6036, 1
        %v7322 = vrot.slane %v6037, 1
        %v7323 = vsel %vm2534, %v7321, %v7322
        %v7324 = vrot.slane %v6038, 1
        %v7325 = vrot.slane %v6039, 1
        %v7326 = vsel %vm2534, %v7324, %v7325
        %s7359 = scalar_lea.vmem [#allocation9], 128
        %v7360 = vld [vmem:[%s7359] sm:$0xf]
        %v7361 = vld [vmem:[%s7359 + $0x4] sm:$0xf]
        %v7362 = vld [vmem:[%s7359 + $0x8] sm:$0xf]
        %v7363 = vld [vmem:[%s7359 + $0xc] sm:$0xf]
        %v7364 = vld [vmem:[%s7359 + $0x10] sm:$0xf]
        %v7365 = vld [vmem:[%s7359 + $0x14] sm:$0xf]
        %v7366 = vld [vmem:[%s7359 + $0x18] sm:$0xf]
        %v7367 = vld [vmem:[%s7359 + $0x1c] sm:$0xf]
        %v7368 = vld [vmem:[%s7359 + $0x20] sm:$0xf]
        %v7369 = vld [vmem:[%s7359 + $0x24] sm:$0xf]
        %v7370 = vld [vmem:[%s7359 + $0x28] sm:$0xf]
        %v7371 = vld [vmem:[%s7359 + $0x2c] sm:$0xf]
        %v7372 = vld [vmem:[%s7359 + $0x30] sm:$0xf]
        %v7373 = vld [vmem:[%s7359 + $0x34] sm:$0xf]
        %v7374 = vld [vmem:[%s7359 + $0x38] sm:$0xf]
        %v7375 = vld [vmem:[%s7359 + $0x3c] sm:$0xf]
        %v7392 = vunpack.c.l.b16 %v7360
        %v7393 = vunpack.c.l.b16 %v7361
        %v7394 = vunpack.c.l.b16 %v7362
        %v7395 = vunpack.c.l.b16 %v7363
        %v7396 = vunpack.c.l.b16 %v7364
        %v7397 = vunpack.c.l.b16 %v7365
        %v7398 = vunpack.c.l.b16 %v7366
        %v7399 = vunpack.c.l.b16 %v7367
        %v7400 = vunpack.c.l.b16 %v7368
        %v7401 = vunpack.c.l.b16 %v7369
        %v7402 = vunpack.c.l.b16 %v7370
        %v7403 = vunpack.c.l.b16 %v7371
        %v7404 = vunpack.c.l.b16 %v7372
        %v7405 = vunpack.c.l.b16 %v7373
        %v7406 = vunpack.c.l.b16 %v7374
        %v7407 = vunpack.c.l.b16 %v7375
        %v7408 = vpack.c.b16 %v7393, %v7392
        %v7409 = vpack.c.b16 %v7395, %v7394
        %v7410 = vpack.c.b16 %v7397, %v7396
        %v7411 = vpack.c.b16 %v7399, %v7398
        %v7412 = vpack.c.b16 %v7401, %v7400
        %v7413 = vpack.c.b16 %v7403, %v7402
        %v7414 = vpack.c.b16 %v7405, %v7404
        %v7415 = vpack.c.b16 %v7407, %v7406
        %7424 = vmatprep.subr.bf16.mxu0 0
        %7425 = vmatpush1.bf16.msra.mxu0 %v7415
        %7426 = vmatprep.subr.bf16.mxu0 0
        %7427 = vmatpush1.bf16.msra.mxu0 %v7414
        %7428 = vmatprep.subr.bf16.mxu0 0
        %7429 = vmatpush1.bf16.msra.mxu0 %v7413
        %7430 = vmatprep.subr.bf16.mxu0 0
        %7431 = vmatpush1.bf16.msra.mxu0 %v7412
        %7432 = vmatprep.subr.bf16.mxu0 0
        %7433 = vmatpush1.bf16.msra.mxu0 %v7411
        %7434 = vmatprep.subr.bf16.mxu0 0
        %7435 = vmatpush1.bf16.msra.mxu0 %v7410
        %7436 = vmatprep.subr.bf16.mxu0 0
        %7437 = vmatpush1.bf16.msra.mxu0 %v7409
        %7438 = vmatprep.subr.bf16.mxu0 0
        %7439 = vmatpush1.bf16.msra.mxu0 %v7408
        %7440 = vmatprep.subr.bf16.mxu0 0
        %7441 = vmatpush2.bf16.msra.mxu0 0
        %7442 = vmatprep.subr.bf16.mxu0 0
        %7443 = vmatpush2.bf16.msra.mxu0 0
        %7444 = vmatprep.subr.bf16.mxu0 0
        %7445 = vmatpush2.bf16.msra.mxu0 0
        %7446 = vmatprep.subr.bf16.mxu0 0
        %7447 = vmatpush2.bf16.msra.mxu0 0
        %7448 = vmatprep.subr.bf16.mxu0 0
        %7449 = vmatpush2.bf16.msra.mxu0 0
        %7450 = vmatprep.subr.bf16.mxu0 0
        %7451 = vmatpush2.bf16.msra.mxu0 0
        %7452 = vmatprep.subr.bf16.mxu0 0
        %7453 = vmatpush2.bf16.msra.mxu0 0
        %7454 = vmatprep.subr.bf16.mxu0 0
        %7455 = vmatpush2.bf16.msra.mxu0 0
        %7456 = vmatprep.mubr.bf16.mxu0 0
        %7457 = vmatmul.mubr.bf16.gmra.mxu0 %v7233
        %v7458 = vpop.f32.mrf.mxu0
        %v7459 = vadd.f32 0.0, %v7458
        %v7460 = vpop.f32.mrf.mxu0
        %v7461 = vpop.f32.mrf.mxu0
        %v7462 = vadd.f32 0.0, %v7461
        %v7463 = vpop.f32.mrf.mxu0
        %7464 = vmatprep.mubr.bf16.mxu0 0
        %7465 = vmatmul.mubr.bf16.gmra.mxu0 %v7236
        %v7466 = vpop.f32.mrf.mxu0
        %v7467 = vadd.f32 0.0, %v7466
        %v7468 = vpop.f32.mrf.mxu0
        %v7469 = vpop.f32.mrf.mxu0
        %v7470 = vadd.f32 0.0, %v7469
        %v7471 = vpop.f32.mrf.mxu0
        %7472 = vmatprep.mubr.bf16.mxu0 0
        %7473 = vmatmul.mubr.bf16.gmra.mxu0 %v7239
        %v7474 = vpop.f32.mrf.mxu0
        %v7475 = vadd.f32 0.0, %v7474
        %v7476 = vpop.f32.mrf.mxu0
        %v7477 = vpop.f32.mrf.mxu0
        %v7478 = vadd.f32 0.0, %v7477
        %v7479 = vpop.f32.mrf.mxu0
        %7480 = vmatprep.mubr.bf16.mxu0 0
        %7481 = vmatmul.mubr.bf16.gmra.mxu0 %v7242
        %v7482 = vpop.f32.mrf.mxu0
        %v7483 = vadd.f32 0.0, %v7482
        %v7484 = vpop.f32.mrf.mxu0
        %v7485 = vpop.f32.mrf.mxu0
        %v7486 = vadd.f32 0.0, %v7485
        %v7487 = vpop.f32.mrf.mxu0
        %7488 = vmatprep.mubr.bf16.mxu0 0
        %7489 = vmatmul.mubr.bf16.gmra.mxu0 %v7245
        %v7490 = vpop.f32.mrf.mxu0
        %v7491 = vadd.f32 0.0, %v7490
        %v7492 = vpop.f32.mrf.mxu0
        %v7493 = vpop.f32.mrf.mxu0
        %v7494 = vadd.f32 0.0, %v7493
        %v7495 = vpop.f32.mrf.mxu0
        %7496 = vmatprep.mubr.bf16.mxu0 0
        %7497 = vmatmul.mubr.bf16.gmra.mxu0 %v7248
        %v7498 = vpop.f32.mrf.mxu0
        %v7499 = vadd.f32 0.0, %v7498
        %v7500 = vpop.f32.mrf.mxu0
        %v7501 = vpop.f32.mrf.mxu0
        %v7502 = vadd.f32 0.0, %v7501
        %v7503 = vpop.f32.mrf.mxu0
        %7504 = vmatprep.mubr.bf16.mxu0 0
        %7505 = vmatmul.mubr.bf16.gmra.mxu0 %v7251
        %v7506 = vpop.f32.mrf.mxu0
        %v7507 = vadd.f32 0.0, %v7506
        %v7508 = vpop.f32.mrf.mxu0
        %v7509 = vpop.f32.mrf.mxu0
        %v7510 = vadd.f32 0.0, %v7509
        %v7511 = vpop.f32.mrf.mxu0
        %7512 = vmatprep.mubr.bf16.mxu0 0
        %7513 = vmatmul.mubr.bf16.gmra.mxu0 %v7254
        %v7514 = vpop.f32.mrf.mxu0
        %v7515 = vadd.f32 0.0, %v7514
        %v7516 = vpop.f32.mrf.mxu0
        %v7517 = vpop.f32.mrf.mxu0
        %v7518 = vadd.f32 0.0, %v7517
        %v7519 = vpop.f32.mrf.mxu0
        %7520 = vmatprep.mubr.bf16.mxu0 0
        %7521 = vmatmul.mubr.bf16.gmra.mxu0 %v7257
        %v7522 = vpop.f32.mrf.mxu0
        %v7523 = vadd.f32 0.0, %v7522
        %v7524 = vpop.f32.mrf.mxu0
        %v7525 = vpop.f32.mrf.mxu0
        %v7526 = vadd.f32 0.0, %v7525
        %v7527 = vpop.f32.mrf.mxu0
        %7528 = vmatprep.mubr.bf16.mxu0 0
        %7529 = vmatmul.mubr.bf16.gmra.mxu0 %v7260
        %v7530 = vpop.f32.mrf.mxu0
        %v7531 = vadd.f32 0.0, %v7530
        %v7532 = vpop.f32.mrf.mxu0
        %v7533 = vpop.f32.mrf.mxu0
        %v7534 = vadd.f32 0.0, %v7533
        %v7535 = vpop.f32.mrf.mxu0
        %7536 = vmatprep.mubr.bf16.mxu0 0
        %7537 = vmatmul.mubr.bf16.gmra.mxu0 %v7263
        %v7538 = vpop.f32.mrf.mxu0
        %v7539 = vadd.f32 0.0, %v7538
        %v7540 = vpop.f32.mrf.mxu0
        %v7541 = vpop.f32.mrf.mxu0
        %v7542 = vadd.f32 0.0, %v7541
        %v7543 = vpop.f32.mrf.mxu0
        %7544 = vmatprep.mubr.bf16.mxu0 0
        %7545 = vmatmul.mubr.bf16.gmra.mxu0 %v7266
        %v7546 = vpop.f32.mrf.mxu0
        %v7547 = vadd.f32 0.0, %v7546
        %v7548 = vpop.f32.mrf.mxu0
        %v7549 = vpop.f32.mrf.mxu0
        %v7550 = vadd.f32 0.0, %v7549
        %v7551 = vpop.f32.mrf.mxu0
        %7552 = vmatprep.mubr.bf16.mxu0 0
        %7553 = vmatmul.mubr.bf16.gmra.mxu0 %v7269
        %v7554 = vpop.f32.mrf.mxu0
        %v7555 = vadd.f32 0.0, %v7554
        %v7556 = vpop.f32.mrf.mxu0
        %v7557 = vpop.f32.mrf.mxu0
        %v7558 = vadd.f32 0.0, %v7557
        %v7559 = vpop.f32.mrf.mxu0
        %7560 = vmatprep.mubr.bf16.mxu0 0
        %7561 = vmatmul.mubr.bf16.gmra.mxu0 %v7272
        %v7562 = vpop.f32.mrf.mxu0
        %v7563 = vadd.f32 0.0, %v7562
        %v7564 = vpop.f32.mrf.mxu0
        %v7565 = vpop.f32.mrf.mxu0
        %v7566 = vadd.f32 0.0, %v7565
        %v7567 = vpop.f32.mrf.mxu0
        %7568 = vmatprep.mubr.bf16.mxu0 0
        %7569 = vmatmul.mubr.bf16.gmra.mxu0 %v7275
        %v7570 = vpop.f32.mrf.mxu0
        %v7571 = vadd.f32 0.0, %v7570
        %v7572 = vpop.f32.mrf.mxu0
        %v7573 = vpop.f32.mrf.mxu0
        %v7574 = vadd.f32 0.0, %v7573
        %v7575 = vpop.f32.mrf.mxu0
        %7576 = vmatprep.mubr.bf16.mxu0 0
        %7577 = vmatmul.mubr.bf16.gmra.mxu0 %v7278
        %v7578 = vpop.f32.mrf.mxu0
        %v7579 = vadd.f32 0.0, %v7578
        %v7580 = vpop.f32.mrf.mxu0
        %v7581 = vpop.f32.mrf.mxu0
        %v7582 = vadd.f32 0.0, %v7581
        %v7583 = vpop.f32.mrf.mxu0
        %7584 = vmatprep.mubr.bf16.mxu0 0
        %7585 = vmatmul.mubr.bf16.gmra.mxu0 %v7281
        %v7586 = vpop.f32.mrf.mxu0
        %v7587 = vadd.f32 0.0, %v7586
        %v7588 = vpop.f32.mrf.mxu0
        %v7589 = vpop.f32.mrf.mxu0
        %v7590 = vadd.f32 0.0, %v7589
        %v7591 = vpop.f32.mrf.mxu0
        %7592 = vmatprep.mubr.bf16.mxu0 0
        %7593 = vmatmul.mubr.bf16.gmra.mxu0 %v7284
        %v7594 = vpop.f32.mrf.mxu0
        %v7595 = vadd.f32 0.0, %v7594
        %v7596 = vpop.f32.mrf.mxu0
        %v7597 = vpop.f32.mrf.mxu0
        %v7598 = vadd.f32 0.0, %v7597
        %v7599 = vpop.f32.mrf.mxu0
        %7600 = vmatprep.mubr.bf16.mxu0 0
        %7601 = vmatmul.mubr.bf16.gmra.mxu0 %v7287
        %v7602 = vpop.f32.mrf.mxu0
        %v7603 = vadd.f32 0.0, %v7602
        %v7604 = vpop.f32.mrf.mxu0
        %v7605 = vpop.f32.mrf.mxu0
        %v7606 = vadd.f32 0.0, %v7605
        %v7607 = vpop.f32.mrf.mxu0
        %7608 = vmatprep.mubr.bf16.mxu0 0
        %7609 = vmatmul.mubr.bf16.gmra.mxu0 %v7290
        %v7610 = vpop.f32.mrf.mxu0
        %v7611 = vadd.f32 0.0, %v7610
        %v7612 = vpop.f32.mrf.mxu0
        %v7613 = vpop.f32.mrf.mxu0
        %v7614 = vadd.f32 0.0, %v7613
        %v7615 = vpop.f32.mrf.mxu0
        %7616 = vmatprep.mubr.bf16.mxu0 0
        %7617 = vmatmul.mubr.bf16.gmra.mxu0 %v7293
        %v7618 = vpop.f32.mrf.mxu0
        %v7619 = vadd.f32 0.0, %v7618
        %v7620 = vpop.f32.mrf.mxu0
        %v7621 = vpop.f32.mrf.mxu0
        %v7622 = vadd.f32 0.0, %v7621
        %v7623 = vpop.f32.mrf.mxu0
        %7624 = vmatprep.mubr.bf16.mxu0 0
        %7625 = vmatmul.mubr.bf16.gmra.mxu0 %v7296
        %v7626 = vpop.f32.mrf.mxu0
        %v7627 = vadd.f32 0.0, %v7626
        %v7628 = vpop.f32.mrf.mxu0
        %v7629 = vpop.f32.mrf.mxu0
        %v7630 = vadd.f32 0.0, %v7629
        %v7631 = vpop.f32.mrf.mxu0
        %7632 = vmatprep.mubr.bf16.mxu0 0
        %7633 = vmatmul.mubr.bf16.gmra.mxu0 %v7299
        %v7634 = vpop.f32.mrf.mxu0
        %v7635 = vadd.f32 0.0, %v7634
        %v7636 = vpop.f32.mrf.mxu0
        %v7637 = vpop.f32.mrf.mxu0
        %v7638 = vadd.f32 0.0, %v7637
        %v7639 = vpop.f32.mrf.mxu0
        %7640 = vmatprep.mubr.bf16.mxu0 0
        %7641 = vmatmul.mubr.bf16.gmra.mxu0 %v7302
        %v7642 = vpop.f32.mrf.mxu0
        %v7643 = vadd.f32 0.0, %v7642
        %v7644 = vpop.f32.mrf.mxu0
        %v7645 = vpop.f32.mrf.mxu0
        %v7646 = vadd.f32 0.0, %v7645
        %v7647 = vpop.f32.mrf.mxu0
        %7648 = vmatprep.mubr.bf16.mxu0 0
        %7649 = vmatmul.mubr.bf16.gmra.mxu0 %v7305
        %v7650 = vpop.f32.mrf.mxu0
        %v7651 = vadd.f32 0.0, %v7650
        %v7652 = vpop.f32.mrf.mxu0
        %v7653 = vpop.f32.mrf.mxu0
        %v7654 = vadd.f32 0.0, %v7653
        %v7655 = vpop.f32.mrf.mxu0
        %7656 = vmatprep.mubr.bf16.mxu0 0
        %7657 = vmatmul.mubr.bf16.gmra.mxu0 %v7308
        %v7658 = vpop.f32.mrf.mxu0
        %v7659 = vadd.f32 0.0, %v7658
        %v7660 = vpop.f32.mrf.mxu0
        %v7661 = vpop.f32.mrf.mxu0
        %v7662 = vadd.f32 0.0, %v7661
        %v7663 = vpop.f32.mrf.mxu0
        %7664 = vmatprep.mubr.bf16.mxu0 0
        %7665 = vmatmul.mubr.bf16.gmra.mxu0 %v7311
        %v7666 = vpop.f32.mrf.mxu0
        %v7667 = vadd.f32 0.0, %v7666
        %v7668 = vpop.f32.mrf.mxu0
        %v7669 = vpop.f32.mrf.mxu0
        %v7670 = vadd.f32 0.0, %v7669
        %v7671 = vpop.f32.mrf.mxu0
        %7672 = vmatprep.mubr.bf16.mxu0 0
        %7673 = vmatmul.mubr.bf16.gmra.mxu0 %v7314
        %v7674 = vpop.f32.mrf.mxu0
        %v7675 = vadd.f32 0.0, %v7674
        %v7676 = vpop.f32.mrf.mxu0
        %v7677 = vpop.f32.mrf.mxu0
        %v7678 = vadd.f32 0.0, %v7677
        %v7679 = vpop.f32.mrf.mxu0
        %7680 = vmatprep.mubr.bf16.mxu0 0
        %7681 = vmatmul.mubr.bf16.gmra.mxu0 %v7317
        %v7682 = vpop.f32.mrf.mxu0
        %v7683 = vadd.f32 0.0, %v7682
        %v7684 = vpop.f32.mrf.mxu0
        %v7685 = vpop.f32.mrf.mxu0
        %v7686 = vadd.f32 0.0, %v7685
        %v7687 = vpop.f32.mrf.mxu0
        %7688 = vmatprep.mubr.bf16.mxu0 0
        %7689 = vmatmul.mubr.bf16.gmra.mxu0 %v7320
        %v7690 = vpop.f32.mrf.mxu0
        %v7691 = vadd.f32 0.0, %v7690
        %v7692 = vpop.f32.mrf.mxu0
        %v7693 = vpop.f32.mrf.mxu0
        %v7694 = vadd.f32 0.0, %v7693
        %v7695 = vpop.f32.mrf.mxu0
        %7696 = vmatprep.mubr.bf16.mxu0 0
        %7697 = vmatmul.mubr.bf16.gmra.mxu0 %v7323
        %v7698 = vpop.f32.mrf.mxu0
        %v7699 = vadd.f32 0.0, %v7698
        %v7700 = vpop.f32.mrf.mxu0
        %v7701 = vpop.f32.mrf.mxu0
        %v7702 = vadd.f32 0.0, %v7701
        %v7703 = vpop.f32.mrf.mxu0
        %7704 = vmatprep.mubr.bf16.mxu0 0
        %7705 = vmatmul.mubr.bf16.gmra.mxu0 %v7326
        %v7706 = vpop.f32.mrf.mxu0
        %v7707 = vadd.f32 0.0, %v7706
        %v7708 = vpop.f32.mrf.mxu0
        %v7709 = vpop.f32.mrf.mxu0
        %v7710 = vadd.f32 0.0, %v7709
        %v7711 = vpop.f32.mrf.mxu0
        %7712 = vdwg.mxu0
        %v7713 = vadd.f32 %v6913, %v7459
        %v7714 = vadd.f32 %v6916, %v7462
        %v7715 = vadd.f32 %v6921, %v7467
        %v7716 = vadd.f32 %v6924, %v7470
        %v7717 = vadd.f32 %v6929, %v7475
        %v7718 = vadd.f32 %v6932, %v7478
        %v7719 = vadd.f32 %v6937, %v7483
        %v7720 = vadd.f32 %v6940, %v7486
        %v7721 = vadd.f32 %v6945, %v7491
        %v7722 = vadd.f32 %v6948, %v7494
        %v7723 = vadd.f32 %v6953, %v7499
        %v7724 = vadd.f32 %v6956, %v7502
        %v7725 = vadd.f32 %v6961, %v7507
        %v7726 = vadd.f32 %v6964, %v7510
        %v7727 = vadd.f32 %v6969, %v7515
        %v7728 = vadd.f32 %v6972, %v7518
        %v7729 = vadd.f32 %v6977, %v7523
        %v7730 = vadd.f32 %v6980, %v7526
        %v7731 = vadd.f32 %v6985, %v7531
        %v7732 = vadd.f32 %v6988, %v7534
        %v7733 = vadd.f32 %v6993, %v7539
        %v7734 = vadd.f32 %v6996, %v7542
        %v7735 = vadd.f32 %v7001, %v7547
        %v7736 = vadd.f32 %v7004, %v7550
        %v7737 = vadd.f32 %v7009, %v7555
        %v7738 = vadd.f32 %v7012, %v7558
        %v7739 = vadd.f32 %v7017, %v7563
        %v7740 = vadd.f32 %v7020, %v7566
        %v7741 = vadd.f32 %v7025, %v7571
        %v7742 = vadd.f32 %v7028, %v7574
        %v7743 = vadd.f32 %v7033, %v7579
        %v7744 = vadd.f32 %v7036, %v7582
        %v7745 = vadd.f32 %v7041, %v7587
        %v7746 = vadd.f32 %v7044, %v7590
        %v7747 = vadd.f32 %v7049, %v7595
        %v7748 = vadd.f32 %v7052, %v7598
        %v7749 = vadd.f32 %v7057, %v7603
        %v7750 = vadd.f32 %v7060, %v7606
        %v7751 = vadd.f32 %v7065, %v7611
        %v7752 = vadd.f32 %v7068, %v7614
        %v7753 = vadd.f32 %v7073, %v7619
        %v7754 = vadd.f32 %v7076, %v7622
        %v7755 = vadd.f32 %v7081, %v7627
        %v7756 = vadd.f32 %v7084, %v7630
        %v7757 = vadd.f32 %v7089, %v7635
        %v7758 = vadd.f32 %v7092, %v7638
        %v7759 = vadd.f32 %v7097, %v7643
        %v7760 = vadd.f32 %v7100, %v7646
        %v7761 = vadd.f32 %v7105, %v7651
        %v7762 = vadd.f32 %v7108, %v7654
        %v7763 = vadd.f32 %v7113, %v7659
        %v7764 = vadd.f32 %v7116, %v7662
        %v7765 = vadd.f32 %v7121, %v7667
        %v7766 = vadd.f32 %v7124, %v7670
        %v7767 = vadd.f32 %v7129, %v7675
        %v7768 = vadd.f32 %v7132, %v7678
        %v7769 = vadd.f32 %v7137, %v7683
        %v7770 = vadd.f32 %v7140, %v7686
        %v7771 = vadd.f32 %v7145, %v7691
        %v7772 = vadd.f32 %v7148, %v7694
        %v7773 = vadd.f32 %v7153, %v7699
        %v7774 = vadd.f32 %v7156, %v7702
        %v7775 = vadd.f32 %v7161, %v7707
        %v7776 = vadd.f32 %v7164, %v7710
        %s7777 = scalar_lea.vmem [#allocation9], 192
        %v7778 = vld [vmem:[%s7777] sm:$0xf]
        %v7779 = vld [vmem:[%s7777 + $0x4] sm:$0xf]
        %v7780 = vld [vmem:[%s7777 + $0x8] sm:$0xf]
        %v7781 = vld [vmem:[%s7777 + $0xc] sm:$0xf]
        %v7782 = vld [vmem:[%s7777 + $0x10] sm:$0xf]
        %v7783 = vld [vmem:[%s7777 + $0x14] sm:$0xf]
        %v7784 = vld [vmem:[%s7777 + $0x18] sm:$0xf]
        %v7785 = vld [vmem:[%s7777 + $0x1c] sm:$0xf]
        %v7786 = vld [vmem:[%s7777 + $0x20] sm:$0xf]
        %v7787 = vld [vmem:[%s7777 + $0x24] sm:$0xf]
        %v7788 = vld [vmem:[%s7777 + $0x28] sm:$0xf]
        %v7789 = vld [vmem:[%s7777 + $0x2c] sm:$0xf]
        %v7790 = vld [vmem:[%s7777 + $0x30] sm:$0xf]
        %v7791 = vld [vmem:[%s7777 + $0x34] sm:$0xf]
        %v7792 = vld [vmem:[%s7777 + $0x38] sm:$0xf]
        %v7793 = vld [vmem:[%s7777 + $0x3c] sm:$0xf]
        %v7810 = vunpack.c.l.b16 %v7778
        %v7811 = vunpack.c.l.b16 %v7779
        %v7812 = vunpack.c.l.b16 %v7780
        %v7813 = vunpack.c.l.b16 %v7781
        %v7814 = vunpack.c.l.b16 %v7782
        %v7815 = vunpack.c.l.b16 %v7783
        %v7816 = vunpack.c.l.b16 %v7784
        %v7817 = vunpack.c.l.b16 %v7785
        %v7818 = vunpack.c.l.b16 %v7786
        %v7819 = vunpack.c.l.b16 %v7787
        %v7820 = vunpack.c.l.b16 %v7788
        %v7821 = vunpack.c.l.b16 %v7789
        %v7822 = vunpack.c.l.b16 %v7790
        %v7823 = vunpack.c.l.b16 %v7791
        %v7824 = vunpack.c.l.b16 %v7792
        %v7825 = vunpack.c.l.b16 %v7793
        %v7826 = vpack.c.b16 %v7811, %v7810
        %v7827 = vpack.c.b16 %v7813, %v7812
        %v7828 = vpack.c.b16 %v7815, %v7814
        %v7829 = vpack.c.b16 %v7817, %v7816
        %v7830 = vpack.c.b16 %v7819, %v7818
        %v7831 = vpack.c.b16 %v7821, %v7820
        %v7832 = vpack.c.b16 %v7823, %v7822
        %v7833 = vpack.c.b16 %v7825, %v7824
        %7842 = vmatprep.subr.bf16.mxu0 0
        %7843 = vmatpush1.bf16.msra.mxu0 %v7833
        %7844 = vmatprep.subr.bf16.mxu0 0
        %7845 = vmatpush1.bf16.msra.mxu0 %v7832
        %7846 = vmatprep.subr.bf16.mxu0 0
        %7847 = vmatpush1.bf16.msra.mxu0 %v7831
        %7848 = vmatprep.subr.bf16.mxu0 0
        %7849 = vmatpush1.bf16.msra.mxu0 %v7830
        %7850 = vmatprep.subr.bf16.mxu0 0
        %7851 = vmatpush1.bf16.msra.mxu0 %v7829
        %7852 = vmatprep.subr.bf16.mxu0 0
        %7853 = vmatpush1.bf16.msra.mxu0 %v7828
        %7854 = vmatprep.subr.bf16.mxu0 0
        %7855 = vmatpush1.bf16.msra.mxu0 %v7827
        %7856 = vmatprep.subr.bf16.mxu0 0
        %7857 = vmatpush1.bf16.msra.mxu0 %v7826
        %7858 = vmatprep.subr.bf16.mxu0 0
        %7859 = vmatpush2.bf16.msra.mxu0 0
        %7860 = vmatprep.subr.bf16.mxu0 0
        %7861 = vmatpush2.bf16.msra.mxu0 0
        %7862 = vmatprep.subr.bf16.mxu0 0
        %7863 = vmatpush2.bf16.msra.mxu0 0
        %7864 = vmatprep.subr.bf16.mxu0 0
        %7865 = vmatpush2.bf16.msra.mxu0 0
        %7866 = vmatprep.subr.bf16.mxu0 0
        %7867 = vmatpush2.bf16.msra.mxu0 0
        %7868 = vmatprep.subr.bf16.mxu0 0
        %7869 = vmatpush2.bf16.msra.mxu0 0
        %7870 = vmatprep.subr.bf16.mxu0 0
        %7871 = vmatpush2.bf16.msra.mxu0 0
        %7872 = vmatprep.subr.bf16.mxu0 0
        %7873 = vmatpush2.bf16.msra.mxu0 0
        %7874 = vmatprep.mubr.bf16.mxu0 0
        %7875 = vmatmul.mubr.bf16.gmra.mxu0 %v5974
        %v7876 = vpop.f32.mrf.mxu0
        %v7877 = vadd.f32 0.0, %v7876
        %v7878 = vpop.f32.mrf.mxu0
        %v7879 = vpop.f32.mrf.mxu0
        %v7880 = vadd.f32 0.0, %v7879
        %v7881 = vpop.f32.mrf.mxu0
        %7882 = vmatprep.mubr.bf16.mxu0 0
        %7883 = vmatmul.mubr.bf16.gmra.mxu0 %v5976
        %v7884 = vpop.f32.mrf.mxu0
        %v7885 = vadd.f32 0.0, %v7884
        %v7886 = vpop.f32.mrf.mxu0
        %v7887 = vpop.f32.mrf.mxu0
        %v7888 = vadd.f32 0.0, %v7887
        %v7889 = vpop.f32.mrf.mxu0
        %7890 = vmatprep.mubr.bf16.mxu0 0
        %7891 = vmatmul.mubr.bf16.gmra.mxu0 %v5978
        %v7892 = vpop.f32.mrf.mxu0
        %v7893 = vadd.f32 0.0, %v7892
        %v7894 = vpop.f32.mrf.mxu0
        %v7895 = vpop.f32.mrf.mxu0
        %v7896 = vadd.f32 0.0, %v7895
        %v7897 = vpop.f32.mrf.mxu0
        %7898 = vmatprep.mubr.bf16.mxu0 0
        %7899 = vmatmul.mubr.bf16.gmra.mxu0 %v5980
        %v7900 = vpop.f32.mrf.mxu0
        %v7901 = vadd.f32 0.0, %v7900
        %v7902 = vpop.f32.mrf.mxu0
        %v7903 = vpop.f32.mrf.mxu0
        %v7904 = vadd.f32 0.0, %v7903
        %v7905 = vpop.f32.mrf.mxu0
        %7906 = vmatprep.mubr.bf16.mxu0 0
        %7907 = vmatmul.mubr.bf16.gmra.mxu0 %v5982
        %v7908 = vpop.f32.mrf.mxu0
        %v7909 = vadd.f32 0.0, %v7908
        %v7910 = vpop.f32.mrf.mxu0
        %v7911 = vpop.f32.mrf.mxu0
        %v7912 = vadd.f32 0.0, %v7911
        %v7913 = vpop.f32.mrf.mxu0
        %7914 = vmatprep.mubr.bf16.mxu0 0
        %7915 = vmatmul.mubr.bf16.gmra.mxu0 %v5984
        %v7916 = vpop.f32.mrf.mxu0
        %v7917 = vadd.f32 0.0, %v7916
        %v7918 = vpop.f32.mrf.mxu0
        %v7919 = vpop.f32.mrf.mxu0
        %v7920 = vadd.f32 0.0, %v7919
        %v7921 = vpop.f32.mrf.mxu0
        %7922 = vmatprep.mubr.bf16.mxu0 0
        %7923 = vmatmul.mubr.bf16.gmra.mxu0 %v5986
        %v7924 = vpop.f32.mrf.mxu0
        %v7925 = vadd.f32 0.0, %v7924
        %v7926 = vpop.f32.mrf.mxu0
        %v7927 = vpop.f32.mrf.mxu0
        %v7928 = vadd.f32 0.0, %v7927
        %v7929 = vpop.f32.mrf.mxu0
        %7930 = vmatprep.mubr.bf16.mxu0 0
        %7931 = vmatmul.mubr.bf16.gmra.mxu0 %v5988
        %v7932 = vpop.f32.mrf.mxu0
        %v7933 = vadd.f32 0.0, %v7932
        %v7934 = vpop.f32.mrf.mxu0
        %v7935 = vpop.f32.mrf.mxu0
        %v7936 = vadd.f32 0.0, %v7935
        %v7937 = vpop.f32.mrf.mxu0
        %7938 = vmatprep.mubr.bf16.mxu0 0
        %7939 = vmatmul.mubr.bf16.gmra.mxu0 %v5990
        %v7940 = vpop.f32.mrf.mxu0
        %v7941 = vadd.f32 0.0, %v7940
        %v7942 = vpop.f32.mrf.mxu0
        %v7943 = vpop.f32.mrf.mxu0
        %v7944 = vadd.f32 0.0, %v7943
        %v7945 = vpop.f32.mrf.mxu0
        %7946 = vmatprep.mubr.bf16.mxu0 0
        %7947 = vmatmul.mubr.bf16.gmra.mxu0 %v5992
        %v7948 = vpop.f32.mrf.mxu0
        %v7949 = vadd.f32 0.0, %v7948
        %v7950 = vpop.f32.mrf.mxu0
        %v7951 = vpop.f32.mrf.mxu0
        %v7952 = vadd.f32 0.0, %v7951
        %v7953 = vpop.f32.mrf.mxu0
        %7954 = vmatprep.mubr.bf16.mxu0 0
        %7955 = vmatmul.mubr.bf16.gmra.mxu0 %v5994
        %v7956 = vpop.f32.mrf.mxu0
        %v7957 = vadd.f32 0.0, %v7956
        %v7958 = vpop.f32.mrf.mxu0
        %v7959 = vpop.f32.mrf.mxu0
        %v7960 = vadd.f32 0.0, %v7959
        %v7961 = vpop.f32.mrf.mxu0
        %7962 = vmatprep.mubr.bf16.mxu0 0
        %7963 = vmatmul.mubr.bf16.gmra.mxu0 %v5996
        %v7964 = vpop.f32.mrf.mxu0
        %v7965 = vadd.f32 0.0, %v7964
        %v7966 = vpop.f32.mrf.mxu0
        %v7967 = vpop.f32.mrf.mxu0
        %v7968 = vadd.f32 0.0, %v7967
        %v7969 = vpop.f32.mrf.mxu0
        %7970 = vmatprep.mubr.bf16.mxu0 0
        %7971 = vmatmul.mubr.bf16.gmra.mxu0 %v5998
        %v7972 = vpop.f32.mrf.mxu0
        %v7973 = vadd.f32 0.0, %v7972
        %v7974 = vpop.f32.mrf.mxu0
        %v7975 = vpop.f32.mrf.mxu0
        %v7976 = vadd.f32 0.0, %v7975
        %v7977 = vpop.f32.mrf.mxu0
        %7978 = vmatprep.mubr.bf16.mxu0 0
        %7979 = vmatmul.mubr.bf16.gmra.mxu0 %v6000
        %v7980 = vpop.f32.mrf.mxu0
        %v7981 = vadd.f32 0.0, %v7980
        %v7982 = vpop.f32.mrf.mxu0
        %v7983 = vpop.f32.mrf.mxu0
        %v7984 = vadd.f32 0.0, %v7983
        %v7985 = vpop.f32.mrf.mxu0
        %7986 = vmatprep.mubr.bf16.mxu0 0
        %7987 = vmatmul.mubr.bf16.gmra.mxu0 %v6002
        %v7988 = vpop.f32.mrf.mxu0
        %v7989 = vadd.f32 0.0, %v7988
        %v7990 = vpop.f32.mrf.mxu0
        %v7991 = vpop.f32.mrf.mxu0
        %v7992 = vadd.f32 0.0, %v7991
        %v7993 = vpop.f32.mrf.mxu0
        %7994 = vmatprep.mubr.bf16.mxu0 0
        %7995 = vmatmul.mubr.bf16.gmra.mxu0 %v6004
        %v7996 = vpop.f32.mrf.mxu0
        %v7997 = vadd.f32 0.0, %v7996
        %v7998 = vpop.f32.mrf.mxu0
        %v7999 = vpop.f32.mrf.mxu0
        %v8000 = vadd.f32 0.0, %v7999
        %v8001 = vpop.f32.mrf.mxu0
        %8002 = vmatprep.mubr.bf16.mxu0 0
        %8003 = vmatmul.mubr.bf16.gmra.mxu0 %v6010
        %v8004 = vpop.f32.mrf.mxu0
        %v8005 = vadd.f32 0.0, %v8004
        %v8006 = vpop.f32.mrf.mxu0
        %v8007 = vpop.f32.mrf.mxu0
        %v8008 = vadd.f32 0.0, %v8007
        %v8009 = vpop.f32.mrf.mxu0
        %8010 = vmatprep.mubr.bf16.mxu0 0
        %8011 = vmatmul.mubr.bf16.gmra.mxu0 %v6012
        %v8012 = vpop.f32.mrf.mxu0
        %v8013 = vadd.f32 0.0, %v8012
        %v8014 = vpop.f32.mrf.mxu0
        %v8015 = vpop.f32.mrf.mxu0
        %v8016 = vadd.f32 0.0, %v8015
        %v8017 = vpop.f32.mrf.mxu0
        %8018 = vmatprep.mubr.bf16.mxu0 0
        %8019 = vmatmul.mubr.bf16.gmra.mxu0 %v6014
        %v8020 = vpop.f32.mrf.mxu0
        %v8021 = vadd.f32 0.0, %v8020
        %v8022 = vpop.f32.mrf.mxu0
        %v8023 = vpop.f32.mrf.mxu0
        %v8024 = vadd.f32 0.0, %v8023
        %v8025 = vpop.f32.mrf.mxu0
        %8026 = vmatprep.mubr.bf16.mxu0 0
        %8027 = vmatmul.mubr.bf16.gmra.mxu0 %v6016
        %v8028 = vpop.f32.mrf.mxu0
        %v8029 = vadd.f32 0.0, %v8028
        %v8030 = vpop.f32.mrf.mxu0
        %v8031 = vpop.f32.mrf.mxu0
        %v8032 = vadd.f32 0.0, %v8031
        %v8033 = vpop.f32.mrf.mxu0
        %8034 = vmatprep.mubr.bf16.mxu0 0
        %8035 = vmatmul.mubr.bf16.gmra.mxu0 %v6018
        %v8036 = vpop.f32.mrf.mxu0
        %v8037 = vadd.f32 0.0, %v8036
        %v8038 = vpop.f32.mrf.mxu0
        %v8039 = vpop.f32.mrf.mxu0
        %v8040 = vadd.f32 0.0, %v8039
        %v8041 = vpop.f32.mrf.mxu0
        %8042 = vmatprep.mubr.bf16.mxu0 0
        %8043 = vmatmul.mubr.bf16.gmra.mxu0 %v6020
        %v8044 = vpop.f32.mrf.mxu0
        %v8045 = vadd.f32 0.0, %v8044
        %v8046 = vpop.f32.mrf.mxu0
        %v8047 = vpop.f32.mrf.mxu0
        %v8048 = vadd.f32 0.0, %v8047
        %v8049 = vpop.f32.mrf.mxu0
        %8050 = vmatprep.mubr.bf16.mxu0 0
        %8051 = vmatmul.mubr.bf16.gmra.mxu0 %v6022
        %v8052 = vpop.f32.mrf.mxu0
        %v8053 = vadd.f32 0.0, %v8052
        %v8054 = vpop.f32.mrf.mxu0
        %v8055 = vpop.f32.mrf.mxu0
        %v8056 = vadd.f32 0.0, %v8055
        %v8057 = vpop.f32.mrf.mxu0
        %8058 = vmatprep.mubr.bf16.mxu0 0
        %8059 = vmatmul.mubr.bf16.gmra.mxu0 %v6024
        %v8060 = vpop.f32.mrf.mxu0
        %v8061 = vadd.f32 0.0, %v8060
        %v8062 = vpop.f32.mrf.mxu0
        %v8063 = vpop.f32.mrf.mxu0
        %v8064 = vadd.f32 0.0, %v8063
        %v8065 = vpop.f32.mrf.mxu0
        %8066 = vmatprep.mubr.bf16.mxu0 0
        %8067 = vmatmul.mubr.bf16.gmra.mxu0 %v6026
        %v8068 = vpop.f32.mrf.mxu0
        %v8069 = vadd.f32 0.0, %v8068
        %v8070 = vpop.f32.mrf.mxu0
        %v8071 = vpop.f32.mrf.mxu0
        %v8072 = vadd.f32 0.0, %v8071
        %v8073 = vpop.f32.mrf.mxu0
        %8074 = vmatprep.mubr.bf16.mxu0 0
        %8075 = vmatmul.mubr.bf16.gmra.mxu0 %v6028
        %v8076 = vpop.f32.mrf.mxu0
        %v8077 = vadd.f32 0.0, %v8076
        %v8078 = vpop.f32.mrf.mxu0
        %v8079 = vpop.f32.mrf.mxu0
        %v8080 = vadd.f32 0.0, %v8079
        %v8081 = vpop.f32.mrf.mxu0
        %8082 = vmatprep.mubr.bf16.mxu0 0
        %8083 = vmatmul.mubr.bf16.gmra.mxu0 %v6030
        %v8084 = vpop.f32.mrf.mxu0
        %v8085 = vadd.f32 0.0, %v8084
        %v8086 = vpop.f32.mrf.mxu0
        %v8087 = vpop.f32.mrf.mxu0
        %v8088 = vadd.f32 0.0, %v8087
        %v8089 = vpop.f32.mrf.mxu0
        %8090 = vmatprep.mubr.bf16.mxu0 0
        %8091 = vmatmul.mubr.bf16.gmra.mxu0 %v6032
        %v8092 = vpop.f32.mrf.mxu0
        %v8093 = vadd.f32 0.0, %v8092
        %v8094 = vpop.f32.mrf.mxu0
        %v8095 = vpop.f32.mrf.mxu0
        %v8096 = vadd.f32 0.0, %v8095
        %v8097 = vpop.f32.mrf.mxu0
        %8098 = vmatprep.mubr.bf16.mxu0 0
        %8099 = vmatmul.mubr.bf16.gmra.mxu0 %v6034
        %v8100 = vpop.f32.mrf.mxu0
        %v8101 = vadd.f32 0.0, %v8100
        %v8102 = vpop.f32.mrf.mxu0
        %v8103 = vpop.f32.mrf.mxu0
        %v8104 = vadd.f32 0.0, %v8103
        %v8105 = vpop.f32.mrf.mxu0
        %8106 = vmatprep.mubr.bf16.mxu0 0
        %8107 = vmatmul.mubr.bf16.gmra.mxu0 %v6036
        %v8108 = vpop.f32.mrf.mxu0
        %v8109 = vadd.f32 0.0, %v8108
        %v8110 = vpop.f32.mrf.mxu0
        %v8111 = vpop.f32.mrf.mxu0
        %v8112 = vadd.f32 0.0, %v8111
        %v8113 = vpop.f32.mrf.mxu0
        %8114 = vmatprep.mubr.bf16.mxu0 0
        %8115 = vmatmul.mubr.bf16.gmra.mxu0 %v6038
        %v8116 = vpop.f32.mrf.mxu0
        %v8117 = vadd.f32 0.0, %v8116
        %v8118 = vpop.f32.mrf.mxu0
        %v8119 = vpop.f32.mrf.mxu0
        %v8120 = vadd.f32 0.0, %v8119
        %v8121 = vpop.f32.mrf.mxu0
        %8122 = vmatprep.mubr.bf16.mxu0 0
        %8123 = vmatmul.mubr.bf16.gmra.mxu0 %v6040
        %v8124 = vpop.f32.mrf.mxu0
        %v8125 = vadd.f32 0.0, %v8124
        %v8126 = vpop.f32.mrf.mxu0
        %v8127 = vpop.f32.mrf.mxu0
        %v8128 = vadd.f32 0.0, %v8127
        %v8129 = vpop.f32.mrf.mxu0
        %8130 = vdwg.mxu0
        %v8131 = vadd.f32 %v7713, %v7877
        %v8132 = vadd.f32 %v7714, %v7880
        %v8133 = vadd.f32 %v7715, %v7885
        %v8134 = vadd.f32 %v7716, %v7888
        %v8135 = vadd.f32 %v7717, %v7893
        %v8136 = vadd.f32 %v7718, %v7896
        %v8137 = vadd.f32 %v7719, %v7901
        %v8138 = vadd.f32 %v7720, %v7904
        %v8139 = vadd.f32 %v7721, %v7909
        %v8140 = vadd.f32 %v7722, %v7912
        %v8141 = vadd.f32 %v7723, %v7917
        %v8142 = vadd.f32 %v7724, %v7920
        %v8143 = vadd.f32 %v7725, %v7925
        %v8144 = vadd.f32 %v7726, %v7928
        %v8145 = vadd.f32 %v7727, %v7933
        %v8146 = vadd.f32 %v7728, %v7936
        %v8147 = vadd.f32 %v7729, %v7941
        %v8148 = vadd.f32 %v7730, %v7944
        %v8149 = vadd.f32 %v7731, %v7949
        %v8150 = vadd.f32 %v7732, %v7952
        %v8151 = vadd.f32 %v7733, %v7957
        %v8152 = vadd.f32 %v7734, %v7960
        %v8153 = vadd.f32 %v7735, %v7965
        %v8154 = vadd.f32 %v7736, %v7968
        %v8155 = vadd.f32 %v7737, %v7973
        %v8156 = vadd.f32 %v7738, %v7976
        %v8157 = vadd.f32 %v7739, %v7981
        %v8158 = vadd.f32 %v7740, %v7984
        %v8159 = vadd.f32 %v7741, %v7989
        %v8160 = vadd.f32 %v7742, %v7992
        %v8161 = vadd.f32 %v7743, %v7997
        %v8162 = vadd.f32 %v7744, %v8000
        %v8163 = vadd.f32 %v7745, %v8005
        %v8164 = vadd.f32 %v7746, %v8008
        %v8165 = vadd.f32 %v7747, %v8013
        %v8166 = vadd.f32 %v7748, %v8016
        %v8167 = vadd.f32 %v7749, %v8021
        %v8168 = vadd.f32 %v7750, %v8024
        %v8169 = vadd.f32 %v7751, %v8029
        %v8170 = vadd.f32 %v7752, %v8032
        %v8171 = vadd.f32 %v7753, %v8037
        %v8172 = vadd.f32 %v7754, %v8040
        %v8173 = vadd.f32 %v7755, %v8045
        %v8174 = vadd.f32 %v7756, %v8048
        %v8175 = vadd.f32 %v7757, %v8053
        %v8176 = vadd.f32 %v7758, %v8056
        %v8177 = vadd.f32 %v7759, %v8061
        %v8178 = vadd.f32 %v7760, %v8064
        %v8179 = vadd.f32 %v7761, %v8069
        %v8180 = vadd.f32 %v7762, %v8072
        %v8181 = vadd.f32 %v7763, %v8077
        %v8182 = vadd.f32 %v7764, %v8080
        %v8183 = vadd.f32 %v7765, %v8085
        %v8184 = vadd.f32 %v7766, %v8088
        %v8185 = vadd.f32 %v7767, %v8093
        %v8186 = vadd.f32 %v7768, %v8096
        %v8187 = vadd.f32 %v7769, %v8101
        %v8188 = vadd.f32 %v7770, %v8104
        %v8189 = vadd.f32 %v7771, %v8109
        %v8190 = vadd.f32 %v7772, %v8112
        %v8191 = vadd.f32 %v7773, %v8117
        %v8192 = vadd.f32 %v7774, %v8120
        %v8193 = vadd.f32 %v7775, %v8125
        %v8194 = vadd.f32 %v7776, %v8128
        %v8196 = vshrl.u32 %v6004, 16
        %v8198 = vshll.u32 %v6004, 16
        %v8200 = vrot.slane %v8198, 1
        %v8201 = vor.u32 %v8196, %v8200
        %v8203 = vshll.u32 %v6005, 16
        %v8205 = vrot.slane %v8203, 1
        %v8206 = vsel %vm1362, %v8201, %v8205
        %v8208 = vshrl.u32 %v6040, 16
        %v8210 = vshll.u32 %v6040, 16
        %v8212 = vrot.slane %v8210, 1
        %v8213 = vor.u32 %v8208, %v8212
        %v8215 = vshll.u32 %v6041, 16
        %v8217 = vrot.slane %v8215, 1
        %v8218 = vsel %vm1362, %v8213, %v8217
        %s8221 = scalar_lea.vmem [#allocation9], 256
        %v8222 = vld [vmem:[%s8221] sm:$0xf]
        %v8223 = vld [vmem:[%s8221 + $0x4] sm:$0xf]
        %v8224 = vld [vmem:[%s8221 + $0x8] sm:$0xf]
        %v8225 = vld [vmem:[%s8221 + $0xc] sm:$0xf]
        %v8226 = vld [vmem:[%s8221 + $0x10] sm:$0xf]
        %v8227 = vld [vmem:[%s8221 + $0x14] sm:$0xf]
        %v8228 = vld [vmem:[%s8221 + $0x18] sm:$0xf]
        %v8229 = vld [vmem:[%s8221 + $0x1c] sm:$0xf]
        %v8230 = vld [vmem:[%s8221 + $0x20] sm:$0xf]
        %v8231 = vld [vmem:[%s8221 + $0x24] sm:$0xf]
        %v8232 = vld [vmem:[%s8221 + $0x28] sm:$0xf]
        %v8233 = vld [vmem:[%s8221 + $0x2c] sm:$0xf]
        %v8234 = vld [vmem:[%s8221 + $0x30] sm:$0xf]
        %v8235 = vld [vmem:[%s8221 + $0x34] sm:$0xf]
        %v8236 = vld [vmem:[%s8221 + $0x38] sm:$0xf]
        %v8237 = vld [vmem:[%s8221 + $0x3c] sm:$0xf]
        %v8254 = vunpack.c.l.b16 %v8222
        %v8255 = vunpack.c.l.b16 %v8223
        %v8256 = vunpack.c.l.b16 %v8224
        %v8257 = vunpack.c.l.b16 %v8225
        %v8258 = vunpack.c.l.b16 %v8226
        %v8259 = vunpack.c.l.b16 %v8227
        %v8260 = vunpack.c.l.b16 %v8228
        %v8261 = vunpack.c.l.b16 %v8229
        %v8262 = vunpack.c.l.b16 %v8230
        %v8263 = vunpack.c.l.b16 %v8231
        %v8264 = vunpack.c.l.b16 %v8232
        %v8265 = vunpack.c.l.b16 %v8233
        %v8266 = vunpack.c.l.b16 %v8234
        %v8267 = vunpack.c.l.b16 %v8235
        %v8268 = vunpack.c.l.b16 %v8236
        %v8269 = vunpack.c.l.b16 %v8237
        %v8270 = vpack.c.b16 %v8255, %v8254
        %v8271 = vpack.c.b16 %v8257, %v8256
        %v8272 = vpack.c.b16 %v8259, %v8258
        %v8273 = vpack.c.b16 %v8261, %v8260
        %v8274 = vpack.c.b16 %v8263, %v8262
        %v8275 = vpack.c.b16 %v8265, %v8264
        %v8276 = vpack.c.b16 %v8267, %v8266
        %v8277 = vpack.c.b16 %v8269, %v8268
        %8286 = vmatprep.subr.bf16.mxu0 0
        %8287 = vmatpush1.bf16.msra.mxu0 %v8277
        %8288 = vmatprep.subr.bf16.mxu0 0
        %8289 = vmatpush1.bf16.msra.mxu0 %v8276
        %8290 = vmatprep.subr.bf16.mxu0 0
        %8291 = vmatpush1.bf16.msra.mxu0 %v8275
        %8292 = vmatprep.subr.bf16.mxu0 0
        %8293 = vmatpush1.bf16.msra.mxu0 %v8274
        %8294 = vmatprep.subr.bf16.mxu0 0
        %8295 = vmatpush1.bf16.msra.mxu0 %v8273
        %8296 = vmatprep.subr.bf16.mxu0 0
        %8297 = vmatpush1.bf16.msra.mxu0 %v8272
        %8298 = vmatprep.subr.bf16.mxu0 0
        %8299 = vmatpush1.bf16.msra.mxu0 %v8271
        %8300 = vmatprep.subr.bf16.mxu0 0
        %8301 = vmatpush1.bf16.msra.mxu0 %v8270
        %8302 = vmatprep.subr.bf16.mxu0 0
        %8303 = vmatpush2.bf16.msra.mxu0 0
        %8304 = vmatprep.subr.bf16.mxu0 0
        %8305 = vmatpush2.bf16.msra.mxu0 0
        %8306 = vmatprep.subr.bf16.mxu0 0
        %8307 = vmatpush2.bf16.msra.mxu0 0
        %8308 = vmatprep.subr.bf16.mxu0 0
        %8309 = vmatpush2.bf16.msra.mxu0 0
        %8310 = vmatprep.subr.bf16.mxu0 0
        %8311 = vmatpush2.bf16.msra.mxu0 0
        %8312 = vmatprep.subr.bf16.mxu0 0
        %8313 = vmatpush2.bf16.msra.mxu0 0
        %8314 = vmatprep.subr.bf16.mxu0 0
        %8315 = vmatpush2.bf16.msra.mxu0 0
        %8316 = vmatprep.subr.bf16.mxu0 0
        %8317 = vmatpush2.bf16.msra.mxu0 0
        %8318 = vmatprep.mubr.bf16.mxu0 0
        %8319 = vmatmul.mubr.bf16.gmra.mxu0 %v6083
        %v8320 = vpop.f32.mrf.mxu0
        %v8321 = vadd.f32 0.0, %v8320
        %v8322 = vpop.f32.mrf.mxu0
        %v8323 = vpop.f32.mrf.mxu0
        %v8324 = vadd.f32 0.0, %v8323
        %v8325 = vpop.f32.mrf.mxu0
        %8326 = vmatprep.mubr.bf16.mxu0 0
        %8327 = vmatmul.mubr.bf16.gmra.mxu0 %v6095
        %v8328 = vpop.f32.mrf.mxu0
        %v8329 = vadd.f32 0.0, %v8328
        %v8330 = vpop.f32.mrf.mxu0
        %v8331 = vpop.f32.mrf.mxu0
        %v8332 = vadd.f32 0.0, %v8331
        %v8333 = vpop.f32.mrf.mxu0
        %8334 = vmatprep.mubr.bf16.mxu0 0
        %8335 = vmatmul.mubr.bf16.gmra.mxu0 %v6107
        %v8336 = vpop.f32.mrf.mxu0
        %v8337 = vadd.f32 0.0, %v8336
        %v8338 = vpop.f32.mrf.mxu0
        %v8339 = vpop.f32.mrf.mxu0
        %v8340 = vadd.f32 0.0, %v8339
        %v8341 = vpop.f32.mrf.mxu0
        %8342 = vmatprep.mubr.bf16.mxu0 0
        %8343 = vmatmul.mubr.bf16.gmra.mxu0 %v6119
        %v8344 = vpop.f32.mrf.mxu0
        %v8345 = vadd.f32 0.0, %v8344
        %v8346 = vpop.f32.mrf.mxu0
        %v8347 = vpop.f32.mrf.mxu0
        %v8348 = vadd.f32 0.0, %v8347
        %v8349 = vpop.f32.mrf.mxu0
        %8350 = vmatprep.mubr.bf16.mxu0 0
        %8351 = vmatmul.mubr.bf16.gmra.mxu0 %v6131
        %v8352 = vpop.f32.mrf.mxu0
        %v8353 = vadd.f32 0.0, %v8352
        %v8354 = vpop.f32.mrf.mxu0
        %v8355 = vpop.f32.mrf.mxu0
        %v8356 = vadd.f32 0.0, %v8355
        %v8357 = vpop.f32.mrf.mxu0
        %8358 = vmatprep.mubr.bf16.mxu0 0
        %8359 = vmatmul.mubr.bf16.gmra.mxu0 %v6143
        %v8360 = vpop.f32.mrf.mxu0
        %v8361 = vadd.f32 0.0, %v8360
        %v8362 = vpop.f32.mrf.mxu0
        %v8363 = vpop.f32.mrf.mxu0
        %v8364 = vadd.f32 0.0, %v8363
        %v8365 = vpop.f32.mrf.mxu0
        %8366 = vmatprep.mubr.bf16.mxu0 0
        %8367 = vmatmul.mubr.bf16.gmra.mxu0 %v6155
        %v8368 = vpop.f32.mrf.mxu0
        %v8369 = vadd.f32 0.0, %v8368
        %v8370 = vpop.f32.mrf.mxu0
        %v8371 = vpop.f32.mrf.mxu0
        %v8372 = vadd.f32 0.0, %v8371
        %v8373 = vpop.f32.mrf.mxu0
        %8374 = vmatprep.mubr.bf16.mxu0 0
        %8375 = vmatmul.mubr.bf16.gmra.mxu0 %v6167
        %v8376 = vpop.f32.mrf.mxu0
        %v8377 = vadd.f32 0.0, %v8376
        %v8378 = vpop.f32.mrf.mxu0
        %v8379 = vpop.f32.mrf.mxu0
        %v8380 = vadd.f32 0.0, %v8379
        %v8381 = vpop.f32.mrf.mxu0
        %8382 = vmatprep.mubr.bf16.mxu0 0
        %8383 = vmatmul.mubr.bf16.gmra.mxu0 %v6179
        %v8384 = vpop.f32.mrf.mxu0
        %v8385 = vadd.f32 0.0, %v8384
        %v8386 = vpop.f32.mrf.mxu0
        %v8387 = vpop.f32.mrf.mxu0
        %v8388 = vadd.f32 0.0, %v8387
        %v8389 = vpop.f32.mrf.mxu0
        %8390 = vmatprep.mubr.bf16.mxu0 0
        %8391 = vmatmul.mubr.bf16.gmra.mxu0 %v6191
        %v8392 = vpop.f32.mrf.mxu0
        %v8393 = vadd.f32 0.0, %v8392
        %v8394 = vpop.f32.mrf.mxu0
        %v8395 = vpop.f32.mrf.mxu0
        %v8396 = vadd.f32 0.0, %v8395
        %v8397 = vpop.f32.mrf.mxu0
        %8398 = vmatprep.mubr.bf16.mxu0 0
        %8399 = vmatmul.mubr.bf16.gmra.mxu0 %v6203
        %v8400 = vpop.f32.mrf.mxu0
        %v8401 = vadd.f32 0.0, %v8400
        %v8402 = vpop.f32.mrf.mxu0
        %v8403 = vpop.f32.mrf.mxu0
        %v8404 = vadd.f32 0.0, %v8403
        %v8405 = vpop.f32.mrf.mxu0
        %8406 = vmatprep.mubr.bf16.mxu0 0
        %8407 = vmatmul.mubr.bf16.gmra.mxu0 %v6215
        %v8408 = vpop.f32.mrf.mxu0
        %v8409 = vadd.f32 0.0, %v8408
        %v8410 = vpop.f32.mrf.mxu0
        %v8411 = vpop.f32.mrf.mxu0
        %v8412 = vadd.f32 0.0, %v8411
        %v8413 = vpop.f32.mrf.mxu0
        %8414 = vmatprep.mubr.bf16.mxu0 0
        %8415 = vmatmul.mubr.bf16.gmra.mxu0 %v6227
        %v8416 = vpop.f32.mrf.mxu0
        %v8417 = vadd.f32 0.0, %v8416
        %v8418 = vpop.f32.mrf.mxu0
        %v8419 = vpop.f32.mrf.mxu0
        %v8420 = vadd.f32 0.0, %v8419
        %v8421 = vpop.f32.mrf.mxu0
        %8422 = vmatprep.mubr.bf16.mxu0 0
        %8423 = vmatmul.mubr.bf16.gmra.mxu0 %v6239
        %v8424 = vpop.f32.mrf.mxu0
        %v8425 = vadd.f32 0.0, %v8424
        %v8426 = vpop.f32.mrf.mxu0
        %v8427 = vpop.f32.mrf.mxu0
        %v8428 = vadd.f32 0.0, %v8427
        %v8429 = vpop.f32.mrf.mxu0
        %8430 = vmatprep.mubr.bf16.mxu0 0
        %8431 = vmatmul.mubr.bf16.gmra.mxu0 %v6251
        %v8432 = vpop.f32.mrf.mxu0
        %v8433 = vadd.f32 0.0, %v8432
        %v8434 = vpop.f32.mrf.mxu0
        %v8435 = vpop.f32.mrf.mxu0
        %v8436 = vadd.f32 0.0, %v8435
        %v8437 = vpop.f32.mrf.mxu0
        %8438 = vmatprep.mubr.bf16.mxu0 0
        %8439 = vmatmul.mubr.bf16.gmra.mxu0 %v8206
        %v8440 = vpop.f32.mrf.mxu0
        %v8441 = vadd.f32 0.0, %v8440
        %v8442 = vpop.f32.mrf.mxu0
        %v8443 = vpop.f32.mrf.mxu0
        %v8444 = vadd.f32 0.0, %v8443
        %v8445 = vpop.f32.mrf.mxu0
        %8446 = vmatprep.mubr.bf16.mxu0 0
        %8447 = vmatmul.mubr.bf16.gmra.mxu0 %v6275
        %v8448 = vpop.f32.mrf.mxu0
        %v8449 = vadd.f32 0.0, %v8448
        %v8450 = vpop.f32.mrf.mxu0
        %v8451 = vpop.f32.mrf.mxu0
        %v8452 = vadd.f32 0.0, %v8451
        %v8453 = vpop.f32.mrf.mxu0
        %8454 = vmatprep.mubr.bf16.mxu0 0
        %8455 = vmatmul.mubr.bf16.gmra.mxu0 %v6287
        %v8456 = vpop.f32.mrf.mxu0
        %v8457 = vadd.f32 0.0, %v8456
        %v8458 = vpop.f32.mrf.mxu0
        %v8459 = vpop.f32.mrf.mxu0
        %v8460 = vadd.f32 0.0, %v8459
        %v8461 = vpop.f32.mrf.mxu0
        %8462 = vmatprep.mubr.bf16.mxu0 0
        %8463 = vmatmul.mubr.bf16.gmra.mxu0 %v6299
        %v8464 = vpop.f32.mrf.mxu0
        %v8465 = vadd.f32 0.0, %v8464
        %v8466 = vpop.f32.mrf.mxu0
        %v8467 = vpop.f32.mrf.mxu0
        %v8468 = vadd.f32 0.0, %v8467
        %v8469 = vpop.f32.mrf.mxu0
        %8470 = vmatprep.mubr.bf16.mxu0 0
        %8471 = vmatmul.mubr.bf16.gmra.mxu0 %v6311
        %v8472 = vpop.f32.mrf.mxu0
        %v8473 = vadd.f32 0.0, %v8472
        %v8474 = vpop.f32.mrf.mxu0
        %v8475 = vpop.f32.mrf.mxu0
        %v8476 = vadd.f32 0.0, %v8475
        %v8477 = vpop.f32.mrf.mxu0
        %8478 = vmatprep.mubr.bf16.mxu0 0
        %8479 = vmatmul.mubr.bf16.gmra.mxu0 %v6323
        %v8480 = vpop.f32.mrf.mxu0
        %v8481 = vadd.f32 0.0, %v8480
        %v8482 = vpop.f32.mrf.mxu0
        %v8483 = vpop.f32.mrf.mxu0
        %v8484 = vadd.f32 0.0, %v8483
        %v8485 = vpop.f32.mrf.mxu0
        %8486 = vmatprep.mubr.bf16.mxu0 0
        %8487 = vmatmul.mubr.bf16.gmra.mxu0 %v6335
        %v8488 = vpop.f32.mrf.mxu0
        %v8489 = vadd.f32 0.0, %v8488
        %v8490 = vpop.f32.mrf.mxu0
        %v8491 = vpop.f32.mrf.mxu0
        %v8492 = vadd.f32 0.0, %v8491
        %v8493 = vpop.f32.mrf.mxu0
        %8494 = vmatprep.mubr.bf16.mxu0 0
        %8495 = vmatmul.mubr.bf16.gmra.mxu0 %v6347
        %v8496 = vpop.f32.mrf.mxu0
        %v8497 = vadd.f32 0.0, %v8496
        %v8498 = vpop.f32.mrf.mxu0
        %v8499 = vpop.f32.mrf.mxu0
        %v8500 = vadd.f32 0.0, %v8499
        %v8501 = vpop.f32.mrf.mxu0
        %8502 = vmatprep.mubr.bf16.mxu0 0
        %8503 = vmatmul.mubr.bf16.gmra.mxu0 %v6359
        %v8504 = vpop.f32.mrf.mxu0
        %v8505 = vadd.f32 0.0, %v8504
        %v8506 = vpop.f32.mrf.mxu0
        %v8507 = vpop.f32.mrf.mxu0
        %v8508 = vadd.f32 0.0, %v8507
        %v8509 = vpop.f32.mrf.mxu0
        %8510 = vmatprep.mubr.bf16.mxu0 0
        %8511 = vmatmul.mubr.bf16.gmra.mxu0 %v6371
        %v8512 = vpop.f32.mrf.mxu0
        %v8513 = vadd.f32 0.0, %v8512
        %v8514 = vpop.f32.mrf.mxu0
        %v8515 = vpop.f32.mrf.mxu0
        %v8516 = vadd.f32 0.0, %v8515
        %v8517 = vpop.f32.mrf.mxu0
        %8518 = vmatprep.mubr.bf16.mxu0 0
        %8519 = vmatmul.mubr.bf16.gmra.mxu0 %v6383
        %v8520 = vpop.f32.mrf.mxu0
        %v8521 = vadd.f32 0.0, %v8520
        %v8522 = vpop.f32.mrf.mxu0
        %v8523 = vpop.f32.mrf.mxu0
        %v8524 = vadd.f32 0.0, %v8523
        %v8525 = vpop.f32.mrf.mxu0
        %8526 = vmatprep.mubr.bf16.mxu0 0
        %8527 = vmatmul.mubr.bf16.gmra.mxu0 %v6395
        %v8528 = vpop.f32.mrf.mxu0
        %v8529 = vadd.f32 0.0, %v8528
        %v8530 = vpop.f32.mrf.mxu0
        %v8531 = vpop.f32.mrf.mxu0
        %v8532 = vadd.f32 0.0, %v8531
        %v8533 = vpop.f32.mrf.mxu0
        %8534 = vmatprep.mubr.bf16.mxu0 0
        %8535 = vmatmul.mubr.bf16.gmra.mxu0 %v6407
        %v8536 = vpop.f32.mrf.mxu0
        %v8537 = vadd.f32 0.0, %v8536
        %v8538 = vpop.f32.mrf.mxu0
        %v8539 = vpop.f32.mrf.mxu0
        %v8540 = vadd.f32 0.0, %v8539
        %v8541 = vpop.f32.mrf.mxu0
        %8542 = vmatprep.mubr.bf16.mxu0 0
        %8543 = vmatmul.mubr.bf16.gmra.mxu0 %v6419
        %v8544 = vpop.f32.mrf.mxu0
        %v8545 = vadd.f32 0.0, %v8544
        %v8546 = vpop.f32.mrf.mxu0
        %v8547 = vpop.f32.mrf.mxu0
        %v8548 = vadd.f32 0.0, %v8547
        %v8549 = vpop.f32.mrf.mxu0
        %8550 = vmatprep.mubr.bf16.mxu0 0
        %8551 = vmatmul.mubr.bf16.gmra.mxu0 %v6431
        %v8552 = vpop.f32.mrf.mxu0
        %v8553 = vadd.f32 0.0, %v8552
        %v8554 = vpop.f32.mrf.mxu0
        %v8555 = vpop.f32.mrf.mxu0
        %v8556 = vadd.f32 0.0, %v8555
        %v8557 = vpop.f32.mrf.mxu0
        %8558 = vmatprep.mubr.bf16.mxu0 0
        %8559 = vmatmul.mubr.bf16.gmra.mxu0 %v6443
        %v8560 = vpop.f32.mrf.mxu0
        %v8561 = vadd.f32 0.0, %v8560
        %v8562 = vpop.f32.mrf.mxu0
        %v8563 = vpop.f32.mrf.mxu0
        %v8564 = vadd.f32 0.0, %v8563
        %v8565 = vpop.f32.mrf.mxu0
        %8566 = vmatprep.mubr.bf16.mxu0 0
        %8567 = vmatmul.mubr.bf16.gmra.mxu0 %v8218
        %v8568 = vpop.f32.mrf.mxu0
        %v8569 = vadd.f32 0.0, %v8568
        %v8570 = vpop.f32.mrf.mxu0
        %v8571 = vpop.f32.mrf.mxu0
        %v8572 = vadd.f32 0.0, %v8571
        %v8573 = vpop.f32.mrf.mxu0
        %8574 = vdwg.mxu0
        %v8575 = vadd.f32 %v8131, %v8321
        %v8576 = vadd.f32 %v8132, %v8324
        %v8577 = vadd.f32 %v8133, %v8329
        %v8578 = vadd.f32 %v8134, %v8332
        %v8579 = vadd.f32 %v8135, %v8337
        %v8580 = vadd.f32 %v8136, %v8340
        %v8581 = vadd.f32 %v8137, %v8345
        %v8582 = vadd.f32 %v8138, %v8348
        %v8583 = vadd.f32 %v8139, %v8353
        %v8584 = vadd.f32 %v8140, %v8356
        %v8585 = vadd.f32 %v8141, %v8361
        %v8586 = vadd.f32 %v8142, %v8364
        %v8587 = vadd.f32 %v8143, %v8369
        %v8588 = vadd.f32 %v8144, %v8372
        %v8589 = vadd.f32 %v8145, %v8377
        %v8590 = vadd.f32 %v8146, %v8380
        %v8591 = vadd.f32 %v8147, %v8385
        %v8592 = vadd.f32 %v8148, %v8388
        %v8593 = vadd.f32 %v8149, %v8393
        %v8594 = vadd.f32 %v8150, %v8396
        %v8595 = vadd.f32 %v8151, %v8401
        %v8596 = vadd.f32 %v8152, %v8404
        %v8597 = vadd.f32 %v8153, %v8409
        %v8598 = vadd.f32 %v8154, %v8412
        %v8599 = vadd.f32 %v8155, %v8417
        %v8600 = vadd.f32 %v8156, %v8420
        %v8601 = vadd.f32 %v8157, %v8425
        %v8602 = vadd.f32 %v8158, %v8428
        %v8603 = vadd.f32 %v8159, %v8433
        %v8604 = vadd.f32 %v8160, %v8436
        %v8605 = vadd.f32 %v8161, %v8441
        %v8606 = vadd.f32 %v8162, %v8444
        %v8607 = vadd.f32 %v8163, %v8449
        %v8608 = vadd.f32 %v8164, %v8452
        %v8609 = vadd.f32 %v8165, %v8457
        %v8610 = vadd.f32 %v8166, %v8460
        %v8611 = vadd.f32 %v8167, %v8465
        %v8612 = vadd.f32 %v8168, %v8468
        %v8613 = vadd.f32 %v8169, %v8473
        %v8614 = vadd.f32 %v8170, %v8476
        %v8615 = vadd.f32 %v8171, %v8481
        %v8616 = vadd.f32 %v8172, %v8484
        %v8617 = vadd.f32 %v8173, %v8489
        %v8618 = vadd.f32 %v8174, %v8492
        %v8619 = vadd.f32 %v8175, %v8497
        %v8620 = vadd.f32 %v8176, %v8500
        %v8621 = vadd.f32 %v8177, %v8505
        %v8622 = vadd.f32 %v8178, %v8508
        %v8623 = vadd.f32 %v8179, %v8513
        %v8624 = vadd.f32 %v8180, %v8516
        %v8625 = vadd.f32 %v8181, %v8521
        %v8626 = vadd.f32 %v8182, %v8524
        %v8627 = vadd.f32 %v8183, %v8529
        %v8628 = vadd.f32 %v8184, %v8532
        %v8629 = vadd.f32 %v8185, %v8537
        %v8630 = vadd.f32 %v8186, %v8540
        %v8631 = vadd.f32 %v8187, %v8545
        %v8632 = vadd.f32 %v8188, %v8548
        %v8633 = vadd.f32 %v8189, %v8553
        %v8634 = vadd.f32 %v8190, %v8556
        %v8635 = vadd.f32 %v8191, %v8561
        %v8636 = vadd.f32 %v8192, %v8564
        %v8637 = vadd.f32 %v8193, %v8569
        %v8638 = vadd.f32 %v8194, %v8572
        %v8643 = vrot.slane %v6004, 1
        %v8644 = vrot.slane %v6005, 1
        %v8645 = vsel %vm2534, %v8643, %v8644
        %v8646 = vrot.slane %v6040, 1
        %v8647 = vrot.slane %v6041, 1
        %v8648 = vsel %vm2534, %v8646, %v8647
        %s8651 = scalar_lea.vmem [#allocation9], 320
        %v8652 = vld [vmem:[%s8651] sm:$0xf]
        %v8653 = vld [vmem:[%s8651 + $0x4] sm:$0xf]
        %v8654 = vld [vmem:[%s8651 + $0x8] sm:$0xf]
        %v8655 = vld [vmem:[%s8651 + $0xc] sm:$0xf]
        %v8656 = vld [vmem:[%s8651 + $0x10] sm:$0xf]
        %v8657 = vld [vmem:[%s8651 + $0x14] sm:$0xf]
        %v8658 = vld [vmem:[%s8651 + $0x18] sm:$0xf]
        %v8659 = vld [vmem:[%s8651 + $0x1c] sm:$0xf]
        %v8660 = vld [vmem:[%s8651 + $0x20] sm:$0xf]
        %v8661 = vld [vmem:[%s8651 + $0x24] sm:$0xf]
        %v8662 = vld [vmem:[%s8651 + $0x28] sm:$0xf]
        %v8663 = vld [vmem:[%s8651 + $0x2c] sm:$0xf]
        %v8664 = vld [vmem:[%s8651 + $0x30] sm:$0xf]
        %v8665 = vld [vmem:[%s8651 + $0x34] sm:$0xf]
        %v8666 = vld [vmem:[%s8651 + $0x38] sm:$0xf]
        %v8667 = vld [vmem:[%s8651 + $0x3c] sm:$0xf]
        %v8684 = vunpack.c.l.b16 %v8652
        %v8685 = vunpack.c.l.b16 %v8653
        %v8686 = vunpack.c.l.b16 %v8654
        %v8687 = vunpack.c.l.b16 %v8655
        %v8688 = vunpack.c.l.b16 %v8656
        %v8689 = vunpack.c.l.b16 %v8657
        %v8690 = vunpack.c.l.b16 %v8658
        %v8691 = vunpack.c.l.b16 %v8659
        %v8692 = vunpack.c.l.b16 %v8660
        %v8693 = vunpack.c.l.b16 %v8661
        %v8694 = vunpack.c.l.b16 %v8662
        %v8695 = vunpack.c.l.b16 %v8663
        %v8696 = vunpack.c.l.b16 %v8664
        %v8697 = vunpack.c.l.b16 %v8665
        %v8698 = vunpack.c.l.b16 %v8666
        %v8699 = vunpack.c.l.b16 %v8667
        %v8700 = vpack.c.b16 %v8685, %v8684
        %v8701 = vpack.c.b16 %v8687, %v8686
        %v8702 = vpack.c.b16 %v8689, %v8688
        %v8703 = vpack.c.b16 %v8691, %v8690
        %v8704 = vpack.c.b16 %v8693, %v8692
        %v8705 = vpack.c.b16 %v8695, %v8694
        %v8706 = vpack.c.b16 %v8697, %v8696
        %v8707 = vpack.c.b16 %v8699, %v8698
        %8716 = vmatprep.subr.bf16.mxu0 0
        %8717 = vmatpush1.bf16.msra.mxu0 %v8707
        %8718 = vmatprep.subr.bf16.mxu0 0
        %8719 = vmatpush1.bf16.msra.mxu0 %v8706
        %8720 = vmatprep.subr.bf16.mxu0 0
        %8721 = vmatpush1.bf16.msra.mxu0 %v8705
        %8722 = vmatprep.subr.bf16.mxu0 0
        %8723 = vmatpush1.bf16.msra.mxu0 %v8704
        %8724 = vmatprep.subr.bf16.mxu0 0
        %8725 = vmatpush1.bf16.msra.mxu0 %v8703
        %8726 = vmatprep.subr.bf16.mxu0 0
        %8727 = vmatpush1.bf16.msra.mxu0 %v8702
        %8728 = vmatprep.subr.bf16.mxu0 0
        %8729 = vmatpush1.bf16.msra.mxu0 %v8701
        %8730 = vmatprep.subr.bf16.mxu0 0
        %8731 = vmatpush1.bf16.msra.mxu0 %v8700
        %8732 = vmatprep.subr.bf16.mxu0 0
        %8733 = vmatpush2.bf16.msra.mxu0 0
        %8734 = vmatprep.subr.bf16.mxu0 0
        %8735 = vmatpush2.bf16.msra.mxu0 0
        %8736 = vmatprep.subr.bf16.mxu0 0
        %8737 = vmatpush2.bf16.msra.mxu0 0
        %8738 = vmatprep.subr.bf16.mxu0 0
        %8739 = vmatpush2.bf16.msra.mxu0 0
        %8740 = vmatprep.subr.bf16.mxu0 0
        %8741 = vmatpush2.bf16.msra.mxu0 0
        %8742 = vmatprep.subr.bf16.mxu0 0
        %8743 = vmatpush2.bf16.msra.mxu0 0
        %8744 = vmatprep.subr.bf16.mxu0 0
        %8745 = vmatpush2.bf16.msra.mxu0 0
        %8746 = vmatprep.subr.bf16.mxu0 0
        %8747 = vmatpush2.bf16.msra.mxu0 0
        %8748 = vmatprep.mubr.bf16.mxu0 0
        %8749 = vmatmul.mubr.bf16.gmra.mxu0 %v7236
        %v8750 = vpop.f32.mrf.mxu0
        %v8751 = vadd.f32 0.0, %v8750
        %v8752 = vpop.f32.mrf.mxu0
        %v8753 = vpop.f32.mrf.mxu0
        %v8754 = vadd.f32 0.0, %v8753
        %v8755 = vpop.f32.mrf.mxu0
        %8756 = vmatprep.mubr.bf16.mxu0 0
        %8757 = vmatmul.mubr.bf16.gmra.mxu0 %v7239
        %v8758 = vpop.f32.mrf.mxu0
        %v8759 = vadd.f32 0.0, %v8758
        %v8760 = vpop.f32.mrf.mxu0
        %v8761 = vpop.f32.mrf.mxu0
        %v8762 = vadd.f32 0.0, %v8761
        %v8763 = vpop.f32.mrf.mxu0
        %8764 = vmatprep.mubr.bf16.mxu0 0
        %8765 = vmatmul.mubr.bf16.gmra.mxu0 %v7242
        %v8766 = vpop.f32.mrf.mxu0
        %v8767 = vadd.f32 0.0, %v8766
        %v8768 = vpop.f32.mrf.mxu0
        %v8769 = vpop.f32.mrf.mxu0
        %v8770 = vadd.f32 0.0, %v8769
        %v8771 = vpop.f32.mrf.mxu0
        %8772 = vmatprep.mubr.bf16.mxu0 0
        %8773 = vmatmul.mubr.bf16.gmra.mxu0 %v7245
        %v8774 = vpop.f32.mrf.mxu0
        %v8775 = vadd.f32 0.0, %v8774
        %v8776 = vpop.f32.mrf.mxu0
        %v8777 = vpop.f32.mrf.mxu0
        %v8778 = vadd.f32 0.0, %v8777
        %v8779 = vpop.f32.mrf.mxu0
        %8780 = vmatprep.mubr.bf16.mxu0 0
        %8781 = vmatmul.mubr.bf16.gmra.mxu0 %v7248
        %v8782 = vpop.f32.mrf.mxu0
        %v8783 = vadd.f32 0.0, %v8782
        %v8784 = vpop.f32.mrf.mxu0
        %v8785 = vpop.f32.mrf.mxu0
        %v8786 = vadd.f32 0.0, %v8785
        %v8787 = vpop.f32.mrf.mxu0
        %8788 = vmatprep.mubr.bf16.mxu0 0
        %8789 = vmatmul.mubr.bf16.gmra.mxu0 %v7251
        %v8790 = vpop.f32.mrf.mxu0
        %v8791 = vadd.f32 0.0, %v8790
        %v8792 = vpop.f32.mrf.mxu0
        %v8793 = vpop.f32.mrf.mxu0
        %v8794 = vadd.f32 0.0, %v8793
        %v8795 = vpop.f32.mrf.mxu0
        %8796 = vmatprep.mubr.bf16.mxu0 0
        %8797 = vmatmul.mubr.bf16.gmra.mxu0 %v7254
        %v8798 = vpop.f32.mrf.mxu0
        %v8799 = vadd.f32 0.0, %v8798
        %v8800 = vpop.f32.mrf.mxu0
        %v8801 = vpop.f32.mrf.mxu0
        %v8802 = vadd.f32 0.0, %v8801
        %v8803 = vpop.f32.mrf.mxu0
        %8804 = vmatprep.mubr.bf16.mxu0 0
        %8805 = vmatmul.mubr.bf16.gmra.mxu0 %v7257
        %v8806 = vpop.f32.mrf.mxu0
        %v8807 = vadd.f32 0.0, %v8806
        %v8808 = vpop.f32.mrf.mxu0
        %v8809 = vpop.f32.mrf.mxu0
        %v8810 = vadd.f32 0.0, %v8809
        %v8811 = vpop.f32.mrf.mxu0
        %8812 = vmatprep.mubr.bf16.mxu0 0
        %8813 = vmatmul.mubr.bf16.gmra.mxu0 %v7260
        %v8814 = vpop.f32.mrf.mxu0
        %v8815 = vadd.f32 0.0, %v8814
        %v8816 = vpop.f32.mrf.mxu0
        %v8817 = vpop.f32.mrf.mxu0
        %v8818 = vadd.f32 0.0, %v8817
        %v8819 = vpop.f32.mrf.mxu0
        %8820 = vmatprep.mubr.bf16.mxu0 0
        %8821 = vmatmul.mubr.bf16.gmra.mxu0 %v7263
        %v8822 = vpop.f32.mrf.mxu0
        %v8823 = vadd.f32 0.0, %v8822
        %v8824 = vpop.f32.mrf.mxu0
        %v8825 = vpop.f32.mrf.mxu0
        %v8826 = vadd.f32 0.0, %v8825
        %v8827 = vpop.f32.mrf.mxu0
        %8828 = vmatprep.mubr.bf16.mxu0 0
        %8829 = vmatmul.mubr.bf16.gmra.mxu0 %v7266
        %v8830 = vpop.f32.mrf.mxu0
        %v8831 = vadd.f32 0.0, %v8830
        %v8832 = vpop.f32.mrf.mxu0
        %v8833 = vpop.f32.mrf.mxu0
        %v8834 = vadd.f32 0.0, %v8833
        %v8835 = vpop.f32.mrf.mxu0
        %8836 = vmatprep.mubr.bf16.mxu0 0
        %8837 = vmatmul.mubr.bf16.gmra.mxu0 %v7269
        %v8838 = vpop.f32.mrf.mxu0
        %v8839 = vadd.f32 0.0, %v8838
        %v8840 = vpop.f32.mrf.mxu0
        %v8841 = vpop.f32.mrf.mxu0
        %v8842 = vadd.f32 0.0, %v8841
        %v8843 = vpop.f32.mrf.mxu0
        %8844 = vmatprep.mubr.bf16.mxu0 0
        %8845 = vmatmul.mubr.bf16.gmra.mxu0 %v7272
        %v8846 = vpop.f32.mrf.mxu0
        %v8847 = vadd.f32 0.0, %v8846
        %v8848 = vpop.f32.mrf.mxu0
        %v8849 = vpop.f32.mrf.mxu0
        %v8850 = vadd.f32 0.0, %v8849
        %v8851 = vpop.f32.mrf.mxu0
        %8852 = vmatprep.mubr.bf16.mxu0 0
        %8853 = vmatmul.mubr.bf16.gmra.mxu0 %v7275
        %v8854 = vpop.f32.mrf.mxu0
        %v8855 = vadd.f32 0.0, %v8854
        %v8856 = vpop.f32.mrf.mxu0
        %v8857 = vpop.f32.mrf.mxu0
        %v8858 = vadd.f32 0.0, %v8857
        %v8859 = vpop.f32.mrf.mxu0
        %8860 = vmatprep.mubr.bf16.mxu0 0
        %8861 = vmatmul.mubr.bf16.gmra.mxu0 %v7278
        %v8862 = vpop.f32.mrf.mxu0
        %v8863 = vadd.f32 0.0, %v8862
        %v8864 = vpop.f32.mrf.mxu0
        %v8865 = vpop.f32.mrf.mxu0
        %v8866 = vadd.f32 0.0, %v8865
        %v8867 = vpop.f32.mrf.mxu0
        %8868 = vmatprep.mubr.bf16.mxu0 0
        %8869 = vmatmul.mubr.bf16.gmra.mxu0 %v8645
        %v8870 = vpop.f32.mrf.mxu0
        %v8871 = vadd.f32 0.0, %v8870
        %v8872 = vpop.f32.mrf.mxu0
        %v8873 = vpop.f32.mrf.mxu0
        %v8874 = vadd.f32 0.0, %v8873
        %v8875 = vpop.f32.mrf.mxu0
        %8876 = vmatprep.mubr.bf16.mxu0 0
        %8877 = vmatmul.mubr.bf16.gmra.mxu0 %v7284
        %v8878 = vpop.f32.mrf.mxu0
        %v8879 = vadd.f32 0.0, %v8878
        %v8880 = vpop.f32.mrf.mxu0
        %v8881 = vpop.f32.mrf.mxu0
        %v8882 = vadd.f32 0.0, %v8881
        %v8883 = vpop.f32.mrf.mxu0
        %8884 = vmatprep.mubr.bf16.mxu0 0
        %8885 = vmatmul.mubr.bf16.gmra.mxu0 %v7287
        %v8886 = vpop.f32.mrf.mxu0
        %v8887 = vadd.f32 0.0, %v8886
        %v8888 = vpop.f32.mrf.mxu0
        %v8889 = vpop.f32.mrf.mxu0
        %v8890 = vadd.f32 0.0, %v8889
        %v8891 = vpop.f32.mrf.mxu0
        %8892 = vmatprep.mubr.bf16.mxu0 0
        %8893 = vmatmul.mubr.bf16.gmra.mxu0 %v7290
        %v8894 = vpop.f32.mrf.mxu0
        %v8895 = vadd.f32 0.0, %v8894
        %v8896 = vpop.f32.mrf.mxu0
        %v8897 = vpop.f32.mrf.mxu0
        %v8898 = vadd.f32 0.0, %v8897
        %v8899 = vpop.f32.mrf.mxu0
        %8900 = vmatprep.mubr.bf16.mxu0 0
        %8901 = vmatmul.mubr.bf16.gmra.mxu0 %v7293
        %v8902 = vpop.f32.mrf.mxu0
        %v8903 = vadd.f32 0.0, %v8902
        %v8904 = vpop.f32.mrf.mxu0
        %v8905 = vpop.f32.mrf.mxu0
        %v8906 = vadd.f32 0.0, %v8905
        %v8907 = vpop.f32.mrf.mxu0
        %8908 = vmatprep.mubr.bf16.mxu0 0
        %8909 = vmatmul.mubr.bf16.gmra.mxu0 %v7296
        %v8910 = vpop.f32.mrf.mxu0
        %v8911 = vadd.f32 0.0, %v8910
        %v8912 = vpop.f32.mrf.mxu0
        %v8913 = vpop.f32.mrf.mxu0
        %v8914 = vadd.f32 0.0, %v8913
        %v8915 = vpop.f32.mrf.mxu0
        %8916 = vmatprep.mubr.bf16.mxu0 0
        %8917 = vmatmul.mubr.bf16.gmra.mxu0 %v7299
        %v8918 = vpop.f32.mrf.mxu0
        %v8919 = vadd.f32 0.0, %v8918
        %v8920 = vpop.f32.mrf.mxu0
        %v8921 = vpop.f32.mrf.mxu0
        %v8922 = vadd.f32 0.0, %v8921
        %v8923 = vpop.f32.mrf.mxu0
        %8924 = vmatprep.mubr.bf16.mxu0 0
        %8925 = vmatmul.mubr.bf16.gmra.mxu0 %v7302
        %v8926 = vpop.f32.mrf.mxu0
        %v8927 = vadd.f32 0.0, %v8926
        %v8928 = vpop.f32.mrf.mxu0
        %v8929 = vpop.f32.mrf.mxu0
        %v8930 = vadd.f32 0.0, %v8929
        %v8931 = vpop.f32.mrf.mxu0
        %8932 = vmatprep.mubr.bf16.mxu0 0
        %8933 = vmatmul.mubr.bf16.gmra.mxu0 %v7305
        %v8934 = vpop.f32.mrf.mxu0
        %v8935 = vadd.f32 0.0, %v8934
        %v8936 = vpop.f32.mrf.mxu0
        %v8937 = vpop.f32.mrf.mxu0
        %v8938 = vadd.f32 0.0, %v8937
        %v8939 = vpop.f32.mrf.mxu0
        %8940 = vmatprep.mubr.bf16.mxu0 0
        %8941 = vmatmul.mubr.bf16.gmra.mxu0 %v7308
        %v8942 = vpop.f32.mrf.mxu0
        %v8943 = vadd.f32 0.0, %v8942
        %v8944 = vpop.f32.mrf.mxu0
        %v8945 = vpop.f32.mrf.mxu0
        %v8946 = vadd.f32 0.0, %v8945
        %v8947 = vpop.f32.mrf.mxu0
        %8948 = vmatprep.mubr.bf16.mxu0 0
        %8949 = vmatmul.mubr.bf16.gmra.mxu0 %v7311
        %v8950 = vpop.f32.mrf.mxu0
        %v8951 = vadd.f32 0.0, %v8950
        %v8952 = vpop.f32.mrf.mxu0
        %v8953 = vpop.f32.mrf.mxu0
        %v8954 = vadd.f32 0.0, %v8953
        %v8955 = vpop.f32.mrf.mxu0
        %8956 = vmatprep.mubr.bf16.mxu0 0
        %8957 = vmatmul.mubr.bf16.gmra.mxu0 %v7314
        %v8958 = vpop.f32.mrf.mxu0
        %v8959 = vadd.f32 0.0, %v8958
        %v8960 = vpop.f32.mrf.mxu0
        %v8961 = vpop.f32.mrf.mxu0
        %v8962 = vadd.f32 0.0, %v8961
        %v8963 = vpop.f32.mrf.mxu0
        %8964 = vmatprep.mubr.bf16.mxu0 0
        %8965 = vmatmul.mubr.bf16.gmra.mxu0 %v7317
        %v8966 = vpop.f32.mrf.mxu0
        %v8967 = vadd.f32 0.0, %v8966
        %v8968 = vpop.f32.mrf.mxu0
        %v8969 = vpop.f32.mrf.mxu0
        %v8970 = vadd.f32 0.0, %v8969
        %v8971 = vpop.f32.mrf.mxu0
        %8972 = vmatprep.mubr.bf16.mxu0 0
        %8973 = vmatmul.mubr.bf16.gmra.mxu0 %v7320
        %v8974 = vpop.f32.mrf.mxu0
        %v8975 = vadd.f32 0.0, %v8974
        %v8976 = vpop.f32.mrf.mxu0
        %v8977 = vpop.f32.mrf.mxu0
        %v8978 = vadd.f32 0.0, %v8977
        %v8979 = vpop.f32.mrf.mxu0
        %8980 = vmatprep.mubr.bf16.mxu0 0
        %8981 = vmatmul.mubr.bf16.gmra.mxu0 %v7323
        %v8982 = vpop.f32.mrf.mxu0
        %v8983 = vadd.f32 0.0, %v8982
        %v8984 = vpop.f32.mrf.mxu0
        %v8985 = vpop.f32.mrf.mxu0
        %v8986 = vadd.f32 0.0, %v8985
        %v8987 = vpop.f32.mrf.mxu0
        %8988 = vmatprep.mubr.bf16.mxu0 0
        %8989 = vmatmul.mubr.bf16.gmra.mxu0 %v7326
        %v8990 = vpop.f32.mrf.mxu0
        %v8991 = vadd.f32 0.0, %v8990
        %v8992 = vpop.f32.mrf.mxu0
        %v8993 = vpop.f32.mrf.mxu0
        %v8994 = vadd.f32 0.0, %v8993
        %v8995 = vpop.f32.mrf.mxu0
        %8996 = vmatprep.mubr.bf16.mxu0 0
        %8997 = vmatmul.mubr.bf16.gmra.mxu0 %v8648
        %v8998 = vpop.f32.mrf.mxu0
        %v8999 = vadd.f32 0.0, %v8998
        %v9000 = vpop.f32.mrf.mxu0
        %v9001 = vpop.f32.mrf.mxu0
        %v9002 = vadd.f32 0.0, %v9001
        %v9003 = vpop.f32.mrf.mxu0
        %9004 = vdwg.mxu0
        %v9005 = vadd.f32 %v8575, %v8751
        %v9006 = vadd.f32 %v8576, %v8754
        %v9007 = vadd.f32 %v8577, %v8759
        %v9008 = vadd.f32 %v8578, %v8762
        %v9009 = vadd.f32 %v8579, %v8767
        %v9010 = vadd.f32 %v8580, %v8770
        %v9011 = vadd.f32 %v8581, %v8775
        %v9012 = vadd.f32 %v8582, %v8778
        %v9013 = vadd.f32 %v8583, %v8783
        %v9014 = vadd.f32 %v8584, %v8786
        %v9015 = vadd.f32 %v8585, %v8791
        %v9016 = vadd.f32 %v8586, %v8794
        %v9017 = vadd.f32 %v8587, %v8799
        %v9018 = vadd.f32 %v8588, %v8802
        %v9019 = vadd.f32 %v8589, %v8807
        %v9020 = vadd.f32 %v8590, %v8810
        %v9021 = vadd.f32 %v8591, %v8815
        %v9022 = vadd.f32 %v8592, %v8818
        %v9023 = vadd.f32 %v8593, %v8823
        %v9024 = vadd.f32 %v8594, %v8826
        %v9025 = vadd.f32 %v8595, %v8831
        %v9026 = vadd.f32 %v8596, %v8834
        %v9027 = vadd.f32 %v8597, %v8839
        %v9028 = vadd.f32 %v8598, %v8842
        %v9029 = vadd.f32 %v8599, %v8847
        %v9030 = vadd.f32 %v8600, %v8850
        %v9031 = vadd.f32 %v8601, %v8855
        %v9032 = vadd.f32 %v8602, %v8858
        %v9033 = vadd.f32 %v8603, %v8863
        %v9034 = vadd.f32 %v8604, %v8866
        %v9035 = vadd.f32 %v8605, %v8871
        %v9036 = vadd.f32 %v8606, %v8874
        %v9037 = vadd.f32 %v8607, %v8879
        %v9038 = vadd.f32 %v8608, %v8882
        %v9039 = vadd.f32 %v8609, %v8887
        %v9040 = vadd.f32 %v8610, %v8890
        %v9041 = vadd.f32 %v8611, %v8895
        %v9042 = vadd.f32 %v8612, %v8898
        %v9043 = vadd.f32 %v8613, %v8903
        %v9044 = vadd.f32 %v8614, %v8906
        %v9045 = vadd.f32 %v8615, %v8911
        %v9046 = vadd.f32 %v8616, %v8914
        %v9047 = vadd.f32 %v8617, %v8919
        %v9048 = vadd.f32 %v8618, %v8922
        %v9049 = vadd.f32 %v8619, %v8927
        %v9050 = vadd.f32 %v8620, %v8930
        %v9051 = vadd.f32 %v8621, %v8935
        %v9052 = vadd.f32 %v8622, %v8938
        %v9053 = vadd.f32 %v8623, %v8943
        %v9054 = vadd.f32 %v8624, %v8946
        %v9055 = vadd.f32 %v8625, %v8951
        %v9056 = vadd.f32 %v8626, %v8954
        %v9057 = vadd.f32 %v8627, %v8959
        %v9058 = vadd.f32 %v8628, %v8962
        %v9059 = vadd.f32 %v8629, %v8967
        %v9060 = vadd.f32 %v8630, %v8970
        %v9061 = vadd.f32 %v8631, %v8975
        %v9062 = vadd.f32 %v8632, %v8978
        %v9063 = vadd.f32 %v8633, %v8983
        %v9064 = vadd.f32 %v8634, %v8986
        %v9065 = vadd.f32 %v8635, %v8991
        %v9066 = vadd.f32 %v8636, %v8994
        %v9067 = vadd.f32 %v8637, %v8999
        %v9068 = vadd.f32 %v8638, %v9002
        %s9069 = scalar_lea.vmem [#allocation9], 384
        %v9070 = vld [vmem:[%s9069] sm:$0xf]
        %v9071 = vld [vmem:[%s9069 + $0x4] sm:$0xf]
        %v9072 = vld [vmem:[%s9069 + $0x8] sm:$0xf]
        %v9073 = vld [vmem:[%s9069 + $0xc] sm:$0xf]
        %v9074 = vld [vmem:[%s9069 + $0x10] sm:$0xf]
        %v9075 = vld [vmem:[%s9069 + $0x14] sm:$0xf]
        %v9076 = vld [vmem:[%s9069 + $0x18] sm:$0xf]
        %v9077 = vld [vmem:[%s9069 + $0x1c] sm:$0xf]
        %v9078 = vld [vmem:[%s9069 + $0x20] sm:$0xf]
        %v9079 = vld [vmem:[%s9069 + $0x24] sm:$0xf]
        %v9080 = vld [vmem:[%s9069 + $0x28] sm:$0xf]
        %v9081 = vld [vmem:[%s9069 + $0x2c] sm:$0xf]
        %v9082 = vld [vmem:[%s9069 + $0x30] sm:$0xf]
        %v9083 = vld [vmem:[%s9069 + $0x34] sm:$0xf]
        %v9084 = vld [vmem:[%s9069 + $0x38] sm:$0xf]
        %v9085 = vld [vmem:[%s9069 + $0x3c] sm:$0xf]
        %v9102 = vunpack.c.l.b16 %v9070
        %v9103 = vunpack.c.l.b16 %v9071
        %v9104 = vunpack.c.l.b16 %v9072
        %v9105 = vunpack.c.l.b16 %v9073
        %v9106 = vunpack.c.l.b16 %v9074
        %v9107 = vunpack.c.l.b16 %v9075
        %v9108 = vunpack.c.l.b16 %v9076
        %v9109 = vunpack.c.l.b16 %v9077
        %v9110 = vunpack.c.l.b16 %v9078
        %v9111 = vunpack.c.l.b16 %v9079
        %v9112 = vunpack.c.l.b16 %v9080
        %v9113 = vunpack.c.l.b16 %v9081
        %v9114 = vunpack.c.l.b16 %v9082
        %v9115 = vunpack.c.l.b16 %v9083
        %v9116 = vunpack.c.l.b16 %v9084
        %v9117 = vunpack.c.l.b16 %v9085
        %v9118 = vpack.c.b16 %v9103, %v9102
        %v9119 = vpack.c.b16 %v9105, %v9104
        %v9120 = vpack.c.b16 %v9107, %v9106
        %v9121 = vpack.c.b16 %v9109, %v9108
        %v9122 = vpack.c.b16 %v9111, %v9110
        %v9123 = vpack.c.b16 %v9113, %v9112
        %v9124 = vpack.c.b16 %v9115, %v9114
        %v9125 = vpack.c.b16 %v9117, %v9116
        %9134 = vmatprep.subr.bf16.mxu0 0
        %9135 = vmatpush1.bf16.msra.mxu0 %v9125
        %9136 = vmatprep.subr.bf16.mxu0 0
        %9137 = vmatpush1.bf16.msra.mxu0 %v9124
        %9138 = vmatprep.subr.bf16.mxu0 0
        %9139 = vmatpush1.bf16.msra.mxu0 %v9123
        %9140 = vmatprep.subr.bf16.mxu0 0
        %9141 = vmatpush1.bf16.msra.mxu0 %v9122
        %9142 = vmatprep.subr.bf16.mxu0 0
        %9143 = vmatpush1.bf16.msra.mxu0 %v9121
        %9144 = vmatprep.subr.bf16.mxu0 0
        %9145 = vmatpush1.bf16.msra.mxu0 %v9120
        %9146 = vmatprep.subr.bf16.mxu0 0
        %9147 = vmatpush1.bf16.msra.mxu0 %v9119
        %9148 = vmatprep.subr.bf16.mxu0 0
        %9149 = vmatpush1.bf16.msra.mxu0 %v9118
        %9150 = vmatprep.subr.bf16.mxu0 0
        %9151 = vmatpush2.bf16.msra.mxu0 0
        %9152 = vmatprep.subr.bf16.mxu0 0
        %9153 = vmatpush2.bf16.msra.mxu0 0
        %9154 = vmatprep.subr.bf16.mxu0 0
        %9155 = vmatpush2.bf16.msra.mxu0 0
        %9156 = vmatprep.subr.bf16.mxu0 0
        %9157 = vmatpush2.bf16.msra.mxu0 0
        %9158 = vmatprep.subr.bf16.mxu0 0
        %9159 = vmatpush2.bf16.msra.mxu0 0
        %9160 = vmatprep.subr.bf16.mxu0 0
        %9161 = vmatpush2.bf16.msra.mxu0 0
        %9162 = vmatprep.subr.bf16.mxu0 0
        %9163 = vmatpush2.bf16.msra.mxu0 0
        %9164 = vmatprep.subr.bf16.mxu0 0
        %9165 = vmatpush2.bf16.msra.mxu0 0
        %9166 = vmatprep.mubr.bf16.mxu0 0
        %9167 = vmatmul.mubr.bf16.gmra.mxu0 %v5976
        %v9168 = vpop.f32.mrf.mxu0
        %v9169 = vadd.f32 0.0, %v9168
        %v9170 = vpop.f32.mrf.mxu0
        %v9171 = vpop.f32.mrf.mxu0
        %v9172 = vadd.f32 0.0, %v9171
        %v9173 = vpop.f32.mrf.mxu0
        %9174 = vmatprep.mubr.bf16.mxu0 0
        %9175 = vmatmul.mubr.bf16.gmra.mxu0 %v5978
        %v9176 = vpop.f32.mrf.mxu0
        %v9177 = vadd.f32 0.0, %v9176
        %v9178 = vpop.f32.mrf.mxu0
        %v9179 = vpop.f32.mrf.mxu0
        %v9180 = vadd.f32 0.0, %v9179
        %v9181 = vpop.f32.mrf.mxu0
        %9182 = vmatprep.mubr.bf16.mxu0 0
        %9183 = vmatmul.mubr.bf16.gmra.mxu0 %v5980
        %v9184 = vpop.f32.mrf.mxu0
        %v9185 = vadd.f32 0.0, %v9184
        %v9186 = vpop.f32.mrf.mxu0
        %v9187 = vpop.f32.mrf.mxu0
        %v9188 = vadd.f32 0.0, %v9187
        %v9189 = vpop.f32.mrf.mxu0
        %9190 = vmatprep.mubr.bf16.mxu0 0
        %9191 = vmatmul.mubr.bf16.gmra.mxu0 %v5982
        %v9192 = vpop.f32.mrf.mxu0
        %v9193 = vadd.f32 0.0, %v9192
        %v9194 = vpop.f32.mrf.mxu0
        %v9195 = vpop.f32.mrf.mxu0
        %v9196 = vadd.f32 0.0, %v9195
        %v9197 = vpop.f32.mrf.mxu0
        %9198 = vmatprep.mubr.bf16.mxu0 0
        %9199 = vmatmul.mubr.bf16.gmra.mxu0 %v5984
        %v9200 = vpop.f32.mrf.mxu0
        %v9201 = vadd.f32 0.0, %v9200
        %v9202 = vpop.f32.mrf.mxu0
        %v9203 = vpop.f32.mrf.mxu0
        %v9204 = vadd.f32 0.0, %v9203
        %v9205 = vpop.f32.mrf.mxu0
        %9206 = vmatprep.mubr.bf16.mxu0 0
        %9207 = vmatmul.mubr.bf16.gmra.mxu0 %v5986
        %v9208 = vpop.f32.mrf.mxu0
        %v9209 = vadd.f32 0.0, %v9208
        %v9210 = vpop.f32.mrf.mxu0
        %v9211 = vpop.f32.mrf.mxu0
        %v9212 = vadd.f32 0.0, %v9211
        %v9213 = vpop.f32.mrf.mxu0
        %9214 = vmatprep.mubr.bf16.mxu0 0
        %9215 = vmatmul.mubr.bf16.gmra.mxu0 %v5988
        %v9216 = vpop.f32.mrf.mxu0
        %v9217 = vadd.f32 0.0, %v9216
        %v9218 = vpop.f32.mrf.mxu0
        %v9219 = vpop.f32.mrf.mxu0
        %v9220 = vadd.f32 0.0, %v9219
        %v9221 = vpop.f32.mrf.mxu0
        %9222 = vmatprep.mubr.bf16.mxu0 0
        %9223 = vmatmul.mubr.bf16.gmra.mxu0 %v5990
        %v9224 = vpop.f32.mrf.mxu0
        %v9225 = vadd.f32 0.0, %v9224
        %v9226 = vpop.f32.mrf.mxu0
        %v9227 = vpop.f32.mrf.mxu0
        %v9228 = vadd.f32 0.0, %v9227
        %v9229 = vpop.f32.mrf.mxu0
        %9230 = vmatprep.mubr.bf16.mxu0 0
        %9231 = vmatmul.mubr.bf16.gmra.mxu0 %v5992
        %v9232 = vpop.f32.mrf.mxu0
        %v9233 = vadd.f32 0.0, %v9232
        %v9234 = vpop.f32.mrf.mxu0
        %v9235 = vpop.f32.mrf.mxu0
        %v9236 = vadd.f32 0.0, %v9235
        %v9237 = vpop.f32.mrf.mxu0
        %9238 = vmatprep.mubr.bf16.mxu0 0
        %9239 = vmatmul.mubr.bf16.gmra.mxu0 %v5994
        %v9240 = vpop.f32.mrf.mxu0
        %v9241 = vadd.f32 0.0, %v9240
        %v9242 = vpop.f32.mrf.mxu0
        %v9243 = vpop.f32.mrf.mxu0
        %v9244 = vadd.f32 0.0, %v9243
        %v9245 = vpop.f32.mrf.mxu0
        %9246 = vmatprep.mubr.bf16.mxu0 0
        %9247 = vmatmul.mubr.bf16.gmra.mxu0 %v5996
        %v9248 = vpop.f32.mrf.mxu0
        %v9249 = vadd.f32 0.0, %v9248
        %v9250 = vpop.f32.mrf.mxu0
        %v9251 = vpop.f32.mrf.mxu0
        %v9252 = vadd.f32 0.0, %v9251
        %v9253 = vpop.f32.mrf.mxu0
        %9254 = vmatprep.mubr.bf16.mxu0 0
        %9255 = vmatmul.mubr.bf16.gmra.mxu0 %v5998
        %v9256 = vpop.f32.mrf.mxu0
        %v9257 = vadd.f32 0.0, %v9256
        %v9258 = vpop.f32.mrf.mxu0
        %v9259 = vpop.f32.mrf.mxu0
        %v9260 = vadd.f32 0.0, %v9259
        %v9261 = vpop.f32.mrf.mxu0
        %9262 = vmatprep.mubr.bf16.mxu0 0
        %9263 = vmatmul.mubr.bf16.gmra.mxu0 %v6000
        %v9264 = vpop.f32.mrf.mxu0
        %v9265 = vadd.f32 0.0, %v9264
        %v9266 = vpop.f32.mrf.mxu0
        %v9267 = vpop.f32.mrf.mxu0
        %v9268 = vadd.f32 0.0, %v9267
        %v9269 = vpop.f32.mrf.mxu0
        %9270 = vmatprep.mubr.bf16.mxu0 0
        %9271 = vmatmul.mubr.bf16.gmra.mxu0 %v6002
        %v9272 = vpop.f32.mrf.mxu0
        %v9273 = vadd.f32 0.0, %v9272
        %v9274 = vpop.f32.mrf.mxu0
        %v9275 = vpop.f32.mrf.mxu0
        %v9276 = vadd.f32 0.0, %v9275
        %v9277 = vpop.f32.mrf.mxu0
        %9278 = vmatprep.mubr.bf16.mxu0 0
        %9279 = vmatmul.mubr.bf16.gmra.mxu0 %v6004
        %v9280 = vpop.f32.mrf.mxu0
        %v9281 = vadd.f32 0.0, %v9280
        %v9282 = vpop.f32.mrf.mxu0
        %v9283 = vpop.f32.mrf.mxu0
        %v9284 = vadd.f32 0.0, %v9283
        %v9285 = vpop.f32.mrf.mxu0
        %9286 = vmatprep.mubr.bf16.mxu0 0
        %9287 = vmatmul.mubr.bf16.gmra.mxu0 %v6006
        %v9288 = vpop.f32.mrf.mxu0
        %v9289 = vadd.f32 0.0, %v9288
        %v9290 = vpop.f32.mrf.mxu0
        %v9291 = vpop.f32.mrf.mxu0
        %v9292 = vadd.f32 0.0, %v9291
        %v9293 = vpop.f32.mrf.mxu0
        %9294 = vmatprep.mubr.bf16.mxu0 0
        %9295 = vmatmul.mubr.bf16.gmra.mxu0 %v6012
        %v9296 = vpop.f32.mrf.mxu0
        %v9297 = vadd.f32 0.0, %v9296
        %v9298 = vpop.f32.mrf.mxu0
        %v9299 = vpop.f32.mrf.mxu0
        %v9300 = vadd.f32 0.0, %v9299
        %v9301 = vpop.f32.mrf.mxu0
        %9302 = vmatprep.mubr.bf16.mxu0 0
        %9303 = vmatmul.mubr.bf16.gmra.mxu0 %v6014
        %v9304 = vpop.f32.mrf.mxu0
        %v9305 = vadd.f32 0.0, %v9304
        %v9306 = vpop.f32.mrf.mxu0
        %v9307 = vpop.f32.mrf.mxu0
        %v9308 = vadd.f32 0.0, %v9307
        %v9309 = vpop.f32.mrf.mxu0
        %9310 = vmatprep.mubr.bf16.mxu0 0
        %9311 = vmatmul.mubr.bf16.gmra.mxu0 %v6016
        %v9312 = vpop.f32.mrf.mxu0
        %v9313 = vadd.f32 0.0, %v9312
        %v9314 = vpop.f32.mrf.mxu0
        %v9315 = vpop.f32.mrf.mxu0
        %v9316 = vadd.f32 0.0, %v9315
        %v9317 = vpop.f32.mrf.mxu0
        %9318 = vmatprep.mubr.bf16.mxu0 0
        %9319 = vmatmul.mubr.bf16.gmra.mxu0 %v6018
        %v9320 = vpop.f32.mrf.mxu0
        %v9321 = vadd.f32 0.0, %v9320
        %v9322 = vpop.f32.mrf.mxu0
        %v9323 = vpop.f32.mrf.mxu0
        %v9324 = vadd.f32 0.0, %v9323
        %v9325 = vpop.f32.mrf.mxu0
        %9326 = vmatprep.mubr.bf16.mxu0 0
        %9327 = vmatmul.mubr.bf16.gmra.mxu0 %v6020
        %v9328 = vpop.f32.mrf.mxu0
        %v9329 = vadd.f32 0.0, %v9328
        %v9330 = vpop.f32.mrf.mxu0
        %v9331 = vpop.f32.mrf.mxu0
        %v9332 = vadd.f32 0.0, %v9331
        %v9333 = vpop.f32.mrf.mxu0
        %9334 = vmatprep.mubr.bf16.mxu0 0
        %9335 = vmatmul.mubr.bf16.gmra.mxu0 %v6022
        %v9336 = vpop.f32.mrf.mxu0
        %v9337 = vadd.f32 0.0, %v9336
        %v9338 = vpop.f32.mrf.mxu0
        %v9339 = vpop.f32.mrf.mxu0
        %v9340 = vadd.f32 0.0, %v9339
        %v9341 = vpop.f32.mrf.mxu0
        %9342 = vmatprep.mubr.bf16.mxu0 0
        %9343 = vmatmul.mubr.bf16.gmra.mxu0 %v6024
        %v9344 = vpop.f32.mrf.mxu0
        %v9345 = vadd.f32 0.0, %v9344
        %v9346 = vpop.f32.mrf.mxu0
        %v9347 = vpop.f32.mrf.mxu0
        %v9348 = vadd.f32 0.0, %v9347
        %v9349 = vpop.f32.mrf.mxu0
        %9350 = vmatprep.mubr.bf16.mxu0 0
        %9351 = vmatmul.mubr.bf16.gmra.mxu0 %v6026
        %v9352 = vpop.f32.mrf.mxu0
        %v9353 = vadd.f32 0.0, %v9352
        %v9354 = vpop.f32.mrf.mxu0
        %v9355 = vpop.f32.mrf.mxu0
        %v9356 = vadd.f32 0.0, %v9355
        %v9357 = vpop.f32.mrf.mxu0
        %9358 = vmatprep.mubr.bf16.mxu0 0
        %9359 = vmatmul.mubr.bf16.gmra.mxu0 %v6028
        %v9360 = vpop.f32.mrf.mxu0
        %v9361 = vadd.f32 0.0, %v9360
        %v9362 = vpop.f32.mrf.mxu0
        %v9363 = vpop.f32.mrf.mxu0
        %v9364 = vadd.f32 0.0, %v9363
        %v9365 = vpop.f32.mrf.mxu0
        %9366 = vmatprep.mubr.bf16.mxu0 0
        %9367 = vmatmul.mubr.bf16.gmra.mxu0 %v6030
        %v9368 = vpop.f32.mrf.mxu0
        %v9369 = vadd.f32 0.0, %v9368
        %v9370 = vpop.f32.mrf.mxu0
        %v9371 = vpop.f32.mrf.mxu0
        %v9372 = vadd.f32 0.0, %v9371
        %v9373 = vpop.f32.mrf.mxu0
        %9374 = vmatprep.mubr.bf16.mxu0 0
        %9375 = vmatmul.mubr.bf16.gmra.mxu0 %v6032
        %v9376 = vpop.f32.mrf.mxu0
        %v9377 = vadd.f32 0.0, %v9376
        %v9378 = vpop.f32.mrf.mxu0
        %v9379 = vpop.f32.mrf.mxu0
        %v9380 = vadd.f32 0.0, %v9379
        %v9381 = vpop.f32.mrf.mxu0
        %9382 = vmatprep.mubr.bf16.mxu0 0
        %9383 = vmatmul.mubr.bf16.gmra.mxu0 %v6034
        %v9384 = vpop.f32.mrf.mxu0
        %v9385 = vadd.f32 0.0, %v9384
        %v9386 = vpop.f32.mrf.mxu0
        %v9387 = vpop.f32.mrf.mxu0
        %v9388 = vadd.f32 0.0, %v9387
        %v9389 = vpop.f32.mrf.mxu0
        %9390 = vmatprep.mubr.bf16.mxu0 0
        %9391 = vmatmul.mubr.bf16.gmra.mxu0 %v6036
        %v9392 = vpop.f32.mrf.mxu0
        %v9393 = vadd.f32 0.0, %v9392
        %v9394 = vpop.f32.mrf.mxu0
        %v9395 = vpop.f32.mrf.mxu0
        %v9396 = vadd.f32 0.0, %v9395
        %v9397 = vpop.f32.mrf.mxu0
        %9398 = vmatprep.mubr.bf16.mxu0 0
        %9399 = vmatmul.mubr.bf16.gmra.mxu0 %v6038
        %v9400 = vpop.f32.mrf.mxu0
        %v9401 = vadd.f32 0.0, %v9400
        %v9402 = vpop.f32.mrf.mxu0
        %v9403 = vpop.f32.mrf.mxu0
        %v9404 = vadd.f32 0.0, %v9403
        %v9405 = vpop.f32.mrf.mxu0
        %9406 = vmatprep.mubr.bf16.mxu0 0
        %9407 = vmatmul.mubr.bf16.gmra.mxu0 %v6040
        %v9408 = vpop.f32.mrf.mxu0
        %v9409 = vadd.f32 0.0, %v9408
        %v9410 = vpop.f32.mrf.mxu0
        %v9411 = vpop.f32.mrf.mxu0
        %v9412 = vadd.f32 0.0, %v9411
        %v9413 = vpop.f32.mrf.mxu0
        %9414 = vmatprep.mubr.bf16.mxu0 0
        %9415 = vmatmul.mubr.bf16.gmra.mxu0 %v6042
        %v9416 = vpop.f32.mrf.mxu0
        %v9417 = vadd.f32 0.0, %v9416
        %v9418 = vpop.f32.mrf.mxu0
        %v9419 = vpop.f32.mrf.mxu0
        %v9420 = vadd.f32 0.0, %v9419
        %v9421 = vpop.f32.mrf.mxu0
        %9422 = vdwg.mxu0
        %v9423 = vadd.f32 %v9005, %v9169
        %v9424 = vadd.f32 %v9006, %v9172
        %v9425 = vadd.f32 %v9007, %v9177
        %v9426 = vadd.f32 %v9008, %v9180
        %v9427 = vadd.f32 %v9009, %v9185
        %v9428 = vadd.f32 %v9010, %v9188
        %v9429 = vadd.f32 %v9011, %v9193
        %v9430 = vadd.f32 %v9012, %v9196
        %v9431 = vadd.f32 %v9013, %v9201
        %v9432 = vadd.f32 %v9014, %v9204
        %v9433 = vadd.f32 %v9015, %v9209
        %v9434 = vadd.f32 %v9016, %v9212
        %v9435 = vadd.f32 %v9017, %v9217
        %v9436 = vadd.f32 %v9018, %v9220
        %v9437 = vadd.f32 %v9019, %v9225
        %v9438 = vadd.f32 %v9020, %v9228
        %v9439 = vadd.f32 %v9021, %v9233
        %v9440 = vadd.f32 %v9022, %v9236
        %v9441 = vadd.f32 %v9023, %v9241
        %v9442 = vadd.f32 %v9024, %v9244
        %v9443 = vadd.f32 %v9025, %v9249
        %v9444 = vadd.f32 %v9026, %v9252
        %v9445 = vadd.f32 %v9027, %v9257
        %v9446 = vadd.f32 %v9028, %v9260
        %v9447 = vadd.f32 %v9029, %v9265
        %v9448 = vadd.f32 %v9030, %v9268
        %v9449 = vadd.f32 %v9031, %v9273
        %v9450 = vadd.f32 %v9032, %v9276
        %v9451 = vadd.f32 %v9033, %v9281
        %v9452 = vadd.f32 %v9034, %v9284
        %v9453 = vadd.f32 %v9035, %v9289
        %v9454 = vadd.f32 %v9036, %v9292
        %v9455 = vadd.f32 %v9037, %v9297
        %v9456 = vadd.f32 %v9038, %v9300
        %v9457 = vadd.f32 %v9039, %v9305
        %v9458 = vadd.f32 %v9040, %v9308
        %v9459 = vadd.f32 %v9041, %v9313
        %v9460 = vadd.f32 %v9042, %v9316
        %v9461 = vadd.f32 %v9043, %v9321
        %v9462 = vadd.f32 %v9044, %v9324
        %v9463 = vadd.f32 %v9045, %v9329
        %v9464 = vadd.f32 %v9046, %v9332
        %v9465 = vadd.f32 %v9047, %v9337
        %v9466 = vadd.f32 %v9048, %v9340
        %v9467 = vadd.f32 %v9049, %v9345
        %v9468 = vadd.f32 %v9050, %v9348
        %v9469 = vadd.f32 %v9051, %v9353
        %v9470 = vadd.f32 %v9052, %v9356
        %v9471 = vadd.f32 %v9053, %v9361
        %v9472 = vadd.f32 %v9054, %v9364
        %v9473 = vadd.f32 %v9055, %v9369
        %v9474 = vadd.f32 %v9056, %v9372
        %v9475 = vadd.f32 %v9057, %v9377
        %v9476 = vadd.f32 %v9058, %v9380
        %v9477 = vadd.f32 %v9059, %v9385
        %v9478 = vadd.f32 %v9060, %v9388
        %v9479 = vadd.f32 %v9061, %v9393
        %v9480 = vadd.f32 %v9062, %v9396
        %v9481 = vadd.f32 %v9063, %v9401
        %v9482 = vadd.f32 %v9064, %v9404
        %v9483 = vadd.f32 %v9065, %v9409
        %v9484 = vadd.f32 %v9066, %v9412
        %v9485 = vadd.f32 %v9067, %v9417
        %v9486 = vadd.f32 %v9068, %v9420
        %v9488 = vshrl.u32 %v6006, 16
        %v9490 = vshll.u32 %v6006, 16
        %v9492 = vrot.slane %v9490, 1
        %v9493 = vor.u32 %v9488, %v9492
        %v9495 = vshll.u32 %v6007, 16
        %v9497 = vrot.slane %v9495, 1
        %v9498 = vsel %vm1362, %v9493, %v9497
        %v9500 = vshrl.u32 %v6042, 16
        %v9502 = vshll.u32 %v6042, 16
        %v9504 = vrot.slane %v9502, 1
        %v9505 = vor.u32 %v9500, %v9504
        %v9507 = vshll.u32 %v6043, 16
        %v9509 = vrot.slane %v9507, 1
        %v9510 = vsel %vm1362, %v9505, %v9509
        %s9513 = scalar_lea.vmem [#allocation9], 448
        %v9514 = vld [vmem:[%s9513] sm:$0xf]
        %v9515 = vld [vmem:[%s9513 + $0x4] sm:$0xf]
        %v9516 = vld [vmem:[%s9513 + $0x8] sm:$0xf]
        %v9517 = vld [vmem:[%s9513 + $0xc] sm:$0xf]
        %v9518 = vld [vmem:[%s9513 + $0x10] sm:$0xf]
        %v9519 = vld [vmem:[%s9513 + $0x14] sm:$0xf]
        %v9520 = vld [vmem:[%s9513 + $0x18] sm:$0xf]
        %v9521 = vld [vmem:[%s9513 + $0x1c] sm:$0xf]
        %v9522 = vld [vmem:[%s9513 + $0x20] sm:$0xf]
        %v9523 = vld [vmem:[%s9513 + $0x24] sm:$0xf]
        %v9524 = vld [vmem:[%s9513 + $0x28] sm:$0xf]
        %v9525 = vld [vmem:[%s9513 + $0x2c] sm:$0xf]
        %v9526 = vld [vmem:[%s9513 + $0x30] sm:$0xf]
        %v9527 = vld [vmem:[%s9513 + $0x34] sm:$0xf]
        %v9528 = vld [vmem:[%s9513 + $0x38] sm:$0xf]
        %v9529 = vld [vmem:[%s9513 + $0x3c] sm:$0xf]
        %v9546 = vunpack.c.l.b16 %v9514
        %v9547 = vunpack.c.l.b16 %v9515
        %v9548 = vunpack.c.l.b16 %v9516
        %v9549 = vunpack.c.l.b16 %v9517
        %v9550 = vunpack.c.l.b16 %v9518
        %v9551 = vunpack.c.l.b16 %v9519
        %v9552 = vunpack.c.l.b16 %v9520
        %v9553 = vunpack.c.l.b16 %v9521
        %v9554 = vunpack.c.l.b16 %v9522
        %v9555 = vunpack.c.l.b16 %v9523
        %v9556 = vunpack.c.l.b16 %v9524
        %v9557 = vunpack.c.l.b16 %v9525
        %v9558 = vunpack.c.l.b16 %v9526
        %v9559 = vunpack.c.l.b16 %v9527
        %v9560 = vunpack.c.l.b16 %v9528
        %v9561 = vunpack.c.l.b16 %v9529
        %v9562 = vpack.c.b16 %v9547, %v9546
        %v9563 = vpack.c.b16 %v9549, %v9548
        %v9564 = vpack.c.b16 %v9551, %v9550
        %v9565 = vpack.c.b16 %v9553, %v9552
        %v9566 = vpack.c.b16 %v9555, %v9554
        %v9567 = vpack.c.b16 %v9557, %v9556
        %v9568 = vpack.c.b16 %v9559, %v9558
        %v9569 = vpack.c.b16 %v9561, %v9560
        %9578 = vmatprep.subr.bf16.mxu0 0
        %9579 = vmatpush1.bf16.msra.mxu0 %v9569
        %9580 = vmatprep.subr.bf16.mxu0 0
        %9581 = vmatpush1.bf16.msra.mxu0 %v9568
        %9582 = vmatprep.subr.bf16.mxu0 0
        %9583 = vmatpush1.bf16.msra.mxu0 %v9567
        %9584 = vmatprep.subr.bf16.mxu0 0
        %9585 = vmatpush1.bf16.msra.mxu0 %v9566
        %9586 = vmatprep.subr.bf16.mxu0 0
        %9587 = vmatpush1.bf16.msra.mxu0 %v9565
        %9588 = vmatprep.subr.bf16.mxu0 0
        %9589 = vmatpush1.bf16.msra.mxu0 %v9564
        %9590 = vmatprep.subr.bf16.mxu0 0
        %9591 = vmatpush1.bf16.msra.mxu0 %v9563
        %9592 = vmatprep.subr.bf16.mxu0 0
        %9593 = vmatpush1.bf16.msra.mxu0 %v9562
        %9594 = vmatprep.subr.bf16.mxu0 0
        %9595 = vmatpush2.bf16.msra.mxu0 0
        %9596 = vmatprep.subr.bf16.mxu0 0
        %9597 = vmatpush2.bf16.msra.mxu0 0
        %9598 = vmatprep.subr.bf16.mxu0 0
        %9599 = vmatpush2.bf16.msra.mxu0 0
        %9600 = vmatprep.subr.bf16.mxu0 0
        %9601 = vmatpush2.bf16.msra.mxu0 0
        %9602 = vmatprep.subr.bf16.mxu0 0
        %9603 = vmatpush2.bf16.msra.mxu0 0
        %9604 = vmatprep.subr.bf16.mxu0 0
        %9605 = vmatpush2.bf16.msra.mxu0 0
        %9606 = vmatprep.subr.bf16.mxu0 0
        %9607 = vmatpush2.bf16.msra.mxu0 0
        %9608 = vmatprep.subr.bf16.mxu0 0
        %9609 = vmatpush2.bf16.msra.mxu0 0
        %9610 = vmatprep.mubr.bf16.mxu0 0
        %9611 = vmatmul.mubr.bf16.gmra.mxu0 %v6095
        %v9612 = vpop.f32.mrf.mxu0
        %v9613 = vadd.f32 0.0, %v9612
        %v9614 = vpop.f32.mrf.mxu0
        %v9615 = vpop.f32.mrf.mxu0
        %v9616 = vadd.f32 0.0, %v9615
        %v9617 = vpop.f32.mrf.mxu0
        %9618 = vmatprep.mubr.bf16.mxu0 0
        %9619 = vmatmul.mubr.bf16.gmra.mxu0 %v6107
        %v9620 = vpop.f32.mrf.mxu0
        %v9621 = vadd.f32 0.0, %v9620
        %v9622 = vpop.f32.mrf.mxu0
        %v9623 = vpop.f32.mrf.mxu0
        %v9624 = vadd.f32 0.0, %v9623
        %v9625 = vpop.f32.mrf.mxu0
        %9626 = vmatprep.mubr.bf16.mxu0 0
        %9627 = vmatmul.mubr.bf16.gmra.mxu0 %v6119
        %v9628 = vpop.f32.mrf.mxu0
        %v9629 = vadd.f32 0.0, %v9628
        %v9630 = vpop.f32.mrf.mxu0
        %v9631 = vpop.f32.mrf.mxu0
        %v9632 = vadd.f32 0.0, %v9631
        %v9633 = vpop.f32.mrf.mxu0
        %9634 = vmatprep.mubr.bf16.mxu0 0
        %9635 = vmatmul.mubr.bf16.gmra.mxu0 %v6131
        %v9636 = vpop.f32.mrf.mxu0
        %v9637 = vadd.f32 0.0, %v9636
        %v9638 = vpop.f32.mrf.mxu0
        %v9639 = vpop.f32.mrf.mxu0
        %v9640 = vadd.f32 0.0, %v9639
        %v9641 = vpop.f32.mrf.mxu0
        %9642 = vmatprep.mubr.bf16.mxu0 0
        %9643 = vmatmul.mubr.bf16.gmra.mxu0 %v6143
        %v9644 = vpop.f32.mrf.mxu0
        %v9645 = vadd.f32 0.0, %v9644
        %v9646 = vpop.f32.mrf.mxu0
        %v9647 = vpop.f32.mrf.mxu0
        %v9648 = vadd.f32 0.0, %v9647
        %v9649 = vpop.f32.mrf.mxu0
        %9650 = vmatprep.mubr.bf16.mxu0 0
        %9651 = vmatmul.mubr.bf16.gmra.mxu0 %v6155
        %v9652 = vpop.f32.mrf.mxu0
        %v9653 = vadd.f32 0.0, %v9652
        %v9654 = vpop.f32.mrf.mxu0
        %v9655 = vpop.f32.mrf.mxu0
        %v9656 = vadd.f32 0.0, %v9655
        %v9657 = vpop.f32.mrf.mxu0
        %9658 = vmatprep.mubr.bf16.mxu0 0
        %9659 = vmatmul.mubr.bf16.gmra.mxu0 %v6167
        %v9660 = vpop.f32.mrf.mxu0
        %v9661 = vadd.f32 0.0, %v9660
        %v9662 = vpop.f32.mrf.mxu0
        %v9663 = vpop.f32.mrf.mxu0
        %v9664 = vadd.f32 0.0, %v9663
        %v9665 = vpop.f32.mrf.mxu0
        %9666 = vmatprep.mubr.bf16.mxu0 0
        %9667 = vmatmul.mubr.bf16.gmra.mxu0 %v6179
        %v9668 = vpop.f32.mrf.mxu0
        %v9669 = vadd.f32 0.0, %v9668
        %v9670 = vpop.f32.mrf.mxu0
        %v9671 = vpop.f32.mrf.mxu0
        %v9672 = vadd.f32 0.0, %v9671
        %v9673 = vpop.f32.mrf.mxu0
        %9674 = vmatprep.mubr.bf16.mxu0 0
        %9675 = vmatmul.mubr.bf16.gmra.mxu0 %v6191
        %v9676 = vpop.f32.mrf.mxu0
        %v9677 = vadd.f32 0.0, %v9676
        %v9678 = vpop.f32.mrf.mxu0
        %v9679 = vpop.f32.mrf.mxu0
        %v9680 = vadd.f32 0.0, %v9679
        %v9681 = vpop.f32.mrf.mxu0
        %9682 = vmatprep.mubr.bf16.mxu0 0
        %9683 = vmatmul.mubr.bf16.gmra.mxu0 %v6203
        %v9684 = vpop.f32.mrf.mxu0
        %v9685 = vadd.f32 0.0, %v9684
        %v9686 = vpop.f32.mrf.mxu0
        %v9687 = vpop.f32.mrf.mxu0
        %v9688 = vadd.f32 0.0, %v9687
        %v9689 = vpop.f32.mrf.mxu0
        %9690 = vmatprep.mubr.bf16.mxu0 0
        %9691 = vmatmul.mubr.bf16.gmra.mxu0 %v6215
        %v9692 = vpop.f32.mrf.mxu0
        %v9693 = vadd.f32 0.0, %v9692
        %v9694 = vpop.f32.mrf.mxu0
        %v9695 = vpop.f32.mrf.mxu0
        %v9696 = vadd.f32 0.0, %v9695
        %v9697 = vpop.f32.mrf.mxu0
        %9698 = vmatprep.mubr.bf16.mxu0 0
        %9699 = vmatmul.mubr.bf16.gmra.mxu0 %v6227
        %v9700 = vpop.f32.mrf.mxu0
        %v9701 = vadd.f32 0.0, %v9700
        %v9702 = vpop.f32.mrf.mxu0
        %v9703 = vpop.f32.mrf.mxu0
        %v9704 = vadd.f32 0.0, %v9703
        %v9705 = vpop.f32.mrf.mxu0
        %9706 = vmatprep.mubr.bf16.mxu0 0
        %9707 = vmatmul.mubr.bf16.gmra.mxu0 %v6239
        %v9708 = vpop.f32.mrf.mxu0
        %v9709 = vadd.f32 0.0, %v9708
        %v9710 = vpop.f32.mrf.mxu0
        %v9711 = vpop.f32.mrf.mxu0
        %v9712 = vadd.f32 0.0, %v9711
        %v9713 = vpop.f32.mrf.mxu0
        %9714 = vmatprep.mubr.bf16.mxu0 0
        %9715 = vmatmul.mubr.bf16.gmra.mxu0 %v6251
        %v9716 = vpop.f32.mrf.mxu0
        %v9717 = vadd.f32 0.0, %v9716
        %v9718 = vpop.f32.mrf.mxu0
        %v9719 = vpop.f32.mrf.mxu0
        %v9720 = vadd.f32 0.0, %v9719
        %v9721 = vpop.f32.mrf.mxu0
        %9722 = vmatprep.mubr.bf16.mxu0 0
        %9723 = vmatmul.mubr.bf16.gmra.mxu0 %v8206
        %v9724 = vpop.f32.mrf.mxu0
        %v9725 = vadd.f32 0.0, %v9724
        %v9726 = vpop.f32.mrf.mxu0
        %v9727 = vpop.f32.mrf.mxu0
        %v9728 = vadd.f32 0.0, %v9727
        %v9729 = vpop.f32.mrf.mxu0
        %9730 = vmatprep.mubr.bf16.mxu0 0
        %9731 = vmatmul.mubr.bf16.gmra.mxu0 %v9498
        %v9732 = vpop.f32.mrf.mxu0
        %v9733 = vadd.f32 0.0, %v9732
        %v9734 = vpop.f32.mrf.mxu0
        %v9735 = vpop.f32.mrf.mxu0
        %v9736 = vadd.f32 0.0, %v9735
        %v9737 = vpop.f32.mrf.mxu0
        %9738 = vmatprep.mubr.bf16.mxu0 0
        %9739 = vmatmul.mubr.bf16.gmra.mxu0 %v6287
        %v9740 = vpop.f32.mrf.mxu0
        %v9741 = vadd.f32 0.0, %v9740
        %v9742 = vpop.f32.mrf.mxu0
        %v9743 = vpop.f32.mrf.mxu0
        %v9744 = vadd.f32 0.0, %v9743
        %v9745 = vpop.f32.mrf.mxu0
        %9746 = vmatprep.mubr.bf16.mxu0 0
        %9747 = vmatmul.mubr.bf16.gmra.mxu0 %v6299
        %v9748 = vpop.f32.mrf.mxu0
        %v9749 = vadd.f32 0.0, %v9748
        %v9750 = vpop.f32.mrf.mxu0
        %v9751 = vpop.f32.mrf.mxu0
        %v9752 = vadd.f32 0.0, %v9751
        %v9753 = vpop.f32.mrf.mxu0
        %9754 = vmatprep.mubr.bf16.mxu0 0
        %9755 = vmatmul.mubr.bf16.gmra.mxu0 %v6311
        %v9756 = vpop.f32.mrf.mxu0
        %v9757 = vadd.f32 0.0, %v9756
        %v9758 = vpop.f32.mrf.mxu0
        %v9759 = vpop.f32.mrf.mxu0
        %v9760 = vadd.f32 0.0, %v9759
        %v9761 = vpop.f32.mrf.mxu0
        %9762 = vmatprep.mubr.bf16.mxu0 0
        %9763 = vmatmul.mubr.bf16.gmra.mxu0 %v6323
        %v9764 = vpop.f32.mrf.mxu0
        %v9765 = vadd.f32 0.0, %v9764
        %v9766 = vpop.f32.mrf.mxu0
        %v9767 = vpop.f32.mrf.mxu0
        %v9768 = vadd.f32 0.0, %v9767
        %v9769 = vpop.f32.mrf.mxu0
        %9770 = vmatprep.mubr.bf16.mxu0 0
        %9771 = vmatmul.mubr.bf16.gmra.mxu0 %v6335
        %v9772 = vpop.f32.mrf.mxu0
        %v9773 = vadd.f32 0.0, %v9772
        %v9774 = vpop.f32.mrf.mxu0
        %v9775 = vpop.f32.mrf.mxu0
        %v9776 = vadd.f32 0.0, %v9775
        %v9777 = vpop.f32.mrf.mxu0
        %9778 = vmatprep.mubr.bf16.mxu0 0
        %9779 = vmatmul.mubr.bf16.gmra.mxu0 %v6347
        %v9780 = vpop.f32.mrf.mxu0
        %v9781 = vadd.f32 0.0, %v9780
        %v9782 = vpop.f32.mrf.mxu0
        %v9783 = vpop.f32.mrf.mxu0
        %v9784 = vadd.f32 0.0, %v9783
        %v9785 = vpop.f32.mrf.mxu0
        %9786 = vmatprep.mubr.bf16.mxu0 0
        %9787 = vmatmul.mubr.bf16.gmra.mxu0 %v6359
        %v9788 = vpop.f32.mrf.mxu0
        %v9789 = vadd.f32 0.0, %v9788
        %v9790 = vpop.f32.mrf.mxu0
        %v9791 = vpop.f32.mrf.mxu0
        %v9792 = vadd.f32 0.0, %v9791
        %v9793 = vpop.f32.mrf.mxu0
        %9794 = vmatprep.mubr.bf16.mxu0 0
        %9795 = vmatmul.mubr.bf16.gmra.mxu0 %v6371
        %v9796 = vpop.f32.mrf.mxu0
        %v9797 = vadd.f32 0.0, %v9796
        %v9798 = vpop.f32.mrf.mxu0
        %v9799 = vpop.f32.mrf.mxu0
        %v9800 = vadd.f32 0.0, %v9799
        %v9801 = vpop.f32.mrf.mxu0
        %9802 = vmatprep.mubr.bf16.mxu0 0
        %9803 = vmatmul.mubr.bf16.gmra.mxu0 %v6383
        %v9804 = vpop.f32.mrf.mxu0
        %v9805 = vadd.f32 0.0, %v9804
        %v9806 = vpop.f32.mrf.mxu0
        %v9807 = vpop.f32.mrf.mxu0
        %v9808 = vadd.f32 0.0, %v9807
        %v9809 = vpop.f32.mrf.mxu0
        %9810 = vmatprep.mubr.bf16.mxu0 0
        %9811 = vmatmul.mubr.bf16.gmra.mxu0 %v6395
        %v9812 = vpop.f32.mrf.mxu0
        %v9813 = vadd.f32 0.0, %v9812
        %v9814 = vpop.f32.mrf.mxu0
        %v9815 = vpop.f32.mrf.mxu0
        %v9816 = vadd.f32 0.0, %v9815
        %v9817 = vpop.f32.mrf.mxu0
        %9818 = vmatprep.mubr.bf16.mxu0 0
        %9819 = vmatmul.mubr.bf16.gmra.mxu0 %v6407
        %v9820 = vpop.f32.mrf.mxu0
        %v9821 = vadd.f32 0.0, %v9820
        %v9822 = vpop.f32.mrf.mxu0
        %v9823 = vpop.f32.mrf.mxu0
        %v9824 = vadd.f32 0.0, %v9823
        %v9825 = vpop.f32.mrf.mxu0
        %9826 = vmatprep.mubr.bf16.mxu0 0
        %9827 = vmatmul.mubr.bf16.gmra.mxu0 %v6419
        %v9828 = vpop.f32.mrf.mxu0
        %v9829 = vadd.f32 0.0, %v9828
        %v9830 = vpop.f32.mrf.mxu0
        %v9831 = vpop.f32.mrf.mxu0
        %v9832 = vadd.f32 0.0, %v9831
        %v9833 = vpop.f32.mrf.mxu0
        %9834 = vmatprep.mubr.bf16.mxu0 0
        %9835 = vmatmul.mubr.bf16.gmra.mxu0 %v6431
        %v9836 = vpop.f32.mrf.mxu0
        %v9837 = vadd.f32 0.0, %v9836
        %v9838 = vpop.f32.mrf.mxu0
        %v9839 = vpop.f32.mrf.mxu0
        %v9840 = vadd.f32 0.0, %v9839
        %v9841 = vpop.f32.mrf.mxu0
        %9842 = vmatprep.mubr.bf16.mxu0 0
        %9843 = vmatmul.mubr.bf16.gmra.mxu0 %v6443
        %v9844 = vpop.f32.mrf.mxu0
        %v9845 = vadd.f32 0.0, %v9844
        %v9846 = vpop.f32.mrf.mxu0
        %v9847 = vpop.f32.mrf.mxu0
        %v9848 = vadd.f32 0.0, %v9847
        %v9849 = vpop.f32.mrf.mxu0
        %9850 = vmatprep.mubr.bf16.mxu0 0
        %9851 = vmatmul.mubr.bf16.gmra.mxu0 %v8218
        %v9852 = vpop.f32.mrf.mxu0
        %v9853 = vadd.f32 0.0, %v9852
        %v9854 = vpop.f32.mrf.mxu0
        %v9855 = vpop.f32.mrf.mxu0
        %v9856 = vadd.f32 0.0, %v9855
        %v9857 = vpop.f32.mrf.mxu0
        %9858 = vmatprep.mubr.bf16.mxu0 0
        %9859 = vmatmul.mubr.bf16.gmra.mxu0 %v9510
        %v9860 = vpop.f32.mrf.mxu0
        %v9861 = vadd.f32 0.0, %v9860
        %v9862 = vpop.f32.mrf.mxu0
        %v9863 = vpop.f32.mrf.mxu0
        %v9864 = vadd.f32 0.0, %v9863
        %v9865 = vpop.f32.mrf.mxu0
        %9866 = vdwg.mxu0
        %v9867 = vadd.f32 %v9423, %v9613
        %v9868 = vadd.f32 %v9424, %v9616
        %v9869 = vadd.f32 %v9425, %v9621
        %v9870 = vadd.f32 %v9426, %v9624
        %v9871 = vadd.f32 %v9427, %v9629
        %v9872 = vadd.f32 %v9428, %v9632
        %v9873 = vadd.f32 %v9429, %v9637
        %v9874 = vadd.f32 %v9430, %v9640
        %v9875 = vadd.f32 %v9431, %v9645
        %v9876 = vadd.f32 %v9432, %v9648
        %v9877 = vadd.f32 %v9433, %v9653
        %v9878 = vadd.f32 %v9434, %v9656
        %v9879 = vadd.f32 %v9435, %v9661
        %v9880 = vadd.f32 %v9436, %v9664
        %v9881 = vadd.f32 %v9437, %v9669
        %v9882 = vadd.f32 %v9438, %v9672
        %v9883 = vadd.f32 %v9439, %v9677
        %v9884 = vadd.f32 %v9440, %v9680
        %v9885 = vadd.f32 %v9441, %v9685
        %v9886 = vadd.f32 %v9442, %v9688
        %v9887 = vadd.f32 %v9443, %v9693
        %v9888 = vadd.f32 %v9444, %v9696
        %v9889 = vadd.f32 %v9445, %v9701
        %v9890 = vadd.f32 %v9446, %v9704
        %v9891 = vadd.f32 %v9447, %v9709
        %v9892 = vadd.f32 %v9448, %v9712
        %v9893 = vadd.f32 %v9449, %v9717
        %v9894 = vadd.f32 %v9450, %v9720
        %v9895 = vadd.f32 %v9451, %v9725
        %v9896 = vadd.f32 %v9452, %v9728
        %v9897 = vadd.f32 %v9453, %v9733
        %v9898 = vadd.f32 %v9454, %v9736
        %v9899 = vadd.f32 %v9455, %v9741
        %v9900 = vadd.f32 %v9456, %v9744
        %v9901 = vadd.f32 %v9457, %v9749
        %v9902 = vadd.f32 %v9458, %v9752
        %v9903 = vadd.f32 %v9459, %v9757
        %v9904 = vadd.f32 %v9460, %v9760
        %v9905 = vadd.f32 %v9461, %v9765
        %v9906 = vadd.f32 %v9462, %v9768
        %v9907 = vadd.f32 %v9463, %v9773
        %v9908 = vadd.f32 %v9464, %v9776
        %v9909 = vadd.f32 %v9465, %v9781
        %v9910 = vadd.f32 %v9466, %v9784
        %v9911 = vadd.f32 %v9467, %v9789
        %v9912 = vadd.f32 %v9468, %v9792
        %v9913 = vadd.f32 %v9469, %v9797
        %v9914 = vadd.f32 %v9470, %v9800
        %v9915 = vadd.f32 %v9471, %v9805
        %v9916 = vadd.f32 %v9472, %v9808
        %v9917 = vadd.f32 %v9473, %v9813
        %v9918 = vadd.f32 %v9474, %v9816
        %v9919 = vadd.f32 %v9475, %v9821
        %v9920 = vadd.f32 %v9476, %v9824
        %v9921 = vadd.f32 %v9477, %v9829
        %v9922 = vadd.f32 %v9478, %v9832
        %v9923 = vadd.f32 %v9479, %v9837
        %v9924 = vadd.f32 %v9480, %v9840
        %v9925 = vadd.f32 %v9481, %v9845
        %v9926 = vadd.f32 %v9482, %v9848
        %v9927 = vadd.f32 %v9483, %v9853
        %v9928 = vadd.f32 %v9484, %v9856
        %v9929 = vadd.f32 %v9485, %v9861
        %v9930 = vadd.f32 %v9486, %v9864
        %v9935 = vrot.slane %v6006, 1
        %v9936 = vrot.slane %v6007, 1
        %v9937 = vsel %vm2534, %v9935, %v9936
        %v9938 = vrot.slane %v6042, 1
        %v9939 = vrot.slane %v6043, 1
        %v9940 = vsel %vm2534, %v9938, %v9939
        %s9943 = scalar_lea.vmem [#allocation9], 512
        %v9944 = vld [vmem:[%s9943] sm:$0xf]
        %v9945 = vld [vmem:[%s9943 + $0x4] sm:$0xf]
        %v9946 = vld [vmem:[%s9943 + $0x8] sm:$0xf]
        %v9947 = vld [vmem:[%s9943 + $0xc] sm:$0xf]
        %v9948 = vld [vmem:[%s9943 + $0x10] sm:$0xf]
        %v9949 = vld [vmem:[%s9943 + $0x14] sm:$0xf]
        %v9950 = vld [vmem:[%s9943 + $0x18] sm:$0xf]
        %v9951 = vld [vmem:[%s9943 + $0x1c] sm:$0xf]
        %v9952 = vld [vmem:[%s9943 + $0x20] sm:$0xf]
        %v9953 = vld [vmem:[%s9943 + $0x24] sm:$0xf]
        %v9954 = vld [vmem:[%s9943 + $0x28] sm:$0xf]
        %v9955 = vld [vmem:[%s9943 + $0x2c] sm:$0xf]
        %v9956 = vld [vmem:[%s9943 + $0x30] sm:$0xf]
        %v9957 = vld [vmem:[%s9943 + $0x34] sm:$0xf]
        %v9958 = vld [vmem:[%s9943 + $0x38] sm:$0xf]
        %v9959 = vld [vmem:[%s9943 + $0x3c] sm:$0xf]
        %v9976 = vunpack.c.l.b16 %v9944
        %v9977 = vunpack.c.l.b16 %v9945
        %v9978 = vunpack.c.l.b16 %v9946
        %v9979 = vunpack.c.l.b16 %v9947
        %v9980 = vunpack.c.l.b16 %v9948
        %v9981 = vunpack.c.l.b16 %v9949
        %v9982 = vunpack.c.l.b16 %v9950
        %v9983 = vunpack.c.l.b16 %v9951
        %v9984 = vunpack.c.l.b16 %v9952
        %v9985 = vunpack.c.l.b16 %v9953
        %v9986 = vunpack.c.l.b16 %v9954
        %v9987 = vunpack.c.l.b16 %v9955
        %v9988 = vunpack.c.l.b16 %v9956
        %v9989 = vunpack.c.l.b16 %v9957
        %v9990 = vunpack.c.l.b16 %v9958
        %v9991 = vunpack.c.l.b16 %v9959
        %v9992 = vpack.c.b16 %v9977, %v9976
        %v9993 = vpack.c.b16 %v9979, %v9978
        %v9994 = vpack.c.b16 %v9981, %v9980
        %v9995 = vpack.c.b16 %v9983, %v9982
        %v9996 = vpack.c.b16 %v9985, %v9984
        %v9997 = vpack.c.b16 %v9987, %v9986
        %v9998 = vpack.c.b16 %v9989, %v9988
        %v9999 = vpack.c.b16 %v9991, %v9990
        %10008 = vmatprep.subr.bf16.mxu0 0
        %10009 = vmatpush1.bf16.msra.mxu0 %v9999
        %10010 = vmatprep.subr.bf16.mxu0 0
        %10011 = vmatpush1.bf16.msra.mxu0 %v9998
        %10012 = vmatprep.subr.bf16.mxu0 0
        %10013 = vmatpush1.bf16.msra.mxu0 %v9997
        %10014 = vmatprep.subr.bf16.mxu0 0
        %10015 = vmatpush1.bf16.msra.mxu0 %v9996
        %10016 = vmatprep.subr.bf16.mxu0 0
        %10017 = vmatpush1.bf16.msra.mxu0 %v9995
        %10018 = vmatprep.subr.bf16.mxu0 0
        %10019 = vmatpush1.bf16.msra.mxu0 %v9994
        %10020 = vmatprep.subr.bf16.mxu0 0
        %10021 = vmatpush1.bf16.msra.mxu0 %v9993
        %10022 = vmatprep.subr.bf16.mxu0 0
        %10023 = vmatpush1.bf16.msra.mxu0 %v9992
        %10024 = vmatprep.subr.bf16.mxu0 0
        %10025 = vmatpush2.bf16.msra.mxu0 0
        %10026 = vmatprep.subr.bf16.mxu0 0
        %10027 = vmatpush2.bf16.msra.mxu0 0
        %10028 = vmatprep.subr.bf16.mxu0 0
        %10029 = vmatpush2.bf16.msra.mxu0 0
        %10030 = vmatprep.subr.bf16.mxu0 0
        %10031 = vmatpush2.bf16.msra.mxu0 0
        %10032 = vmatprep.subr.bf16.mxu0 0
        %10033 = vmatpush2.bf16.msra.mxu0 0
        %10034 = vmatprep.subr.bf16.mxu0 0
        %10035 = vmatpush2.bf16.msra.mxu0 0
        %10036 = vmatprep.subr.bf16.mxu0 0
        %10037 = vmatpush2.bf16.msra.mxu0 0
        %10038 = vmatprep.subr.bf16.mxu0 0
        %10039 = vmatpush2.bf16.msra.mxu0 0
        %10040 = vmatprep.mubr.bf16.mxu0 0
        %10041 = vmatmul.mubr.bf16.gmra.mxu0 %v7239
        %v10042 = vpop.f32.mrf.mxu0
        %v10043 = vadd.f32 0.0, %v10042
        %v10044 = vpop.f32.mrf.mxu0
        %v10045 = vpop.f32.mrf.mxu0
        %v10046 = vadd.f32 0.0, %v10045
        %v10047 = vpop.f32.mrf.mxu0
        %10048 = vmatprep.mubr.bf16.mxu0 0
        %10049 = vmatmul.mubr.bf16.gmra.mxu0 %v7242
        %v10050 = vpop.f32.mrf.mxu0
        %v10051 = vadd.f32 0.0, %v10050
        %v10052 = vpop.f32.mrf.mxu0
        %v10053 = vpop.f32.mrf.mxu0
        %v10054 = vadd.f32 0.0, %v10053
        %v10055 = vpop.f32.mrf.mxu0
        %10056 = vmatprep.mubr.bf16.mxu0 0
        %10057 = vmatmul.mubr.bf16.gmra.mxu0 %v7245
        %v10058 = vpop.f32.mrf.mxu0
        %v10059 = vadd.f32 0.0, %v10058
        %v10060 = vpop.f32.mrf.mxu0
        %v10061 = vpop.f32.mrf.mxu0
        %v10062 = vadd.f32 0.0, %v10061
        %v10063 = vpop.f32.mrf.mxu0
        %10064 = vmatprep.mubr.bf16.mxu0 0
        %10065 = vmatmul.mubr.bf16.gmra.mxu0 %v7248
        %v10066 = vpop.f32.mrf.mxu0
        %v10067 = vadd.f32 0.0, %v10066
        %v10068 = vpop.f32.mrf.mxu0
        %v10069 = vpop.f32.mrf.mxu0
        %v10070 = vadd.f32 0.0, %v10069
        %v10071 = vpop.f32.mrf.mxu0
        %10072 = vmatprep.mubr.bf16.mxu0 0
        %10073 = vmatmul.mubr.bf16.gmra.mxu0 %v7251
        %v10074 = vpop.f32.mrf.mxu0
        %v10075 = vadd.f32 0.0, %v10074
        %v10076 = vpop.f32.mrf.mxu0
        %v10077 = vpop.f32.mrf.mxu0
        %v10078 = vadd.f32 0.0, %v10077
        %v10079 = vpop.f32.mrf.mxu0
        %10080 = vmatprep.mubr.bf16.mxu0 0
        %10081 = vmatmul.mubr.bf16.gmra.mxu0 %v7254
        %v10082 = vpop.f32.mrf.mxu0
        %v10083 = vadd.f32 0.0, %v10082
        %v10084 = vpop.f32.mrf.mxu0
        %v10085 = vpop.f32.mrf.mxu0
        %v10086 = vadd.f32 0.0, %v10085
        %v10087 = vpop.f32.mrf.mxu0
        %10088 = vmatprep.mubr.bf16.mxu0 0
        %10089 = vmatmul.mubr.bf16.gmra.mxu0 %v7257
        %v10090 = vpop.f32.mrf.mxu0
        %v10091 = vadd.f32 0.0, %v10090
        %v10092 = vpop.f32.mrf.mxu0
        %v10093 = vpop.f32.mrf.mxu0
        %v10094 = vadd.f32 0.0, %v10093
        %v10095 = vpop.f32.mrf.mxu0
        %10096 = vmatprep.mubr.bf16.mxu0 0
        %10097 = vmatmul.mubr.bf16.gmra.mxu0 %v7260
        %v10098 = vpop.f32.mrf.mxu0
        %v10099 = vadd.f32 0.0, %v10098
        %v10100 = vpop.f32.mrf.mxu0
        %v10101 = vpop.f32.mrf.mxu0
        %v10102 = vadd.f32 0.0, %v10101
        %v10103 = vpop.f32.mrf.mxu0
        %10104 = vmatprep.mubr.bf16.mxu0 0
        %10105 = vmatmul.mubr.bf16.gmra.mxu0 %v7263
        %v10106 = vpop.f32.mrf.mxu0
        %v10107 = vadd.f32 0.0, %v10106
        %v10108 = vpop.f32.mrf.mxu0
        %v10109 = vpop.f32.mrf.mxu0
        %v10110 = vadd.f32 0.0, %v10109
        %v10111 = vpop.f32.mrf.mxu0
        %10112 = vmatprep.mubr.bf16.mxu0 0
        %10113 = vmatmul.mubr.bf16.gmra.mxu0 %v7266
        %v10114 = vpop.f32.mrf.mxu0
        %v10115 = vadd.f32 0.0, %v10114
        %v10116 = vpop.f32.mrf.mxu0
        %v10117 = vpop.f32.mrf.mxu0
        %v10118 = vadd.f32 0.0, %v10117
        %v10119 = vpop.f32.mrf.mxu0
        %10120 = vmatprep.mubr.bf16.mxu0 0
        %10121 = vmatmul.mubr.bf16.gmra.mxu0 %v7269
        %v10122 = vpop.f32.mrf.mxu0
        %v10123 = vadd.f32 0.0, %v10122
        %v10124 = vpop.f32.mrf.mxu0
        %v10125 = vpop.f32.mrf.mxu0
        %v10126 = vadd.f32 0.0, %v10125
        %v10127 = vpop.f32.mrf.mxu0
        %10128 = vmatprep.mubr.bf16.mxu0 0
        %10129 = vmatmul.mubr.bf16.gmra.mxu0 %v7272
        %v10130 = vpop.f32.mrf.mxu0
        %v10131 = vadd.f32 0.0, %v10130
        %v10132 = vpop.f32.mrf.mxu0
        %v10133 = vpop.f32.mrf.mxu0
        %v10134 = vadd.f32 0.0, %v10133
        %v10135 = vpop.f32.mrf.mxu0
        %10136 = vmatprep.mubr.bf16.mxu0 0
        %10137 = vmatmul.mubr.bf16.gmra.mxu0 %v7275
        %v10138 = vpop.f32.mrf.mxu0
        %v10139 = vadd.f32 0.0, %v10138
        %v10140 = vpop.f32.mrf.mxu0
        %v10141 = vpop.f32.mrf.mxu0
        %v10142 = vadd.f32 0.0, %v10141
        %v10143 = vpop.f32.mrf.mxu0
        %10144 = vmatprep.mubr.bf16.mxu0 0
        %10145 = vmatmul.mubr.bf16.gmra.mxu0 %v7278
        %v10146 = vpop.f32.mrf.mxu0
        %v10147 = vadd.f32 0.0, %v10146
        %v10148 = vpop.f32.mrf.mxu0
        %v10149 = vpop.f32.mrf.mxu0
        %v10150 = vadd.f32 0.0, %v10149
        %v10151 = vpop.f32.mrf.mxu0
        %10152 = vmatprep.mubr.bf16.mxu0 0
        %10153 = vmatmul.mubr.bf16.gmra.mxu0 %v8645
        %v10154 = vpop.f32.mrf.mxu0
        %v10155 = vadd.f32 0.0, %v10154
        %v10156 = vpop.f32.mrf.mxu0
        %v10157 = vpop.f32.mrf.mxu0
        %v10158 = vadd.f32 0.0, %v10157
        %v10159 = vpop.f32.mrf.mxu0
        %10160 = vmatprep.mubr.bf16.mxu0 0
        %10161 = vmatmul.mubr.bf16.gmra.mxu0 %v9937
        %v10162 = vpop.f32.mrf.mxu0
        %v10163 = vadd.f32 0.0, %v10162
        %v10164 = vpop.f32.mrf.mxu0
        %v10165 = vpop.f32.mrf.mxu0
        %v10166 = vadd.f32 0.0, %v10165
        %v10167 = vpop.f32.mrf.mxu0
        %10168 = vmatprep.mubr.bf16.mxu0 0
        %10169 = vmatmul.mubr.bf16.gmra.mxu0 %v7287
        %v10170 = vpop.f32.mrf.mxu0
        %v10171 = vadd.f32 0.0, %v10170
        %v10172 = vpop.f32.mrf.mxu0
        %v10173 = vpop.f32.mrf.mxu0
        %v10174 = vadd.f32 0.0, %v10173
        %v10175 = vpop.f32.mrf.mxu0
        %10176 = vmatprep.mubr.bf16.mxu0 0
        %10177 = vmatmul.mubr.bf16.gmra.mxu0 %v7290
        %v10178 = vpop.f32.mrf.mxu0
        %v10179 = vadd.f32 0.0, %v10178
        %v10180 = vpop.f32.mrf.mxu0
        %v10181 = vpop.f32.mrf.mxu0
        %v10182 = vadd.f32 0.0, %v10181
        %v10183 = vpop.f32.mrf.mxu0
        %10184 = vmatprep.mubr.bf16.mxu0 0
        %10185 = vmatmul.mubr.bf16.gmra.mxu0 %v7293
        %v10186 = vpop.f32.mrf.mxu0
        %v10187 = vadd.f32 0.0, %v10186
        %v10188 = vpop.f32.mrf.mxu0
        %v10189 = vpop.f32.mrf.mxu0
        %v10190 = vadd.f32 0.0, %v10189
        %v10191 = vpop.f32.mrf.mxu0
        %10192 = vmatprep.mubr.bf16.mxu0 0
        %10193 = vmatmul.mubr.bf16.gmra.mxu0 %v7296
        %v10194 = vpop.f32.mrf.mxu0
        %v10195 = vadd.f32 0.0, %v10194
        %v10196 = vpop.f32.mrf.mxu0
        %v10197 = vpop.f32.mrf.mxu0
        %v10198 = vadd.f32 0.0, %v10197
        %v10199 = vpop.f32.mrf.mxu0
        %10200 = vmatprep.mubr.bf16.mxu0 0
        %10201 = vmatmul.mubr.bf16.gmra.mxu0 %v7299
        %v10202 = vpop.f32.mrf.mxu0
        %v10203 = vadd.f32 0.0, %v10202
        %v10204 = vpop.f32.mrf.mxu0
        %v10205 = vpop.f32.mrf.mxu0
        %v10206 = vadd.f32 0.0, %v10205
        %v10207 = vpop.f32.mrf.mxu0
        %10208 = vmatprep.mubr.bf16.mxu0 0
        %10209 = vmatmul.mubr.bf16.gmra.mxu0 %v7302
        %v10210 = vpop.f32.mrf.mxu0
        %v10211 = vadd.f32 0.0, %v10210
        %v10212 = vpop.f32.mrf.mxu0
        %v10213 = vpop.f32.mrf.mxu0
        %v10214 = vadd.f32 0.0, %v10213
        %v10215 = vpop.f32.mrf.mxu0
        %10216 = vmatprep.mubr.bf16.mxu0 0
        %10217 = vmatmul.mubr.bf16.gmra.mxu0 %v7305
        %v10218 = vpop.f32.mrf.mxu0
        %v10219 = vadd.f32 0.0, %v10218
        %v10220 = vpop.f32.mrf.mxu0
        %v10221 = vpop.f32.mrf.mxu0
        %v10222 = vadd.f32 0.0, %v10221
        %v10223 = vpop.f32.mrf.mxu0
        %10224 = vmatprep.mubr.bf16.mxu0 0
        %10225 = vmatmul.mubr.bf16.gmra.mxu0 %v7308
        %v10226 = vpop.f32.mrf.mxu0
        %v10227 = vadd.f32 0.0, %v10226
        %v10228 = vpop.f32.mrf.mxu0
        %v10229 = vpop.f32.mrf.mxu0
        %v10230 = vadd.f32 0.0, %v10229
        %v10231 = vpop.f32.mrf.mxu0
        %10232 = vmatprep.mubr.bf16.mxu0 0
        %10233 = vmatmul.mubr.bf16.gmra.mxu0 %v7311
        %v10234 = vpop.f32.mrf.mxu0
        %v10235 = vadd.f32 0.0, %v10234
        %v10236 = vpop.f32.mrf.mxu0
        %v10237 = vpop.f32.mrf.mxu0
        %v10238 = vadd.f32 0.0, %v10237
        %v10239 = vpop.f32.mrf.mxu0
        %10240 = vmatprep.mubr.bf16.mxu0 0
        %10241 = vmatmul.mubr.bf16.gmra.mxu0 %v7314
        %v10242 = vpop.f32.mrf.mxu0
        %v10243 = vadd.f32 0.0, %v10242
        %v10244 = vpop.f32.mrf.mxu0
        %v10245 = vpop.f32.mrf.mxu0
        %v10246 = vadd.f32 0.0, %v10245
        %v10247 = vpop.f32.mrf.mxu0
        %10248 = vmatprep.mubr.bf16.mxu0 0
        %10249 = vmatmul.mubr.bf16.gmra.mxu0 %v7317
        %v10250 = vpop.f32.mrf.mxu0
        %v10251 = vadd.f32 0.0, %v10250
        %v10252 = vpop.f32.mrf.mxu0
        %v10253 = vpop.f32.mrf.mxu0
        %v10254 = vadd.f32 0.0, %v10253
        %v10255 = vpop.f32.mrf.mxu0
        %10256 = vmatprep.mubr.bf16.mxu0 0
        %10257 = vmatmul.mubr.bf16.gmra.mxu0 %v7320
        %v10258 = vpop.f32.mrf.mxu0
        %v10259 = vadd.f32 0.0, %v10258
        %v10260 = vpop.f32.mrf.mxu0
        %v10261 = vpop.f32.mrf.mxu0
        %v10262 = vadd.f32 0.0, %v10261
        %v10263 = vpop.f32.mrf.mxu0
        %10264 = vmatprep.mubr.bf16.mxu0 0
        %10265 = vmatmul.mubr.bf16.gmra.mxu0 %v7323
        %v10266 = vpop.f32.mrf.mxu0
        %v10267 = vadd.f32 0.0, %v10266
        %v10268 = vpop.f32.mrf.mxu0
        %v10269 = vpop.f32.mrf.mxu0
        %v10270 = vadd.f32 0.0, %v10269
        %v10271 = vpop.f32.mrf.mxu0
        %10272 = vmatprep.mubr.bf16.mxu0 0
        %10273 = vmatmul.mubr.bf16.gmra.mxu0 %v7326
        %v10274 = vpop.f32.mrf.mxu0
        %v10275 = vadd.f32 0.0, %v10274
        %v10276 = vpop.f32.mrf.mxu0
        %v10277 = vpop.f32.mrf.mxu0
        %v10278 = vadd.f32 0.0, %v10277
        %v10279 = vpop.f32.mrf.mxu0
        %10280 = vmatprep.mubr.bf16.mxu0 0
        %10281 = vmatmul.mubr.bf16.gmra.mxu0 %v8648
        %v10282 = vpop.f32.mrf.mxu0
        %v10283 = vadd.f32 0.0, %v10282
        %v10284 = vpop.f32.mrf.mxu0
        %v10285 = vpop.f32.mrf.mxu0
        %v10286 = vadd.f32 0.0, %v10285
        %v10287 = vpop.f32.mrf.mxu0
        %10288 = vmatprep.mubr.bf16.mxu0 0
        %10289 = vmatmul.mubr.bf16.gmra.mxu0 %v9940
        %v10290 = vpop.f32.mrf.mxu0
        %v10291 = vadd.f32 0.0, %v10290
        %v10292 = vpop.f32.mrf.mxu0
        %v10293 = vpop.f32.mrf.mxu0
        %v10294 = vadd.f32 0.0, %v10293
        %v10295 = vpop.f32.mrf.mxu0
        %10296 = vdwg.mxu0
        %v10297 = vadd.f32 %v9867, %v10043
        %v10298 = vadd.f32 %v9868, %v10046
        %v10299 = vadd.f32 %v9869, %v10051
        %v10300 = vadd.f32 %v9870, %v10054
        %v10301 = vadd.f32 %v9871, %v10059
        %v10302 = vadd.f32 %v9872, %v10062
        %v10303 = vadd.f32 %v9873, %v10067
        %v10304 = vadd.f32 %v9874, %v10070
        %v10305 = vadd.f32 %v9875, %v10075
        %v10306 = vadd.f32 %v9876, %v10078
        %v10307 = vadd.f32 %v9877, %v10083
        %v10308 = vadd.f32 %v9878, %v10086
        %v10309 = vadd.f32 %v9879, %v10091
        %v10310 = vadd.f32 %v9880, %v10094
        %v10311 = vadd.f32 %v9881, %v10099
        %v10312 = vadd.f32 %v9882, %v10102
        %v10313 = vadd.f32 %v9883, %v10107
        %v10314 = vadd.f32 %v9884, %v10110
        %v10315 = vadd.f32 %v9885, %v10115
        %v10316 = vadd.f32 %v9886, %v10118
        %v10317 = vadd.f32 %v9887, %v10123
        %v10318 = vadd.f32 %v9888, %v10126
        %v10319 = vadd.f32 %v9889, %v10131
        %v10320 = vadd.f32 %v9890, %v10134
        %v10321 = vadd.f32 %v9891, %v10139
        %v10322 = vadd.f32 %v9892, %v10142
        %v10323 = vadd.f32 %v9893, %v10147
        %v10324 = vadd.f32 %v9894, %v10150
        %v10325 = vadd.f32 %v9895, %v10155
        %v10326 = vadd.f32 %v9896, %v10158
        %v10327 = vadd.f32 %v9897, %v10163
        %v10328 = vadd.f32 %v9898, %v10166
        %v10329 = vadd.f32 %v9899, %v10171
        %v10330 = vadd.f32 %v9900, %v10174
        %v10331 = vadd.f32 %v9901, %v10179
        %v10332 = vadd.f32 %v9902, %v10182
        %v10333 = vadd.f32 %v9903, %v10187
        %v10334 = vadd.f32 %v9904, %v10190
        %v10335 = vadd.f32 %v9905, %v10195
        %v10336 = vadd.f32 %v9906, %v10198
        %v10337 = vadd.f32 %v9907, %v10203
        %v10338 = vadd.f32 %v9908, %v10206
        %v10339 = vadd.f32 %v9909, %v10211
        %v10340 = vadd.f32 %v9910, %v10214
        %v10341 = vadd.f32 %v9911, %v10219
        %v10342 = vadd.f32 %v9912, %v10222
        %v10343 = vadd.f32 %v9913, %v10227
        %v10344 = vadd.f32 %v9914, %v10230
        %v10345 = vadd.f32 %v9915, %v10235
        %v10346 = vadd.f32 %v9916, %v10238
        %v10347 = vadd.f32 %v9917, %v10243
        %v10348 = vadd.f32 %v9918, %v10246
        %v10349 = vadd.f32 %v9919, %v10251
        %v10350 = vadd.f32 %v9920, %v10254
        %v10351 = vadd.f32 %v9921, %v10259
        %v10352 = vadd.f32 %v9922, %v10262
        %v10353 = vadd.f32 %v9923, %v10267
        %v10354 = vadd.f32 %v9924, %v10270
        %v10355 = vadd.f32 %v9925, %v10275
        %v10356 = vadd.f32 %v9926, %v10278
        %v10357 = vadd.f32 %v9927, %v10283
        %v10358 = vadd.f32 %v9928, %v10286
        %v10359 = vadd.f32 %v9929, %v10291
        %v10360 = vadd.f32 %v9930, %v10294
        %v10361 = vld [vmem:[%s6] sm:$0x1]
        %v10363 = vlaneseq
        %v10364 = vshrl.u32 %v10363, 7
        %v10365 = vsub.s32 0, %v10364
        %v10366 = vrot.slane %v10361, %v10365
        %v10368 = vadd.f32 %v10297, %v10366
        %v10369 = vadd.f32 %v10298, %v10366
        %v10370 = vadd.f32 %v10299, %v10366
        %v10371 = vadd.f32 %v10300, %v10366
        %v10372 = vadd.f32 %v10301, %v10366
        %v10373 = vadd.f32 %v10302, %v10366
        %v10374 = vadd.f32 %v10303, %v10366
        %v10375 = vadd.f32 %v10304, %v10366
        %v10376 = vadd.f32 %v10305, %v10366
        %v10377 = vadd.f32 %v10306, %v10366
        %v10378 = vadd.f32 %v10307, %v10366
        %v10379 = vadd.f32 %v10308, %v10366
        %v10380 = vadd.f32 %v10309, %v10366
        %v10381 = vadd.f32 %v10310, %v10366
        %v10382 = vadd.f32 %v10311, %v10366
        %v10383 = vadd.f32 %v10312, %v10366
        %v10384 = vadd.f32 %v10313, %v10366
        %v10385 = vadd.f32 %v10314, %v10366
        %v10386 = vadd.f32 %v10315, %v10366
        %v10387 = vadd.f32 %v10316, %v10366
        %v10388 = vadd.f32 %v10317, %v10366
        %v10389 = vadd.f32 %v10318, %v10366
        %v10390 = vadd.f32 %v10319, %v10366
        %v10391 = vadd.f32 %v10320, %v10366
        %v10392 = vadd.f32 %v10321, %v10366
        %v10393 = vadd.f32 %v10322, %v10366
        %v10394 = vadd.f32 %v10323, %v10366
        %v10395 = vadd.f32 %v10324, %v10366
        %v10396 = vadd.f32 %v10325, %v10366
        %v10397 = vadd.f32 %v10326, %v10366
        %v10398 = vadd.f32 %v10327, %v10366
        %v10399 = vadd.f32 %v10328, %v10366
        %v10400 = vadd.f32 %v10329, %v10366
        %v10401 = vadd.f32 %v10330, %v10366
        %v10402 = vadd.f32 %v10331, %v10366
        %v10403 = vadd.f32 %v10332, %v10366
        %v10404 = vadd.f32 %v10333, %v10366
        %v10405 = vadd.f32 %v10334, %v10366
        %v10406 = vadd.f32 %v10335, %v10366
        %v10407 = vadd.f32 %v10336, %v10366
        %v10408 = vadd.f32 %v10337, %v10366
        %v10409 = vadd.f32 %v10338, %v10366
        %v10410 = vadd.f32 %v10339, %v10366
        %v10411 = vadd.f32 %v10340, %v10366
        %v10412 = vadd.f32 %v10341, %v10366
        %v10413 = vadd.f32 %v10342, %v10366
        %v10414 = vadd.f32 %v10343, %v10366
        %v10415 = vadd.f32 %v10344, %v10366
        %v10416 = vadd.f32 %v10345, %v10366
        %v10417 = vadd.f32 %v10346, %v10366
        %v10418 = vadd.f32 %v10347, %v10366
        %v10419 = vadd.f32 %v10348, %v10366
        %v10420 = vadd.f32 %v10349, %v10366
        %v10421 = vadd.f32 %v10350, %v10366
        %v10422 = vadd.f32 %v10351, %v10366
        %v10423 = vadd.f32 %v10352, %v10366
        %v10424 = vadd.f32 %v10353, %v10366
        %v10425 = vadd.f32 %v10354, %v10366
        %v10426 = vadd.f32 %v10355, %v10366
        %v10427 = vadd.f32 %v10356, %v10366
        %v10428 = vadd.f32 %v10357, %v10366
        %v10429 = vadd.f32 %v10358, %v10366
        %v10430 = vadd.f32 %v10359, %v10366
        %v10431 = vadd.f32 %v10360, %v10366
        %v10432 = vadd.f32 %v10368, %v1038
        %v10433 = vadd.f32 %v10369, %v1039
        %v10434 = vadd.f32 %v10370, %v1040
        %v10435 = vadd.f32 %v10371, %v1041
        %v10436 = vadd.f32 %v10372, %v1042
        %v10437 = vadd.f32 %v10373, %v1043
        %v10438 = vadd.f32 %v10374, %v1044
        %v10439 = vadd.f32 %v10375, %v1045
        %v10440 = vadd.f32 %v10376, %v1046
        %v10441 = vadd.f32 %v10377, %v1047
        %v10442 = vadd.f32 %v10378, %v1048
        %v10443 = vadd.f32 %v10379, %v1049
        %v10444 = vadd.f32 %v10380, %v1050
        %v10445 = vadd.f32 %v10381, %v1051
        %v10446 = vadd.f32 %v10382, %v1052
        %v10447 = vadd.f32 %v10383, %v1053
        %v10448 = vadd.f32 %v10384, %v1054
        %v10449 = vadd.f32 %v10385, %v1055
        %v10450 = vadd.f32 %v10386, %v1056
        %v10451 = vadd.f32 %v10387, %v1057
        %v10452 = vadd.f32 %v10388, %v1058
        %v10453 = vadd.f32 %v10389, %v1059
        %v10454 = vadd.f32 %v10390, %v1060
        %v10455 = vadd.f32 %v10391, %v1061
        %v10456 = vadd.f32 %v10392, %v1062
        %v10457 = vadd.f32 %v10393, %v1063
        %v10458 = vadd.f32 %v10394, %v1064
        %v10459 = vadd.f32 %v10395, %v1065
        %v10460 = vadd.f32 %v10396, %v1066
        %v10461 = vadd.f32 %v10397, %v1067
        %v10462 = vadd.f32 %v10398, %v1068
        %v10463 = vadd.f32 %v10399, %v1069
        %v10464 = vadd.f32 %v10400, %v1070
        %v10465 = vadd.f32 %v10401, %v1071
        %v10466 = vadd.f32 %v10402, %v1072
        %v10467 = vadd.f32 %v10403, %v1073
        %v10468 = vadd.f32 %v10404, %v1074
        %v10469 = vadd.f32 %v10405, %v1075
        %v10470 = vadd.f32 %v10406, %v1076
        %v10471 = vadd.f32 %v10407, %v1077
        %v10472 = vadd.f32 %v10408, %v1078
        %v10473 = vadd.f32 %v10409, %v1079
        %v10474 = vadd.f32 %v10410, %v1080
        %v10475 = vadd.f32 %v10411, %v1081
        %v10476 = vadd.f32 %v10412, %v1082
        %v10477 = vadd.f32 %v10413, %v1083
        %v10478 = vadd.f32 %v10414, %v1084
        %v10479 = vadd.f32 %v10415, %v1085
        %v10480 = vadd.f32 %v10416, %v1086
        %v10481 = vadd.f32 %v10417, %v1087
        %v10482 = vadd.f32 %v10418, %v1088
        %v10483 = vadd.f32 %v10419, %v1089
        %v10484 = vadd.f32 %v10420, %v1090
        %v10485 = vadd.f32 %v10421, %v1091
        %v10486 = vadd.f32 %v10422, %v1092
        %v10487 = vadd.f32 %v10423, %v1093
        %v10488 = vadd.f32 %v10424, %v1094
        %v10489 = vadd.f32 %v10425, %v1095
        %v10490 = vadd.f32 %v10426, %v1096
        %v10491 = vadd.f32 %v10427, %v1097
        %v10492 = vadd.f32 %v10428, %v1098
        %v10493 = vadd.f32 %v10429, %v1099
        %v10494 = vadd.f32 %v10430, %v1100
        %v10495 = vadd.f32 %v10431, %v1101
        %v10496 = vmax.f32 %v10432, 0.0
        %v10497 = vmax.f32 %v10433, 0.0
        %v10498 = vmax.f32 %v10434, 0.0
        %v10499 = vmax.f32 %v10435, 0.0
        %v10500 = vmax.f32 %v10436, 0.0
        %v10501 = vmax.f32 %v10437, 0.0
        %v10502 = vmax.f32 %v10438, 0.0
        %v10503 = vmax.f32 %v10439, 0.0
        %v10504 = vmax.f32 %v10440, 0.0
        %v10505 = vmax.f32 %v10441, 0.0
        %v10506 = vmax.f32 %v10442, 0.0
        %v10507 = vmax.f32 %v10443, 0.0
        %v10508 = vmax.f32 %v10444, 0.0
        %v10509 = vmax.f32 %v10445, 0.0
        %v10510 = vmax.f32 %v10446, 0.0
        %v10511 = vmax.f32 %v10447, 0.0
        %v10512 = vmax.f32 %v10448, 0.0
        %v10513 = vmax.f32 %v10449, 0.0
        %v10514 = vmax.f32 %v10450, 0.0
        %v10515 = vmax.f32 %v10451, 0.0
        %v10516 = vmax.f32 %v10452, 0.0
        %v10517 = vmax.f32 %v10453, 0.0
        %v10518 = vmax.f32 %v10454, 0.0
        %v10519 = vmax.f32 %v10455, 0.0
        %v10520 = vmax.f32 %v10456, 0.0
        %v10521 = vmax.f32 %v10457, 0.0
        %v10522 = vmax.f32 %v10458, 0.0
        %v10523 = vmax.f32 %v10459, 0.0
        %v10524 = vmax.f32 %v10460, 0.0
        %v10525 = vmax.f32 %v10461, 0.0
        %v10526 = vmax.f32 %v10462, 0.0
        %v10527 = vmax.f32 %v10463, 0.0
        %v10528 = vmax.f32 %v10464, 0.0
        %v10529 = vmax.f32 %v10465, 0.0
        %v10530 = vmax.f32 %v10466, 0.0
        %v10531 = vmax.f32 %v10467, 0.0
        %v10532 = vmax.f32 %v10468, 0.0
        %v10533 = vmax.f32 %v10469, 0.0
        %v10534 = vmax.f32 %v10470, 0.0
        %v10535 = vmax.f32 %v10471, 0.0
        %v10536 = vmax.f32 %v10472, 0.0
        %v10537 = vmax.f32 %v10473, 0.0
        %v10538 = vmax.f32 %v10474, 0.0
        %v10539 = vmax.f32 %v10475, 0.0
        %v10540 = vmax.f32 %v10476, 0.0
        %v10541 = vmax.f32 %v10477, 0.0
        %v10542 = vmax.f32 %v10478, 0.0
        %v10543 = vmax.f32 %v10479, 0.0
        %v10544 = vmax.f32 %v10480, 0.0
        %v10545 = vmax.f32 %v10481, 0.0
        %v10546 = vmax.f32 %v10482, 0.0
        %v10547 = vmax.f32 %v10483, 0.0
        %v10548 = vmax.f32 %v10484, 0.0
        %v10549 = vmax.f32 %v10485, 0.0
        %v10550 = vmax.f32 %v10486, 0.0
        %v10551 = vmax.f32 %v10487, 0.0
        %v10552 = vmax.f32 %v10488, 0.0
        %v10553 = vmax.f32 %v10489, 0.0
        %v10554 = vmax.f32 %v10490, 0.0
        %v10555 = vmax.f32 %v10491, 0.0
        %v10556 = vmax.f32 %v10492, 0.0
        %v10557 = vmax.f32 %v10493, 0.0
        %v10558 = vmax.f32 %v10494, 0.0
        %v10559 = vmax.f32 %v10495, 0.0
        %v10560 = vadd.f32 %v10496, %v10497
        %v10561 = vadd.f32 %v10560, %v10498
        %v10562 = vadd.f32 %v10561, %v10499
        %v10563 = vadd.f32 %v10562, %v10500
        %v10564 = vadd.f32 %v10563, %v10501
        %v10565 = vadd.f32 %v10564, %v10502
        %v10566 = vadd.f32 %v10565, %v10503
        %v10567 = vadd.f32 %v10566, %v10504
        %v10568 = vadd.f32 %v10567, %v10505
        %v10569 = vadd.f32 %v10568, %v10506
        %v10570 = vadd.f32 %v10569, %v10507
        %v10571 = vadd.f32 %v10570, %v10508
        %v10572 = vadd.f32 %v10571, %v10509
        %v10573 = vadd.f32 %v10572, %v10510
        %v10574 = vadd.f32 %v10573, %v10511
        %v10575 = vadd.f32 %v10574, %v10512
        %v10576 = vadd.f32 %v10575, %v10513
        %v10577 = vadd.f32 %v10576, %v10514
        %v10578 = vadd.f32 %v10577, %v10515
        %v10579 = vadd.f32 %v10578, %v10516
        %v10580 = vadd.f32 %v10579, %v10517
        %v10581 = vadd.f32 %v10580, %v10518
        %v10582 = vadd.f32 %v10581, %v10519
        %v10583 = vadd.f32 %v10582, %v10520
        %v10584 = vadd.f32 %v10583, %v10521
        %v10585 = vadd.f32 %v10584, %v10522
        %v10586 = vadd.f32 %v10585, %v10523
        %v10587 = vadd.f32 %v10586, %v10524
        %v10588 = vadd.f32 %v10587, %v10525
        %v10589 = vadd.f32 %v10588, %v10526
        %v10590 = vadd.f32 %v10589, %v10527
        %v10591 = vrot.slane %v10590, 4
        %v10592 = vadd.f32 %v10590, %v10591
        %v10593 = vrot.slane %v10592, 2
        %v10594 = vadd.f32 %v10592, %v10593
        %v10595 = vrot.slane %v10594, 1
        %v10596 = vadd.f32 %v10594, %v10595
        %v10597 = vmul.f32 %v10596, 0.00390625
        %v10598 = vadd.f32 %v10528, %v10529
        %v10599 = vadd.f32 %v10598, %v10530
        %v10600 = vadd.f32 %v10599, %v10531
        %v10601 = vadd.f32 %v10600, %v10532
        %v10602 = vadd.f32 %v10601, %v10533
        %v10603 = vadd.f32 %v10602, %v10534
        %v10604 = vadd.f32 %v10603, %v10535
        %v10605 = vadd.f32 %v10604, %v10536
        %v10606 = vadd.f32 %v10605, %v10537
        %v10607 = vadd.f32 %v10606, %v10538
        %v10608 = vadd.f32 %v10607, %v10539
        %v10609 = vadd.f32 %v10608, %v10540
        %v10610 = vadd.f32 %v10609, %v10541
        %v10611 = vadd.f32 %v10610, %v10542
        %v10612 = vadd.f32 %v10611, %v10543
        %v10613 = vadd.f32 %v10612, %v10544
        %v10614 = vadd.f32 %v10613, %v10545
        %v10615 = vadd.f32 %v10614, %v10546
        %v10616 = vadd.f32 %v10615, %v10547
        %v10617 = vadd.f32 %v10616, %v10548
        %v10618 = vadd.f32 %v10617, %v10549
        %v10619 = vadd.f32 %v10618, %v10550
        %v10620 = vadd.f32 %v10619, %v10551
        %v10621 = vadd.f32 %v10620, %v10552
        %v10622 = vadd.f32 %v10621, %v10553
        %v10623 = vadd.f32 %v10622, %v10554
        %v10624 = vadd.f32 %v10623, %v10555
        %v10625 = vadd.f32 %v10624, %v10556
        %v10626 = vadd.f32 %v10625, %v10557
        %v10627 = vadd.f32 %v10626, %v10558
        %v10628 = vadd.f32 %v10627, %v10559
        %v10629 = vrot.slane %v10628, 4
        %v10630 = vadd.f32 %v10628, %v10629
        %v10631 = vrot.slane %v10630, 2
        %v10632 = vadd.f32 %v10630, %v10631
        %v10633 = vrot.slane %v10632, 1
        %v10634 = vadd.f32 %v10632, %v10633
        %v10635 = vmul.f32 %v10634, 0.00390625
        %vm10636 = vcmask 1040384
        %v10637 = vsel %vm10636, %v10597, %v10635
        %10638 = vst [vmem:[%s341] sm:$0x3] %v10637
        %s10639 = sand.u32 %s186, 1
        %s10640 = scalar_lea.sflag [#allocation5], %s10639
        %s10641 = sand.u32 %s186, 1
        %s10642 = smul.addr %s10641, 2
        %s10643 = scalar_lea.vmem [#allocation11], %s10642
        // Predicated region
        $region65: #{tpu_custom_call.1} parent=47 // pred_check
          %p10644 = pneg %p196
        $region66: #{tpu_custom_call.1} parent=47 // pred_check_branch
          %10646 = sbr.rel (%p10644) target = $region68
        $region67: #{tpu_custom_call.1} parent=47 // pred_region
          %s10648 = ssub.s32 32, 32
          %10649 = vsyncadd %s10640, %s10648
          %s10650 = smul.addr %s26, 32
          %s10651 = scalar_lea.hbm %s7, %s10650
          %s10653 = sshll.u32 %s10643, 4
          %s10654 = int_to_ptr.vmem [resolvable:$true] %s10653
          %10656 = dma.vmem_to_hbm [thread:$0]  %s10654, 32, %s10651, %s10640
        $region68: #{tpu_custom_call.1} parent=47 // pred_fallthru
          _
      $region48: #{tpu_custom_call.1} parent=5 // pred_fallthru
        _
      %p10657 = scmp.le.s32.totalorder 2, %s21
      // Predicated region
      $region69: #{tpu_custom_call.1} parent=5 // pred_check
        %p10658 = pneg %p10657
      $region70: #{tpu_custom_call.1} parent=5 // pred_check_branch
        %10660 = sbr.rel (%p10658) target = $region72
      $region71: #{tpu_custom_call.1} parent=5 // pred_region
        %s10661 = ssub.s32 %s21, 2
        // Predicated region
        $region73: #{tpu_custom_call.1} parent=71 // pred_check
          %p10662 = pneg %p202
        $region74: #{tpu_custom_call.1} parent=71 // pred_check_branch
          %10664 = sbr.rel (%p10662) target = $region76
        $region75: #{tpu_custom_call.1} parent=71 // pred_region
          %s10665 = sand.u32 %s187, 1
          %s10666 = scalar_lea.sflag [#allocation5], %s10665
          %s10667 = sand.u32 %s187, 1
          %s10668 = smul.addr %s10667, 2
          %s10669 = scalar_lea.vmem [#allocation11], %s10668
          %10670 = dma.done %s10666, 32
        $region76: #{tpu_custom_call.1} parent=71 // pred_fallthru
          _
      $region72: #{tpu_custom_call.1} parent=5 // pred_fallthru
        _
    $region6: #{tpu_custom_call.1} parent=1 // loop_footer
      %s25 = sadd.s32 1, %s21
    $region7: #{tpu_custom_call.1} parent=1 // loop_footer_branch
      %20 = sbr.rel target = $region3
    $region8: #{tpu_custom_call.1} parent=1 // loop_exit
      _
    %10671 = vsyncpa [#allocation4], 1
    %s10672 = scalar_lea.sflag [#allocation4], 1
    %10673 = vsyncpa %s10672, 1
    %10674 = vsyncpa [#allocation7], 1
    %10675 = vsyncpa [#allocation10], 1
    %10676 = vsyncpa [#allocation5], 1
    %s10677 = scalar_lea.sflag [#allocation5], 1
    %10678 = vsyncpa %s10677, 1

</llo_original>
